<compile_context>
chip_gen: v7x
topology: tpu7x:2x2x1
jax: 0.10.0
libtpu: 0.0.40
codegen_flags: <defaults>
</compile_context>

<pallas_src>
import numpy as np
import jax
import jax.numpy as jnp
from jax.experimental import pallas as pl
from jax.experimental.pallas import tpu as pltpu


# ---------------------------------------------------------------------------
# Fused kernel: conv2..conv4 + maxpool + all dense layers for one batch tile.
# ---------------------------------------------------------------------------
def dqn_kernel(x1t_ref, xb_ref, xs_ref,
               w2a_ref, w2b_ref, b2_ref,
               w3a_ref, w3b_ref, b3_ref,
               w4a_ref, w4b_ref, b4_ref,
               wf1_ref, bf1_ref, wf2_ref, bf2_ref,
               wl1_ref, bl1_ref, wl2_ref, bl2_ref, wl3_ref, bl3_ref,
               wa1a_ref, wa1b_ref, ba1_ref,
               wa2_ref, ba2_ref, wa3_ref, ba3_ref, wa4_ref, ba4_ref,
               ws1a_ref, ws1b_ref, bs1_ref, ws2_ref, bs2_ref,
               out_ref):
    f32, bf16 = jnp.float32, jnp.bfloat16
    tn = xb_ref.shape[0]

    def mm(a, w):
        return jnp.dot(a.astype(bf16), w, preferred_element_type=f32)

    def relu(v):
        return jnp.maximum(v, 0.0)

    def conv_1x2(x3d, wa, wb, b, stride, w_out):
        # Conv2d(Cin, Cout, (1,2), padding=(0,1)) on a (w_in, tn, c_in) tile.
        # Taps are static slices along the leading W axis; the two per-tap
        # (C_in, C_out) matmuls run on merged (w_out*tn, C_in) rows.
        w_in, _, c_in = x3d.shape
        z = jnp.zeros((1, tn, c_in), x3d.dtype)
        xp = jnp.concatenate([z, x3d, z], axis=0)          # (w_in + 2, tn, c_in)
        if stride == 2:
            xr = xp.reshape((w_in + 2) // 2, 2, tn, c_in)
            t0, t1 = xr[:, 0], xr[:, 1]                    # (w_out, tn, c_in)
        else:
            t0, t1 = xp[0:w_out], xp[1:1 + w_out]
        a0 = t0.reshape(w_out * tn, c_in)
        a1 = t1.reshape(w_out * tn, c_in)
        y = mm(a0, wa) + mm(a1, wb) + b                    # (w_out*tn, c_out)
        return y.reshape(w_out, tn, y.shape[-1])

    # conv stack (conv1 was folded into the wrapper glue); no ReLU between convs.
    c1 = x1t_ref[...]                                                   # (30, tn, 60) bf16
    c2 = conv_1x2(c1, w2a_ref[...], w2b_ref[...], b2_ref[...], 2, 16)   # (16, tn, 100)
    c3 = conv_1x2(c2, w3a_ref[...], w3b_ref[...], b3_ref[...], 1, 17)   # (17, tn, 120)
    c4 = conv_1x2(c3, w4a_ref[...], w4b_ref[...], b4_ref[...], 1, 18)   # (18, tn, 160)

    # MaxPool2d((1,2), stride=2): 18 -> 9 along W.
    cr = c4.reshape(9, 2, tn, 160)
    feat = jnp.maximum(cr[:, 0], cr[:, 1])                              # (9, tn, 160)

    # Linear(1440, 600): channel-major flatten (idx = c*9 + w) folded into wf1[w].
    h = mm(feat[0], wf1_ref[0])
    for w in range(1, 9):
        h = h + mm(feat[w], wf1_ref[w])
    h = relu(h + bf1_ref[...])                                          # (tn, 600)
    logits2 = relu(mm(h, wf2_ref[...]) + bf2_ref[...])                  # (tn, 80)

    # linear_relu_stack on x[1]
    h1 = relu(mm(xb_ref[...], wl1_ref[...]) + bl1_ref[...])             # (tn, 27)
    h1 = relu(mm(h1, wl2_ref[...]) + bl2_ref[...])                      # (tn, 20)
    logits1 = relu(mm(h1, wl3_ref[...]) + bl3_ref[...])                 # (tn, 12)

    # aggr on cat((logits1, logits2), axis=1) -> split-weight matmuls
    a = relu(mm(logits1, wa1a_ref[...]) + mm(logits2, wa1b_ref[...]) + ba1_ref[...])
    a = relu(mm(a, wa2_ref[...]) + ba2_ref[...])
    a = relu(mm(a, wa3_ref[...]) + ba3_ref[...])
    a = relu(mm(a, wa4_ref[...]) + ba4_ref[...])                        # (tn, 7)

    # act_select on cat((a, x[2]), axis=1)
    s = relu(mm(a, ws1a_ref[...]) + mm(xs_ref[...], ws1b_ref[...]) + bs1_ref[...])
    out_ref[...] = relu(mm(s, ws2_ref[...]) + bs2_ref[...]).astype(out_ref.dtype)


# ---------------------------------------------------------------------------
# Parameters (PyTorch-style init, f32 master copies).
# ---------------------------------------------------------------------------
def make_params(seed=42):
    keys = jax.random.split(jax.random.PRNGKey(seed), 15)

    def lin(key, fin, fout):
        kw, kb = jax.random.split(key)
        bound = 1.0 / np.sqrt(fin)
        w = jax.random.uniform(kw, (fout, fin), jnp.float32, -bound, bound)
        b = jax.random.uniform(kb, (fout,), jnp.float32, -bound, bound)
        return w, b

    def conv(key, cout, cin, kw_):
        kkw, kkb = jax.random.split(key)
        bound = 1.0 / np.sqrt(cin * kw_)
        w = jax.random.uniform(kkw, (cout, cin, 1, kw_), jnp.float32, -bound, bound)
        b = jax.random.uniform(kkb, (cout,), jnp.float32, -bound, bound)
        return w, b

    return {
        'conv1': conv(keys[0], 60, 1, 1),
        'conv2': conv(keys[1], 100, 60, 2),
        'conv3': conv(keys[2], 120, 100, 2),
        'conv4': conv(keys[3], 160, 120, 2),
        'fc1': lin(keys[4], 1440, 600),
        'fc2': lin(keys[5], 600, 80),
        'l1': lin(keys[6], 27, 27),
        'l2': lin(keys[7], 27, 20),
        'l3': lin(keys[8], 20, 12),
        'a1': lin(keys[9], 92, 60),
        'a2': lin(keys[10], 60, 30),
        'a3': lin(keys[11], 30, 20),
        'a4': lin(keys[12], 20, 7),
        's1': lin(keys[13], 9, 6),
        's2': lin(keys[14], 6, 3),
    }


def _round_up(a, m):
    return (a + m - 1) // m * m


# ---------------------------------------------------------------------------
# Wrapper: layout glue + weight prep + single fused pallas_call.
# ---------------------------------------------------------------------------
@jax.jit
def dqn_t1_forward(params, x0, x1, x2):
    f32, bf16 = jnp.float32, jnp.bfloat16
    N = x0.shape[0]

    TN_MAX = 128
    if N <= TN_MAX:
        n_pad = _round_up(max(N, 1), 16)      # keep bf16 sublane tiling clean
        tn = n_pad
    else:
        n_pad = _round_up(N, TN_MAX)
        tn = TN_MAX
    grid = n_pad // tn
    pad_n = n_pad - N

    # ---- conv1 (1x1 on the single input channel) + layout glue --------------
    w1, b1 = params['conv1']
    k1 = w1[:, 0, 0, 0]                                              # (60,)
    x0p = jnp.pad(x0.reshape(N, 30).astype(f32), ((0, pad_n), (0, 0)))
    c1 = x0p[:, :, None] * k1[None, None, :] + b1[None, None, :]     # (n_pad, 30, 60)
    x1t = jnp.transpose(c1, (1, 0, 2)).astype(bf16)                  # (30, n_pad, 60)

    xb = jnp.pad(x1.reshape(N, -1).astype(f32), ((0, pad_n), (0, 0)))  # (n_pad, 27)
    xs = jnp.pad(x2.reshape(N, -1).astype(f32), ((0, pad_n), (0, 0)))  # (n_pad, 2)

    # ---- weight prep: bf16 matmul weights, f32 (1, F) biases ----------------
    def conv_taps(name):
        w, b = params[name]
        return (w[:, :, 0, 0].T.astype(bf16), w[:, :, 0, 1].T.astype(bf16),
                b.reshape(1, -1).astype(f32))

    w2a, w2b, b2r = conv_taps('conv2')       # (60,100)x2,  (1,100)
    w3a, w3b, b3r = conv_taps('conv3')       # (100,120)x2, (1,120)
    w4a, w4b, b4r = conv_taps('conv4')       # (120,160)x2, (1,160)

    wfc1, bfc1 = params['fc1']               # (600, 1440), (600,)
    # fold PyTorch's channel-major flatten (idx = c*9 + w) into per-width slabs
    wf1 = wfc1.T.reshape(160, 9, 600).transpose(1, 0, 2).astype(bf16)  # (9,160,600)
    bf1r = bfc1.reshape(1, -1).astype(f32)

    def lin_w(name):
        w, b = params[name]
        return w.T.astype(bf16), b.reshape(1, -1).astype(f32)

    wf2m, bf2r = lin_w('fc2')
    wl1m, bl1r = lin_w('l1')
    wl2m, bl2r = lin_w('l2')
    wl3m, bl3r = lin_w('l3')
    wa1, ba1 = params['a1']
    wa1a = wa1[:, :12].T.astype(bf16)        # cat(logits1, logits2) split
    wa1b = wa1[:, 12:].T.astype(bf16)
    ba1r = ba1.reshape(1, -1).astype(f32)
    wa2m, ba2r = lin_w('a2')
    wa3m, ba3r = lin_w('a3')
    wa4m, ba4r = lin_w('a4')
    ws1, bs1 = params['s1']
    ws1a = ws1[:, :7].T.astype(bf16)         # cat(aggr_out, x[2]) split
    ws1b = ws1[:, 7:].T.astype(bf16)
    bs1r = bs1.reshape(1, -1).astype(f32)
    ws2m, bs2r = lin_w('s2')

    const_inputs = [w2a, w2b, b2r, w3a, w3b, b3r, w4a, w4b, b4r,
                    wf1, bf1r, wf2m, bf2r,
                    wl1m, bl1r, wl2m, bl2r, wl3m, bl3r,
                    wa1a, wa1b, ba1r, wa2m, ba2r, wa3m, ba3r, wa4m, ba4r,
                    ws1a, ws1b, bs1r, ws2m, bs2r]

    def const_spec(a):
        nd = a.ndim
        return pl.BlockSpec(a.shape, lambda i, nd=nd: (0,) * nd)

    in_specs = ([pl.BlockSpec((30, tn, 60), lambda i: (0, i, 0)),
                 pl.BlockSpec((tn, 27), lambda i: (i, 0)),
                 pl.BlockSpec((tn, 2), lambda i: (i, 0))]
                + [const_spec(a) for a in const_inputs])

    out_pad = pl.pallas_call(
        dqn_kernel,
        out_shape=jax.ShapeDtypeStruct((n_pad, 3), f32),
        grid=(grid,),
        in_specs=in_specs,
        out_specs=pl.BlockSpec((tn, 3), lambda i: (i, 0)),
        compiler_params=pltpu.CompilerParams(
            dimension_semantics=("parallel",),
            vmem_limit_bytes=48 * 1024 * 1024),
    )(x1t, xb, xs, *const_inputs)
    return out_pad[:N]


# ---------------------------------------------------------------------------
# Pure-JAX f32 reference (mirrors the PyTorch module) for self-validation.
# ---------------------------------------------------------------------------
def reference_forward(params, x0, x1, x2):
    N = x0.shape[0]
    w1, b1 = params['conv1']
    a = x0.reshape(N, 30)[:, :, None] * w1[:, 0, 0, 0][None, None, :] + b1  # (N,30,60)

    def conv1x2(a, wb, stride, pad):
        w, b = wb
        n, W, _ = a.shape
        co, _, _, kw = w.shape
        ap = jnp.pad(a, ((0, 0), (pad, pad), (0, 0)))
        w_out = (W + 2 * pad - kw) // stride + 1
        out = jnp.broadcast_to(b, (n, w_out, co)).astype(jnp.float32)
        for j in range(kw):
            taps = ap[:, j::stride, :][:, :w_out, :]
            out = out + jnp.einsum('nwc,oc->nwo', taps, w[:, :, 0, j])
        return out

    a = conv1x2(a, params['conv2'], 2, 1)            # (N,16,100)
    a = conv1x2(a, params['conv3'], 1, 1)            # (N,17,120)
    a = conv1x2(a, params['conv4'], 1, 1)            # (N,18,160)
    a = jnp.maximum(a[:, 0::2, :], a[:, 1::2, :])    # (N,9,160)
    feat = a.transpose(0, 2, 1).reshape(N, 1440)     # channel-major flatten

    def lin(h, name):
        w, b = params[name]
        return h @ w.T + b

    relu = jax.nn.relu
    h = relu(lin(feat, 'fc1'))
    logits2 = relu(lin(h, 'fc2'))
    h1 = relu(lin(x1.reshape(N, -1), 'l1'))
    h1 = relu(lin(h1, 'l2'))
    logits1 = relu(lin(h1, 'l3'))
    c = jnp.concatenate([logits1, logits2], axis=1)
    g = relu(lin(c, 'a1'))
    g = relu(lin(g, 'a2'))
    g = relu(lin(g, 'a3'))
    g = relu(lin(g, 'a4'))
    c2 = jnp.concatenate([g, x2.reshape(N, -1)], axis=1)
    s = relu(lin(c2, 's1'))
    return relu(lin(s, 's2'))


if __name__ == "__main__":
    params = make_params(seed=42)
    k0, ka, kb = jax.random.split(jax.random.PRNGKey(0), 3)
    # x is a tuple of three tensors: image-like (N,1,1,30), flat (N,27), (N,2)
    x0 = jax.random.normal(k0, (2, 1, 1, 30), jnp.float32)
    x1 = jax.random.normal(ka, (2, 27), jnp.float32)
    x2 = jax.random.normal(kb, (2, 2), jnp.float32)

    out = dqn_t1_forward(params, x0, x1, x2)
    jax.block_until_ready(out)
    assert out.shape == (2, 3) and out.dtype == jnp.float32

    ref = reference_forward(params, x0, x1, x2)
    err = float(jnp.max(jnp.abs(out - ref)))
    assert err < 1e-1, f"max abs error vs reference: {err}"
    print("KERNEL_OK")
</pallas_src>

<mosaic_0001>
module attributes {stable_mosaic.version = 11 : i64} {
  func.func @dqn_kernel(%arg0: i32, %arg1: memref<30x16x60xbf16, #tpu.memory_space<vmem>>, %arg2: memref<16x27xf32, #tpu.memory_space<vmem>>, %arg3: memref<16x2xf32, #tpu.memory_space<vmem>>, %arg4: memref<60x100xbf16, #tpu.memory_space<vmem>>, %arg5: memref<60x100xbf16, #tpu.memory_space<vmem>>, %arg6: memref<1x100xf32, #tpu.memory_space<vmem>>, %arg7: memref<100x120xbf16, #tpu.memory_space<vmem>>, %arg8: memref<100x120xbf16, #tpu.memory_space<vmem>>, %arg9: memref<1x120xf32, #tpu.memory_space<vmem>>, %arg10: memref<120x160xbf16, #tpu.memory_space<vmem>>, %arg11: memref<120x160xbf16, #tpu.memory_space<vmem>>, %arg12: memref<1x160xf32, #tpu.memory_space<vmem>>, %arg13: memref<9x160x600xbf16, #tpu.memory_space<vmem>>, %arg14: memref<1x600xf32, #tpu.memory_space<vmem>>, %arg15: memref<600x80xbf16, #tpu.memory_space<vmem>>, %arg16: memref<1x80xf32, #tpu.memory_space<vmem>>, %arg17: memref<27x27xbf16, #tpu.memory_space<vmem>>, %arg18: memref<1x27xf32, #tpu.memory_space<vmem>>, %arg19: memref<27x20xbf16, #tpu.memory_space<vmem>>, %arg20: memref<1x20xf32, #tpu.memory_space<vmem>>, %arg21: memref<20x12xbf16, #tpu.memory_space<vmem>>, %arg22: memref<1x12xf32, #tpu.memory_space<vmem>>, %arg23: memref<12x60xbf16, #tpu.memory_space<vmem>>, %arg24: memref<80x60xbf16, #tpu.memory_space<vmem>>, %arg25: memref<1x60xf32, #tpu.memory_space<vmem>>, %arg26: memref<60x30xbf16, #tpu.memory_space<vmem>>, %arg27: memref<1x30xf32, #tpu.memory_space<vmem>>, %arg28: memref<30x20xbf16, #tpu.memory_space<vmem>>, %arg29: memref<1x20xf32, #tpu.memory_space<vmem>>, %arg30: memref<20x7xbf16, #tpu.memory_space<vmem>>, %arg31: memref<1x7xf32, #tpu.memory_space<vmem>>, %arg32: memref<7x6xbf16, #tpu.memory_space<vmem>>, %arg33: memref<2x6xbf16, #tpu.memory_space<vmem>>, %arg34: memref<1x6xf32, #tpu.memory_space<vmem>>, %arg35: memref<6x3xbf16, #tpu.memory_space<vmem>>, %arg36: memref<1x3xf32, #tpu.memory_space<vmem>>, %arg37: memref<16x3xf32, #tpu.memory_space<vmem>>) attributes {dimension_semantics = [#tpu.dimension_semantics<parallel>], iteration_bounds = array<i64: 1>, scalar_prefetch = 0 : i64, scratch_operands = 0 : i64, tpu.core_type = #tpu.core_type<tc>, window_params = [{transform_indices = @transform_0, window_bounds = array<i64: 30, 16, 60>}, {transform_indices = @transform_1, window_bounds = array<i64: 16, 27>}, {transform_indices = @transform_2, window_bounds = array<i64: 16, 2>}, {pipeline_mode = #tpu.pipeline_mode<synchronous>, transform_indices = @transform_3, window_bounds = array<i64: 60, 100>}, {pipeline_mode = #tpu.pipeline_mode<synchronous>, transform_indices = @transform_4, window_bounds = array<i64: 60, 100>}, {pipeline_mode = #tpu.pipeline_mode<synchronous>, transform_indices = @transform_5, window_bounds = array<i64: 1, 100>}, {pipeline_mode = #tpu.pipeline_mode<synchronous>, transform_indices = @transform_6, window_bounds = array<i64: 100, 120>}, {pipeline_mode = #tpu.pipeline_mode<synchronous>, transform_indices = @transform_7, window_bounds = array<i64: 100, 120>}, {pipeline_mode = #tpu.pipeline_mode<synchronous>, transform_indices = @transform_8, window_bounds = array<i64: 1, 120>}, {pipeline_mode = #tpu.pipeline_mode<synchronous>, transform_indices = @transform_9, window_bounds = array<i64: 120, 160>}, {pipeline_mode = #tpu.pipeline_mode<synchronous>, transform_indices = @transform_10, window_bounds = array<i64: 120, 160>}, {pipeline_mode = #tpu.pipeline_mode<synchronous>, transform_indices = @transform_11, window_bounds = array<i64: 1, 160>}, {pipeline_mode = #tpu.pipeline_mode<synchronous>, transform_indices = @transform_12, window_bounds = array<i64: 9, 160, 600>}, {pipeline_mode = #tpu.pipeline_mode<synchronous>, transform_indices = @transform_13, window_bounds = array<i64: 1, 600>}, {pipeline_mode = #tpu.pipeline_mode<synchronous>, transform_indices = @transform_14, window_bounds = array<i64: 600, 80>}, {pipeline_mode = #tpu.pipeline_mode<synchronous>, transform_indices = @transform_15, window_bounds = array<i64: 1, 80>}, {pipeline_mode = #tpu.pipeline_mode<synchronous>, transform_indices = @transform_16, window_bounds = array<i64: 27, 27>}, {pipeline_mode = #tpu.pipeline_mode<synchronous>, transform_indices = @transform_17, window_bounds = array<i64: 1, 27>}, {pipeline_mode = #tpu.pipeline_mode<synchronous>, transform_indices = @transform_18, window_bounds = array<i64: 27, 20>}, {pipeline_mode = #tpu.pipeline_mode<synchronous>, transform_indices = @transform_19, window_bounds = array<i64: 1, 20>}, {pipeline_mode = #tpu.pipeline_mode<synchronous>, transform_indices = @transform_20, window_bounds = array<i64: 20, 12>}, {pipeline_mode = #tpu.pipeline_mode<synchronous>, transform_indices = @transform_21, window_bounds = array<i64: 1, 12>}, {pipeline_mode = #tpu.pipeline_mode<synchronous>, transform_indices = @transform_22, window_bounds = array<i64: 12, 60>}, {pipeline_mode = #tpu.pipeline_mode<synchronous>, transform_indices = @transform_23, window_bounds = array<i64: 80, 60>}, {pipeline_mode = #tpu.pipeline_mode<synchronous>, transform_indices = @transform_24, window_bounds = array<i64: 1, 60>}, {pipeline_mode = #tpu.pipeline_mode<synchronous>, transform_indices = @transform_25, window_bounds = array<i64: 60, 30>}, {pipeline_mode = #tpu.pipeline_mode<synchronous>, transform_indices = @transform_26, window_bounds = array<i64: 1, 30>}, {pipeline_mode = #tpu.pipeline_mode<synchronous>, transform_indices = @transform_27, window_bounds = array<i64: 30, 20>}, {pipeline_mode = #tpu.pipeline_mode<synchronous>, transform_indices = @transform_28, window_bounds = array<i64: 1, 20>}, {pipeline_mode = #tpu.pipeline_mode<synchronous>, transform_indices = @transform_29, window_bounds = array<i64: 20, 7>}, {pipeline_mode = #tpu.pipeline_mode<synchronous>, transform_indices = @transform_30, window_bounds = array<i64: 1, 7>}, {pipeline_mode = #tpu.pipeline_mode<synchronous>, transform_indices = @transform_31, window_bounds = array<i64: 7, 6>}, {pipeline_mode = #tpu.pipeline_mode<synchronous>, transform_indices = @transform_32, window_bounds = array<i64: 2, 6>}, {pipeline_mode = #tpu.pipeline_mode<synchronous>, transform_indices = @transform_33, window_bounds = array<i64: 1, 6>}, {pipeline_mode = #tpu.pipeline_mode<synchronous>, transform_indices = @transform_34, window_bounds = array<i64: 6, 3>}, {pipeline_mode = #tpu.pipeline_mode<synchronous>, transform_indices = @transform_35, window_bounds = array<i64: 1, 3>}, {transform_indices = @transform_36, window_bounds = array<i64: 16, 3>}]} {
    %c0 = arith.constant 0 : index
    %c0_0 = arith.constant 0 : index
    %c0_1 = arith.constant 0 : index
    %0 = vector.load %arg1[%c0, %c0_0, %c0_1] : memref<30x16x60xbf16, #tpu.memory_space<vmem>>, vector<30x16x60xbf16>
    %c0_2 = arith.constant 0 : index
    %c0_3 = arith.constant 0 : index
    %1 = vector.load %arg4[%c0_2, %c0_3] : memref<60x100xbf16, #tpu.memory_space<vmem>>, vector<60x100xbf16>
    %c0_4 = arith.constant 0 : index
    %c0_5 = arith.constant 0 : index
    %2 = vector.load %arg5[%c0_4, %c0_5] : memref<60x100xbf16, #tpu.memory_space<vmem>>, vector<60x100xbf16>
    %c0_6 = arith.constant 0 : index
    %c0_7 = arith.constant 0 : index
    %3 = vector.load %arg6[%c0_6, %c0_7] : memref<1x100xf32, #tpu.memory_space<vmem>>, vector<1x100xf32>
    %cst = arith.constant 0.000000e+00 : bf16
    %4 = vector.broadcast %cst : bf16 to vector<1x16x60xbf16>
    %5 = tpu.concatenate %4, %0, %4 in 0 : vector<1x16x60xbf16>, vector<30x16x60xbf16>, vector<1x16x60xbf16> -> vector<32x16x60xbf16>
    %6 = vector.shape_cast %5 : vector<32x16x60xbf16> to vector<16x2x16x60xbf16>
    %7 = vector.extract_strided_slice %6 {offsets = [0, 0, 0, 0], sizes = [16, 1, 16, 60], strides = [1, 1, 1, 1]} : vector<16x2x16x60xbf16> to vector<16x1x16x60xbf16>
    %8 = vector.shape_cast %7 : vector<16x1x16x60xbf16> to vector<16x16x60xbf16>
    %9 = vector.extract_strided_slice %6 {offsets = [0, 1, 0, 0], sizes = [16, 1, 16, 60], strides = [1, 1, 1, 1]} : vector<16x2x16x60xbf16> to vector<16x1x16x60xbf16>
    %10 = vector.shape_cast %9 : vector<16x1x16x60xbf16> to vector<16x16x60xbf16>
    %11 = vector.shape_cast %8 : vector<16x16x60xbf16> to vector<256x60xbf16>
    %12 = vector.shape_cast %10 : vector<16x16x60xbf16> to vector<256x60xbf16>
    %cst_8 = arith.constant dense<0.000000e+00> : vector<256x100xf32>
    %13 = tpu.matmul %11, %1, %cst_8 {dimension_numbers = #tpu.dot_dimension_numbers<[1], [0], [0], [1], [0, 0, 1, 1], [], []>} : vector<256x60xbf16>, vector<60x100xbf16>, vector<256x100xf32> -> vector<256x100xf32>
    %cst_9 = arith.constant dense<0.000000e+00> : vector<256x100xf32>
    %14 = tpu.matmul %12, %2, %cst_9 {dimension_numbers = #tpu.dot_dimension_numbers<[1], [0], [0], [1], [0, 0, 1, 1], [], []>} : vector<256x60xbf16>, vector<60x100xbf16>, vector<256x100xf32> -> vector<256x100xf32>
    %15 = arith.addf %13, %14 : vector<256x100xf32>
    %16 = vector.broadcast %3 : vector<1x100xf32> to vector<256x100xf32>
    %17 = arith.addf %15, %16 : vector<256x100xf32>
    %18 = vector.shape_cast %17 : vector<256x100xf32> to vector<16x16x100xf32>
    %c0_10 = arith.constant 0 : index
    %c0_11 = arith.constant 0 : index
    %19 = vector.load %arg7[%c0_10, %c0_11] : memref<100x120xbf16, #tpu.memory_space<vmem>>, vector<100x120xbf16>
    %c0_12 = arith.constant 0 : index
    %c0_13 = arith.constant 0 : index
    %20 = vector.load %arg8[%c0_12, %c0_13] : memref<100x120xbf16, #tpu.memory_space<vmem>>, vector<100x120xbf16>
    %c0_14 = arith.constant 0 : index
    %c0_15 = arith.constant 0 : index
    %21 = vector.load %arg9[%c0_14, %c0_15] : memref<1x120xf32, #tpu.memory_space<vmem>>, vector<1x120xf32>
    %cst_16 = arith.constant 0.000000e+00 : f32
    %22 = vector.broadcast %cst_16 : f32 to vector<1x16x100xf32>
    %23 = tpu.concatenate %22, %18, %22 in 0 : vector<1x16x100xf32>, vector<16x16x100xf32>, vector<1x16x100xf32> -> vector<18x16x100xf32>
    %24 = vector.extract_strided_slice %23 {offsets = [0, 0, 0], sizes = [17, 16, 100], strides = [1, 1, 1]} : vector<18x16x100xf32> to vector<17x16x100xf32>
    %25 = vector.extract_strided_slice %23 {offsets = [1, 0, 0], sizes = [17, 16, 100], strides = [1, 1, 1]} : vector<18x16x100xf32> to vector<17x16x100xf32>
    %26 = vector.shape_cast %24 : vector<17x16x100xf32> to vector<272x100xf32>
    %27 = vector.shape_cast %25 : vector<17x16x100xf32> to vector<272x100xf32>
    %28 = arith.truncf %26 : vector<272x100xf32> to vector<272x100xbf16>
    %cst_17 = arith.constant dense<0.000000e+00> : vector<272x120xf32>
    %29 = tpu.matmul %28, %19, %cst_17 {dimension_numbers = #tpu.dot_dimension_numbers<[1], [0], [0], [1], [0, 0, 1, 1], [], []>} : vector<272x100xbf16>, vector<100x120xbf16>, vector<272x120xf32> -> vector<272x120xf32>
    %30 = arith.truncf %27 : vector<272x100xf32> to vector<272x100xbf16>
    %cst_18 = arith.constant dense<0.000000e+00> : vector<272x120xf32>
    %31 = tpu.matmul %30, %20, %cst_18 {dimension_numbers = #tpu.dot_dimension_numbers<[1], [0], [0], [1], [0, 0, 1, 1], [], []>} : vector<272x100xbf16>, vector<100x120xbf16>, vector<272x120xf32> -> vector<272x120xf32>
    %32 = arith.addf %29, %31 : vector<272x120xf32>
    %33 = vector.broadcast %21 : vector<1x120xf32> to vector<272x120xf32>
    %34 = arith.addf %32, %33 : vector<272x120xf32>
    %35 = vector.shape_cast %34 : vector<272x120xf32> to vector<17x16x120xf32>
    %c0_19 = arith.constant 0 : index
    %c0_20 = arith.constant 0 : index
    %36 = vector.load %arg10[%c0_19, %c0_20] : memref<120x160xbf16, #tpu.memory_space<vmem>>, vector<120x160xbf16>
    %c0_21 = arith.constant 0 : index
    %c0_22 = arith.constant 0 : index
    %37 = vector.load %arg11[%c0_21, %c0_22] : memref<120x160xbf16, #tpu.memory_space<vmem>>, vector<120x160xbf16>
    %c0_23 = arith.constant 0 : index
    %c0_24 = arith.constant 0 : index
    %38 = vector.load %arg12[%c0_23, %c0_24] : memref<1x160xf32, #tpu.memory_space<vmem>>, vector<1x160xf32>
    %cst_25 = arith.constant 0.000000e+00 : f32
    %39 = vector.broadcast %cst_25 : f32 to vector<1x16x120xf32>
    %40 = tpu.concatenate %39, %35, %39 in 0 : vector<1x16x120xf32>, vector<17x16x120xf32>, vector<1x16x120xf32> -> vector<19x16x120xf32>
    %41 = vector.extract_strided_slice %40 {offsets = [0, 0, 0], sizes = [18, 16, 120], strides = [1, 1, 1]} : vector<19x16x120xf32> to vector<18x16x120xf32>
    %42 = vector.extract_strided_slice %40 {offsets = [1, 0, 0], sizes = [18, 16, 120], strides = [1, 1, 1]} : vector<19x16x120xf32> to vector<18x16x120xf32>
    %43 = vector.shape_cast %41 : vector<18x16x120xf32> to vector<288x120xf32>
    %44 = vector.shape_cast %42 : vector<18x16x120xf32> to vector<288x120xf32>
    %45 = arith.truncf %43 : vector<288x120xf32> to vector<288x120xbf16>
    %cst_26 = arith.constant dense<0.000000e+00> : vector<288x160xf32>
    %46 = tpu.matmul %45, %36, %cst_26 {dimension_numbers = #tpu.dot_dimension_numbers<[1], [0], [0], [1], [0, 0, 1, 1], [], []>} : vector<288x120xbf16>, vector<120x160xbf16>, vector<288x160xf32> -> vector<288x160xf32>
    %47 = arith.truncf %44 : vector<288x120xf32> to vector<288x120xbf16>
    %cst_27 = arith.constant dense<0.000000e+00> : vector<288x160xf32>
    %48 = tpu.matmul %47, %37, %cst_27 {dimension_numbers = #tpu.dot_dimension_numbers<[1], [0], [0], [1], [0, 0, 1, 1], [], []>} : vector<288x120xbf16>, vector<120x160xbf16>, vector<288x160xf32> -> vector<288x160xf32>
    %49 = arith.addf %46, %48 : vector<288x160xf32>
    %50 = vector.broadcast %38 : vector<1x160xf32> to vector<288x160xf32>
    %51 = arith.addf %49, %50 : vector<288x160xf32>
    %52 = vector.shape_cast %51 : vector<288x160xf32> to vector<18x16x160xf32>
    %53 = vector.shape_cast %52 : vector<18x16x160xf32> to vector<9x2x16x160xf32>
    %54 = vector.extract_strided_slice %53 {offsets = [0, 0, 0, 0], sizes = [9, 1, 16, 160], strides = [1, 1, 1, 1]} : vector<9x2x16x160xf32> to vector<9x1x16x160xf32>
    %55 = vector.shape_cast %54 : vector<9x1x16x160xf32> to vector<9x16x160xf32>
    %56 = vector.extract_strided_slice %53 {offsets = [0, 1, 0, 0], sizes = [9, 1, 16, 160], strides = [1, 1, 1, 1]} : vector<9x2x16x160xf32> to vector<9x1x16x160xf32>
    %57 = vector.shape_cast %56 : vector<9x1x16x160xf32> to vector<9x16x160xf32>
    %58 = arith.maximumf %55, %57 : vector<9x16x160xf32>
    %59 = vector.extract_strided_slice %58 {offsets = [0, 0, 0], sizes = [1, 16, 160], strides = [1, 1, 1]} : vector<9x16x160xf32> to vector<1x16x160xf32>
    %60 = vector.shape_cast %59 : vector<1x16x160xf32> to vector<16x160xf32>
    %c0_28 = arith.constant 0 : index
    %c0_29 = arith.constant 0 : index
    %c0_30 = arith.constant 0 : index
    %61 = vector.load %arg13[%c0_28, %c0_29, %c0_30] : memref<9x160x600xbf16, #tpu.memory_space<vmem>>, vector<1x160x600xbf16>
    %62 = vector.shape_cast %61 : vector<1x160x600xbf16> to vector<160x600xbf16>
    %63 = arith.truncf %60 : vector<16x160xf32> to vector<16x160xbf16>
    %cst_31 = arith.constant dense<0.000000e+00> : vector<16x600xf32>
    %64 = tpu.matmul %63, %62, %cst_31 {dimension_numbers = #tpu.dot_dimension_numbers<[1], [0], [0], [1], [0, 0, 1, 1], [], []>} : vector<16x160xbf16>, vector<160x600xbf16>, vector<16x600xf32> -> vector<16x600xf32>
    %65 = vector.extract_strided_slice %58 {offsets = [1, 0, 0], sizes = [1, 16, 160], strides = [1, 1, 1]} : vector<9x16x160xf32> to vector<1x16x160xf32>
    %66 = vector.shape_cast %65 : vector<1x16x160xf32> to vector<16x160xf32>
    %c1 = arith.constant 1 : index
    %c0_32 = arith.constant 0 : index
    %c0_33 = arith.constant 0 : index
    %67 = vector.load %arg13[%c1, %c0_32, %c0_33] : memref<9x160x600xbf16, #tpu.memory_space<vmem>>, vector<1x160x600xbf16>
    %68 = vector.shape_cast %67 : vector<1x160x600xbf16> to vector<160x600xbf16>
    %69 = arith.truncf %66 : vector<16x160xf32> to vector<16x160xbf16>
    %cst_34 = arith.constant dense<0.000000e+00> : vector<16x600xf32>
    %70 = tpu.matmul %69, %68, %cst_34 {dimension_numbers = #tpu.dot_dimension_numbers<[1], [0], [0], [1], [0, 0, 1, 1], [], []>} : vector<16x160xbf16>, vector<160x600xbf16>, vector<16x600xf32> -> vector<16x600xf32>
    %71 = arith.addf %64, %70 : vector<16x600xf32>
    %72 = vector.extract_strided_slice %58 {offsets = [2, 0, 0], sizes = [1, 16, 160], strides = [1, 1, 1]} : vector<9x16x160xf32> to vector<1x16x160xf32>
    %73 = vector.shape_cast %72 : vector<1x16x160xf32> to vector<16x160xf32>
    %c2 = arith.constant 2 : index
    %c0_35 = arith.constant 0 : index
    %c0_36 = arith.constant 0 : index
    %74 = vector.load %arg13[%c2, %c0_35, %c0_36] : memref<9x160x600xbf16, #tpu.memory_space<vmem>>, vector<1x160x600xbf16>
    %75 = vector.shape_cast %74 : vector<1x160x600xbf16> to vector<160x600xbf16>
    %76 = arith.truncf %73 : vector<16x160xf32> to vector<16x160xbf16>
    %cst_37 = arith.constant dense<0.000000e+00> : vector<16x600xf32>
    %77 = tpu.matmul %76, %75, %cst_37 {dimension_numbers = #tpu.dot_dimension_numbers<[1], [0], [0], [1], [0, 0, 1, 1], [], []>} : vector<16x160xbf16>, vector<160x600xbf16>, vector<16x600xf32> -> vector<16x600xf32>
    %78 = arith.addf %71, %77 : vector<16x600xf32>
    %79 = vector.extract_strided_slice %58 {offsets = [3, 0, 0], sizes = [1, 16, 160], strides = [1, 1, 1]} : vector<9x16x160xf32> to vector<1x16x160xf32>
    %80 = vector.shape_cast %79 : vector<1x16x160xf32> to vector<16x160xf32>
    %c3 = arith.constant 3 : index
    %c0_38 = arith.constant 0 : index
    %c0_39 = arith.constant 0 : index
    %81 = vector.load %arg13[%c3, %c0_38, %c0_39] : memref<9x160x600xbf16, #tpu.memory_space<vmem>>, vector<1x160x600xbf16>
    %82 = vector.shape_cast %81 : vector<1x160x600xbf16> to vector<160x600xbf16>
    %83 = arith.truncf %80 : vector<16x160xf32> to vector<16x160xbf16>
    %cst_40 = arith.constant dense<0.000000e+00> : vector<16x600xf32>
    %84 = tpu.matmul %83, %82, %cst_40 {dimension_numbers = #tpu.dot_dimension_numbers<[1], [0], [0], [1], [0, 0, 1, 1], [], []>} : vector<16x160xbf16>, vector<160x600xbf16>, vector<16x600xf32> -> vector<16x600xf32>
    %85 = arith.addf %78, %84 : vector<16x600xf32>
    %86 = vector.extract_strided_slice %58 {offsets = [4, 0, 0], sizes = [1, 16, 160], strides = [1, 1, 1]} : vector<9x16x160xf32> to vector<1x16x160xf32>
    %87 = vector.shape_cast %86 : vector<1x16x160xf32> to vector<16x160xf32>
    %c4 = arith.constant 4 : index
    %c0_41 = arith.constant 0 : index
    %c0_42 = arith.constant 0 : index
    %88 = vector.load %arg13[%c4, %c0_41, %c0_42] : memref<9x160x600xbf16, #tpu.memory_space<vmem>>, vector<1x160x600xbf16>
    %89 = vector.shape_cast %88 : vector<1x160x600xbf16> to vector<160x600xbf16>
    %90 = arith.truncf %87 : vector<16x160xf32> to vector<16x160xbf16>
    %cst_43 = arith.constant dense<0.000000e+00> : vector<16x600xf32>
    %91 = tpu.matmul %90, %89, %cst_43 {dimension_numbers = #tpu.dot_dimension_numbers<[1], [0], [0], [1], [0, 0, 1, 1], [], []>} : vector<16x160xbf16>, vector<160x600xbf16>, vector<16x600xf32> -> vector<16x600xf32>
    %92 = arith.addf %85, %91 : vector<16x600xf32>
    %93 = vector.extract_strided_slice %58 {offsets = [5, 0, 0], sizes = [1, 16, 160], strides = [1, 1, 1]} : vector<9x16x160xf32> to vector<1x16x160xf32>
    %94 = vector.shape_cast %93 : vector<1x16x160xf32> to vector<16x160xf32>
    %c5 = arith.constant 5 : index
    %c0_44 = arith.constant 0 : index
    %c0_45 = arith.constant 0 : index
    %95 = vector.load %arg13[%c5, %c0_44, %c0_45] : memref<9x160x600xbf16, #tpu.memory_space<vmem>>, vector<1x160x600xbf16>
    %96 = vector.shape_cast %95 : vector<1x160x600xbf16> to vector<160x600xbf16>
    %97 = arith.truncf %94 : vector<16x160xf32> to vector<16x160xbf16>
    %cst_46 = arith.constant dense<0.000000e+00> : vector<16x600xf32>
    %98 = tpu.matmul %97, %96, %cst_46 {dimension_numbers = #tpu.dot_dimension_numbers<[1], [0], [0], [1], [0, 0, 1, 1], [], []>} : vector<16x160xbf16>, vector<160x600xbf16>, vector<16x600xf32> -> vector<16x600xf32>
    %99 = arith.addf %92, %98 : vector<16x600xf32>
    %100 = vector.extract_strided_slice %58 {offsets = [6, 0, 0], sizes = [1, 16, 160], strides = [1, 1, 1]} : vector<9x16x160xf32> to vector<1x16x160xf32>
    %101 = vector.shape_cast %100 : vector<1x16x160xf32> to vector<16x160xf32>
    %c6 = arith.constant 6 : index
    %c0_47 = arith.constant 0 : index
    %c0_48 = arith.constant 0 : index
    %102 = vector.load %arg13[%c6, %c0_47, %c0_48] : memref<9x160x600xbf16, #tpu.memory_space<vmem>>, vector<1x160x600xbf16>
    %103 = vector.shape_cast %102 : vector<1x160x600xbf16> to vector<160x600xbf16>
    %104 = arith.truncf %101 : vector<16x160xf32> to vector<16x160xbf16>
    %cst_49 = arith.constant dense<0.000000e+00> : vector<16x600xf32>
    %105 = tpu.matmul %104, %103, %cst_49 {dimension_numbers = #tpu.dot_dimension_numbers<[1], [0], [0], [1], [0, 0, 1, 1], [], []>} : vector<16x160xbf16>, vector<160x600xbf16>, vector<16x600xf32> -> vector<16x600xf32>
    %106 = arith.addf %99, %105 : vector<16x600xf32>
    %107 = vector.extract_strided_slice %58 {offsets = [7, 0, 0], sizes = [1, 16, 160], strides = [1, 1, 1]} : vector<9x16x160xf32> to vector<1x16x160xf32>
    %108 = vector.shape_cast %107 : vector<1x16x160xf32> to vector<16x160xf32>
    %c7 = arith.constant 7 : index
    %c0_50 = arith.constant 0 : index
    %c0_51 = arith.constant 0 : index
    %109 = vector.load %arg13[%c7, %c0_50, %c0_51] : memref<9x160x600xbf16, #tpu.memory_space<vmem>>, vector<1x160x600xbf16>
    %110 = vector.shape_cast %109 : vector<1x160x600xbf16> to vector<160x600xbf16>
    %111 = arith.truncf %108 : vector<16x160xf32> to vector<16x160xbf16>
    %cst_52 = arith.constant dense<0.000000e+00> : vector<16x600xf32>
    %112 = tpu.matmul %111, %110, %cst_52 {dimension_numbers = #tpu.dot_dimension_numbers<[1], [0], [0], [1], [0, 0, 1, 1], [], []>} : vector<16x160xbf16>, vector<160x600xbf16>, vector<16x600xf32> -> vector<16x600xf32>
    %113 = arith.addf %106, %112 : vector<16x600xf32>
    %114 = vector.extract_strided_slice %58 {offsets = [8, 0, 0], sizes = [1, 16, 160], strides = [1, 1, 1]} : vector<9x16x160xf32> to vector<1x16x160xf32>
    %115 = vector.shape_cast %114 : vector<1x16x160xf32> to vector<16x160xf32>
    %c8 = arith.constant 8 : index
    %c0_53 = arith.constant 0 : index
    %c0_54 = arith.constant 0 : index
    %116 = vector.load %arg13[%c8, %c0_53, %c0_54] : memref<9x160x600xbf16, #tpu.memory_space<vmem>>, vector<1x160x600xbf16>
    %117 = vector.shape_cast %116 : vector<1x160x600xbf16> to vector<160x600xbf16>
    %118 = arith.truncf %115 : vector<16x160xf32> to vector<16x160xbf16>
    %cst_55 = arith.constant dense<0.000000e+00> : vector<16x600xf32>
    %119 = tpu.matmul %118, %117, %cst_55 {dimension_numbers = #tpu.dot_dimension_numbers<[1], [0], [0], [1], [0, 0, 1, 1], [], []>} : vector<16x160xbf16>, vector<160x600xbf16>, vector<16x600xf32> -> vector<16x600xf32>
    %120 = arith.addf %113, %119 : vector<16x600xf32>
    %c0_56 = arith.constant 0 : index
    %c0_57 = arith.constant 0 : index
    %121 = vector.load %arg14[%c0_56, %c0_57] : memref<1x600xf32, #tpu.memory_space<vmem>>, vector<1x600xf32>
    %122 = vector.broadcast %121 : vector<1x600xf32> to vector<16x600xf32>
    %123 = arith.addf %120, %122 : vector<16x600xf32>
    %cst_58 = arith.constant 0.000000e+00 : f32
    %124 = vector.broadcast %cst_58 : f32 to vector<16x600xf32>
    %125 = arith.maximumf %123, %124 : vector<16x600xf32>
    %c0_59 = arith.constant 0 : index
    %c0_60 = arith.constant 0 : index
    %126 = vector.load %arg15[%c0_59, %c0_60] : memref<600x80xbf16, #tpu.memory_space<vmem>>, vector<600x80xbf16>
    %127 = arith.truncf %125 : vector<16x600xf32> to vector<16x600xbf16>
    %cst_61 = arith.constant dense<0.000000e+00> : vector<16x80xf32>
    %128 = tpu.matmul %127, %126, %cst_61 {dimension_numbers = #tpu.dot_dimension_numbers<[1], [0], [0], [1], [0, 0, 1, 1], [], []>} : vector<16x600xbf16>, vector<600x80xbf16>, vector<16x80xf32> -> vector<16x80xf32>
    %c0_62 = arith.constant 0 : index
    %c0_63 = arith.constant 0 : index
    %129 = vector.load %arg16[%c0_62, %c0_63] : memref<1x80xf32, #tpu.memory_space<vmem>>, vector<1x80xf32>
    %130 = vector.broadcast %129 : vector<1x80xf32> to vector<16x80xf32>
    %131 = arith.addf %128, %130 : vector<16x80xf32>
    %cst_64 = arith.constant 0.000000e+00 : f32
    %132 = vector.broadcast %cst_64 : f32 to vector<16x80xf32>
    %133 = arith.maximumf %131, %132 : vector<16x80xf32>
    %c0_65 = arith.constant 0 : index
    %c0_66 = arith.constant 0 : index
    %134 = vector.load %arg2[%c0_65, %c0_66] : memref<16x27xf32, #tpu.memory_space<vmem>>, vector<16x27xf32>
    %c0_67 = arith.constant 0 : index
    %c0_68 = arith.constant 0 : index
    %135 = vector.load %arg17[%c0_67, %c0_68] : memref<27x27xbf16, #tpu.memory_space<vmem>>, vector<27x27xbf16>
    %136 = arith.truncf %134 : vector<16x27xf32> to vector<16x27xbf16>
    %cst_69 = arith.constant dense<0.000000e+00> : vector<16x27xf32>
    %137 = tpu.matmul %136, %135, %cst_69 {dimension_numbers = #tpu.dot_dimension_numbers<[1], [0], [0], [1], [0, 0, 1, 1], [], []>} : vector<16x27xbf16>, vector<27x27xbf16>, vector<16x27xf32> -> vector<16x27xf32>
    %c0_70 = arith.constant 0 : index
    %c0_71 = arith.constant 0 : index
    %138 = vector.load %arg18[%c0_70, %c0_71] : memref<1x27xf32, #tpu.memory_space<vmem>>, vector<1x27xf32>
    %139 = vector.broadcast %138 : vector<1x27xf32> to vector<16x27xf32>
    %140 = arith.addf %137, %139 : vector<16x27xf32>
    %cst_72 = arith.constant 0.000000e+00 : f32
    %141 = vector.broadcast %cst_72 : f32 to vector<16x27xf32>
    %142 = arith.maximumf %140, %141 : vector<16x27xf32>
    %c0_73 = arith.constant 0 : index
    %c0_74 = arith.constant 0 : index
    %143 = vector.load %arg19[%c0_73, %c0_74] : memref<27x20xbf16, #tpu.memory_space<vmem>>, vector<27x20xbf16>
    %144 = arith.truncf %142 : vector<16x27xf32> to vector<16x27xbf16>
    %cst_75 = arith.constant dense<0.000000e+00> : vector<16x20xf32>
    %145 = tpu.matmul %144, %143, %cst_75 {dimension_numbers = #tpu.dot_dimension_numbers<[1], [0], [0], [1], [0, 0, 1, 1], [], []>} : vector<16x27xbf16>, vector<27x20xbf16>, vector<16x20xf32> -> vector<16x20xf32>
    %c0_76 = arith.constant 0 : index
    %c0_77 = arith.constant 0 : index
    %146 = vector.load %arg20[%c0_76, %c0_77] : memref<1x20xf32, #tpu.memory_space<vmem>>, vector<1x20xf32>
    %147 = vector.broadcast %146 : vector<1x20xf32> to vector<16x20xf32>
    %148 = arith.addf %145, %147 : vector<16x20xf32>
    %cst_78 = arith.constant 0.000000e+00 : f32
    %149 = vector.broadcast %cst_78 : f32 to vector<16x20xf32>
    %150 = arith.maximumf %148, %149 : vector<16x20xf32>
    %c0_79 = arith.constant 0 : index
    %c0_80 = arith.constant 0 : index
    %151 = vector.load %arg21[%c0_79, %c0_80] : memref<20x12xbf16, #tpu.memory_space<vmem>>, vector<20x12xbf16>
    %152 = arith.truncf %150 : vector<16x20xf32> to vector<16x20xbf16>
    %cst_81 = arith.constant dense<0.000000e+00> : vector<16x12xf32>
    %153 = tpu.matmul %152, %151, %cst_81 {dimension_numbers = #tpu.dot_dimension_numbers<[1], [0], [0], [1], [0, 0, 1, 1], [], []>} : vector<16x20xbf16>, vector<20x12xbf16>, vector<16x12xf32> -> vector<16x12xf32>
    %c0_82 = arith.constant 0 : index
    %c0_83 = arith.constant 0 : index
    %154 = vector.load %arg22[%c0_82, %c0_83] : memref<1x12xf32, #tpu.memory_space<vmem>>, vector<1x12xf32>
    %155 = vector.broadcast %154 : vector<1x12xf32> to vector<16x12xf32>
    %156 = arith.addf %153, %155 : vector<16x12xf32>
    %cst_84 = arith.constant 0.000000e+00 : f32
    %157 = vector.broadcast %cst_84 : f32 to vector<16x12xf32>
    %158 = arith.maximumf %156, %157 : vector<16x12xf32>
    %c0_85 = arith.constant 0 : index
    %c0_86 = arith.constant 0 : index
    %159 = vector.load %arg23[%c0_85, %c0_86] : memref<12x60xbf16, #tpu.memory_space<vmem>>, vector<12x60xbf16>
    %160 = arith.truncf %158 : vector<16x12xf32> to vector<16x12xbf16>
    %cst_87 = arith.constant dense<0.000000e+00> : vector<16x60xf32>
    %161 = tpu.matmul %160, %159, %cst_87 {dimension_numbers = #tpu.dot_dimension_numbers<[1], [0], [0], [1], [0, 0, 1, 1], [], []>} : vector<16x12xbf16>, vector<12x60xbf16>, vector<16x60xf32> -> vector<16x60xf32>
    %c0_88 = arith.constant 0 : index
    %c0_89 = arith.constant 0 : index
    %162 = vector.load %arg24[%c0_88, %c0_89] : memref<80x60xbf16, #tpu.memory_space<vmem>>, vector<80x60xbf16>
    %163 = arith.truncf %133 : vector<16x80xf32> to vector<16x80xbf16>
    %cst_90 = arith.constant dense<0.000000e+00> : vector<16x60xf32>
    %164 = tpu.matmul %163, %162, %cst_90 {dimension_numbers = #tpu.dot_dimension_numbers<[1], [0], [0], [1], [0, 0, 1, 1], [], []>} : vector<16x80xbf16>, vector<80x60xbf16>, vector<16x60xf32> -> vector<16x60xf32>
    %165 = arith.addf %161, %164 : vector<16x60xf32>
    %c0_91 = arith.constant 0 : index
    %c0_92 = arith.constant 0 : index
    %166 = vector.load %arg25[%c0_91, %c0_92] : memref<1x60xf32, #tpu.memory_space<vmem>>, vector<1x60xf32>
    %167 = vector.broadcast %166 : vector<1x60xf32> to vector<16x60xf32>
    %168 = arith.addf %165, %167 : vector<16x60xf32>
    %cst_93 = arith.constant 0.000000e+00 : f32
    %169 = vector.broadcast %cst_93 : f32 to vector<16x60xf32>
    %170 = arith.maximumf %168, %169 : vector<16x60xf32>
    %c0_94 = arith.constant 0 : index
    %c0_95 = arith.constant 0 : index
    %171 = vector.load %arg26[%c0_94, %c0_95] : memref<60x30xbf16, #tpu.memory_space<vmem>>, vector<60x30xbf16>
    %172 = arith.truncf %170 : vector<16x60xf32> to vector<16x60xbf16>
    %cst_96 = arith.constant dense<0.000000e+00> : vector<16x30xf32>
    %173 = tpu.matmul %172, %171, %cst_96 {dimension_numbers = #tpu.dot_dimension_numbers<[1], [0], [0], [1], [0, 0, 1, 1], [], []>} : vector<16x60xbf16>, vector<60x30xbf16>, vector<16x30xf32> -> vector<16x30xf32>
    %c0_97 = arith.constant 0 : index
    %c0_98 = arith.constant 0 : index
    %174 = vector.load %arg27[%c0_97, %c0_98] : memref<1x30xf32, #tpu.memory_space<vmem>>, vector<1x30xf32>
    %175 = vector.broadcast %174 : vector<1x30xf32> to vector<16x30xf32>
    %176 = arith.addf %173, %175 : vector<16x30xf32>
    %cst_99 = arith.constant 0.000000e+00 : f32
    %177 = vector.broadcast %cst_99 : f32 to vector<16x30xf32>
    %178 = arith.maximumf %176, %177 : vector<16x30xf32>
    %c0_100 = arith.constant 0 : index
    %c0_101 = arith.constant 0 : index
    %179 = vector.load %arg28[%c0_100, %c0_101] : memref<30x20xbf16, #tpu.memory_space<vmem>>, vector<30x20xbf16>
    %180 = arith.truncf %178 : vector<16x30xf32> to vector<16x30xbf16>
    %cst_102 = arith.constant dense<0.000000e+00> : vector<16x20xf32>
    %181 = tpu.matmul %180, %179, %cst_102 {dimension_numbers = #tpu.dot_dimension_numbers<[1], [0], [0], [1], [0, 0, 1, 1], [], []>} : vector<16x30xbf16>, vector<30x20xbf16>, vector<16x20xf32> -> vector<16x20xf32>
    %c0_103 = arith.constant 0 : index
    %c0_104 = arith.constant 0 : index
    %182 = vector.load %arg29[%c0_103, %c0_104] : memref<1x20xf32, #tpu.memory_space<vmem>>, vector<1x20xf32>
    %183 = vector.broadcast %182 : vector<1x20xf32> to vector<16x20xf32>
    %184 = arith.addf %181, %183 : vector<16x20xf32>
    %cst_105 = arith.constant 0.000000e+00 : f32
    %185 = vector.broadcast %cst_105 : f32 to vector<16x20xf32>
    %186 = arith.maximumf %184, %185 : vector<16x20xf32>
    %c0_106 = arith.constant 0 : index
    %c0_107 = arith.constant 0 : index
    %187 = vector.load %arg30[%c0_106, %c0_107] : memref<20x7xbf16, #tpu.memory_space<vmem>>, vector<20x7xbf16>
    %188 = arith.truncf %186 : vector<16x20xf32> to vector<16x20xbf16>
    %cst_108 = arith.constant dense<0.000000e+00> : vector<16x7xf32>
    %189 = tpu.matmul %188, %187, %cst_108 {dimension_numbers = #tpu.dot_dimension_numbers<[1], [0], [0], [1], [0, 0, 1, 1], [], []>} : vector<16x20xbf16>, vector<20x7xbf16>, vector<16x7xf32> -> vector<16x7xf32>
    %c0_109 = arith.constant 0 : index
    %c0_110 = arith.constant 0 : index
    %190 = vector.load %arg31[%c0_109, %c0_110] : memref<1x7xf32, #tpu.memory_space<vmem>>, vector<1x7xf32>
    %191 = vector.broadcast %190 : vector<1x7xf32> to vector<16x7xf32>
    %192 = arith.addf %189, %191 : vector<16x7xf32>
    %cst_111 = arith.constant 0.000000e+00 : f32
    %193 = vector.broadcast %cst_111 : f32 to vector<16x7xf32>
    %194 = arith.maximumf %192, %193 : vector<16x7xf32>
    %c0_112 = arith.constant 0 : index
    %c0_113 = arith.constant 0 : index
    %195 = vector.load %arg32[%c0_112, %c0_113] : memref<7x6xbf16, #tpu.memory_space<vmem>>, vector<7x6xbf16>
    %196 = arith.truncf %194 : vector<16x7xf32> to vector<16x7xbf16>
    %cst_114 = arith.constant dense<0.000000e+00> : vector<16x6xf32>
    %197 = tpu.matmul %196, %195, %cst_114 {dimension_numbers = #tpu.dot_dimension_numbers<[1], [0], [0], [1], [0, 0, 1, 1], [], []>} : vector<16x7xbf16>, vector<7x6xbf16>, vector<16x6xf32> -> vector<16x6xf32>
    %c0_115 = arith.constant 0 : index
    %c0_116 = arith.constant 0 : index
    %198 = vector.load %arg3[%c0_115, %c0_116] : memref<16x2xf32, #tpu.memory_space<vmem>>, vector<16x2xf32>
    %c0_117 = arith.constant 0 : index
    %c0_118 = arith.constant 0 : index
    %199 = vector.load %arg33[%c0_117, %c0_118] : memref<2x6xbf16, #tpu.memory_space<vmem>>, vector<2x6xbf16>
    %200 = arith.truncf %198 : vector<16x2xf32> to vector<16x2xbf16>
    %cst_119 = arith.constant dense<0.000000e+00> : vector<16x6xf32>
    %201 = tpu.matmul %200, %199, %cst_119 {dimension_numbers = #tpu.dot_dimension_numbers<[1], [0], [0], [1], [0, 0, 1, 1], [], []>} : vector<16x2xbf16>, vector<2x6xbf16>, vector<16x6xf32> -> vector<16x6xf32>
    %202 = arith.addf %197, %201 : vector<16x6xf32>
    %c0_120 = arith.constant 0 : index
    %c0_121 = arith.constant 0 : index
    %203 = vector.load %arg34[%c0_120, %c0_121] : memref<1x6xf32, #tpu.memory_space<vmem>>, vector<1x6xf32>
    %204 = vector.broadcast %203 : vector<1x6xf32> to vector<16x6xf32>
    %205 = arith.addf %202, %204 : vector<16x6xf32>
    %cst_122 = arith.constant 0.000000e+00 : f32
    %206 = vector.broadcast %cst_122 : f32 to vector<16x6xf32>
    %207 = arith.maximumf %205, %206 : vector<16x6xf32>
    %c0_123 = arith.constant 0 : index
    %c0_124 = arith.constant 0 : index
    %208 = vector.load %arg35[%c0_123, %c0_124] : memref<6x3xbf16, #tpu.memory_space<vmem>>, vector<6x3xbf16>
    %209 = arith.truncf %207 : vector<16x6xf32> to vector<16x6xbf16>
    %cst_125 = arith.constant dense<0.000000e+00> : vector<16x3xf32>
    %210 = tpu.matmul %209, %208, %cst_125 {dimension_numbers = #tpu.dot_dimension_numbers<[1], [0], [0], [1], [0, 0, 1, 1], [], []>} : vector<16x6xbf16>, vector<6x3xbf16>, vector<16x3xf32> -> vector<16x3xf32>
    %c0_126 = arith.constant 0 : index
    %c0_127 = arith.constant 0 : index
    %211 = vector.load %arg36[%c0_126, %c0_127] : memref<1x3xf32, #tpu.memory_space<vmem>>, vector<1x3xf32>
    %212 = vector.broadcast %211 : vector<1x3xf32> to vector<16x3xf32>
    %213 = arith.addf %210, %212 : vector<16x3xf32>
    %cst_128 = arith.constant 0.000000e+00 : f32
    %214 = vector.broadcast %cst_128 : f32 to vector<16x3xf32>
    %215 = arith.maximumf %213, %214 : vector<16x3xf32>
    %c0_129 = arith.constant 0 : index
    %c0_130 = arith.constant 0 : index
    %216 = vector.load %arg37[%c0_129, %c0_130] : memref<16x3xf32, #tpu.memory_space<vmem>>, vector<16x3xf32>
    tpu.vector_store %arg37[%c0_129, %c0_130], %215 {strides = array<i32>} : memref<16x3xf32, #tpu.memory_space<vmem>>, vector<16x3xf32>,
    return
  }
  func.func @transform_0(%arg0: i32) -> (i32, i32, i32) {
    %c0_i32 = arith.constant 0 : i32
    %c0_i32_0 = arith.constant 0 : i32
    %c0_i32_1 = arith.constant 0 : i32
    return %c0_i32, %arg0, %c0_i32_0 : i32, i32, i32
  }
  func.func @transform_1(%arg0: i32) -> (i32, i32) {
    %c0_i32 = arith.constant 0 : i32
    %c0_i32_0 = arith.constant 0 : i32
    return %arg0, %c0_i32 : i32, i32
  }
  func.func @transform_2(%arg0: i32) -> (i32, i32) {
    %c0_i32 = arith.constant 0 : i32
    %c0_i32_0 = arith.constant 0 : i32
    return %arg0, %c0_i32 : i32, i32
  }
  func.func @transform_3(%arg0: i32) -> (i32, i32) {
    %c0_i32 = arith.constant 0 : i32
    %c0_i32_0 = arith.constant 0 : i32
    %c0_i32_1 = arith.constant 0 : i32
    return %c0_i32, %c0_i32_0 : i32, i32
  }
  func.func @transform_4(%arg0: i32) -> (i32, i32) {
    %c0_i32 = arith.constant 0 : i32
    %c0_i32_0 = arith.constant 0 : i32
    %c0_i32_1 = arith.constant 0 : i32
    return %c0_i32, %c0_i32_0 : i32, i32
  }
  func.func @transform_5(%arg0: i32) -> (i32, i32) {
    %c0_i32 = arith.constant 0 : i32
    %c0_i32_0 = arith.constant 0 : i32
    %c0_i32_1 = arith.constant 0 : i32
    return %c0_i32, %c0_i32_0 : i32, i32
  }
  func.func @transform_6(%arg0: i32) -> (i32, i32) {
    %c0_i32 = arith.constant 0 : i32
    %c0_i32_0 = arith.constant 0 : i32
    %c0_i32_1 = arith.constant 0 : i32
    return %c0_i32, %c0_i32_0 : i32, i32
  }
  func.func @transform_7(%arg0: i32) -> (i32, i32) {
    %c0_i32 = arith.constant 0 : i32
    %c0_i32_0 = arith.constant 0 : i32
    %c0_i32_1 = arith.constant 0 : i32
    return %c0_i32, %c0_i32_0 : i32, i32
  }
  func.func @transform_8(%arg0: i32) -> (i32, i32) {
    %c0_i32 = arith.constant 0 : i32
    %c0_i32_0 = arith.constant 0 : i32
    %c0_i32_1 = arith.constant 0 : i32
    return %c0_i32, %c0_i32_0 : i32, i32
  }
  func.func @transform_9(%arg0: i32) -> (i32, i32) {
    %c0_i32 = arith.constant 0 : i32
    %c0_i32_0 = arith.constant 0 : i32
    %c0_i32_1 = arith.constant 0 : i32
    return %c0_i32, %c0_i32_0 : i32, i32
  }
  func.func @transform_10(%arg0: i32) -> (i32, i32) {
    %c0_i32 = arith.constant 0 : i32
    %c0_i32_0 = arith.constant 0 : i32
    %c0_i32_1 = arith.constant 0 : i32
    return %c0_i32, %c0_i32_0 : i32, i32
  }
  func.func @transform_11(%arg0: i32) -> (i32, i32) {
    %c0_i32 = arith.constant 0 : i32
    %c0_i32_0 = arith.constant 0 : i32
    %c0_i32_1 = arith.constant 0 : i32
    return %c0_i32, %c0_i32_0 : i32, i32
  }
  func.func @transform_12(%arg0: i32) -> (i32, i32, i32) {
    %c0_i32 = arith.constant 0 : i32
    %c0_i32_0 = arith.constant 0 : i32
    %c0_i32_1 = arith.constant 0 : i32
    %c0_i32_2 = arith.constant 0 : i32
    return %c0_i32, %c0_i32_0, %c0_i32_1 : i32, i32, i32
  }
  func.func @transform_13(%arg0: i32) -> (i32, i32) {
    %c0_i32 = arith.constant 0 : i32
    %c0_i32_0 = arith.constant 0 : i32
    %c0_i32_1 = arith.constant 0 : i32
    return %c0_i32, %c0_i32_0 : i32, i32
  }
  func.func @transform_14(%arg0: i32) -> (i32, i32) {
    %c0_i32 = arith.constant 0 : i32
    %c0_i32_0 = arith.constant 0 : i32
    %c0_i32_1 = arith.constant 0 : i32
    return %c0_i32, %c0_i32_0 : i32, i32
  }
  func.func @transform_15(%arg0: i32) -> (i32, i32) {
    %c0_i32 = arith.constant 0 : i32
    %c0_i32_0 = arith.constant 0 : i32
    %c0_i32_1 = arith.constant 0 : i32
    return %c0_i32, %c0_i32_0 : i32, i32
  }
  func.func @transform_16(%arg0: i32) -> (i32, i32) {
    %c0_i32 = arith.constant 0 : i32
    %c0_i32_0 = arith.constant 0 : i32
    %c0_i32_1 = arith.constant 0 : i32
    return %c0_i32, %c0_i32_0 : i32, i32
  }
  func.func @transform_17(%arg0: i32) -> (i32, i32) {
    %c0_i32 = arith.constant 0 : i32
    %c0_i32_0 = arith.constant 0 : i32
    %c0_i32_1 = arith.constant 0 : i32
    return %c0_i32, %c0_i32_0 : i32, i32
  }
  func.func @transform_18(%arg0: i32) -> (i32, i32) {
    %c0_i32 = arith.constant 0 : i32
    %c0_i32_0 = arith.constant 0 : i32
    %c0_i32_1 = arith.constant 0 : i32
    return %c0_i32, %c0_i32_0 : i32, i32
  }
  func.func @transform_19(%arg0: i32) -> (i32, i32) {
    %c0_i32 = arith.constant 0 : i32
    %c0_i32_0 = arith.constant 0 : i32
    %c0_i32_1 = arith.constant 0 : i32
    return %c0_i32, %c0_i32_0 : i32, i32
  }
  func.func @transform_20(%arg0: i32) -> (i32, i32) {
    %c0_i32 = arith.constant 0 : i32
    %c0_i32_0 = arith.constant 0 : i32
    %c0_i32_1 = arith.constant 0 : i32
    return %c0_i32, %c0_i32_0 : i32, i32
  }
  func.func @transform_21(%arg0: i32) -> (i32, i32) {
    %c0_i32 = arith.constant 0 : i32
    %c0_i32_0 = arith.constant 0 : i32
    %c0_i32_1 = arith.constant 0 : i32
    return %c0_i32, %c0_i32_0 : i32, i32
  }
  func.func @transform_22(%arg0: i32) -> (i32, i32) {
    %c0_i32 = arith.constant 0 : i32
    %c0_i32_0 = arith.constant 0 : i32
    %c0_i32_1 = arith.constant 0 : i32
    return %c0_i32, %c0_i32_0 : i32, i32
  }
  func.func @transform_23(%arg0: i32) -> (i32, i32) {
    %c0_i32 = arith.constant 0 : i32
    %c0_i32_0 = arith.constant 0 : i32
    %c0_i32_1 = arith.constant 0 : i32
    return %c0_i32, %c0_i32_0 : i32, i32
  }
  func.func @transform_24(%arg0: i32) -> (i32, i32) {
    %c0_i32 = arith.constant 0 : i32
    %c0_i32_0 = arith.constant 0 : i32
    %c0_i32_1 = arith.constant 0 : i32
    return %c0_i32, %c0_i32_0 : i32, i32
  }
  func.func @transform_25(%arg0: i32) -> (i32, i32) {
    %c0_i32 = arith.constant 0 : i32
    %c0_i32_0 = arith.constant 0 : i32
    %c0_i32_1 = arith.constant 0 : i32
    return %c0_i32, %c0_i32_0 : i32, i32
  }
  func.func @transform_26(%arg0: i32) -> (i32, i32) {
    %c0_i32 = arith.constant 0 : i32
    %c0_i32_0 = arith.constant 0 : i32
    %c0_i32_1 = arith.constant 0 : i32
    return %c0_i32, %c0_i32_0 : i32, i32
  }
  func.func @transform_27(%arg0: i32) -> (i32, i32) {
    %c0_i32 = arith.constant 0 : i32
    %c0_i32_0 = arith.constant 0 : i32
    %c0_i32_1 = arith.constant 0 : i32
    return %c0_i32, %c0_i32_0 : i32, i32
  }
  func.func @transform_28(%arg0: i32) -> (i32, i32) {
    %c0_i32 = arith.constant 0 : i32
    %c0_i32_0 = arith.constant 0 : i32
    %c0_i32_1 = arith.constant 0 : i32
    return %c0_i32, %c0_i32_0 : i32, i32
  }
  func.func @transform_29(%arg0: i32) -> (i32, i32) {
    %c0_i32 = arith.constant 0 : i32
    %c0_i32_0 = arith.constant 0 : i32
    %c0_i32_1 = arith.constant 0 : i32
    return %c0_i32, %c0_i32_0 : i32, i32
  }
  func.func @transform_30(%arg0: i32) -> (i32, i32) {
    %c0_i32 = arith.constant 0 : i32
    %c0_i32_0 = arith.constant 0 : i32
    %c0_i32_1 = arith.constant 0 : i32
    return %c0_i32, %c0_i32_0 : i32, i32
  }
  func.func @transform_31(%arg0: i32) -> (i32, i32) {
    %c0_i32 = arith.constant 0 : i32
    %c0_i32_0 = arith.constant 0 : i32
    %c0_i32_1 = arith.constant 0 : i32
    return %c0_i32, %c0_i32_0 : i32, i32
  }
  func.func @transform_32(%arg0: i32) -> (i32, i32) {
    %c0_i32 = arith.constant 0 : i32
    %c0_i32_0 = arith.constant 0 : i32
    %c0_i32_1 = arith.constant 0 : i32
    return %c0_i32, %c0_i32_0 : i32, i32
  }
  func.func @transform_33(%arg0: i32) -> (i32, i32) {
    %c0_i32 = arith.constant 0 : i32
    %c0_i32_0 = arith.constant 0 : i32
    %c0_i32_1 = arith.constant 0 : i32
    return %c0_i32, %c0_i32_0 : i32, i32
  }
  func.func @transform_34(%arg0: i32) -> (i32, i32) {
    %c0_i32 = arith.constant 0 : i32
    %c0_i32_0 = arith.constant 0 : i32
    %c0_i32_1 = arith.constant 0 : i32
    return %c0_i32, %c0_i32_0 : i32, i32
  }
  func.func @transform_35(%arg0: i32) -> (i32, i32) {
    %c0_i32 = arith.constant 0 : i32
    %c0_i32_0 = arith.constant 0 : i32
    %c0_i32_1 = arith.constant 0 : i32
    return %c0_i32, %c0_i32_0 : i32, i32
  }
  func.func @transform_36(%arg0: i32) -> (i32, i32) {
    %c0_i32 = arith.constant 0 : i32
    %c0_i32_0 = arith.constant 0 : i32
    return %arg0, %c0_i32 : i32, i32
  }
}

</mosaic_0001>

<llo_original>
// kernel: dqn_t1_forward.1
$region0: #{dqn_t1_forward.1}
  #allocation0 [shape = 'u32[]', space=smem, size = 0x4, offset = 0x4, fixed_abs, tag = 'smem constant byte address 0x4 - core index']
  #allocation1 [shape = 'u32[144,128]{1,0:T(1,128)}', space=vmem, size = 0x12000, scoped, tag = 'internal scratch']
  %s0 = inlined_call_operand.smem [shape: u32[37], index: -1, kind: input, shape index: {}]
  %s1 = sld [smem:[%s0]]
  %s2 = scalar_lea.smem %s0, 1
  %s3 = sld [smem:[%s2]]
  %s4 = scalar_lea.smem %s0, 2
  %s5 = sld [smem:[%s4]]
  %s6 = scalar_lea.smem %s0, 3
  %s7 = sld [smem:[%s6]]
  %s8 = scalar_lea.smem %s0, 4
  %s9 = sld [smem:[%s8]]
  %s10 = scalar_lea.smem %s0, 5
  %s11 = sld [smem:[%s10]]
  %s12 = scalar_lea.smem %s0, 6
  %s13 = sld [smem:[%s12]]
  %s14 = scalar_lea.smem %s0, 7
  %s15 = sld [smem:[%s14]]
  %s16 = scalar_lea.smem %s0, 8
  %s17 = sld [smem:[%s16]]
  %s18 = scalar_lea.smem %s0, 9
  %s19 = sld [smem:[%s18]]
  %s20 = scalar_lea.smem %s0, 10
  %s21 = sld [smem:[%s20]]
  %s22 = scalar_lea.smem %s0, 11
  %s23 = sld [smem:[%s22]]
  %s24 = scalar_lea.smem %s0, 12
  %s25 = sld [smem:[%s24]]
  %s26 = scalar_lea.smem %s0, 13
  %s27 = sld [smem:[%s26]]
  %s28 = scalar_lea.smem %s0, 14
  %s29 = sld [smem:[%s28]]
  %s30 = scalar_lea.smem %s0, 15
  %s31 = sld [smem:[%s30]]
  %s32 = scalar_lea.smem %s0, 16
  %s33 = sld [smem:[%s32]]
  %s34 = scalar_lea.smem %s0, 17
  %s35 = sld [smem:[%s34]]
  %s36 = scalar_lea.smem %s0, 18
  %s37 = sld [smem:[%s36]]
  %s38 = scalar_lea.smem %s0, 19
  %s39 = sld [smem:[%s38]]
  %s40 = scalar_lea.smem %s0, 20
  %s41 = sld [smem:[%s40]]
  %s42 = scalar_lea.smem %s0, 21
  %s43 = sld [smem:[%s42]]
  %s44 = scalar_lea.smem %s0, 22
  %s45 = sld [smem:[%s44]]
  %s46 = scalar_lea.smem %s0, 23
  %s47 = sld [smem:[%s46]]
  %s48 = scalar_lea.smem %s0, 24
  %s49 = sld [smem:[%s48]]
  %s50 = scalar_lea.smem %s0, 25
  %s51 = sld [smem:[%s50]]
  %s52 = scalar_lea.smem %s0, 26
  %s53 = sld [smem:[%s52]]
  %s54 = scalar_lea.smem %s0, 27
  %s55 = sld [smem:[%s54]]
  %s56 = scalar_lea.smem %s0, 28
  %s57 = sld [smem:[%s56]]
  %s58 = scalar_lea.smem %s0, 29
  %s59 = sld [smem:[%s58]]
  %s60 = scalar_lea.smem %s0, 30
  %s61 = sld [smem:[%s60]]
  %s62 = scalar_lea.smem %s0, 31
  %s63 = sld [smem:[%s62]]
  %s64 = scalar_lea.smem %s0, 32
  %s65 = sld [smem:[%s64]]
  %s66 = scalar_lea.smem %s0, 33
  %s67 = sld [smem:[%s66]]
  %s68 = scalar_lea.smem %s0, 34
  %s69 = sld [smem:[%s68]]
  %s70 = scalar_lea.smem %s0, 35
  %s71 = sld [smem:[%s70]]
  %s72 = scalar_lea.smem %s0, 36
  %s73 = sld [smem:[%s72]]
  %s74 = sld [smem:[#allocation0]]
  $region154: #{dqn_t1_forward.1} parent=0
    _
  %s76 = ssub.s32 1, %s74
  %s77 = scalar_select 0, %s76, %s74
  // Predicated region
  $region2: #{dqn_t1_forward.1} parent=0 // pred_check
    _
  $region3: #{dqn_t1_forward.1} parent=0 // pred_check_branch
    %79 = sbr.rel (0) target = $region5
  $region4: #{dqn_t1_forward.1} parent=0 // pred_region
    _
  $region5: #{dqn_t1_forward.1} parent=0 // pred_fallthru
    _
  // Predicated region
  $region6: #{dqn_t1_forward.1} parent=0 // pred_check
    _
  $region7: #{dqn_t1_forward.1} parent=0 // pred_check_branch
    %81 = sbr.rel (0) target = $region9
  $region8: #{dqn_t1_forward.1} parent=0 // pred_region
    _
  $region9: #{dqn_t1_forward.1} parent=0 // pred_fallthru
    _
  // Predicated region
  $region10: #{dqn_t1_forward.1} parent=0 // pred_check
    _
  $region11: #{dqn_t1_forward.1} parent=0 // pred_check_branch
    %83 = sbr.rel (0) target = $region13
  $region12: #{dqn_t1_forward.1} parent=0 // pred_region
    _
  $region13: #{dqn_t1_forward.1} parent=0 // pred_fallthru
    _
  // Predicated region
  $region14: #{dqn_t1_forward.1} parent=0 // pred_check
    _
  $region15: #{dqn_t1_forward.1} parent=0 // pred_check_branch
    %85 = sbr.rel (0) target = $region17
  $region16: #{dqn_t1_forward.1} parent=0 // pred_region
    _
  $region17: #{dqn_t1_forward.1} parent=0 // pred_fallthru
    _
  // Predicated region
  $region18: #{dqn_t1_forward.1} parent=0 // pred_check
    _
  $region19: #{dqn_t1_forward.1} parent=0 // pred_check_branch
    %87 = sbr.rel (0) target = $region21
  $region20: #{dqn_t1_forward.1} parent=0 // pred_region
    _
  $region21: #{dqn_t1_forward.1} parent=0 // pred_fallthru
    _
  // Predicated region
  $region22: #{dqn_t1_forward.1} parent=0 // pred_check
    _
  $region23: #{dqn_t1_forward.1} parent=0 // pred_check_branch
    %89 = sbr.rel (0) target = $region25
  $region24: #{dqn_t1_forward.1} parent=0 // pred_region
    _
  $region25: #{dqn_t1_forward.1} parent=0 // pred_fallthru
    _
  // Predicated region
  $region26: #{dqn_t1_forward.1} parent=0 // pred_check
    _
  $region27: #{dqn_t1_forward.1} parent=0 // pred_check_branch
    %91 = sbr.rel (0) target = $region29
  $region28: #{dqn_t1_forward.1} parent=0 // pred_region
    _
  $region29: #{dqn_t1_forward.1} parent=0 // pred_fallthru
    _
  // Predicated region
  $region30: #{dqn_t1_forward.1} parent=0 // pred_check
    _
  $region31: #{dqn_t1_forward.1} parent=0 // pred_check_branch
    %93 = sbr.rel (0) target = $region33
  $region32: #{dqn_t1_forward.1} parent=0 // pred_region
    _
  $region33: #{dqn_t1_forward.1} parent=0 // pred_fallthru
    _
  // Predicated region
  $region34: #{dqn_t1_forward.1} parent=0 // pred_check
    _
  $region35: #{dqn_t1_forward.1} parent=0 // pred_check_branch
    %95 = sbr.rel (0) target = $region37
  $region36: #{dqn_t1_forward.1} parent=0 // pred_region
    _
  $region37: #{dqn_t1_forward.1} parent=0 // pred_fallthru
    _
  // Predicated region
  $region38: #{dqn_t1_forward.1} parent=0 // pred_check
    _
  $region39: #{dqn_t1_forward.1} parent=0 // pred_check_branch
    %97 = sbr.rel (0) target = $region41
  $region40: #{dqn_t1_forward.1} parent=0 // pred_region
    _
  $region41: #{dqn_t1_forward.1} parent=0 // pred_fallthru
    _
  // Predicated region
  $region42: #{dqn_t1_forward.1} parent=0 // pred_check
    _
  $region43: #{dqn_t1_forward.1} parent=0 // pred_check_branch
    %99 = sbr.rel (0) target = $region45
  $region44: #{dqn_t1_forward.1} parent=0 // pred_region
    _
  $region45: #{dqn_t1_forward.1} parent=0 // pred_fallthru
    _
  // Predicated region
  $region46: #{dqn_t1_forward.1} parent=0 // pred_check
    _
  $region47: #{dqn_t1_forward.1} parent=0 // pred_check_branch
    %101 = sbr.rel (0) target = $region49
  $region48: #{dqn_t1_forward.1} parent=0 // pred_region
    _
  $region49: #{dqn_t1_forward.1} parent=0 // pred_fallthru
    _
  // Predicated region
  $region50: #{dqn_t1_forward.1} parent=0 // pred_check
    _
  $region51: #{dqn_t1_forward.1} parent=0 // pred_check_branch
    %103 = sbr.rel (0) target = $region53
  $region52: #{dqn_t1_forward.1} parent=0 // pred_region
    _
  $region53: #{dqn_t1_forward.1} parent=0 // pred_fallthru
    _
  // Predicated region
  $region54: #{dqn_t1_forward.1} parent=0 // pred_check
    _
  $region55: #{dqn_t1_forward.1} parent=0 // pred_check_branch
    %105 = sbr.rel (0) target = $region57
  $region56: #{dqn_t1_forward.1} parent=0 // pred_region
    _
  $region57: #{dqn_t1_forward.1} parent=0 // pred_fallthru
    _
  // Predicated region
  $region58: #{dqn_t1_forward.1} parent=0 // pred_check
    _
  $region59: #{dqn_t1_forward.1} parent=0 // pred_check_branch
    %107 = sbr.rel (0) target = $region61
  $region60: #{dqn_t1_forward.1} parent=0 // pred_region
    _
  $region61: #{dqn_t1_forward.1} parent=0 // pred_fallthru
    _
  // Predicated region
  $region62: #{dqn_t1_forward.1} parent=0 // pred_check
    _
  $region63: #{dqn_t1_forward.1} parent=0 // pred_check_branch
    %109 = sbr.rel (0) target = $region65
  $region64: #{dqn_t1_forward.1} parent=0 // pred_region
    _
  $region65: #{dqn_t1_forward.1} parent=0 // pred_fallthru
    _
  // Predicated region
  $region66: #{dqn_t1_forward.1} parent=0 // pred_check
    _
  $region67: #{dqn_t1_forward.1} parent=0 // pred_check_branch
    %111 = sbr.rel (0) target = $region69
  $region68: #{dqn_t1_forward.1} parent=0 // pred_region
    _
  $region69: #{dqn_t1_forward.1} parent=0 // pred_fallthru
    _
  // Predicated region
  $region70: #{dqn_t1_forward.1} parent=0 // pred_check
    _
  $region71: #{dqn_t1_forward.1} parent=0 // pred_check_branch
    %113 = sbr.rel (0) target = $region73
  $region72: #{dqn_t1_forward.1} parent=0 // pred_region
    _
  $region73: #{dqn_t1_forward.1} parent=0 // pred_fallthru
    _
  // Predicated region
  $region74: #{dqn_t1_forward.1} parent=0 // pred_check
    _
  $region75: #{dqn_t1_forward.1} parent=0 // pred_check_branch
    %115 = sbr.rel (0) target = $region77
  $region76: #{dqn_t1_forward.1} parent=0 // pred_region
    _
  $region77: #{dqn_t1_forward.1} parent=0 // pred_fallthru
    _
  // Predicated region
  $region78: #{dqn_t1_forward.1} parent=0 // pred_check
    _
  $region79: #{dqn_t1_forward.1} parent=0 // pred_check_branch
    %117 = sbr.rel (0) target = $region81
  $region80: #{dqn_t1_forward.1} parent=0 // pred_region
    _
  $region81: #{dqn_t1_forward.1} parent=0 // pred_fallthru
    _
  // Predicated region
  $region82: #{dqn_t1_forward.1} parent=0 // pred_check
    _
  $region83: #{dqn_t1_forward.1} parent=0 // pred_check_branch
    %119 = sbr.rel (0) target = $region85
  $region84: #{dqn_t1_forward.1} parent=0 // pred_region
    _
  $region85: #{dqn_t1_forward.1} parent=0 // pred_fallthru
    _
  // Predicated region
  $region86: #{dqn_t1_forward.1} parent=0 // pred_check
    _
  $region87: #{dqn_t1_forward.1} parent=0 // pred_check_branch
    %121 = sbr.rel (0) target = $region89
  $region88: #{dqn_t1_forward.1} parent=0 // pred_region
    _
  $region89: #{dqn_t1_forward.1} parent=0 // pred_fallthru
    _
  // Predicated region
  $region90: #{dqn_t1_forward.1} parent=0 // pred_check
    _
  $region91: #{dqn_t1_forward.1} parent=0 // pred_check_branch
    %123 = sbr.rel (0) target = $region93
  $region92: #{dqn_t1_forward.1} parent=0 // pred_region
    _
  $region93: #{dqn_t1_forward.1} parent=0 // pred_fallthru
    _
  // Predicated region
  $region94: #{dqn_t1_forward.1} parent=0 // pred_check
    _
  $region95: #{dqn_t1_forward.1} parent=0 // pred_check_branch
    %125 = sbr.rel (0) target = $region97
  $region96: #{dqn_t1_forward.1} parent=0 // pred_region
    _
  $region97: #{dqn_t1_forward.1} parent=0 // pred_fallthru
    _
  // Predicated region
  $region98: #{dqn_t1_forward.1} parent=0 // pred_check
    _
  $region99: #{dqn_t1_forward.1} parent=0 // pred_check_branch
    %127 = sbr.rel (0) target = $region101
  $region100: #{dqn_t1_forward.1} parent=0 // pred_region
    _
  $region101: #{dqn_t1_forward.1} parent=0 // pred_fallthru
    _
  // Predicated region
  $region102: #{dqn_t1_forward.1} parent=0 // pred_check
    _
  $region103: #{dqn_t1_forward.1} parent=0 // pred_check_branch
    %129 = sbr.rel (0) target = $region105
  $region104: #{dqn_t1_forward.1} parent=0 // pred_region
    _
  $region105: #{dqn_t1_forward.1} parent=0 // pred_fallthru
    _
  // Predicated region
  $region106: #{dqn_t1_forward.1} parent=0 // pred_check
    _
  $region107: #{dqn_t1_forward.1} parent=0 // pred_check_branch
    %131 = sbr.rel (0) target = $region109
  $region108: #{dqn_t1_forward.1} parent=0 // pred_region
    _
  $region109: #{dqn_t1_forward.1} parent=0 // pred_fallthru
    _
  // Predicated region
  $region110: #{dqn_t1_forward.1} parent=0 // pred_check
    _
  $region111: #{dqn_t1_forward.1} parent=0 // pred_check_branch
    %133 = sbr.rel (0) target = $region113
  $region112: #{dqn_t1_forward.1} parent=0 // pred_region
    _
  $region113: #{dqn_t1_forward.1} parent=0 // pred_fallthru
    _
  // Predicated region
  $region114: #{dqn_t1_forward.1} parent=0 // pred_check
    _
  $region115: #{dqn_t1_forward.1} parent=0 // pred_check_branch
    %135 = sbr.rel (0) target = $region117
  $region116: #{dqn_t1_forward.1} parent=0 // pred_region
    _
  $region117: #{dqn_t1_forward.1} parent=0 // pred_fallthru
    _
  // Predicated region
  $region118: #{dqn_t1_forward.1} parent=0 // pred_check
    _
  $region119: #{dqn_t1_forward.1} parent=0 // pred_check_branch
    %137 = sbr.rel (0) target = $region121
  $region120: #{dqn_t1_forward.1} parent=0 // pred_region
    _
  $region121: #{dqn_t1_forward.1} parent=0 // pred_fallthru
    _
  // Predicated region
  $region122: #{dqn_t1_forward.1} parent=0 // pred_check
    _
  $region123: #{dqn_t1_forward.1} parent=0 // pred_check_branch
    %139 = sbr.rel (0) target = $region125
  $region124: #{dqn_t1_forward.1} parent=0 // pred_region
    _
  $region125: #{dqn_t1_forward.1} parent=0 // pred_fallthru
    _
  // Predicated region
  $region126: #{dqn_t1_forward.1} parent=0 // pred_check
    _
  $region127: #{dqn_t1_forward.1} parent=0 // pred_check_branch
    %141 = sbr.rel (0) target = $region129
  $region128: #{dqn_t1_forward.1} parent=0 // pred_region
    _
  $region129: #{dqn_t1_forward.1} parent=0 // pred_fallthru
    _
  // Predicated region
  $region130: #{dqn_t1_forward.1} parent=0 // pred_check
    _
  $region131: #{dqn_t1_forward.1} parent=0 // pred_check_branch
    %143 = sbr.rel (0) target = $region133
  $region132: #{dqn_t1_forward.1} parent=0 // pred_region
    _
  $region133: #{dqn_t1_forward.1} parent=0 // pred_fallthru
    _
  // Predicated region
  $region134: #{dqn_t1_forward.1} parent=0 // pred_check
    _
  $region135: #{dqn_t1_forward.1} parent=0 // pred_check_branch
    %145 = sbr.rel (0) target = $region137
  $region136: #{dqn_t1_forward.1} parent=0 // pred_region
    _
  $region137: #{dqn_t1_forward.1} parent=0 // pred_fallthru
    _
  // Predicated region
  $region138: #{dqn_t1_forward.1} parent=0 // pred_check
    _
  $region139: #{dqn_t1_forward.1} parent=0 // pred_check_branch
    %147 = sbr.rel (0) target = $region141
  $region140: #{dqn_t1_forward.1} parent=0 // pred_region
    _
  $region141: #{dqn_t1_forward.1} parent=0 // pred_fallthru
    _
  // Predicated region
  $region142: #{dqn_t1_forward.1} parent=0 // pred_check
    _
  $region143: #{dqn_t1_forward.1} parent=0 // pred_check_branch
    %149 = sbr.rel (0) target = $region145
  $region144: #{dqn_t1_forward.1} parent=0 // pred_region
    _
  $region145: #{dqn_t1_forward.1} parent=0 // pred_fallthru
    _
  %v151 = vld [vmem:[%s1] sm:$0xf]
  %v152 = vld [vmem:[%s1 + $0x4] sm:$0xf]
  %v153 = vld [vmem:[%s1 + $0x8] sm:$0xf]
  %v154 = vld [vmem:[%s1 + $0xc] sm:$0xf]
  %v155 = vld [vmem:[%s1 + $0x10] sm:$0xf]
  %v156 = vld [vmem:[%s1 + $0x14] sm:$0xf]
  %v157 = vld [vmem:[%s1 + $0x18] sm:$0xf]
  %v158 = vld [vmem:[%s1 + $0x1c] sm:$0xf]
  %v159 = vld [vmem:[%s1 + $0x20] sm:$0xf]
  %v160 = vld [vmem:[%s1 + $0x24] sm:$0xf]
  %v161 = vld [vmem:[%s1 + $0x28] sm:$0xf]
  %v162 = vld [vmem:[%s1 + $0x2c] sm:$0xf]
  %v163 = vld [vmem:[%s1 + $0x30] sm:$0xf]
  %v164 = vld [vmem:[%s1 + $0x34] sm:$0xf]
  %v165 = vld [vmem:[%s1 + $0x38] sm:$0xf]
  %v166 = vld [vmem:[%s1 + $0x3c] sm:$0xf]
  %v167 = vld [vmem:[%s1 + $0x40] sm:$0xf]
  %v168 = vld [vmem:[%s1 + $0x44] sm:$0xf]
  %v169 = vld [vmem:[%s1 + $0x48] sm:$0xf]
  %v170 = vld [vmem:[%s1 + $0x4c] sm:$0xf]
  %v171 = vld [vmem:[%s1 + $0x50] sm:$0xf]
  %v172 = vld [vmem:[%s1 + $0x54] sm:$0xf]
  %v173 = vld [vmem:[%s1 + $0x58] sm:$0xf]
  %v174 = vld [vmem:[%s1 + $0x5c] sm:$0xf]
  %v175 = vld [vmem:[%s1 + $0x60] sm:$0xf]
  %v176 = vld [vmem:[%s1 + $0x64] sm:$0xf]
  %v177 = vld [vmem:[%s1 + $0x68] sm:$0xf]
  %v178 = vld [vmem:[%s1 + $0x6c] sm:$0xf]
  %v179 = vld [vmem:[%s1 + $0x70] sm:$0xf]
  %v180 = vld [vmem:[%s1 + $0x74] sm:$0xf]
  %v181 = vld [vmem:[%s1 + $0x78] sm:$0xf]
  %v182 = vld [vmem:[%s1 + $0x7c] sm:$0xf]
  %v183 = vld [vmem:[%s1 + $0x80] sm:$0xf]
  %v184 = vld [vmem:[%s1 + $0x84] sm:$0xf]
  %v185 = vld [vmem:[%s1 + $0x88] sm:$0xf]
  %v186 = vld [vmem:[%s1 + $0x8c] sm:$0xf]
  %v187 = vld [vmem:[%s1 + $0x90] sm:$0xf]
  %v188 = vld [vmem:[%s1 + $0x94] sm:$0xf]
  %v189 = vld [vmem:[%s1 + $0x98] sm:$0xf]
  %v190 = vld [vmem:[%s1 + $0x9c] sm:$0xf]
  %v191 = vld [vmem:[%s1 + $0xa0] sm:$0xf]
  %v192 = vld [vmem:[%s1 + $0xa4] sm:$0xf]
  %v193 = vld [vmem:[%s1 + $0xa8] sm:$0xf]
  %v194 = vld [vmem:[%s1 + $0xac] sm:$0xf]
  %v195 = vld [vmem:[%s1 + $0xb0] sm:$0xf]
  %v196 = vld [vmem:[%s1 + $0xb4] sm:$0xf]
  %v197 = vld [vmem:[%s1 + $0xb8] sm:$0xf]
  %v198 = vld [vmem:[%s1 + $0xbc] sm:$0xf]
  %v199 = vld [vmem:[%s1 + $0xc0] sm:$0xf]
  %v200 = vld [vmem:[%s1 + $0xc4] sm:$0xf]
  %v201 = vld [vmem:[%s1 + $0xc8] sm:$0xf]
  %v202 = vld [vmem:[%s1 + $0xcc] sm:$0xf]
  %v203 = vld [vmem:[%s1 + $0xd0] sm:$0xf]
  %v204 = vld [vmem:[%s1 + $0xd4] sm:$0xf]
  %v205 = vld [vmem:[%s1 + $0xd8] sm:$0xf]
  %v206 = vld [vmem:[%s1 + $0xdc] sm:$0xf]
  %v207 = vld [vmem:[%s1 + $0xe0] sm:$0xf]
  %v208 = vld [vmem:[%s1 + $0xe4] sm:$0xf]
  %v209 = vld [vmem:[%s1 + $0xe8] sm:$0xf]
  %v210 = vld [vmem:[%s1 + $0xec] sm:$0xf]
  %v211 = vld [vmem:[%s7] sm:$0xf]
  %v212 = vld [vmem:[%s7 + $0x4] sm:$0xf]
  %v213 = vld [vmem:[%s7 + $0x8] sm:$0xf]
  %v214 = vld [vmem:[%s7 + $0xc] sm:$0xf]
  %v215 = vld [vmem:[%s7 + $0x10] sm:$0xf]
  %v216 = vld [vmem:[%s7 + $0x14] sm:$0xf]
  %v217 = vld [vmem:[%s7 + $0x18] sm:$0xf]
  %v218 = vld [vmem:[%s7 + $0x1c] sm:$0x3]
  %v219 = vld [vmem:[%s9] sm:$0xf]
  %v220 = vld [vmem:[%s9 + $0x4] sm:$0xf]
  %v221 = vld [vmem:[%s9 + $0x8] sm:$0xf]
  %v222 = vld [vmem:[%s9 + $0xc] sm:$0xf]
  %v223 = vld [vmem:[%s9 + $0x10] sm:$0xf]
  %v224 = vld [vmem:[%s9 + $0x14] sm:$0xf]
  %v225 = vld [vmem:[%s9 + $0x18] sm:$0xf]
  %v226 = vld [vmem:[%s9 + $0x1c] sm:$0x3]
  %v227 = vld [vmem:[%s11] sm:$0x1]
  %v288 = vunpack.c.l.b16 %v151
  %v289 = vunpack.c.l.b16 %v152
  %v290 = vunpack.c.l.b16 %v153
  %v291 = vunpack.c.l.b16 %v154
  %v292 = vunpack.c.l.b16 %v155
  %v293 = vunpack.c.l.b16 %v156
  %v294 = vunpack.c.l.b16 %v157
  %v295 = vunpack.c.l.b16 %v158
  %v296 = vunpack.c.l.b16 %v159
  %v297 = vunpack.c.l.b16 %v160
  %v298 = vunpack.c.l.b16 %v161
  %v299 = vunpack.c.l.b16 %v162
  %v300 = vunpack.c.l.b16 %v163
  %v301 = vunpack.c.l.b16 %v164
  %v302 = vunpack.c.l.b16 %v165
  %v303 = vunpack.c.l.b16 %v166
  %v304 = vunpack.c.l.b16 %v167
  %v305 = vunpack.c.l.b16 %v168
  %v306 = vunpack.c.l.b16 %v169
  %v307 = vunpack.c.l.b16 %v170
  %v308 = vunpack.c.l.b16 %v171
  %v309 = vunpack.c.l.b16 %v172
  %v310 = vunpack.c.l.b16 %v173
  %v311 = vunpack.c.l.b16 %v174
  %v312 = vunpack.c.l.b16 %v175
  %v313 = vunpack.c.l.b16 %v176
  %v314 = vunpack.c.l.b16 %v177
  %v315 = vunpack.c.l.b16 %v178
  %v316 = vunpack.c.l.b16 %v179
  %v317 = vunpack.c.l.b16 %v180
  %v318 = vunpack.c.l.b16 %v181
  %v319 = vunpack.c.l.b16 %v182
  %v320 = vunpack.c.l.b16 %v183
  %v321 = vunpack.c.l.b16 %v184
  %v322 = vunpack.c.l.b16 %v185
  %v323 = vunpack.c.l.b16 %v186
  %v324 = vunpack.c.l.b16 %v187
  %v325 = vunpack.c.l.b16 %v188
  %v326 = vunpack.c.l.b16 %v189
  %v327 = vunpack.c.l.b16 %v190
  %v328 = vunpack.c.l.b16 %v191
  %v329 = vunpack.c.l.b16 %v192
  %v330 = vunpack.c.l.b16 %v193
  %v331 = vunpack.c.l.b16 %v194
  %v332 = vunpack.c.l.b16 %v195
  %v333 = vunpack.c.l.b16 %v196
  %v334 = vunpack.c.l.b16 %v197
  %v335 = vunpack.c.l.b16 %v198
  %v336 = vunpack.c.l.b16 %v199
  %v337 = vunpack.c.l.b16 %v200
  %v338 = vunpack.c.l.b16 %v201
  %v339 = vunpack.c.l.b16 %v202
  %v340 = vunpack.c.l.b16 %v203
  %v341 = vunpack.c.l.b16 %v204
  %v342 = vunpack.c.l.b16 %v205
  %v343 = vunpack.c.l.b16 %v206
  %v344 = vunpack.c.l.b16 %v207
  %v345 = vunpack.c.l.b16 %v208
  %v346 = vunpack.c.l.b16 %v209
  %v347 = vunpack.c.l.b16 %v210
  %v348 = vpack.c.b16 %v289, %v288
  %v349 = vpack.c.b16 %v291, %v290
  %v350 = vpack.c.b16 %v293, %v292
  %v351 = vpack.c.b16 %v295, %v294
  %v352 = vpack.c.b16 %v297, %v296
  %v353 = vpack.c.b16 %v299, %v298
  %v354 = vpack.c.b16 %v301, %v300
  %v355 = vpack.c.b16 %v303, %v302
  %v356 = vpack.c.b16 %v305, %v304
  %v357 = vpack.c.b16 %v307, %v306
  %v358 = vpack.c.b16 %v309, %v308
  %v359 = vpack.c.b16 %v311, %v310
  %v360 = vpack.c.b16 %v313, %v312
  %v361 = vpack.c.b16 %v315, %v314
  %v362 = vpack.c.b16 %v317, %v316
  %v363 = vpack.c.b16 %v319, %v318
  %v364 = vpack.c.b16 %v321, %v320
  %v365 = vpack.c.b16 %v323, %v322
  %v366 = vpack.c.b16 %v325, %v324
  %v367 = vpack.c.b16 %v327, %v326
  %v368 = vpack.c.b16 %v329, %v328
  %v369 = vpack.c.b16 %v331, %v330
  %v370 = vpack.c.b16 %v333, %v332
  %v371 = vpack.c.b16 %v335, %v334
  %v372 = vpack.c.b16 %v337, %v336
  %v373 = vpack.c.b16 %v339, %v338
  %v374 = vpack.c.b16 %v341, %v340
  %v375 = vpack.c.b16 %v343, %v342
  %v376 = vpack.c.b16 %v345, %v344
  %v377 = vpack.c.b16 %v347, %v346
  %v386 = vunpack.c.l.b16 %v219
  %v387 = vunpack.c.l.b16 %v220
  %v388 = vunpack.c.l.b16 %v221
  %v389 = vunpack.c.l.b16 %v222
  %v390 = vunpack.c.l.b16 %v223
  %v391 = vunpack.c.l.b16 %v224
  %v392 = vunpack.c.l.b16 %v225
  %v393 = vunpack.c.l.b16 %v226
  %v394 = vpack.c.b16 %v387, %v386
  %v395 = vpack.c.b16 %v389, %v388
  %v396 = vpack.c.b16 %v391, %v390
  %v397 = vpack.c.b16 %v393, %v392
  %vm401 = vcmask 490496
  %v403 = vsel %vm401, %v348, 0
  %v406 = vsel %vm401, %v350, 0
  %v409 = vsel %vm401, %v352, 0
  %v412 = vsel %vm401, %v354, 0
  %v415 = vsel %vm401, %v356, 0
  %v418 = vsel %vm401, %v358, 0
  %v421 = vsel %vm401, %v360, 0
  %v424 = vsel %vm401, %v362, 0
  %v427 = vsel %vm401, %v364, 0
  %v430 = vsel %vm401, %v366, 0
  %v433 = vsel %vm401, %v368, 0
  %v436 = vsel %vm401, %v370, 0
  %v439 = vsel %vm401, %v372, 0
  %v442 = vsel %vm401, %v374, 0
  %v445 = vsel %vm401, %v376, 0
  %v448 = vsel %vm401, 0, 0
  %vm450 = vcmask 1045504
  %v452 = vsel %vm450, %v397, 0
  %454 = vmatprep.subr.bf16.mxu0 0
  %455 = vmatpush1.bf16.msra.mxu0 %v394
  %456 = vmatprep.subr.bf16.mxu0 0
  %457 = vmatpush1.bf16.msra.mxu0 %v395
  %458 = vmatprep.subr.bf16.mxu0 0
  %459 = vmatpush1.bf16.msra.mxu0 %v396
  %460 = vmatprep.subr.bf16.mxu0 0
  %461 = vmatpush1.bf16.msra.mxu0 %v452
  %462 = vmatprep.subr.bf16.mxu0 0
  %463 = vmatpush1.bf16.msra.mxu0 0
  %464 = vmatprep.subr.bf16.mxu0 0
  %465 = vmatpush1.bf16.msra.mxu0 0
  %466 = vmatprep.subr.bf16.mxu0 0
  %467 = vmatpush1.bf16.msra.mxu0 0
  %468 = vmatprep.subr.bf16.mxu0 0
  %469 = vmatpush1.bf16.msra.mxu0 0
  %470 = vmatprep.subr.bf16.mxu0 0
  %471 = vmatpush1.bf16.msra.mxu0 0
  %472 = vmatprep.subr.bf16.mxu0 0
  %473 = vmatpush1.bf16.msra.mxu0 0
  %474 = vmatprep.subr.bf16.mxu0 0
  %475 = vmatpush1.bf16.msra.mxu0 0
  %476 = vmatprep.subr.bf16.mxu0 0
  %477 = vmatpush1.bf16.msra.mxu0 0
  %478 = vmatprep.subr.bf16.mxu0 0
  %479 = vmatpush1.bf16.msra.mxu0 0
  %480 = vmatprep.subr.bf16.mxu0 0
  %481 = vmatpush1.bf16.msra.mxu0 0
  %482 = vmatprep.subr.bf16.mxu0 0
  %483 = vmatpush1.bf16.msra.mxu0 0
  %484 = vmatprep.subr.bf16.mxu0 0
  %485 = vmatpush1.bf16.msra.mxu0 0
  %486 = vmatprep.mubr.bf16.mxu0 0
  %487 = vmatmul.mubr.bf16.gmra.mrb[0].mxu0 %v403
  %v488 = vpop.f32.mrb[0].mxu0
  %v489 = vadd.f32 0.0, %v488
  %v490 = vpop.f32.mrb[0].mxu0
  %v491 = vpop.f32.mrb[0].mxu0
  %v492 = vadd.f32 0.0, %v491
  %v493 = vpop.f32.mrb[0].mxu0
  %494 = vmatprep.mubr.bf16.mxu0 0
  %495 = vmatmul.mubr.bf16.gmra.mrb[0].mxu0 %v406
  %v496 = vpop.f32.mrb[0].mxu0
  %v497 = vadd.f32 0.0, %v496
  %v498 = vpop.f32.mrb[0].mxu0
  %v499 = vpop.f32.mrb[0].mxu0
  %v500 = vadd.f32 0.0, %v499
  %v501 = vpop.f32.mrb[0].mxu0
  %502 = vmatprep.mubr.bf16.mxu0 0
  %503 = vmatmul.mubr.bf16.gmra.mrb[0].mxu0 %v409
  %v504 = vpop.f32.mrb[0].mxu0
  %v505 = vadd.f32 0.0, %v504
  %v506 = vpop.f32.mrb[0].mxu0
  %v507 = vpop.f32.mrb[0].mxu0
  %v508 = vadd.f32 0.0, %v507
  %v509 = vpop.f32.mrb[0].mxu0
  %510 = vmatprep.mubr.bf16.mxu0 0
  %511 = vmatmul.mubr.bf16.gmra.mrb[0].mxu0 %v412
  %v512 = vpop.f32.mrb[0].mxu0
  %v513 = vadd.f32 0.0, %v512
  %v514 = vpop.f32.mrb[0].mxu0
  %v515 = vpop.f32.mrb[0].mxu0
  %v516 = vadd.f32 0.0, %v515
  %v517 = vpop.f32.mrb[0].mxu0
  %518 = vmatprep.mubr.bf16.mxu0 0
  %519 = vmatmul.mubr.bf16.gmra.mrb[0].mxu0 %v415
  %v520 = vpop.f32.mrb[0].mxu0
  %v521 = vadd.f32 0.0, %v520
  %v522 = vpop.f32.mrb[0].mxu0
  %v523 = vpop.f32.mrb[0].mxu0
  %v524 = vadd.f32 0.0, %v523
  %v525 = vpop.f32.mrb[0].mxu0
  %526 = vmatprep.mubr.bf16.mxu0 0
  %527 = vmatmul.mubr.bf16.gmra.mrb[0].mxu0 %v418
  %v528 = vpop.f32.mrb[0].mxu0
  %v529 = vadd.f32 0.0, %v528
  %v530 = vpop.f32.mrb[0].mxu0
  %v531 = vpop.f32.mrb[0].mxu0
  %v532 = vadd.f32 0.0, %v531
  %v533 = vpop.f32.mrb[0].mxu0
  %534 = vmatprep.mubr.bf16.mxu0 0
  %535 = vmatmul.mubr.bf16.gmra.mrb[0].mxu0 %v421
  %v536 = vpop.f32.mrb[0].mxu0
  %v537 = vadd.f32 0.0, %v536
  %v538 = vpop.f32.mrb[0].mxu0
  %v539 = vpop.f32.mrb[0].mxu0
  %v540 = vadd.f32 0.0, %v539
  %v541 = vpop.f32.mrb[0].mxu0
  %542 = vmatprep.mubr.bf16.mxu0 0
  %543 = vmatmul.mubr.bf16.gmra.mrb[0].mxu0 %v424
  %v544 = vpop.f32.mrb[0].mxu0
  %v545 = vadd.f32 0.0, %v544
  %v546 = vpop.f32.mrb[0].mxu0
  %v547 = vpop.f32.mrb[0].mxu0
  %v548 = vadd.f32 0.0, %v547
  %v549 = vpop.f32.mrb[0].mxu0
  %550 = vmatprep.mubr.bf16.mxu0 0
  %551 = vmatmul.mubr.bf16.gmra.mrb[0].mxu0 %v427
  %v552 = vpop.f32.mrb[0].mxu0
  %v553 = vadd.f32 0.0, %v552
  %v554 = vpop.f32.mrb[0].mxu0
  %v555 = vpop.f32.mrb[0].mxu0
  %v556 = vadd.f32 0.0, %v555
  %v557 = vpop.f32.mrb[0].mxu0
  %558 = vmatprep.mubr.bf16.mxu0 0
  %559 = vmatmul.mubr.bf16.gmra.mrb[0].mxu0 %v430
  %v560 = vpop.f32.mrb[0].mxu0
  %v561 = vadd.f32 0.0, %v560
  %v562 = vpop.f32.mrb[0].mxu0
  %v563 = vpop.f32.mrb[0].mxu0
  %v564 = vadd.f32 0.0, %v563
  %v565 = vpop.f32.mrb[0].mxu0
  %566 = vmatprep.mubr.bf16.mxu0 0
  %567 = vmatmul.mubr.bf16.gmra.mrb[0].mxu0 %v433
  %v568 = vpop.f32.mrb[0].mxu0
  %v569 = vadd.f32 0.0, %v568
  %v570 = vpop.f32.mrb[0].mxu0
  %v571 = vpop.f32.mrb[0].mxu0
  %v572 = vadd.f32 0.0, %v571
  %v573 = vpop.f32.mrb[0].mxu0
  %574 = vmatprep.mubr.bf16.mxu0 0
  %575 = vmatmul.mubr.bf16.gmra.mrb[0].mxu0 %v436
  %v576 = vpop.f32.mrb[0].mxu0
  %v577 = vadd.f32 0.0, %v576
  %v578 = vpop.f32.mrb[0].mxu0
  %v579 = vpop.f32.mrb[0].mxu0
  %v580 = vadd.f32 0.0, %v579
  %v581 = vpop.f32.mrb[0].mxu0
  %582 = vmatprep.mubr.bf16.mxu0 0
  %583 = vmatmul.mubr.bf16.gmra.mrb[0].mxu0 %v439
  %v584 = vpop.f32.mrb[0].mxu0
  %v585 = vadd.f32 0.0, %v584
  %v586 = vpop.f32.mrb[0].mxu0
  %v587 = vpop.f32.mrb[0].mxu0
  %v588 = vadd.f32 0.0, %v587
  %v589 = vpop.f32.mrb[0].mxu0
  %590 = vmatprep.mubr.bf16.mxu0 0
  %591 = vmatmul.mubr.bf16.gmra.mrb[0].mxu0 %v442
  %v592 = vpop.f32.mrb[0].mxu0
  %v593 = vadd.f32 0.0, %v592
  %v594 = vpop.f32.mrb[0].mxu0
  %v595 = vpop.f32.mrb[0].mxu0
  %v596 = vadd.f32 0.0, %v595
  %v597 = vpop.f32.mrb[0].mxu0
  %598 = vmatprep.mubr.bf16.mxu0 0
  %599 = vmatmul.mubr.bf16.gmra.mrb[0].mxu0 %v445
  %v600 = vpop.f32.mrb[0].mxu0
  %v601 = vadd.f32 0.0, %v600
  %v602 = vpop.f32.mrb[0].mxu0
  %v603 = vpop.f32.mrb[0].mxu0
  %v604 = vadd.f32 0.0, %v603
  %v605 = vpop.f32.mrb[0].mxu0
  %606 = vmatprep.mubr.bf16.mxu0 0
  %607 = vmatmul.mubr.bf16.gmra.mrb[0].mxu0 %v448
  %v608 = vpop.f32.mrb[0].mxu0
  %v609 = vadd.f32 0.0, %v608
  %v610 = vpop.f32.mrb[0].mxu0
  %v611 = vpop.f32.mrb[0].mxu0
  %v612 = vadd.f32 0.0, %v611
  %v613 = vpop.f32.mrb[0].mxu0
  %614 = vdwg.mxu0
  %v623 = vunpack.c.l.b16 %v211
  %v624 = vunpack.c.l.b16 %v212
  %v625 = vunpack.c.l.b16 %v213
  %v626 = vunpack.c.l.b16 %v214
  %v627 = vunpack.c.l.b16 %v215
  %v628 = vunpack.c.l.b16 %v216
  %v629 = vunpack.c.l.b16 %v217
  %v630 = vunpack.c.l.b16 %v218
  %v631 = vpack.c.b16 %v624, %v623
  %v632 = vpack.c.b16 %v626, %v625
  %v633 = vpack.c.b16 %v628, %v627
  %v634 = vpack.c.b16 %v630, %v629
  %v639 = vsel %vm401, %v349, 0
  %v642 = vsel %vm401, %v351, 0
  %v645 = vsel %vm401, %v353, 0
  %v648 = vsel %vm401, %v355, 0
  %v651 = vsel %vm401, %v357, 0
  %v654 = vsel %vm401, %v359, 0
  %v657 = vsel %vm401, %v361, 0
  %v660 = vsel %vm401, %v363, 0
  %v663 = vsel %vm401, %v365, 0
  %v666 = vsel %vm401, %v367, 0
  %v669 = vsel %vm401, %v369, 0
  %v672 = vsel %vm401, %v371, 0
  %v675 = vsel %vm401, %v373, 0
  %v678 = vsel %vm401, %v375, 0
  %v681 = vsel %vm401, %v377, 0
  %v684 = vsel %vm450, %v634, 0
  %686 = vmatprep.subr.bf16.mxu0 0
  %687 = vmatpush1.bf16.msra.mxu0 %v631
  %688 = vmatprep.subr.bf16.mxu0 0
  %689 = vmatpush1.bf16.msra.mxu0 %v632
  %690 = vmatprep.subr.bf16.mxu0 0
  %691 = vmatpush1.bf16.msra.mxu0 %v633
  %692 = vmatprep.subr.bf16.mxu0 0
  %693 = vmatpush1.bf16.msra.mxu0 %v684
  %694 = vmatprep.subr.bf16.mxu0 0
  %695 = vmatpush1.bf16.msra.mxu0 0
  %696 = vmatprep.subr.bf16.mxu0 0
  %697 = vmatpush1.bf16.msra.mxu0 0
  %698 = vmatprep.subr.bf16.mxu0 0
  %699 = vmatpush1.bf16.msra.mxu0 0
  %700 = vmatprep.subr.bf16.mxu0 0
  %701 = vmatpush1.bf16.msra.mxu0 0
  %702 = vmatprep.subr.bf16.mxu0 0
  %703 = vmatpush1.bf16.msra.mxu0 0
  %704 = vmatprep.subr.bf16.mxu0 0
  %705 = vmatpush1.bf16.msra.mxu0 0
  %706 = vmatprep.subr.bf16.mxu0 0
  %707 = vmatpush1.bf16.msra.mxu0 0
  %708 = vmatprep.subr.bf16.mxu0 0
  %709 = vmatpush1.bf16.msra.mxu0 0
  %710 = vmatprep.subr.bf16.mxu0 0
  %711 = vmatpush1.bf16.msra.mxu0 0
  %712 = vmatprep.subr.bf16.mxu0 0
  %713 = vmatpush1.bf16.msra.mxu0 0
  %714 = vmatprep.subr.bf16.mxu0 0
  %715 = vmatpush1.bf16.msra.mxu0 0
  %716 = vmatprep.subr.bf16.mxu0 0
  %717 = vmatpush1.bf16.msra.mxu0 0
  %718 = vmatprep.mubr.bf16.mxu0 0
  %719 = vmatmul.mubr.bf16.gmra.mrb[0].mxu0 %v448
  %v720 = vpop.f32.mrb[0].mxu0
  %v721 = vadd.f32 %v489, %v720
  %v722 = vpop.f32.mrb[0].mxu0
  %v723 = vpop.f32.mrb[0].mxu0
  %v724 = vadd.f32 %v492, %v723
  %v725 = vpop.f32.mrb[0].mxu0
  %726 = vmatprep.mubr.bf16.mxu0 0
  %727 = vmatmul.mubr.bf16.gmra.mrb[0].mxu0 %v639
  %v728 = vpop.f32.mrb[0].mxu0
  %v729 = vadd.f32 %v497, %v728
  %v730 = vpop.f32.mrb[0].mxu0
  %v731 = vpop.f32.mrb[0].mxu0
  %v732 = vadd.f32 %v500, %v731
  %v733 = vpop.f32.mrb[0].mxu0
  %734 = vmatprep.mubr.bf16.mxu0 0
  %735 = vmatmul.mubr.bf16.gmra.mrb[0].mxu0 %v642
  %v736 = vpop.f32.mrb[0].mxu0
  %v737 = vadd.f32 %v505, %v736
  %v738 = vpop.f32.mrb[0].mxu0
  %v739 = vpop.f32.mrb[0].mxu0
  %v740 = vadd.f32 %v508, %v739
  %v741 = vpop.f32.mrb[0].mxu0
  %742 = vmatprep.mubr.bf16.mxu0 0
  %743 = vmatmul.mubr.bf16.gmra.mrb[0].mxu0 %v645
  %v744 = vpop.f32.mrb[0].mxu0
  %v745 = vadd.f32 %v513, %v744
  %v746 = vpop.f32.mrb[0].mxu0
  %v747 = vpop.f32.mrb[0].mxu0
  %v748 = vadd.f32 %v516, %v747
  %v749 = vpop.f32.mrb[0].mxu0
  %750 = vmatprep.mubr.bf16.mxu0 0
  %751 = vmatmul.mubr.bf16.gmra.mrb[0].mxu0 %v648
  %v752 = vpop.f32.mrb[0].mxu0
  %v753 = vadd.f32 %v521, %v752
  %v754 = vpop.f32.mrb[0].mxu0
  %v755 = vpop.f32.mrb[0].mxu0
  %v756 = vadd.f32 %v524, %v755
  %v757 = vpop.f32.mrb[0].mxu0
  %758 = vmatprep.mubr.bf16.mxu0 0
  %759 = vmatmul.mubr.bf16.gmra.mrb[0].mxu0 %v651
  %v760 = vpop.f32.mrb[0].mxu0
  %v761 = vadd.f32 %v529, %v760
  %v762 = vpop.f32.mrb[0].mxu0
  %v763 = vpop.f32.mrb[0].mxu0
  %v764 = vadd.f32 %v532, %v763
  %v765 = vpop.f32.mrb[0].mxu0
  %766 = vmatprep.mubr.bf16.mxu0 0
  %767 = vmatmul.mubr.bf16.gmra.mrb[0].mxu0 %v654
  %v768 = vpop.f32.mrb[0].mxu0
  %v769 = vadd.f32 %v537, %v768
  %v770 = vpop.f32.mrb[0].mxu0
  %v771 = vpop.f32.mrb[0].mxu0
  %v772 = vadd.f32 %v540, %v771
  %v773 = vpop.f32.mrb[0].mxu0
  %774 = vmatprep.mubr.bf16.mxu0 0
  %775 = vmatmul.mubr.bf16.gmra.mrb[0].mxu0 %v657
  %v776 = vpop.f32.mrb[0].mxu0
  %v777 = vadd.f32 %v545, %v776
  %v778 = vpop.f32.mrb[0].mxu0
  %v779 = vpop.f32.mrb[0].mxu0
  %v780 = vadd.f32 %v548, %v779
  %v781 = vpop.f32.mrb[0].mxu0
  %782 = vmatprep.mubr.bf16.mxu0 0
  %783 = vmatmul.mubr.bf16.gmra.mrb[0].mxu0 %v660
  %v784 = vpop.f32.mrb[0].mxu0
  %v785 = vadd.f32 %v553, %v784
  %v786 = vpop.f32.mrb[0].mxu0
  %v787 = vpop.f32.mrb[0].mxu0
  %v788 = vadd.f32 %v556, %v787
  %v789 = vpop.f32.mrb[0].mxu0
  %790 = vmatprep.mubr.bf16.mxu0 0
  %791 = vmatmul.mubr.bf16.gmra.mrb[0].mxu0 %v663
  %v792 = vpop.f32.mrb[0].mxu0
  %v793 = vadd.f32 %v561, %v792
  %v794 = vpop.f32.mrb[0].mxu0
  %v795 = vpop.f32.mrb[0].mxu0
  %v796 = vadd.f32 %v564, %v795
  %v797 = vpop.f32.mrb[0].mxu0
  %798 = vmatprep.mubr.bf16.mxu0 0
  %799 = vmatmul.mubr.bf16.gmra.mrb[0].mxu0 %v666
  %v800 = vpop.f32.mrb[0].mxu0
  %v801 = vadd.f32 %v569, %v800
  %v802 = vpop.f32.mrb[0].mxu0
  %v803 = vpop.f32.mrb[0].mxu0
  %v804 = vadd.f32 %v572, %v803
  %v805 = vpop.f32.mrb[0].mxu0
  %806 = vmatprep.mubr.bf16.mxu0 0
  %807 = vmatmul.mubr.bf16.gmra.mrb[0].mxu0 %v669
  %v808 = vpop.f32.mrb[0].mxu0
  %v809 = vadd.f32 %v577, %v808
  %v810 = vpop.f32.mrb[0].mxu0
  %v811 = vpop.f32.mrb[0].mxu0
  %v812 = vadd.f32 %v580, %v811
  %v813 = vpop.f32.mrb[0].mxu0
  %814 = vmatprep.mubr.bf16.mxu0 0
  %815 = vmatmul.mubr.bf16.gmra.mrb[0].mxu0 %v672
  %v816 = vpop.f32.mrb[0].mxu0
  %v817 = vadd.f32 %v585, %v816
  %v818 = vpop.f32.mrb[0].mxu0
  %v819 = vpop.f32.mrb[0].mxu0
  %v820 = vadd.f32 %v588, %v819
  %v821 = vpop.f32.mrb[0].mxu0
  %822 = vmatprep.mubr.bf16.mxu0 0
  %823 = vmatmul.mubr.bf16.gmra.mrb[0].mxu0 %v675
  %v824 = vpop.f32.mrb[0].mxu0
  %v825 = vadd.f32 %v593, %v824
  %v826 = vpop.f32.mrb[0].mxu0
  %v827 = vpop.f32.mrb[0].mxu0
  %v828 = vadd.f32 %v596, %v827
  %v829 = vpop.f32.mrb[0].mxu0
  %830 = vmatprep.mubr.bf16.mxu0 0
  %831 = vmatmul.mubr.bf16.gmra.mrb[0].mxu0 %v678
  %v832 = vpop.f32.mrb[0].mxu0
  %v833 = vadd.f32 %v601, %v832
  %v834 = vpop.f32.mrb[0].mxu0
  %v835 = vpop.f32.mrb[0].mxu0
  %v836 = vadd.f32 %v604, %v835
  %v837 = vpop.f32.mrb[0].mxu0
  %838 = vmatprep.mubr.bf16.mxu0 0
  %839 = vmatmul.mubr.bf16.gmra.mrb[0].mxu0 %v681
  %v840 = vpop.f32.mrb[0].mxu0
  %v841 = vadd.f32 %v609, %v840
  %v842 = vpop.f32.mrb[0].mxu0
  %v843 = vpop.f32.mrb[0].mxu0
  %v844 = vadd.f32 %v612, %v843
  %v845 = vpop.f32.mrb[0].mxu0
  %846 = vdwg.mxu0
  %v848 = vlaneseq
  %v849 = vshrl.u32 %v848, 7
  %v850 = vsub.s32 0, %v849
  %v851 = vrot.slane %v227, %v850
  %v853 = vadd.f32 %v721, %v851
  %v854 = vadd.f32 %v724, %v851
  %v855 = vadd.f32 %v729, %v851
  %v856 = vadd.f32 %v732, %v851
  %v857 = vadd.f32 %v737, %v851
  %v858 = vadd.f32 %v740, %v851
  %v859 = vadd.f32 %v745, %v851
  %v860 = vadd.f32 %v748, %v851
  %v861 = vadd.f32 %v753, %v851
  %v862 = vadd.f32 %v756, %v851
  %v863 = vadd.f32 %v761, %v851
  %v864 = vadd.f32 %v764, %v851
  %v865 = vadd.f32 %v769, %v851
  %v866 = vadd.f32 %v772, %v851
  %v867 = vadd.f32 %v777, %v851
  %v868 = vadd.f32 %v780, %v851
  %v869 = vadd.f32 %v785, %v851
  %v870 = vadd.f32 %v788, %v851
  %v871 = vadd.f32 %v793, %v851
  %v872 = vadd.f32 %v796, %v851
  %v873 = vadd.f32 %v801, %v851
  %v874 = vadd.f32 %v804, %v851
  %v875 = vadd.f32 %v809, %v851
  %v876 = vadd.f32 %v812, %v851
  %v877 = vadd.f32 %v817, %v851
  %v878 = vadd.f32 %v820, %v851
  %v879 = vadd.f32 %v825, %v851
  %v880 = vadd.f32 %v828, %v851
  %v881 = vadd.f32 %v833, %v851
  %v882 = vadd.f32 %v836, %v851
  %v883 = vadd.f32 %v841, %v851
  %v884 = vadd.f32 %v844, %v851
  %v885 = vld [vmem:[%s13] sm:$0xf]
  %v886 = vld [vmem:[%s13 + $0x4] sm:$0xf]
  %v887 = vld [vmem:[%s13 + $0x8] sm:$0xf]
  %v888 = vld [vmem:[%s13 + $0xc] sm:$0xf]
  %v889 = vld [vmem:[%s13 + $0x10] sm:$0xf]
  %v890 = vld [vmem:[%s13 + $0x14] sm:$0xf]
  %v891 = vld [vmem:[%s13 + $0x18] sm:$0xf]
  %v892 = vld [vmem:[%s13 + $0x1c] sm:$0xf]
  %v893 = vld [vmem:[%s13 + $0x20] sm:$0xf]
  %v894 = vld [vmem:[%s13 + $0x24] sm:$0xf]
  %v895 = vld [vmem:[%s13 + $0x28] sm:$0xf]
  %v896 = vld [vmem:[%s13 + $0x2c] sm:$0xf]
  %v897 = vld [vmem:[%s13 + $0x30] sm:$0x3]
  %v898 = vld [vmem:[%s15] sm:$0xf]
  %v899 = vld [vmem:[%s15 + $0x4] sm:$0xf]
  %v900 = vld [vmem:[%s15 + $0x8] sm:$0xf]
  %v901 = vld [vmem:[%s15 + $0xc] sm:$0xf]
  %v902 = vld [vmem:[%s15 + $0x10] sm:$0xf]
  %v903 = vld [vmem:[%s15 + $0x14] sm:$0xf]
  %v904 = vld [vmem:[%s15 + $0x18] sm:$0xf]
  %v905 = vld [vmem:[%s15 + $0x1c] sm:$0xf]
  %v906 = vld [vmem:[%s15 + $0x20] sm:$0xf]
  %v907 = vld [vmem:[%s15 + $0x24] sm:$0xf]
  %v908 = vld [vmem:[%s15 + $0x28] sm:$0xf]
  %v909 = vld [vmem:[%s15 + $0x2c] sm:$0xf]
  %v910 = vld [vmem:[%s15 + $0x30] sm:$0x3]
  %v911 = vld [vmem:[%s17] sm:$0x1]
  %v912 = vpack.c.bf16 0.0, 0.0
  %v913 = vpack.c.bf16 %v854, %v853
  %v914 = vpack.c.bf16 %v856, %v855
  %v915 = vpack.c.bf16 %v858, %v857
  %v916 = vpack.c.bf16 %v860, %v859
  %v917 = vpack.c.bf16 %v862, %v861
  %v918 = vpack.c.bf16 %v864, %v863
  %v919 = vpack.c.bf16 %v866, %v865
  %v920 = vpack.c.bf16 %v868, %v867
  %v921 = vpack.c.bf16 %v870, %v869
  %v922 = vpack.c.bf16 %v872, %v871
  %v923 = vpack.c.bf16 %v874, %v873
  %v924 = vpack.c.bf16 %v876, %v875
  %v925 = vpack.c.bf16 %v878, %v877
  %v926 = vpack.c.bf16 %v880, %v879
  %v927 = vpack.c.bf16 %v882, %v881
  %v928 = vpack.c.bf16 %v884, %v883
  %v942 = vunpack.c.l.b16 %v898
  %v943 = vunpack.c.l.b16 %v899
  %v944 = vunpack.c.l.b16 %v900
  %v945 = vunpack.c.l.b16 %v901
  %v946 = vunpack.c.l.b16 %v902
  %v947 = vunpack.c.l.b16 %v903
  %v948 = vunpack.c.l.b16 %v904
  %v949 = vunpack.c.l.b16 %v905
  %v950 = vunpack.c.l.b16 %v906
  %v951 = vunpack.c.l.b16 %v907
  %v952 = vunpack.c.l.b16 %v908
  %v953 = vunpack.c.l.b16 %v909
  %v954 = vunpack.c.l.b16 %v910
  %v955 = vpack.c.b16 %v943, %v942
  %v956 = vpack.c.b16 %v945, %v944
  %v957 = vpack.c.b16 %v947, %v946
  %v958 = vpack.c.b16 %v949, %v948
  %v959 = vpack.c.b16 %v951, %v950
  %v960 = vpack.c.b16 %v953, %v952
  %v961 = vpack.c.b16 %v954, %v954
  %vm968 = vcmask 818176
  %v970 = vsel %vm968, %v913, 0
  %v973 = vsel %vm968, %v914, 0
  %v976 = vsel %vm968, %v915, 0
  %v979 = vsel %vm968, %v916, 0
  %v982 = vsel %vm968, %v917, 0
  %v985 = vsel %vm968, %v918, 0
  %v988 = vsel %vm968, %v919, 0
  %v991 = vsel %vm968, %v920, 0
  %v994 = vsel %vm968, %v921, 0
  %v997 = vsel %vm968, %v922, 0
  %v1000 = vsel %vm968, %v923, 0
  %v1003 = vsel %vm968, %v924, 0
  %v1006 = vsel %vm968, %v925, 0
  %v1009 = vsel %vm968, %v926, 0
  %v1012 = vsel %vm968, %v927, 0
  %v1015 = vsel %vm968, %v928, 0
  %v1018 = vsel %vm968, %v912, 0
  %vm1020 = vcmask 1041408
  %v1022 = vsel %vm1020, %v961, 0
  %1024 = vmatprep.subr.bf16.mxu0 0
  %1025 = vmatpush1.bf16.msra.mxu0 %v955
  %1026 = vmatprep.subr.bf16.mxu0 0
  %1027 = vmatpush1.bf16.msra.mxu0 %v956
  %1028 = vmatprep.subr.bf16.mxu0 0
  %1029 = vmatpush1.bf16.msra.mxu0 %v957
  %1030 = vmatprep.subr.bf16.mxu0 0
  %1031 = vmatpush1.bf16.msra.mxu0 %v958
  %1032 = vmatprep.subr.bf16.mxu0 0
  %1033 = vmatpush1.bf16.msra.mxu0 %v959
  %1034 = vmatprep.subr.bf16.mxu0 0
  %1035 = vmatpush1.bf16.msra.mxu0 %v960
  %1036 = vmatprep.subr.bf16.mxu0 0
  %1037 = vmatpush1.bf16.msra.mxu0 %v1022
  %1038 = vmatprep.subr.bf16.mxu0 0
  %1039 = vmatpush1.bf16.msra.mxu0 0
  %1040 = vmatprep.subr.bf16.mxu0 0
  %1041 = vmatpush1.bf16.msra.mxu0 0
  %1042 = vmatprep.subr.bf16.mxu0 0
  %1043 = vmatpush1.bf16.msra.mxu0 0
  %1044 = vmatprep.subr.bf16.mxu0 0
  %1045 = vmatpush1.bf16.msra.mxu0 0
  %1046 = vmatprep.subr.bf16.mxu0 0
  %1047 = vmatpush1.bf16.msra.mxu0 0
  %1048 = vmatprep.subr.bf16.mxu0 0
  %1049 = vmatpush1.bf16.msra.mxu0 0
  %1050 = vmatprep.subr.bf16.mxu0 0
  %1051 = vmatpush1.bf16.msra.mxu0 0
  %1052 = vmatprep.subr.bf16.mxu0 0
  %1053 = vmatpush1.bf16.msra.mxu0 0
  %1054 = vmatprep.subr.bf16.mxu0 0
  %1055 = vmatpush1.bf16.msra.mxu0 0
  %1056 = vmatprep.mubr.bf16.mxu0 0
  %1057 = vmatmul.mubr.bf16.gmra.mrb[0].mxu0 %v970
  %v1058 = vpop.f32.mrb[0].mxu0
  %v1059 = vadd.f32 0.0, %v1058
  %v1060 = vpop.f32.mrb[0].mxu0
  %v1061 = vpop.f32.mrb[0].mxu0
  %v1062 = vadd.f32 0.0, %v1061
  %v1063 = vpop.f32.mrb[0].mxu0
  %1064 = vmatprep.mubr.bf16.mxu0 0
  %1065 = vmatmul.mubr.bf16.gmra.mrb[0].mxu0 %v973
  %v1066 = vpop.f32.mrb[0].mxu0
  %v1067 = vadd.f32 0.0, %v1066
  %v1068 = vpop.f32.mrb[0].mxu0
  %v1069 = vpop.f32.mrb[0].mxu0
  %v1070 = vadd.f32 0.0, %v1069
  %v1071 = vpop.f32.mrb[0].mxu0
  %1072 = vmatprep.mubr.bf16.mxu0 0
  %1073 = vmatmul.mubr.bf16.gmra.mrb[0].mxu0 %v976
  %v1074 = vpop.f32.mrb[0].mxu0
  %v1075 = vadd.f32 0.0, %v1074
  %v1076 = vpop.f32.mrb[0].mxu0
  %v1077 = vpop.f32.mrb[0].mxu0
  %v1078 = vadd.f32 0.0, %v1077
  %v1079 = vpop.f32.mrb[0].mxu0
  %1080 = vmatprep.mubr.bf16.mxu0 0
  %1081 = vmatmul.mubr.bf16.gmra.mrb[0].mxu0 %v979
  %v1082 = vpop.f32.mrb[0].mxu0
  %v1083 = vadd.f32 0.0, %v1082
  %v1084 = vpop.f32.mrb[0].mxu0
  %v1085 = vpop.f32.mrb[0].mxu0
  %v1086 = vadd.f32 0.0, %v1085
  %v1087 = vpop.f32.mrb[0].mxu0
  %1088 = vmatprep.mubr.bf16.mxu0 0
  %1089 = vmatmul.mubr.bf16.gmra.mrb[0].mxu0 %v982
  %v1090 = vpop.f32.mrb[0].mxu0
  %v1091 = vadd.f32 0.0, %v1090
  %v1092 = vpop.f32.mrb[0].mxu0
  %v1093 = vpop.f32.mrb[0].mxu0
  %v1094 = vadd.f32 0.0, %v1093
  %v1095 = vpop.f32.mrb[0].mxu0
  %1096 = vmatprep.mubr.bf16.mxu0 0
  %1097 = vmatmul.mubr.bf16.gmra.mrb[0].mxu0 %v985
  %v1098 = vpop.f32.mrb[0].mxu0
  %v1099 = vadd.f32 0.0, %v1098
  %v1100 = vpop.f32.mrb[0].mxu0
  %v1101 = vpop.f32.mrb[0].mxu0
  %v1102 = vadd.f32 0.0, %v1101
  %v1103 = vpop.f32.mrb[0].mxu0
  %1104 = vmatprep.mubr.bf16.mxu0 0
  %1105 = vmatmul.mubr.bf16.gmra.mrb[0].mxu0 %v988
  %v1106 = vpop.f32.mrb[0].mxu0
  %v1107 = vadd.f32 0.0, %v1106
  %v1108 = vpop.f32.mrb[0].mxu0
  %v1109 = vpop.f32.mrb[0].mxu0
  %v1110 = vadd.f32 0.0, %v1109
  %v1111 = vpop.f32.mrb[0].mxu0
  %1112 = vmatprep.mubr.bf16.mxu0 0
  %1113 = vmatmul.mubr.bf16.gmra.mrb[0].mxu0 %v991
  %v1114 = vpop.f32.mrb[0].mxu0
  %v1115 = vadd.f32 0.0, %v1114
  %v1116 = vpop.f32.mrb[0].mxu0
  %v1117 = vpop.f32.mrb[0].mxu0
  %v1118 = vadd.f32 0.0, %v1117
  %v1119 = vpop.f32.mrb[0].mxu0
  %1120 = vmatprep.mubr.bf16.mxu0 0
  %1121 = vmatmul.mubr.bf16.gmra.mrb[0].mxu0 %v994
  %v1122 = vpop.f32.mrb[0].mxu0
  %v1123 = vadd.f32 0.0, %v1122
  %v1124 = vpop.f32.mrb[0].mxu0
  %v1125 = vpop.f32.mrb[0].mxu0
  %v1126 = vadd.f32 0.0, %v1125
  %v1127 = vpop.f32.mrb[0].mxu0
  %1128 = vmatprep.mubr.bf16.mxu0 0
  %1129 = vmatmul.mubr.bf16.gmra.mrb[0].mxu0 %v997
  %v1130 = vpop.f32.mrb[0].mxu0
  %v1131 = vadd.f32 0.0, %v1130
  %v1132 = vpop.f32.mrb[0].mxu0
  %v1133 = vpop.f32.mrb[0].mxu0
  %v1134 = vadd.f32 0.0, %v1133
  %v1135 = vpop.f32.mrb[0].mxu0
  %1136 = vmatprep.mubr.bf16.mxu0 0
  %1137 = vmatmul.mubr.bf16.gmra.mrb[0].mxu0 %v1000
  %v1138 = vpop.f32.mrb[0].mxu0
  %v1139 = vadd.f32 0.0, %v1138
  %v1140 = vpop.f32.mrb[0].mxu0
  %v1141 = vpop.f32.mrb[0].mxu0
  %v1142 = vadd.f32 0.0, %v1141
  %v1143 = vpop.f32.mrb[0].mxu0
  %1144 = vmatprep.mubr.bf16.mxu0 0
  %1145 = vmatmul.mubr.bf16.gmra.mrb[0].mxu0 %v1003
  %v1146 = vpop.f32.mrb[0].mxu0
  %v1147 = vadd.f32 0.0, %v1146
  %v1148 = vpop.f32.mrb[0].mxu0
  %v1149 = vpop.f32.mrb[0].mxu0
  %v1150 = vadd.f32 0.0, %v1149
  %v1151 = vpop.f32.mrb[0].mxu0
  %1152 = vmatprep.mubr.bf16.mxu0 0
  %1153 = vmatmul.mubr.bf16.gmra.mrb[0].mxu0 %v1006
  %v1154 = vpop.f32.mrb[0].mxu0
  %v1155 = vadd.f32 0.0, %v1154
  %v1156 = vpop.f32.mrb[0].mxu0
  %v1157 = vpop.f32.mrb[0].mxu0
  %v1158 = vadd.f32 0.0, %v1157
  %v1159 = vpop.f32.mrb[0].mxu0
  %1160 = vmatprep.mubr.bf16.mxu0 0
  %1161 = vmatmul.mubr.bf16.gmra.mrb[0].mxu0 %v1009
  %v1162 = vpop.f32.mrb[0].mxu0
  %v1163 = vadd.f32 0.0, %v1162
  %v1164 = vpop.f32.mrb[0].mxu0
  %v1165 = vpop.f32.mrb[0].mxu0
  %v1166 = vadd.f32 0.0, %v1165
  %v1167 = vpop.f32.mrb[0].mxu0
  %1168 = vmatprep.mubr.bf16.mxu0 0
  %1169 = vmatmul.mubr.bf16.gmra.mrb[0].mxu0 %v1012
  %v1170 = vpop.f32.mrb[0].mxu0
  %v1171 = vadd.f32 0.0, %v1170
  %v1172 = vpop.f32.mrb[0].mxu0
  %v1173 = vpop.f32.mrb[0].mxu0
  %v1174 = vadd.f32 0.0, %v1173
  %v1175 = vpop.f32.mrb[0].mxu0
  %1176 = vmatprep.mubr.bf16.mxu0 0
  %1177 = vmatmul.mubr.bf16.gmra.mrb[0].mxu0 %v1015
  %v1178 = vpop.f32.mrb[0].mxu0
  %v1179 = vadd.f32 0.0, %v1178
  %v1180 = vpop.f32.mrb[0].mxu0
  %v1181 = vpop.f32.mrb[0].mxu0
  %v1182 = vadd.f32 0.0, %v1181
  %v1183 = vpop.f32.mrb[0].mxu0
  %1184 = vmatprep.mubr.bf16.mxu0 0
  %1185 = vmatmul.mubr.bf16.gmra.mrb[0].mxu0 %v1018
  %v1186 = vpop.f32.mrb[0].mxu0
  %v1187 = vadd.f32 0.0, %v1186
  %v1188 = vpop.f32.mrb[0].mxu0
  %v1189 = vpop.f32.mrb[0].mxu0
  %v1190 = vadd.f32 0.0, %v1189
  %v1191 = vpop.f32.mrb[0].mxu0
  %1192 = vdwg.mxu0
  %v1206 = vunpack.c.l.b16 %v885
  %v1207 = vunpack.c.l.b16 %v886
  %v1208 = vunpack.c.l.b16 %v887
  %v1209 = vunpack.c.l.b16 %v888
  %v1210 = vunpack.c.l.b16 %v889
  %v1211 = vunpack.c.l.b16 %v890
  %v1212 = vunpack.c.l.b16 %v891
  %v1213 = vunpack.c.l.b16 %v892
  %v1214 = vunpack.c.l.b16 %v893
  %v1215 = vunpack.c.l.b16 %v894
  %v1216 = vunpack.c.l.b16 %v895
  %v1217 = vunpack.c.l.b16 %v896
  %v1218 = vunpack.c.l.b16 %v897
  %v1219 = vpack.c.b16 %v1207, %v1206
  %v1220 = vpack.c.b16 %v1209, %v1208
  %v1221 = vpack.c.b16 %v1211, %v1210
  %v1222 = vpack.c.b16 %v1213, %v1212
  %v1223 = vpack.c.b16 %v1215, %v1214
  %v1224 = vpack.c.b16 %v1217, %v1216
  %v1225 = vpack.c.b16 %v1218, %v1218
  %v1233 = vsel %vm1020, %v1225, 0
  %1235 = vmatprep.subr.bf16.mxu0 0
  %1236 = vmatpush1.bf16.msra.mxu0 %v1219
  %1237 = vmatprep.subr.bf16.mxu0 0
  %1238 = vmatpush1.bf16.msra.mxu0 %v1220
  %1239 = vmatprep.subr.bf16.mxu0 0
  %1240 = vmatpush1.bf16.msra.mxu0 %v1221
  %1241 = vmatprep.subr.bf16.mxu0 0
  %1242 = vmatpush1.bf16.msra.mxu0 %v1222
  %1243 = vmatprep.subr.bf16.mxu0 0
  %1244 = vmatpush1.bf16.msra.mxu0 %v1223
  %1245 = vmatprep.subr.bf16.mxu0 0
  %1246 = vmatpush1.bf16.msra.mxu0 %v1224
  %1247 = vmatprep.subr.bf16.mxu0 0
  %1248 = vmatpush1.bf16.msra.mxu0 %v1233
  %1249 = vmatprep.subr.bf16.mxu0 0
  %1250 = vmatpush1.bf16.msra.mxu0 0
  %1251 = vmatprep.subr.bf16.mxu0 0
  %1252 = vmatpush1.bf16.msra.mxu0 0
  %1253 = vmatprep.subr.bf16.mxu0 0
  %1254 = vmatpush1.bf16.msra.mxu0 0
  %1255 = vmatprep.subr.bf16.mxu0 0
  %1256 = vmatpush1.bf16.msra.mxu0 0
  %1257 = vmatprep.subr.bf16.mxu0 0
  %1258 = vmatpush1.bf16.msra.mxu0 0
  %1259 = vmatprep.subr.bf16.mxu0 0
  %1260 = vmatpush1.bf16.msra.mxu0 0
  %1261 = vmatprep.subr.bf16.mxu0 0
  %1262 = vmatpush1.bf16.msra.mxu0 0
  %1263 = vmatprep.subr.bf16.mxu0 0
  %1264 = vmatpush1.bf16.msra.mxu0 0
  %1265 = vmatprep.subr.bf16.mxu0 0
  %1266 = vmatpush1.bf16.msra.mxu0 0
  %1267 = vmatprep.mubr.bf16.mxu0 0
  %1268 = vmatmul.mubr.bf16.gmra.mrb[0].mxu0 %v1018
  %v1269 = vpop.f32.mrb[0].mxu0
  %v1270 = vadd.f32 %v1059, %v1269
  %v1271 = vpop.f32.mrb[0].mxu0
  %v1272 = vpop.f32.mrb[0].mxu0
  %v1273 = vadd.f32 %v1062, %v1272
  %v1274 = vpop.f32.mrb[0].mxu0
  %1275 = vmatprep.mubr.bf16.mxu0 0
  %1276 = vmatmul.mubr.bf16.gmra.mrb[0].mxu0 %v970
  %v1277 = vpop.f32.mrb[0].mxu0
  %v1278 = vadd.f32 %v1067, %v1277
  %v1279 = vpop.f32.mrb[0].mxu0
  %v1280 = vpop.f32.mrb[0].mxu0
  %v1281 = vadd.f32 %v1070, %v1280
  %v1282 = vpop.f32.mrb[0].mxu0
  %1283 = vmatprep.mubr.bf16.mxu0 0
  %1284 = vmatmul.mubr.bf16.gmra.mrb[0].mxu0 %v973
  %v1285 = vpop.f32.mrb[0].mxu0
  %v1286 = vadd.f32 %v1075, %v1285
  %v1287 = vpop.f32.mrb[0].mxu0
  %v1288 = vpop.f32.mrb[0].mxu0
  %v1289 = vadd.f32 %v1078, %v1288
  %v1290 = vpop.f32.mrb[0].mxu0
  %1291 = vmatprep.mubr.bf16.mxu0 0
  %1292 = vmatmul.mubr.bf16.gmra.mrb[0].mxu0 %v976
  %v1293 = vpop.f32.mrb[0].mxu0
  %v1294 = vadd.f32 %v1083, %v1293
  %v1295 = vpop.f32.mrb[0].mxu0
  %v1296 = vpop.f32.mrb[0].mxu0
  %v1297 = vadd.f32 %v1086, %v1296
  %v1298 = vpop.f32.mrb[0].mxu0
  %1299 = vmatprep.mubr.bf16.mxu0 0
  %1300 = vmatmul.mubr.bf16.gmra.mrb[0].mxu0 %v979
  %v1301 = vpop.f32.mrb[0].mxu0
  %v1302 = vadd.f32 %v1091, %v1301
  %v1303 = vpop.f32.mrb[0].mxu0
  %v1304 = vpop.f32.mrb[0].mxu0
  %v1305 = vadd.f32 %v1094, %v1304
  %v1306 = vpop.f32.mrb[0].mxu0
  %1307 = vmatprep.mubr.bf16.mxu0 0
  %1308 = vmatmul.mubr.bf16.gmra.mrb[0].mxu0 %v982
  %v1309 = vpop.f32.mrb[0].mxu0
  %v1310 = vadd.f32 %v1099, %v1309
  %v1311 = vpop.f32.mrb[0].mxu0
  %v1312 = vpop.f32.mrb[0].mxu0
  %v1313 = vadd.f32 %v1102, %v1312
  %v1314 = vpop.f32.mrb[0].mxu0
  %1315 = vmatprep.mubr.bf16.mxu0 0
  %1316 = vmatmul.mubr.bf16.gmra.mrb[0].mxu0 %v985
  %v1317 = vpop.f32.mrb[0].mxu0
  %v1318 = vadd.f32 %v1107, %v1317
  %v1319 = vpop.f32.mrb[0].mxu0
  %v1320 = vpop.f32.mrb[0].mxu0
  %v1321 = vadd.f32 %v1110, %v1320
  %v1322 = vpop.f32.mrb[0].mxu0
  %1323 = vmatprep.mubr.bf16.mxu0 0
  %1324 = vmatmul.mubr.bf16.gmra.mrb[0].mxu0 %v988
  %v1325 = vpop.f32.mrb[0].mxu0
  %v1326 = vadd.f32 %v1115, %v1325
  %v1327 = vpop.f32.mrb[0].mxu0
  %v1328 = vpop.f32.mrb[0].mxu0
  %v1329 = vadd.f32 %v1118, %v1328
  %v1330 = vpop.f32.mrb[0].mxu0
  %1331 = vmatprep.mubr.bf16.mxu0 0
  %1332 = vmatmul.mubr.bf16.gmra.mrb[0].mxu0 %v991
  %v1333 = vpop.f32.mrb[0].mxu0
  %v1334 = vadd.f32 %v1123, %v1333
  %v1335 = vpop.f32.mrb[0].mxu0
  %v1336 = vpop.f32.mrb[0].mxu0
  %v1337 = vadd.f32 %v1126, %v1336
  %v1338 = vpop.f32.mrb[0].mxu0
  %1339 = vmatprep.mubr.bf16.mxu0 0
  %1340 = vmatmul.mubr.bf16.gmra.mrb[0].mxu0 %v994
  %v1341 = vpop.f32.mrb[0].mxu0
  %v1342 = vadd.f32 %v1131, %v1341
  %v1343 = vpop.f32.mrb[0].mxu0
  %v1344 = vpop.f32.mrb[0].mxu0
  %v1345 = vadd.f32 %v1134, %v1344
  %v1346 = vpop.f32.mrb[0].mxu0
  %1347 = vmatprep.mubr.bf16.mxu0 0
  %1348 = vmatmul.mubr.bf16.gmra.mrb[0].mxu0 %v997
  %v1349 = vpop.f32.mrb[0].mxu0
  %v1350 = vadd.f32 %v1139, %v1349
  %v1351 = vpop.f32.mrb[0].mxu0
  %v1352 = vpop.f32.mrb[0].mxu0
  %v1353 = vadd.f32 %v1142, %v1352
  %v1354 = vpop.f32.mrb[0].mxu0
  %1355 = vmatprep.mubr.bf16.mxu0 0
  %1356 = vmatmul.mubr.bf16.gmra.mrb[0].mxu0 %v1000
  %v1357 = vpop.f32.mrb[0].mxu0
  %v1358 = vadd.f32 %v1147, %v1357
  %v1359 = vpop.f32.mrb[0].mxu0
  %v1360 = vpop.f32.mrb[0].mxu0
  %v1361 = vadd.f32 %v1150, %v1360
  %v1362 = vpop.f32.mrb[0].mxu0
  %1363 = vmatprep.mubr.bf16.mxu0 0
  %1364 = vmatmul.mubr.bf16.gmra.mrb[0].mxu0 %v1003
  %v1365 = vpop.f32.mrb[0].mxu0
  %v1366 = vadd.f32 %v1155, %v1365
  %v1367 = vpop.f32.mrb[0].mxu0
  %v1368 = vpop.f32.mrb[0].mxu0
  %v1369 = vadd.f32 %v1158, %v1368
  %v1370 = vpop.f32.mrb[0].mxu0
  %1371 = vmatprep.mubr.bf16.mxu0 0
  %1372 = vmatmul.mubr.bf16.gmra.mrb[0].mxu0 %v1006
  %v1373 = vpop.f32.mrb[0].mxu0
  %v1374 = vadd.f32 %v1163, %v1373
  %v1375 = vpop.f32.mrb[0].mxu0
  %v1376 = vpop.f32.mrb[0].mxu0
  %v1377 = vadd.f32 %v1166, %v1376
  %v1378 = vpop.f32.mrb[0].mxu0
  %1379 = vmatprep.mubr.bf16.mxu0 0
  %1380 = vmatmul.mubr.bf16.gmra.mrb[0].mxu0 %v1009
  %v1381 = vpop.f32.mrb[0].mxu0
  %v1382 = vadd.f32 %v1171, %v1381
  %v1383 = vpop.f32.mrb[0].mxu0
  %v1384 = vpop.f32.mrb[0].mxu0
  %v1385 = vadd.f32 %v1174, %v1384
  %v1386 = vpop.f32.mrb[0].mxu0
  %1387 = vmatprep.mubr.bf16.mxu0 0
  %1388 = vmatmul.mubr.bf16.gmra.mrb[0].mxu0 %v1012
  %v1389 = vpop.f32.mrb[0].mxu0
  %v1390 = vadd.f32 %v1179, %v1389
  %v1391 = vpop.f32.mrb[0].mxu0
  %v1392 = vpop.f32.mrb[0].mxu0
  %v1393 = vadd.f32 %v1182, %v1392
  %v1394 = vpop.f32.mrb[0].mxu0
  %1395 = vmatprep.mubr.bf16.mxu0 0
  %1396 = vmatmul.mubr.bf16.gmra.mrb[0].mxu0 %v1015
  %v1397 = vpop.f32.mrb[0].mxu0
  %v1398 = vadd.f32 %v1187, %v1397
  %v1399 = vpop.f32.mrb[0].mxu0
  %v1400 = vpop.f32.mrb[0].mxu0
  %v1401 = vadd.f32 %v1190, %v1400
  %v1402 = vpop.f32.mrb[0].mxu0
  %1403 = vdwg.mxu0
  %v1405 = vlaneseq
  %v1406 = vshrl.u32 %v1405, 7
  %v1407 = vsub.s32 0, %v1406
  %v1408 = vrot.slane %v911, %v1407
  %v1410 = vadd.f32 %v1270, %v1408
  %v1411 = vadd.f32 %v1273, %v1408
  %v1412 = vadd.f32 %v1278, %v1408
  %v1413 = vadd.f32 %v1281, %v1408
  %v1414 = vadd.f32 %v1286, %v1408
  %v1415 = vadd.f32 %v1289, %v1408
  %v1416 = vadd.f32 %v1294, %v1408
  %v1417 = vadd.f32 %v1297, %v1408
  %v1418 = vadd.f32 %v1302, %v1408
  %v1419 = vadd.f32 %v1305, %v1408
  %v1420 = vadd.f32 %v1310, %v1408
  %v1421 = vadd.f32 %v1313, %v1408
  %v1422 = vadd.f32 %v1318, %v1408
  %v1423 = vadd.f32 %v1321, %v1408
  %v1424 = vadd.f32 %v1326, %v1408
  %v1425 = vadd.f32 %v1329, %v1408
  %v1426 = vadd.f32 %v1334, %v1408
  %v1427 = vadd.f32 %v1337, %v1408
  %v1428 = vadd.f32 %v1342, %v1408
  %v1429 = vadd.f32 %v1345, %v1408
  %v1430 = vadd.f32 %v1350, %v1408
  %v1431 = vadd.f32 %v1353, %v1408
  %v1432 = vadd.f32 %v1358, %v1408
  %v1433 = vadd.f32 %v1361, %v1408
  %v1434 = vadd.f32 %v1366, %v1408
  %v1435 = vadd.f32 %v1369, %v1408
  %v1436 = vadd.f32 %v1374, %v1408
  %v1437 = vadd.f32 %v1377, %v1408
  %v1438 = vadd.f32 %v1382, %v1408
  %v1439 = vadd.f32 %v1385, %v1408
  %v1440 = vadd.f32 %v1390, %v1408
  %v1441 = vadd.f32 %v1393, %v1408
  %v1442 = vadd.f32 %v1398, %v1408
  %v1443 = vadd.f32 %v1401, %v1408
  %v1444 = vld [vmem:[%s19] sm:$0xff]
  %v1445 = vld [vmem:[%s19 + $0x8] sm:$0xff]
  %v1446 = vld [vmem:[%s19 + $0x10] sm:$0xff]
  %v1447 = vld [vmem:[%s19 + $0x18] sm:$0xff]
  %v1448 = vld [vmem:[%s19 + $0x20] sm:$0xff]
  %v1449 = vld [vmem:[%s19 + $0x28] sm:$0xff]
  %v1450 = vld [vmem:[%s19 + $0x30] sm:$0xff]
  %v1451 = vld [vmem:[%s19 + $0x38] sm:$0xff]
  %v1452 = vld [vmem:[%s19 + $0x40] sm:$0xff]
  %v1453 = vld [vmem:[%s19 + $0x48] sm:$0xff]
  %v1454 = vld [vmem:[%s19 + $0x50] sm:$0xff]
  %v1455 = vld [vmem:[%s19 + $0x58] sm:$0xff]
  %v1456 = vld [vmem:[%s19 + $0x60] sm:$0xff]
  %v1457 = vld [vmem:[%s19 + $0x68] sm:$0xff]
  %v1458 = vld [vmem:[%s19 + $0x70] sm:$0xff]
  %v1459 = vld [vmem:[%s21] sm:$0xff]
  %v1460 = vld [vmem:[%s21 + $0x8] sm:$0xff]
  %v1461 = vld [vmem:[%s21 + $0x10] sm:$0xff]
  %v1462 = vld [vmem:[%s21 + $0x18] sm:$0xff]
  %v1463 = vld [vmem:[%s21 + $0x20] sm:$0xff]
  %v1464 = vld [vmem:[%s21 + $0x28] sm:$0xff]
  %v1465 = vld [vmem:[%s21 + $0x30] sm:$0xff]
  %v1466 = vld [vmem:[%s21 + $0x38] sm:$0xff]
  %v1467 = vld [vmem:[%s21 + $0x40] sm:$0xff]
  %v1468 = vld [vmem:[%s21 + $0x48] sm:$0xff]
  %v1469 = vld [vmem:[%s21 + $0x50] sm:$0xff]
  %v1470 = vld [vmem:[%s21 + $0x58] sm:$0xff]
  %v1471 = vld [vmem:[%s21 + $0x60] sm:$0xff]
  %v1472 = vld [vmem:[%s21 + $0x68] sm:$0xff]
  %v1473 = vld [vmem:[%s21 + $0x70] sm:$0xff]
  %v1474 = vld [vmem:[%s23] sm:$0x3]
  %v1475 = vpack.c.bf16 %v1411, %v1410
  %v1476 = vpack.c.bf16 %v1413, %v1412
  %v1477 = vpack.c.bf16 %v1415, %v1414
  %v1478 = vpack.c.bf16 %v1417, %v1416
  %v1479 = vpack.c.bf16 %v1419, %v1418
  %v1480 = vpack.c.bf16 %v1421, %v1420
  %v1481 = vpack.c.bf16 %v1423, %v1422
  %v1482 = vpack.c.bf16 %v1425, %v1424
  %v1483 = vpack.c.bf16 %v1427, %v1426
  %v1484 = vpack.c.bf16 %v1429, %v1428
  %v1485 = vpack.c.bf16 %v1431, %v1430
  %v1486 = vpack.c.bf16 %v1433, %v1432
  %v1487 = vpack.c.bf16 %v1435, %v1434
  %v1488 = vpack.c.bf16 %v1437, %v1436
  %v1489 = vpack.c.bf16 %v1439, %v1438
  %v1490 = vpack.c.bf16 %v1441, %v1440
  %v1491 = vpack.c.bf16 %v1443, %v1442
  %v1507 = vunpack.c.l.b16 %v1459
  %v1508 = vunpack.c.h.b16 %v1459
  %v1509 = vunpack.c.l.b16 %v1460
  %v1510 = vunpack.c.h.b16 %v1460
  %v1511 = vunpack.c.l.b16 %v1461
  %v1512 = vunpack.c.h.b16 %v1461
  %v1513 = vunpack.c.l.b16 %v1462
  %v1514 = vunpack.c.h.b16 %v1462
  %v1515 = vunpack.c.l.b16 %v1463
  %v1516 = vunpack.c.h.b16 %v1463
  %v1517 = vunpack.c.l.b16 %v1464
  %v1518 = vunpack.c.h.b16 %v1464
  %v1519 = vunpack.c.l.b16 %v1465
  %v1520 = vunpack.c.h.b16 %v1465
  %v1521 = vunpack.c.l.b16 %v1466
  %v1522 = vunpack.c.h.b16 %v1466
  %v1523 = vunpack.c.l.b16 %v1467
  %v1524 = vunpack.c.h.b16 %v1467
  %v1525 = vunpack.c.l.b16 %v1468
  %v1526 = vunpack.c.h.b16 %v1468
  %v1527 = vunpack.c.l.b16 %v1469
  %v1528 = vunpack.c.h.b16 %v1469
  %v1529 = vunpack.c.l.b16 %v1470
  %v1530 = vunpack.c.h.b16 %v1470
  %v1531 = vunpack.c.l.b16 %v1471
  %v1532 = vunpack.c.h.b16 %v1471
  %v1533 = vunpack.c.l.b16 %v1472
  %v1534 = vunpack.c.h.b16 %v1472
  %v1535 = vunpack.c.l.b16 %v1473
  %v1536 = vunpack.c.h.b16 %v1473
  %v1537 = vpack.c.b16 %v1509, %v1507
  %v1538 = vpack.c.b16 %v1510, %v1508
  %v1539 = vpack.c.b16 %v1513, %v1511
  %v1540 = vpack.c.b16 %v1514, %v1512
  %v1541 = vpack.c.b16 %v1517, %v1515
  %v1542 = vpack.c.b16 %v1518, %v1516
  %v1543 = vpack.c.b16 %v1521, %v1519
  %v1544 = vpack.c.b16 %v1522, %v1520
  %v1545 = vpack.c.b16 %v1525, %v1523
  %v1546 = vpack.c.b16 %v1526, %v1524
  %v1547 = vpack.c.b16 %v1529, %v1527
  %v1548 = vpack.c.b16 %v1530, %v1528
  %v1549 = vpack.c.b16 %v1533, %v1531
  %v1550 = vpack.c.b16 %v1534, %v1532
  %v1551 = vpack.c.b16 %v1535, %v1535
  %v1552 = vpack.c.b16 %v1536, %v1536
  %vm1567 = vcmask 982016
  %v1569 = vsel %vm1567, %v1475, 0
  %v1572 = vsel %vm1567, %v1476, 0
  %v1575 = vsel %vm1567, %v1477, 0
  %v1578 = vsel %vm1567, %v1478, 0
  %v1581 = vsel %vm1567, %v1479, 0
  %v1584 = vsel %vm1567, %v1480, 0
  %v1587 = vsel %vm1567, %v1481, 0
  %v1590 = vsel %vm1567, %v1482, 0
  %v1593 = vsel %vm1567, %v1483, 0
  %v1596 = vsel %vm1567, %v1484, 0
  %v1599 = vsel %vm1567, %v1485, 0
  %v1602 = vsel %vm1567, %v1486, 0
  %v1605 = vsel %vm1567, %v1487, 0
  %v1608 = vsel %vm1567, %v1488, 0
  %v1611 = vsel %vm1567, %v1489, 0
  %v1614 = vsel %vm1567, %v1490, 0
  %v1617 = vsel %vm1567, %v1491, 0
  %v1619 = vsel %vm1567, %v912, 0
  %vm1621 = vcmask 1043456
  %v1623 = vsel %vm1621, %v1551, 0
  %v1626 = vsel %vm1621, %v1552, 0
  %1628 = vmatprep.subr.bf16.mxu0 %v1538
  %1629 = vmatpush1.bf16.msra.mxu0 %v1537
  %1630 = vmatprep.subr.bf16.mxu0 %v1540
  %1631 = vmatpush1.bf16.msra.mxu0 %v1539
  %1632 = vmatprep.subr.bf16.mxu0 %v1542
  %1633 = vmatpush1.bf16.msra.mxu0 %v1541
  %1634 = vmatprep.subr.bf16.mxu0 %v1544
  %1635 = vmatpush1.bf16.msra.mxu0 %v1543
  %1636 = vmatprep.subr.bf16.mxu0 %v1546
  %1637 = vmatpush1.bf16.msra.mxu0 %v1545
  %1638 = vmatprep.subr.bf16.mxu0 %v1548
  %1639 = vmatpush1.bf16.msra.mxu0 %v1547
  %1640 = vmatprep.subr.bf16.mxu0 %v1550
  %1641 = vmatpush1.bf16.msra.mxu0 %v1549
  %1642 = vmatprep.subr.bf16.mxu0 %v1626
  %1643 = vmatpush1.bf16.msra.mxu0 %v1623
  %1644 = vmatprep.subr.bf16.mxu0 0
  %1645 = vmatpush1.bf16.msra.mxu0 0
  %1646 = vmatprep.subr.bf16.mxu0 0
  %1647 = vmatpush1.bf16.msra.mxu0 0
  %1648 = vmatprep.subr.bf16.mxu0 0
  %1649 = vmatpush1.bf16.msra.mxu0 0
  %1650 = vmatprep.subr.bf16.mxu0 0
  %1651 = vmatpush1.bf16.msra.mxu0 0
  %1652 = vmatprep.subr.bf16.mxu0 0
  %1653 = vmatpush1.bf16.msra.mxu0 0
  %1654 = vmatprep.subr.bf16.mxu0 0
  %1655 = vmatpush1.bf16.msra.mxu0 0
  %1656 = vmatprep.subr.bf16.mxu0 0
  %1657 = vmatpush1.bf16.msra.mxu0 0
  %1658 = vmatprep.subr.bf16.mxu0 0
  %1659 = vmatpush1.bf16.msra.mxu0 0
  %1660 = vmatprep.mubr.bf16.mxu0 0
  %1661 = vmatmul.mubr.bf16.gmra.mrb[0].mxu0 %v1569
  %v1662 = vpop.f32.mrb[0].mxu0
  %v1663 = vadd.f32 0.0, %v1662
  %v1664 = vpop.f32.mrb[0].mxu0
  %v1665 = vadd.f32 0.0, %v1664
  %v1666 = vpop.f32.mrb[0].mxu0
  %v1667 = vadd.f32 0.0, %v1666
  %v1668 = vpop.f32.mrb[0].mxu0
  %v1669 = vadd.f32 0.0, %v1668
  %1670 = vmatprep.mubr.bf16.mxu0 0
  %1671 = vmatmul.mubr.bf16.gmra.mrb[0].mxu0 %v1572
  %v1672 = vpop.f32.mrb[0].mxu0
  %v1673 = vadd.f32 0.0, %v1672
  %v1674 = vpop.f32.mrb[0].mxu0
  %v1675 = vadd.f32 0.0, %v1674
  %v1676 = vpop.f32.mrb[0].mxu0
  %v1677 = vadd.f32 0.0, %v1676
  %v1678 = vpop.f32.mrb[0].mxu0
  %v1679 = vadd.f32 0.0, %v1678
  %1680 = vmatprep.mubr.bf16.mxu0 0
  %1681 = vmatmul.mubr.bf16.gmra.mrb[0].mxu0 %v1575
  %v1682 = vpop.f32.mrb[0].mxu0
  %v1683 = vadd.f32 0.0, %v1682
  %v1684 = vpop.f32.mrb[0].mxu0
  %v1685 = vadd.f32 0.0, %v1684
  %v1686 = vpop.f32.mrb[0].mxu0
  %v1687 = vadd.f32 0.0, %v1686
  %v1688 = vpop.f32.mrb[0].mxu0
  %v1689 = vadd.f32 0.0, %v1688
  %1690 = vmatprep.mubr.bf16.mxu0 0
  %1691 = vmatmul.mubr.bf16.gmra.mrb[0].mxu0 %v1578
  %v1692 = vpop.f32.mrb[0].mxu0
  %v1693 = vadd.f32 0.0, %v1692
  %v1694 = vpop.f32.mrb[0].mxu0
  %v1695 = vadd.f32 0.0, %v1694
  %v1696 = vpop.f32.mrb[0].mxu0
  %v1697 = vadd.f32 0.0, %v1696
  %v1698 = vpop.f32.mrb[0].mxu0
  %v1699 = vadd.f32 0.0, %v1698
  %1700 = vmatprep.mubr.bf16.mxu0 0
  %1701 = vmatmul.mubr.bf16.gmra.mrb[0].mxu0 %v1581
  %v1702 = vpop.f32.mrb[0].mxu0
  %v1703 = vadd.f32 0.0, %v1702
  %v1704 = vpop.f32.mrb[0].mxu0
  %v1705 = vadd.f32 0.0, %v1704
  %v1706 = vpop.f32.mrb[0].mxu0
  %v1707 = vadd.f32 0.0, %v1706
  %v1708 = vpop.f32.mrb[0].mxu0
  %v1709 = vadd.f32 0.0, %v1708
  %1710 = vmatprep.mubr.bf16.mxu0 0
  %1711 = vmatmul.mubr.bf16.gmra.mrb[0].mxu0 %v1584
  %v1712 = vpop.f32.mrb[0].mxu0
  %v1713 = vadd.f32 0.0, %v1712
  %v1714 = vpop.f32.mrb[0].mxu0
  %v1715 = vadd.f32 0.0, %v1714
  %v1716 = vpop.f32.mrb[0].mxu0
  %v1717 = vadd.f32 0.0, %v1716
  %v1718 = vpop.f32.mrb[0].mxu0
  %v1719 = vadd.f32 0.0, %v1718
  %1720 = vmatprep.mubr.bf16.mxu0 0
  %1721 = vmatmul.mubr.bf16.gmra.mrb[0].mxu0 %v1587
  %v1722 = vpop.f32.mrb[0].mxu0
  %v1723 = vadd.f32 0.0, %v1722
  %v1724 = vpop.f32.mrb[0].mxu0
  %v1725 = vadd.f32 0.0, %v1724
  %v1726 = vpop.f32.mrb[0].mxu0
  %v1727 = vadd.f32 0.0, %v1726
  %v1728 = vpop.f32.mrb[0].mxu0
  %v1729 = vadd.f32 0.0, %v1728
  %1730 = vmatprep.mubr.bf16.mxu0 0
  %1731 = vmatmul.mubr.bf16.gmra.mrb[0].mxu0 %v1590
  %v1732 = vpop.f32.mrb[0].mxu0
  %v1733 = vadd.f32 0.0, %v1732
  %v1734 = vpop.f32.mrb[0].mxu0
  %v1735 = vadd.f32 0.0, %v1734
  %v1736 = vpop.f32.mrb[0].mxu0
  %v1737 = vadd.f32 0.0, %v1736
  %v1738 = vpop.f32.mrb[0].mxu0
  %v1739 = vadd.f32 0.0, %v1738
  %1740 = vmatprep.mubr.bf16.mxu0 0
  %1741 = vmatmul.mubr.bf16.gmra.mrb[0].mxu0 %v1593
  %v1742 = vpop.f32.mrb[0].mxu0
  %v1743 = vadd.f32 0.0, %v1742
  %v1744 = vpop.f32.mrb[0].mxu0
  %v1745 = vadd.f32 0.0, %v1744
  %v1746 = vpop.f32.mrb[0].mxu0
  %v1747 = vadd.f32 0.0, %v1746
  %v1748 = vpop.f32.mrb[0].mxu0
  %v1749 = vadd.f32 0.0, %v1748
  %1750 = vmatprep.mubr.bf16.mxu0 0
  %1751 = vmatmul.mubr.bf16.gmra.mrb[0].mxu0 %v1596
  %v1752 = vpop.f32.mrb[0].mxu0
  %v1753 = vadd.f32 0.0, %v1752
  %v1754 = vpop.f32.mrb[0].mxu0
  %v1755 = vadd.f32 0.0, %v1754
  %v1756 = vpop.f32.mrb[0].mxu0
  %v1757 = vadd.f32 0.0, %v1756
  %v1758 = vpop.f32.mrb[0].mxu0
  %v1759 = vadd.f32 0.0, %v1758
  %1760 = vmatprep.mubr.bf16.mxu0 0
  %1761 = vmatmul.mubr.bf16.gmra.mrb[0].mxu0 %v1599
  %v1762 = vpop.f32.mrb[0].mxu0
  %v1763 = vadd.f32 0.0, %v1762
  %v1764 = vpop.f32.mrb[0].mxu0
  %v1765 = vadd.f32 0.0, %v1764
  %v1766 = vpop.f32.mrb[0].mxu0
  %v1767 = vadd.f32 0.0, %v1766
  %v1768 = vpop.f32.mrb[0].mxu0
  %v1769 = vadd.f32 0.0, %v1768
  %1770 = vmatprep.mubr.bf16.mxu0 0
  %1771 = vmatmul.mubr.bf16.gmra.mrb[0].mxu0 %v1602
  %v1772 = vpop.f32.mrb[0].mxu0
  %v1773 = vadd.f32 0.0, %v1772
  %v1774 = vpop.f32.mrb[0].mxu0
  %v1775 = vadd.f32 0.0, %v1774
  %v1776 = vpop.f32.mrb[0].mxu0
  %v1777 = vadd.f32 0.0, %v1776
  %v1778 = vpop.f32.mrb[0].mxu0
  %v1779 = vadd.f32 0.0, %v1778
  %1780 = vmatprep.mubr.bf16.mxu0 0
  %1781 = vmatmul.mubr.bf16.gmra.mrb[0].mxu0 %v1605
  %v1782 = vpop.f32.mrb[0].mxu0
  %v1783 = vadd.f32 0.0, %v1782
  %v1784 = vpop.f32.mrb[0].mxu0
  %v1785 = vadd.f32 0.0, %v1784
  %v1786 = vpop.f32.mrb[0].mxu0
  %v1787 = vadd.f32 0.0, %v1786
  %v1788 = vpop.f32.mrb[0].mxu0
  %v1789 = vadd.f32 0.0, %v1788
  %1790 = vmatprep.mubr.bf16.mxu0 0
  %1791 = vmatmul.mubr.bf16.gmra.mrb[0].mxu0 %v1608
  %v1792 = vpop.f32.mrb[0].mxu0
  %v1793 = vadd.f32 0.0, %v1792
  %v1794 = vpop.f32.mrb[0].mxu0
  %v1795 = vadd.f32 0.0, %v1794
  %v1796 = vpop.f32.mrb[0].mxu0
  %v1797 = vadd.f32 0.0, %v1796
  %v1798 = vpop.f32.mrb[0].mxu0
  %v1799 = vadd.f32 0.0, %v1798
  %1800 = vmatprep.mubr.bf16.mxu0 0
  %1801 = vmatmul.mubr.bf16.gmra.mrb[0].mxu0 %v1611
  %v1802 = vpop.f32.mrb[0].mxu0
  %v1803 = vadd.f32 0.0, %v1802
  %v1804 = vpop.f32.mrb[0].mxu0
  %v1805 = vadd.f32 0.0, %v1804
  %v1806 = vpop.f32.mrb[0].mxu0
  %v1807 = vadd.f32 0.0, %v1806
  %v1808 = vpop.f32.mrb[0].mxu0
  %v1809 = vadd.f32 0.0, %v1808
  %1810 = vmatprep.mubr.bf16.mxu0 0
  %1811 = vmatmul.mubr.bf16.gmra.mrb[0].mxu0 %v1614
  %v1812 = vpop.f32.mrb[0].mxu0
  %v1813 = vadd.f32 0.0, %v1812
  %v1814 = vpop.f32.mrb[0].mxu0
  %v1815 = vadd.f32 0.0, %v1814
  %v1816 = vpop.f32.mrb[0].mxu0
  %v1817 = vadd.f32 0.0, %v1816
  %v1818 = vpop.f32.mrb[0].mxu0
  %v1819 = vadd.f32 0.0, %v1818
  %1820 = vmatprep.mubr.bf16.mxu0 0
  %1821 = vmatmul.mubr.bf16.gmra.mrb[0].mxu0 %v1617
  %v1822 = vpop.f32.mrb[0].mxu0
  %v1823 = vadd.f32 0.0, %v1822
  %v1824 = vpop.f32.mrb[0].mxu0
  %v1825 = vadd.f32 0.0, %v1824
  %v1826 = vpop.f32.mrb[0].mxu0
  %v1827 = vadd.f32 0.0, %v1826
  %v1828 = vpop.f32.mrb[0].mxu0
  %v1829 = vadd.f32 0.0, %v1828
  %1830 = vmatprep.mubr.bf16.mxu0 0
  %1831 = vmatmul.mubr.bf16.gmra.mrb[0].mxu0 %v1619
  %v1832 = vpop.f32.mrb[0].mxu0
  %v1833 = vadd.f32 0.0, %v1832
  %v1834 = vpop.f32.mrb[0].mxu0
  %v1835 = vadd.f32 0.0, %v1834
  %v1836 = vpop.f32.mrb[0].mxu0
  %v1837 = vadd.f32 0.0, %v1836
  %v1838 = vpop.f32.mrb[0].mxu0
  %v1839 = vadd.f32 0.0, %v1838
  %1840 = vdwg.mxu0
  %v1856 = vunpack.c.l.b16 %v1444
  %v1857 = vunpack.c.h.b16 %v1444
  %v1858 = vunpack.c.l.b16 %v1445
  %v1859 = vunpack.c.h.b16 %v1445
  %v1860 = vunpack.c.l.b16 %v1446
  %v1861 = vunpack.c.h.b16 %v1446
  %v1862 = vunpack.c.l.b16 %v1447
  %v1863 = vunpack.c.h.b16 %v1447
  %v1864 = vunpack.c.l.b16 %v1448
  %v1865 = vunpack.c.h.b16 %v1448
  %v1866 = vunpack.c.l.b16 %v1449
  %v1867 = vunpack.c.h.b16 %v1449
  %v1868 = vunpack.c.l.b16 %v1450
  %v1869 = vunpack.c.h.b16 %v1450
  %v1870 = vunpack.c.l.b16 %v1451
  %v1871 = vunpack.c.h.b16 %v1451
  %v1872 = vunpack.c.l.b16 %v1452
  %v1873 = vunpack.c.h.b16 %v1452
  %v1874 = vunpack.c.l.b16 %v1453
  %v1875 = vunpack.c.h.b16 %v1453
  %v1876 = vunpack.c.l.b16 %v1454
  %v1877 = vunpack.c.h.b16 %v1454
  %v1878 = vunpack.c.l.b16 %v1455
  %v1879 = vunpack.c.h.b16 %v1455
  %v1880 = vunpack.c.l.b16 %v1456
  %v1881 = vunpack.c.h.b16 %v1456
  %v1882 = vunpack.c.l.b16 %v1457
  %v1883 = vunpack.c.h.b16 %v1457
  %v1884 = vunpack.c.l.b16 %v1458
  %v1885 = vunpack.c.h.b16 %v1458
  %v1886 = vpack.c.b16 %v1858, %v1856
  %v1887 = vpack.c.b16 %v1859, %v1857
  %v1888 = vpack.c.b16 %v1862, %v1860
  %v1889 = vpack.c.b16 %v1863, %v1861
  %v1890 = vpack.c.b16 %v1866, %v1864
  %v1891 = vpack.c.b16 %v1867, %v1865
  %v1892 = vpack.c.b16 %v1870, %v1868
  %v1893 = vpack.c.b16 %v1871, %v1869
  %v1894 = vpack.c.b16 %v1874, %v1872
  %v1895 = vpack.c.b16 %v1875, %v1873
  %v1896 = vpack.c.b16 %v1878, %v1876
  %v1897 = vpack.c.b16 %v1879, %v1877
  %v1898 = vpack.c.b16 %v1882, %v1880
  %v1899 = vpack.c.b16 %v1883, %v1881
  %v1900 = vpack.c.b16 %v1884, %v1884
  %v1901 = vpack.c.b16 %v1885, %v1885
  %v1917 = vsel %vm1621, %v1900, 0
  %v1920 = vsel %vm1621, %v1901, 0
  %1922 = vmatprep.subr.bf16.mxu0 %v1887
  %1923 = vmatpush1.bf16.msra.mxu0 %v1886
  %1924 = vmatprep.subr.bf16.mxu0 %v1889
  %1925 = vmatpush1.bf16.msra.mxu0 %v1888
  %1926 = vmatprep.subr.bf16.mxu0 %v1891
  %1927 = vmatpush1.bf16.msra.mxu0 %v1890
  %1928 = vmatprep.subr.bf16.mxu0 %v1893
  %1929 = vmatpush1.bf16.msra.mxu0 %v1892
  %1930 = vmatprep.subr.bf16.mxu0 %v1895
  %1931 = vmatpush1.bf16.msra.mxu0 %v1894
  %1932 = vmatprep.subr.bf16.mxu0 %v1897
  %1933 = vmatpush1.bf16.msra.mxu0 %v1896
  %1934 = vmatprep.subr.bf16.mxu0 %v1899
  %1935 = vmatpush1.bf16.msra.mxu0 %v1898
  %1936 = vmatprep.subr.bf16.mxu0 %v1920
  %1937 = vmatpush1.bf16.msra.mxu0 %v1917
  %1938 = vmatprep.subr.bf16.mxu0 0
  %1939 = vmatpush1.bf16.msra.mxu0 0
  %1940 = vmatprep.subr.bf16.mxu0 0
  %1941 = vmatpush1.bf16.msra.mxu0 0
  %1942 = vmatprep.subr.bf16.mxu0 0
  %1943 = vmatpush1.bf16.msra.mxu0 0
  %1944 = vmatprep.subr.bf16.mxu0 0
  %1945 = vmatpush1.bf16.msra.mxu0 0
  %1946 = vmatprep.subr.bf16.mxu0 0
  %1947 = vmatpush1.bf16.msra.mxu0 0
  %1948 = vmatprep.subr.bf16.mxu0 0
  %1949 = vmatpush1.bf16.msra.mxu0 0
  %1950 = vmatprep.subr.bf16.mxu0 0
  %1951 = vmatpush1.bf16.msra.mxu0 0
  %1952 = vmatprep.subr.bf16.mxu0 0
  %1953 = vmatpush1.bf16.msra.mxu0 0
  %1954 = vmatprep.mubr.bf16.mxu0 0
  %1955 = vmatmul.mubr.bf16.gmra.mrb[0].mxu0 %v1619
  %v1956 = vpop.f32.mrb[0].mxu0
  %v1957 = vadd.f32 %v1663, %v1956
  %v1958 = vpop.f32.mrb[0].mxu0
  %v1959 = vadd.f32 %v1665, %v1958
  %v1960 = vpop.f32.mrb[0].mxu0
  %v1961 = vadd.f32 %v1667, %v1960
  %v1962 = vpop.f32.mrb[0].mxu0
  %v1963 = vadd.f32 %v1669, %v1962
  %1964 = vmatprep.mubr.bf16.mxu0 0
  %1965 = vmatmul.mubr.bf16.gmra.mrb[0].mxu0 %v1569
  %v1966 = vpop.f32.mrb[0].mxu0
  %v1967 = vadd.f32 %v1673, %v1966
  %v1968 = vpop.f32.mrb[0].mxu0
  %v1969 = vadd.f32 %v1675, %v1968
  %v1970 = vpop.f32.mrb[0].mxu0
  %v1971 = vadd.f32 %v1677, %v1970
  %v1972 = vpop.f32.mrb[0].mxu0
  %v1973 = vadd.f32 %v1679, %v1972
  %1974 = vmatprep.mubr.bf16.mxu0 0
  %1975 = vmatmul.mubr.bf16.gmra.mrb[0].mxu0 %v1572
  %v1976 = vpop.f32.mrb[0].mxu0
  %v1977 = vadd.f32 %v1683, %v1976
  %v1978 = vpop.f32.mrb[0].mxu0
  %v1979 = vadd.f32 %v1685, %v1978
  %v1980 = vpop.f32.mrb[0].mxu0
  %v1981 = vadd.f32 %v1687, %v1980
  %v1982 = vpop.f32.mrb[0].mxu0
  %v1983 = vadd.f32 %v1689, %v1982
  %1984 = vmatprep.mubr.bf16.mxu0 0
  %1985 = vmatmul.mubr.bf16.gmra.mrb[0].mxu0 %v1575
  %v1986 = vpop.f32.mrb[0].mxu0
  %v1987 = vadd.f32 %v1693, %v1986
  %v1988 = vpop.f32.mrb[0].mxu0
  %v1989 = vadd.f32 %v1695, %v1988
  %v1990 = vpop.f32.mrb[0].mxu0
  %v1991 = vadd.f32 %v1697, %v1990
  %v1992 = vpop.f32.mrb[0].mxu0
  %v1993 = vadd.f32 %v1699, %v1992
  %1994 = vmatprep.mubr.bf16.mxu0 0
  %1995 = vmatmul.mubr.bf16.gmra.mrb[0].mxu0 %v1578
  %v1996 = vpop.f32.mrb[0].mxu0
  %v1997 = vadd.f32 %v1703, %v1996
  %v1998 = vpop.f32.mrb[0].mxu0
  %v1999 = vadd.f32 %v1705, %v1998
  %v2000 = vpop.f32.mrb[0].mxu0
  %v2001 = vadd.f32 %v1707, %v2000
  %v2002 = vpop.f32.mrb[0].mxu0
  %v2003 = vadd.f32 %v1709, %v2002
  %2004 = vmatprep.mubr.bf16.mxu0 0
  %2005 = vmatmul.mubr.bf16.gmra.mrb[0].mxu0 %v1581
  %v2006 = vpop.f32.mrb[0].mxu0
  %v2007 = vadd.f32 %v1713, %v2006
  %v2008 = vpop.f32.mrb[0].mxu0
  %v2009 = vadd.f32 %v1715, %v2008
  %v2010 = vpop.f32.mrb[0].mxu0
  %v2011 = vadd.f32 %v1717, %v2010
  %v2012 = vpop.f32.mrb[0].mxu0
  %v2013 = vadd.f32 %v1719, %v2012
  %2014 = vmatprep.mubr.bf16.mxu0 0
  %2015 = vmatmul.mubr.bf16.gmra.mrb[0].mxu0 %v1584
  %v2016 = vpop.f32.mrb[0].mxu0
  %v2017 = vadd.f32 %v1723, %v2016
  %v2018 = vpop.f32.mrb[0].mxu0
  %v2019 = vadd.f32 %v1725, %v2018
  %v2020 = vpop.f32.mrb[0].mxu0
  %v2021 = vadd.f32 %v1727, %v2020
  %v2022 = vpop.f32.mrb[0].mxu0
  %v2023 = vadd.f32 %v1729, %v2022
  %2024 = vmatprep.mubr.bf16.mxu0 0
  %2025 = vmatmul.mubr.bf16.gmra.mrb[0].mxu0 %v1587
  %v2026 = vpop.f32.mrb[0].mxu0
  %v2027 = vadd.f32 %v1733, %v2026
  %v2028 = vpop.f32.mrb[0].mxu0
  %v2029 = vadd.f32 %v1735, %v2028
  %v2030 = vpop.f32.mrb[0].mxu0
  %v2031 = vadd.f32 %v1737, %v2030
  %v2032 = vpop.f32.mrb[0].mxu0
  %v2033 = vadd.f32 %v1739, %v2032
  %2034 = vmatprep.mubr.bf16.mxu0 0
  %2035 = vmatmul.mubr.bf16.gmra.mrb[0].mxu0 %v1590
  %v2036 = vpop.f32.mrb[0].mxu0
  %v2037 = vadd.f32 %v1743, %v2036
  %v2038 = vpop.f32.mrb[0].mxu0
  %v2039 = vadd.f32 %v1745, %v2038
  %v2040 = vpop.f32.mrb[0].mxu0
  %v2041 = vadd.f32 %v1747, %v2040
  %v2042 = vpop.f32.mrb[0].mxu0
  %v2043 = vadd.f32 %v1749, %v2042
  %2044 = vmatprep.mubr.bf16.mxu0 0
  %2045 = vmatmul.mubr.bf16.gmra.mrb[0].mxu0 %v1593
  %v2046 = vpop.f32.mrb[0].mxu0
  %v2047 = vadd.f32 %v1753, %v2046
  %v2048 = vpop.f32.mrb[0].mxu0
  %v2049 = vadd.f32 %v1755, %v2048
  %v2050 = vpop.f32.mrb[0].mxu0
  %v2051 = vadd.f32 %v1757, %v2050
  %v2052 = vpop.f32.mrb[0].mxu0
  %v2053 = vadd.f32 %v1759, %v2052
  %2054 = vmatprep.mubr.bf16.mxu0 0
  %2055 = vmatmul.mubr.bf16.gmra.mrb[0].mxu0 %v1596
  %v2056 = vpop.f32.mrb[0].mxu0
  %v2057 = vadd.f32 %v1763, %v2056
  %v2058 = vpop.f32.mrb[0].mxu0
  %v2059 = vadd.f32 %v1765, %v2058
  %v2060 = vpop.f32.mrb[0].mxu0
  %v2061 = vadd.f32 %v1767, %v2060
  %v2062 = vpop.f32.mrb[0].mxu0
  %v2063 = vadd.f32 %v1769, %v2062
  %2064 = vmatprep.mubr.bf16.mxu0 0
  %2065 = vmatmul.mubr.bf16.gmra.mrb[0].mxu0 %v1599
  %v2066 = vpop.f32.mrb[0].mxu0
  %v2067 = vadd.f32 %v1773, %v2066
  %v2068 = vpop.f32.mrb[0].mxu0
  %v2069 = vadd.f32 %v1775, %v2068
  %v2070 = vpop.f32.mrb[0].mxu0
  %v2071 = vadd.f32 %v1777, %v2070
  %v2072 = vpop.f32.mrb[0].mxu0
  %v2073 = vadd.f32 %v1779, %v2072
  %2074 = vmatprep.mubr.bf16.mxu0 0
  %2075 = vmatmul.mubr.bf16.gmra.mrb[0].mxu0 %v1602
  %v2076 = vpop.f32.mrb[0].mxu0
  %v2077 = vadd.f32 %v1783, %v2076
  %v2078 = vpop.f32.mrb[0].mxu0
  %v2079 = vadd.f32 %v1785, %v2078
  %v2080 = vpop.f32.mrb[0].mxu0
  %v2081 = vadd.f32 %v1787, %v2080
  %v2082 = vpop.f32.mrb[0].mxu0
  %v2083 = vadd.f32 %v1789, %v2082
  %2084 = vmatprep.mubr.bf16.mxu0 0
  %2085 = vmatmul.mubr.bf16.gmra.mrb[0].mxu0 %v1605
  %v2086 = vpop.f32.mrb[0].mxu0
  %v2087 = vadd.f32 %v1793, %v2086
  %v2088 = vpop.f32.mrb[0].mxu0
  %v2089 = vadd.f32 %v1795, %v2088
  %v2090 = vpop.f32.mrb[0].mxu0
  %v2091 = vadd.f32 %v1797, %v2090
  %v2092 = vpop.f32.mrb[0].mxu0
  %v2093 = vadd.f32 %v1799, %v2092
  %2094 = vmatprep.mubr.bf16.mxu0 0
  %2095 = vmatmul.mubr.bf16.gmra.mrb[0].mxu0 %v1608
  %v2096 = vpop.f32.mrb[0].mxu0
  %v2097 = vadd.f32 %v1803, %v2096
  %v2098 = vpop.f32.mrb[0].mxu0
  %v2099 = vadd.f32 %v1805, %v2098
  %v2100 = vpop.f32.mrb[0].mxu0
  %v2101 = vadd.f32 %v1807, %v2100
  %v2102 = vpop.f32.mrb[0].mxu0
  %v2103 = vadd.f32 %v1809, %v2102
  %2104 = vmatprep.mubr.bf16.mxu0 0
  %2105 = vmatmul.mubr.bf16.gmra.mrb[0].mxu0 %v1611
  %v2106 = vpop.f32.mrb[0].mxu0
  %v2107 = vadd.f32 %v1813, %v2106
  %v2108 = vpop.f32.mrb[0].mxu0
  %v2109 = vadd.f32 %v1815, %v2108
  %v2110 = vpop.f32.mrb[0].mxu0
  %v2111 = vadd.f32 %v1817, %v2110
  %v2112 = vpop.f32.mrb[0].mxu0
  %v2113 = vadd.f32 %v1819, %v2112
  %2114 = vmatprep.mubr.bf16.mxu0 0
  %2115 = vmatmul.mubr.bf16.gmra.mrb[0].mxu0 %v1614
  %v2116 = vpop.f32.mrb[0].mxu0
  %v2117 = vadd.f32 %v1823, %v2116
  %v2118 = vpop.f32.mrb[0].mxu0
  %v2119 = vadd.f32 %v1825, %v2118
  %v2120 = vpop.f32.mrb[0].mxu0
  %v2121 = vadd.f32 %v1827, %v2120
  %v2122 = vpop.f32.mrb[0].mxu0
  %v2123 = vadd.f32 %v1829, %v2122
  %2124 = vmatprep.mubr.bf16.mxu0 0
  %2125 = vmatmul.mubr.bf16.gmra.mrb[0].mxu0 %v1617
  %v2126 = vpop.f32.mrb[0].mxu0
  %v2127 = vadd.f32 %v1833, %v2126
  %v2128 = vpop.f32.mrb[0].mxu0
  %v2129 = vadd.f32 %v1835, %v2128
  %v2130 = vpop.f32.mrb[0].mxu0
  %v2131 = vadd.f32 %v1837, %v2130
  %v2132 = vpop.f32.mrb[0].mxu0
  %v2133 = vadd.f32 %v1839, %v2132
  %2134 = vdwg.mxu0
  %v2136 = vlaneseq
  %v2137 = vshrl.u32 %v2136, 7
  %v2138 = vsub.s32 0, %v2137
  %v2139 = vrot.slane %v1474, %v2138
  %v2140 = vlaneseq
  %v2141 = vshrl.u32 %v2140, 7
  %v2142 = vsub.s32 1, %v2141
  %v2143 = vrot.slane %v1474, %v2142
  %v2146 = vadd.f32 %v1957, %v2139
  %v2147 = vadd.f32 %v1959, %v2143
  %v2148 = vadd.f32 %v1961, %v2139
  %v2149 = vadd.f32 %v1963, %v2143
  %v2150 = vadd.f32 %v1967, %v2139
  %v2151 = vadd.f32 %v1969, %v2143
  %v2152 = vadd.f32 %v1971, %v2139
  %v2153 = vadd.f32 %v1973, %v2143
  %v2154 = vadd.f32 %v1977, %v2139
  %v2155 = vadd.f32 %v1979, %v2143
  %v2156 = vadd.f32 %v1981, %v2139
  %v2157 = vadd.f32 %v1983, %v2143
  %v2158 = vadd.f32 %v1987, %v2139
  %v2159 = vadd.f32 %v1989, %v2143
  %v2160 = vadd.f32 %v1991, %v2139
  %v2161 = vadd.f32 %v1993, %v2143
  %v2162 = vadd.f32 %v1997, %v2139
  %v2163 = vadd.f32 %v1999, %v2143
  %v2164 = vadd.f32 %v2001, %v2139
  %v2165 = vadd.f32 %v2003, %v2143
  %v2166 = vadd.f32 %v2007, %v2139
  %v2167 = vadd.f32 %v2009, %v2143
  %v2168 = vadd.f32 %v2011, %v2139
  %v2169 = vadd.f32 %v2013, %v2143
  %v2170 = vadd.f32 %v2017, %v2139
  %v2171 = vadd.f32 %v2019, %v2143
  %v2172 = vadd.f32 %v2021, %v2139
  %v2173 = vadd.f32 %v2023, %v2143
  %v2174 = vadd.f32 %v2027, %v2139
  %v2175 = vadd.f32 %v2029, %v2143
  %v2176 = vadd.f32 %v2031, %v2139
  %v2177 = vadd.f32 %v2033, %v2143
  %v2178 = vadd.f32 %v2037, %v2139
  %v2179 = vadd.f32 %v2039, %v2143
  %v2180 = vadd.f32 %v2041, %v2139
  %v2181 = vadd.f32 %v2043, %v2143
  %v2182 = vadd.f32 %v2047, %v2139
  %v2183 = vadd.f32 %v2049, %v2143
  %v2184 = vadd.f32 %v2051, %v2139
  %v2185 = vadd.f32 %v2053, %v2143
  %v2186 = vadd.f32 %v2057, %v2139
  %v2187 = vadd.f32 %v2059, %v2143
  %v2188 = vadd.f32 %v2061, %v2139
  %v2189 = vadd.f32 %v2063, %v2143
  %v2190 = vadd.f32 %v2067, %v2139
  %v2191 = vadd.f32 %v2069, %v2143
  %v2192 = vadd.f32 %v2071, %v2139
  %v2193 = vadd.f32 %v2073, %v2143
  %v2194 = vadd.f32 %v2077, %v2139
  %v2195 = vadd.f32 %v2079, %v2143
  %v2196 = vadd.f32 %v2081, %v2139
  %v2197 = vadd.f32 %v2083, %v2143
  %v2198 = vadd.f32 %v2087, %v2139
  %v2199 = vadd.f32 %v2089, %v2143
  %v2200 = vadd.f32 %v2091, %v2139
  %v2201 = vadd.f32 %v2093, %v2143
  %v2202 = vadd.f32 %v2097, %v2139
  %v2203 = vadd.f32 %v2099, %v2143
  %v2204 = vadd.f32 %v2101, %v2139
  %v2205 = vadd.f32 %v2103, %v2143
  %v2206 = vadd.f32 %v2107, %v2139
  %v2207 = vadd.f32 %v2109, %v2143
  %v2208 = vadd.f32 %v2111, %v2139
  %v2209 = vadd.f32 %v2113, %v2143
  %v2210 = vadd.f32 %v2117, %v2139
  %v2211 = vadd.f32 %v2119, %v2143
  %v2212 = vadd.f32 %v2121, %v2139
  %v2213 = vadd.f32 %v2123, %v2143
  %v2214 = vadd.f32 %v2127, %v2139
  %v2215 = vadd.f32 %v2129, %v2143
  %v2216 = vadd.f32 %v2131, %v2139
  %v2217 = vadd.f32 %v2133, %v2143
  %v2218 = vmax.f32 %v2146, %v2150
  %v2219 = vmax.f32 %v2147, %v2151
  %v2220 = vmax.f32 %v2148, %v2152
  %v2221 = vmax.f32 %v2149, %v2153
  %v2222 = vmax.f32 %v2154, %v2158
  %v2223 = vmax.f32 %v2155, %v2159
  %v2224 = vmax.f32 %v2156, %v2160
  %v2225 = vmax.f32 %v2157, %v2161
  %v2226 = vmax.f32 %v2162, %v2166
  %v2227 = vmax.f32 %v2163, %v2167
  %v2228 = vmax.f32 %v2164, %v2168
  %v2229 = vmax.f32 %v2165, %v2169
  %v2230 = vmax.f32 %v2170, %v2174
  %v2231 = vmax.f32 %v2171, %v2175
  %v2232 = vmax.f32 %v2172, %v2176
  %v2233 = vmax.f32 %v2173, %v2177
  %v2234 = vmax.f32 %v2178, %v2182
  %v2235 = vmax.f32 %v2179, %v2183
  %v2236 = vmax.f32 %v2180, %v2184
  %v2237 = vmax.f32 %v2181, %v2185
  %v2238 = vmax.f32 %v2186, %v2190
  %v2239 = vmax.f32 %v2187, %v2191
  %v2240 = vmax.f32 %v2188, %v2192
  %v2241 = vmax.f32 %v2189, %v2193
  %v2242 = vmax.f32 %v2194, %v2198
  %v2243 = vmax.f32 %v2195, %v2199
  %v2244 = vmax.f32 %v2196, %v2200
  %v2245 = vmax.f32 %v2197, %v2201
  %v2246 = vmax.f32 %v2202, %v2206
  %v2247 = vmax.f32 %v2203, %v2207
  %v2248 = vmax.f32 %v2204, %v2208
  %v2249 = vmax.f32 %v2205, %v2209
  %v2250 = vmax.f32 %v2210, %v2214
  %v2251 = vmax.f32 %v2211, %v2215
  %v2252 = vmax.f32 %v2212, %v2216
  %v2253 = vmax.f32 %v2213, %v2217
  %v2254 = vld [vmem:[%s25] sm:$0xff]
  %v2255 = vld [vmem:[%s25 + $0x8] sm:$0xff]
  %v2256 = vld [vmem:[%s25 + $0x10] sm:$0xf]
  %v2257 = vld [vmem:[%s25 + $0x14] sm:$0xff]
  %v2258 = vld [vmem:[%s25 + $0x1c] sm:$0xff]
  %v2259 = vld [vmem:[%s25 + $0x24] sm:$0xf]
  %v2260 = vld [vmem:[%s25 + $0x28] sm:$0xff]
  %v2261 = vld [vmem:[%s25 + $0x30] sm:$0xff]
  %v2262 = vld [vmem:[%s25 + $0x38] sm:$0xf]
  %v2263 = vld [vmem:[%s25 + $0x3c] sm:$0xff]
  %v2264 = vld [vmem:[%s25 + $0x44] sm:$0xff]
  %v2265 = vld [vmem:[%s25 + $0x4c] sm:$0xf]
  %v2266 = vld [vmem:[%s25 + $0x50] sm:$0xff]
  %v2267 = vld [vmem:[%s25 + $0x58] sm:$0xff]
  %v2268 = vld [vmem:[%s25 + $0x60] sm:$0xf]
  %v2269 = vld [vmem:[%s25 + $0x64] sm:$0xff]
  %v2270 = vld [vmem:[%s25 + $0x6c] sm:$0xff]
  %v2271 = vld [vmem:[%s25 + $0x74] sm:$0xf]
  %v2272 = vld [vmem:[%s25 + $0x78] sm:$0xff]
  %v2273 = vld [vmem:[%s25 + $0x80] sm:$0xff]
  %v2274 = vld [vmem:[%s25 + $0x88] sm:$0xf]
  %v2275 = vld [vmem:[%s25 + $0x8c] sm:$0xff]
  %v2276 = vld [vmem:[%s25 + $0x94] sm:$0xff]
  %v2277 = vld [vmem:[%s25 + $0x9c] sm:$0xf]
  %v2278 = vld [vmem:[%s25 + $0xa0] sm:$0xff]
  %v2279 = vld [vmem:[%s25 + $0xa8] sm:$0xff]
  %v2280 = vld [vmem:[%s25 + $0xb0] sm:$0xf]
  %v2281 = vld [vmem:[%s25 + $0xb4] sm:$0xff]
  %v2282 = vld [vmem:[%s25 + $0xbc] sm:$0xff]
  %v2283 = vld [vmem:[%s25 + $0xc4] sm:$0xf]
  %v2284 = vld [vmem:[%s25 + $0xc8] sm:$0xff]
  %v2285 = vld [vmem:[%s25 + $0xd0] sm:$0xff]
  %v2286 = vld [vmem:[%s25 + $0xd8] sm:$0xf]
  %v2287 = vld [vmem:[%s25 + $0xdc] sm:$0xff]
  %v2288 = vld [vmem:[%s25 + $0xe4] sm:$0xff]
  %v2289 = vld [vmem:[%s25 + $0xec] sm:$0xf]
  %v2290 = vld [vmem:[%s25 + $0xf0] sm:$0xff]
  %v2291 = vld [vmem:[%s25 + $0xf8] sm:$0xff]
  %v2292 = vld [vmem:[%s25 + $0x100] sm:$0xf]
  %v2293 = vld [vmem:[%s25 + $0x104] sm:$0xff]
  %v2294 = vld [vmem:[%s25 + $0x10c] sm:$0xff]
  %v2295 = vld [vmem:[%s25 + $0x114] sm:$0xf]
  %v2296 = vld [vmem:[%s25 + $0x118] sm:$0xff]
  %v2297 = vld [vmem:[%s25 + $0x120] sm:$0xff]
  %v2298 = vld [vmem:[%s25 + $0x128] sm:$0xf]
  %v2299 = vld [vmem:[%s25 + $0x12c] sm:$0xff]
  %v2300 = vld [vmem:[%s25 + $0x134] sm:$0xff]
  %v2301 = vld [vmem:[%s25 + $0x13c] sm:$0xf]
  %v2302 = vld [vmem:[%s25 + $0x140] sm:$0xff]
  %v2303 = vld [vmem:[%s25 + $0x148] sm:$0xff]
  %v2304 = vld [vmem:[%s25 + $0x150] sm:$0xf]
  %v2305 = vld [vmem:[%s25 + $0x154] sm:$0xff]
  %v2306 = vld [vmem:[%s25 + $0x15c] sm:$0xff]
  %v2307 = vld [vmem:[%s25 + $0x164] sm:$0xf]
  %v2308 = vld [vmem:[%s25 + $0x168] sm:$0xff]
  %v2309 = vld [vmem:[%s25 + $0x170] sm:$0xff]
  %v2310 = vld [vmem:[%s25 + $0x178] sm:$0xf]
  %v2311 = vld [vmem:[%s25 + $0x17c] sm:$0xff]
  %v2312 = vld [vmem:[%s25 + $0x184] sm:$0xff]
  %v2313 = vld [vmem:[%s25 + $0x18c] sm:$0xf]
  %v2314 = vpack.c.bf16 %v2220, %v2218
  %v2315 = vpack.c.bf16 %v2221, %v2219
  %s2316 = scalar_lea.vmem %s25, 400
  %v2317 = vld [vmem:[%s2316] sm:$0xff]
  %v2318 = vld [vmem:[%s2316 + $0x8] sm:$0xff]
  %v2319 = vld [vmem:[%s2316 + $0x10] sm:$0xf]
  %v2320 = vld [vmem:[%s2316 + $0x14] sm:$0xff]
  %v2321 = vld [vmem:[%s2316 + $0x1c] sm:$0xff]
  %v2322 = vld [vmem:[%s2316 + $0x24] sm:$0xf]
  %v2323 = vld [vmem:[%s2316 + $0x28] sm:$0xff]
  %v2324 = vld [vmem:[%s2316 + $0x30] sm:$0xff]
  %v2325 = vld [vmem:[%s2316 + $0x38] sm:$0xf]
  %v2326 = vld [vmem:[%s2316 + $0x3c] sm:$0xff]
  %v2327 = vld [vmem:[%s2316 + $0x44] sm:$0xff]
  %v2328 = vld [vmem:[%s2316 + $0x4c] sm:$0xf]
  %v2329 = vld [vmem:[%s2316 + $0x50] sm:$0xff]
  %v2330 = vld [vmem:[%s2316 + $0x58] sm:$0xff]
  %v2331 = vld [vmem:[%s2316 + $0x60] sm:$0xf]
  %v2332 = vld [vmem:[%s2316 + $0x64] sm:$0xff]
  %v2333 = vld [vmem:[%s2316 + $0x6c] sm:$0xff]
  %v2334 = vld [vmem:[%s2316 + $0x74] sm:$0xf]
  %v2335 = vld [vmem:[%s2316 + $0x78] sm:$0xff]
  %v2336 = vld [vmem:[%s2316 + $0x80] sm:$0xff]
  %v2337 = vld [vmem:[%s2316 + $0x88] sm:$0xf]
  %v2338 = vld [vmem:[%s2316 + $0x8c] sm:$0xff]
  %v2339 = vld [vmem:[%s2316 + $0x94] sm:$0xff]
  %v2340 = vld [vmem:[%s2316 + $0x9c] sm:$0xf]
  %v2341 = vld [vmem:[%s2316 + $0xa0] sm:$0xff]
  %v2342 = vld [vmem:[%s2316 + $0xa8] sm:$0xff]
  %v2343 = vld [vmem:[%s2316 + $0xb0] sm:$0xf]
  %v2344 = vld [vmem:[%s2316 + $0xb4] sm:$0xff]
  %v2345 = vld [vmem:[%s2316 + $0xbc] sm:$0xff]
  %v2346 = vld [vmem:[%s2316 + $0xc4] sm:$0xf]
  %v2347 = vld [vmem:[%s2316 + $0xc8] sm:$0xff]
  %v2348 = vld [vmem:[%s2316 + $0xd0] sm:$0xff]
  %v2349 = vld [vmem:[%s2316 + $0xd8] sm:$0xf]
  %v2350 = vld [vmem:[%s2316 + $0xdc] sm:$0xff]
  %v2351 = vld [vmem:[%s2316 + $0xe4] sm:$0xff]
  %v2352 = vld [vmem:[%s2316 + $0xec] sm:$0xf]
  %v2353 = vld [vmem:[%s2316 + $0xf0] sm:$0xff]
  %v2354 = vld [vmem:[%s2316 + $0xf8] sm:$0xff]
  %v2355 = vld [vmem:[%s2316 + $0x100] sm:$0xf]
  %v2356 = vld [vmem:[%s2316 + $0x104] sm:$0xff]
  %v2357 = vld [vmem:[%s2316 + $0x10c] sm:$0xff]
  %v2358 = vld [vmem:[%s2316 + $0x114] sm:$0xf]
  %v2359 = vld [vmem:[%s2316 + $0x118] sm:$0xff]
  %v2360 = vld [vmem:[%s2316 + $0x120] sm:$0xff]
  %v2361 = vld [vmem:[%s2316 + $0x128] sm:$0xf]
  %v2362 = vld [vmem:[%s2316 + $0x12c] sm:$0xff]
  %v2363 = vld [vmem:[%s2316 + $0x134] sm:$0xff]
  %v2364 = vld [vmem:[%s2316 + $0x13c] sm:$0xf]
  %v2365 = vld [vmem:[%s2316 + $0x140] sm:$0xff]
  %v2366 = vld [vmem:[%s2316 + $0x148] sm:$0xff]
  %v2367 = vld [vmem:[%s2316 + $0x150] sm:$0xf]
  %v2368 = vld [vmem:[%s2316 + $0x154] sm:$0xff]
  %v2369 = vld [vmem:[%s2316 + $0x15c] sm:$0xff]
  %v2370 = vld [vmem:[%s2316 + $0x164] sm:$0xf]
  %v2371 = vld [vmem:[%s2316 + $0x168] sm:$0xff]
  %v2372 = vld [vmem:[%s2316 + $0x170] sm:$0xff]
  %v2373 = vld [vmem:[%s2316 + $0x178] sm:$0xf]
  %v2374 = vld [vmem:[%s2316 + $0x17c] sm:$0xff]
  %v2375 = vld [vmem:[%s2316 + $0x184] sm:$0xff]
  %v2376 = vld [vmem:[%s2316 + $0x18c] sm:$0xf]
  %v2377 = vpack.c.bf16 %v2224, %v2222
  %v2378 = vpack.c.bf16 %v2225, %v2223
  %v2439 = vunpack.c.l.b16 %v2317
  %v2440 = vunpack.c.h.b16 %v2317
  %v2441 = vunpack.c.l.b16 %v2318
  %v2442 = vunpack.c.h.b16 %v2318
  %v2443 = vunpack.c.l.b16 %v2319
  %v2444 = vunpack.c.l.b16 %v2320
  %v2445 = vunpack.c.h.b16 %v2320
  %v2446 = vunpack.c.l.b16 %v2321
  %v2447 = vunpack.c.h.b16 %v2321
  %v2448 = vunpack.c.l.b16 %v2322
  %v2449 = vunpack.c.l.b16 %v2323
  %v2450 = vunpack.c.h.b16 %v2323
  %v2451 = vunpack.c.l.b16 %v2324
  %v2452 = vunpack.c.h.b16 %v2324
  %v2453 = vunpack.c.l.b16 %v2325
  %v2454 = vunpack.c.l.b16 %v2326
  %v2455 = vunpack.c.h.b16 %v2326
  %v2456 = vunpack.c.l.b16 %v2327
  %v2457 = vunpack.c.h.b16 %v2327
  %v2458 = vunpack.c.l.b16 %v2328
  %v2459 = vunpack.c.l.b16 %v2329
  %v2460 = vunpack.c.h.b16 %v2329
  %v2461 = vunpack.c.l.b16 %v2330
  %v2462 = vunpack.c.h.b16 %v2330
  %v2463 = vunpack.c.l.b16 %v2331
  %v2464 = vunpack.c.l.b16 %v2332
  %v2465 = vunpack.c.h.b16 %v2332
  %v2466 = vunpack.c.l.b16 %v2333
  %v2467 = vunpack.c.h.b16 %v2333
  %v2468 = vunpack.c.l.b16 %v2334
  %v2469 = vunpack.c.l.b16 %v2335
  %v2470 = vunpack.c.h.b16 %v2335
  %v2471 = vunpack.c.l.b16 %v2336
  %v2472 = vunpack.c.h.b16 %v2336
  %v2473 = vunpack.c.l.b16 %v2337
  %v2474 = vunpack.c.l.b16 %v2338
  %v2475 = vunpack.c.h.b16 %v2338
  %v2476 = vunpack.c.l.b16 %v2339
  %v2477 = vunpack.c.h.b16 %v2339
  %v2478 = vunpack.c.l.b16 %v2340
  %v2479 = vunpack.c.l.b16 %v2341
  %v2480 = vunpack.c.h.b16 %v2341
  %v2481 = vunpack.c.l.b16 %v2342
  %v2482 = vunpack.c.h.b16 %v2342
  %v2483 = vunpack.c.l.b16 %v2343
  %v2484 = vunpack.c.l.b16 %v2344
  %v2485 = vunpack.c.h.b16 %v2344
  %v2486 = vunpack.c.l.b16 %v2345
  %v2487 = vunpack.c.h.b16 %v2345
  %v2488 = vunpack.c.l.b16 %v2346
  %v2489 = vunpack.c.l.b16 %v2347
  %v2490 = vunpack.c.h.b16 %v2347
  %v2491 = vunpack.c.l.b16 %v2348
  %v2492 = vunpack.c.h.b16 %v2348
  %v2493 = vunpack.c.l.b16 %v2349
  %v2494 = vunpack.c.l.b16 %v2350
  %v2495 = vunpack.c.h.b16 %v2350
  %v2496 = vunpack.c.l.b16 %v2351
  %v2497 = vunpack.c.h.b16 %v2351
  %v2498 = vunpack.c.l.b16 %v2352
  %v2499 = vunpack.c.l.b16 %v2353
  %v2500 = vunpack.c.h.b16 %v2353
  %v2501 = vunpack.c.l.b16 %v2354
  %v2502 = vunpack.c.h.b16 %v2354
  %v2503 = vunpack.c.l.b16 %v2355
  %v2504 = vunpack.c.l.b16 %v2356
  %v2505 = vunpack.c.h.b16 %v2356
  %v2506 = vunpack.c.l.b16 %v2357
  %v2507 = vunpack.c.h.b16 %v2357
  %v2508 = vunpack.c.l.b16 %v2358
  %v2509 = vunpack.c.l.b16 %v2359
  %v2510 = vunpack.c.h.b16 %v2359
  %v2511 = vunpack.c.l.b16 %v2360
  %v2512 = vunpack.c.h.b16 %v2360
  %v2513 = vunpack.c.l.b16 %v2361
  %v2514 = vunpack.c.l.b16 %v2362
  %v2515 = vunpack.c.h.b16 %v2362
  %v2516 = vunpack.c.l.b16 %v2363
  %v2517 = vunpack.c.h.b16 %v2363
  %v2518 = vunpack.c.l.b16 %v2364
  %v2519 = vunpack.c.l.b16 %v2365
  %v2520 = vunpack.c.h.b16 %v2365
  %v2521 = vunpack.c.l.b16 %v2366
  %v2522 = vunpack.c.h.b16 %v2366
  %v2523 = vunpack.c.l.b16 %v2367
  %v2524 = vunpack.c.l.b16 %v2368
  %v2525 = vunpack.c.h.b16 %v2368
  %v2526 = vunpack.c.l.b16 %v2369
  %v2527 = vunpack.c.h.b16 %v2369
  %v2528 = vunpack.c.l.b16 %v2370
  %v2529 = vunpack.c.l.b16 %v2371
  %v2530 = vunpack.c.h.b16 %v2371
  %v2531 = vunpack.c.l.b16 %v2372
  %v2532 = vunpack.c.h.b16 %v2372
  %v2533 = vunpack.c.l.b16 %v2373
  %v2534 = vunpack.c.l.b16 %v2374
  %v2535 = vunpack.c.h.b16 %v2374
  %v2536 = vunpack.c.l.b16 %v2375
  %v2537 = vunpack.c.h.b16 %v2375
  %v2538 = vunpack.c.l.b16 %v2376
  %v2539 = vpack.c.b16 %v2444, %v2439
  %v2540 = vpack.c.b16 %v2445, %v2440
  %v2541 = vpack.c.b16 %v2446, %v2441
  %v2542 = vpack.c.b16 %v2447, %v2442
  %v2543 = vpack.c.b16 %v2448, %v2443
  %v2544 = vpack.c.b16 %v2454, %v2449
  %v2545 = vpack.c.b16 %v2455, %v2450
  %v2546 = vpack.c.b16 %v2456, %v2451
  %v2547 = vpack.c.b16 %v2457, %v2452
  %v2548 = vpack.c.b16 %v2458, %v2453
  %v2549 = vpack.c.b16 %v2464, %v2459
  %v2550 = vpack.c.b16 %v2465, %v2460
  %v2551 = vpack.c.b16 %v2466, %v2461
  %v2552 = vpack.c.b16 %v2467, %v2462
  %v2553 = vpack.c.b16 %v2468, %v2463
  %v2554 = vpack.c.b16 %v2474, %v2469
  %v2555 = vpack.c.b16 %v2475, %v2470
  %v2556 = vpack.c.b16 %v2476, %v2471
  %v2557 = vpack.c.b16 %v2477, %v2472
  %v2558 = vpack.c.b16 %v2478, %v2473
  %v2559 = vpack.c.b16 %v2484, %v2479
  %v2560 = vpack.c.b16 %v2485, %v2480
  %v2561 = vpack.c.b16 %v2486, %v2481
  %v2562 = vpack.c.b16 %v2487, %v2482
  %v2563 = vpack.c.b16 %v2488, %v2483
  %v2564 = vpack.c.b16 %v2494, %v2489
  %v2565 = vpack.c.b16 %v2495, %v2490
  %v2566 = vpack.c.b16 %v2496, %v2491
  %v2567 = vpack.c.b16 %v2497, %v2492
  %v2568 = vpack.c.b16 %v2498, %v2493
  %v2569 = vpack.c.b16 %v2504, %v2499
  %v2570 = vpack.c.b16 %v2505, %v2500
  %v2571 = vpack.c.b16 %v2506, %v2501
  %v2572 = vpack.c.b16 %v2507, %v2502
  %v2573 = vpack.c.b16 %v2508, %v2503
  %v2574 = vpack.c.b16 %v2514, %v2509
  %v2575 = vpack.c.b16 %v2515, %v2510
  %v2576 = vpack.c.b16 %v2516, %v2511
  %v2577 = vpack.c.b16 %v2517, %v2512
  %v2578 = vpack.c.b16 %v2518, %v2513
  %v2579 = vpack.c.b16 %v2524, %v2519
  %v2580 = vpack.c.b16 %v2525, %v2520
  %v2581 = vpack.c.b16 %v2526, %v2521
  %v2582 = vpack.c.b16 %v2527, %v2522
  %v2583 = vpack.c.b16 %v2528, %v2523
  %v2584 = vpack.c.b16 %v2534, %v2529
  %v2585 = vpack.c.b16 %v2535, %v2530
  %v2586 = vpack.c.b16 %v2536, %v2531
  %v2587 = vpack.c.b16 %v2537, %v2532
  %v2588 = vpack.c.b16 %v2538, %v2533
  %vm2639 = vcmask 261120
  %v2641 = vsel %vm2639, %v2378, 0
  %2643 = vmatprep.subr.bf16.mxu0 %v2540
  %2644 = vmatpush1.bf16.msra.mxu0 %v2539
  %2645 = vmatprep.subr.bf16.mxu0 %v2545
  %2646 = vmatpush1.bf16.msra.mxu0 %v2544
  %2647 = vmatprep.subr.bf16.mxu0 %v2550
  %2648 = vmatpush1.bf16.msra.mxu0 %v2549
  %2649 = vmatprep.subr.bf16.mxu0 %v2555
  %2650 = vmatpush1.bf16.msra.mxu0 %v2554
  %2651 = vmatprep.subr.bf16.mxu0 %v2560
  %2652 = vmatpush1.bf16.msra.mxu0 %v2559
  %2653 = vmatprep.subr.bf16.mxu0 %v2565
  %2654 = vmatpush1.bf16.msra.mxu0 %v2564
  %2655 = vmatprep.subr.bf16.mxu0 %v2570
  %2656 = vmatpush1.bf16.msra.mxu0 %v2569
  %2657 = vmatprep.subr.bf16.mxu0 %v2575
  %2658 = vmatpush1.bf16.msra.mxu0 %v2574
  %2659 = vmatprep.subr.bf16.mxu0 %v2580
  %2660 = vmatpush1.bf16.msra.mxu0 %v2579
  %2661 = vmatprep.subr.bf16.mxu0 %v2585
  %2662 = vmatpush1.bf16.msra.mxu0 %v2584
  %2663 = vmatprep.subr.bf16.mxu0 0
  %2664 = vmatpush1.bf16.msra.mxu0 0
  %2665 = vmatprep.subr.bf16.mxu0 0
  %2666 = vmatpush1.bf16.msra.mxu0 0
  %2667 = vmatprep.subr.bf16.mxu0 0
  %2668 = vmatpush1.bf16.msra.mxu0 0
  %2669 = vmatprep.subr.bf16.mxu0 0
  %2670 = vmatpush1.bf16.msra.mxu0 0
  %2671 = vmatprep.subr.bf16.mxu0 0
  %2672 = vmatpush1.bf16.msra.mxu0 0
  %2673 = vmatprep.subr.bf16.mxu0 0
  %2674 = vmatpush1.bf16.msra.mxu0 0
  %2675 = vmatprep.mubr.bf16.mxu0 %v2641
  %2676 = vmatmul.mubr.bf16.gmra.mrb[0].mxu0 %v2377
  %v2677 = vpop.f32.mrb[0].mxu0
  %v2678 = vadd.f32 0.0, %v2677
  %v2679 = vpop.f32.mrb[0].mxu0
  %v2680 = vadd.f32 0.0, %v2679
  %v2681 = vpop.f32.mrb[0].mxu0
  %v2682 = vadd.f32 0.0, %v2681
  %v2683 = vpop.f32.mrb[0].mxu0
  %v2684 = vadd.f32 0.0, %v2683
  %2685 = vdwg.mxu0
  %2686 = vmatprep.subr.bf16.mxu0 %v2542
  %2687 = vmatpush1.bf16.msra.mxu0 %v2541
  %2688 = vmatprep.subr.bf16.mxu0 %v2547
  %2689 = vmatpush1.bf16.msra.mxu0 %v2546
  %2690 = vmatprep.subr.bf16.mxu0 %v2552
  %2691 = vmatpush1.bf16.msra.mxu0 %v2551
  %2692 = vmatprep.subr.bf16.mxu0 %v2557
  %2693 = vmatpush1.bf16.msra.mxu0 %v2556
  %2694 = vmatprep.subr.bf16.mxu0 %v2562
  %2695 = vmatpush1.bf16.msra.mxu0 %v2561
  %2696 = vmatprep.subr.bf16.mxu0 %v2567
  %2697 = vmatpush1.bf16.msra.mxu0 %v2566
  %2698 = vmatprep.subr.bf16.mxu0 %v2572
  %2699 = vmatpush1.bf16.msra.mxu0 %v2571
  %2700 = vmatprep.subr.bf16.mxu0 %v2577
  %2701 = vmatpush1.bf16.msra.mxu0 %v2576
  %2702 = vmatprep.subr.bf16.mxu0 %v2582
  %2703 = vmatpush1.bf16.msra.mxu0 %v2581
  %2704 = vmatprep.subr.bf16.mxu0 %v2587
  %2705 = vmatpush1.bf16.msra.mxu0 %v2586
  %2706 = vmatprep.subr.bf16.mxu0 0
  %2707 = vmatpush1.bf16.msra.mxu0 0
  %2708 = vmatprep.subr.bf16.mxu0 0
  %2709 = vmatpush1.bf16.msra.mxu0 0
  %2710 = vmatprep.subr.bf16.mxu0 0
  %2711 = vmatpush1.bf16.msra.mxu0 0
  %2712 = vmatprep.subr.bf16.mxu0 0
  %2713 = vmatpush1.bf16.msra.mxu0 0
  %2714 = vmatprep.subr.bf16.mxu0 0
  %2715 = vmatpush1.bf16.msra.mxu0 0
  %2716 = vmatprep.subr.bf16.mxu0 0
  %2717 = vmatpush1.bf16.msra.mxu0 0
  %2718 = vmatprep.mubr.bf16.mxu0 %v2641
  %2719 = vmatmul.mubr.bf16.gmra.mrb[0].mxu0 %v2377
  %v2720 = vpop.f32.mrb[0].mxu0
  %v2721 = vadd.f32 0.0, %v2720
  %v2722 = vpop.f32.mrb[0].mxu0
  %v2723 = vadd.f32 0.0, %v2722
  %v2724 = vpop.f32.mrb[0].mxu0
  %v2725 = vadd.f32 0.0, %v2724
  %v2726 = vpop.f32.mrb[0].mxu0
  %v2727 = vadd.f32 0.0, %v2726
  %2728 = vdwg.mxu0
  %2729 = vmatprep.subr.bf16.mxu0 0
  %2730 = vmatpush1.bf16.msra.mxu0 %v2543
  %2731 = vmatprep.subr.bf16.mxu0 0
  %2732 = vmatpush1.bf16.msra.mxu0 %v2548
  %2733 = vmatprep.subr.bf16.mxu0 0
  %2734 = vmatpush1.bf16.msra.mxu0 %v2553
  %2735 = vmatprep.subr.bf16.mxu0 0
  %2736 = vmatpush1.bf16.msra.mxu0 %v2558
  %2737 = vmatprep.subr.bf16.mxu0 0
  %2738 = vmatpush1.bf16.msra.mxu0 %v2563
  %2739 = vmatprep.subr.bf16.mxu0 0
  %2740 = vmatpush1.bf16.msra.mxu0 %v2568
  %2741 = vmatprep.subr.bf16.mxu0 0
  %2742 = vmatpush1.bf16.msra.mxu0 %v2573
  %2743 = vmatprep.subr.bf16.mxu0 0
  %2744 = vmatpush1.bf16.msra.mxu0 %v2578
  %2745 = vmatprep.subr.bf16.mxu0 0
  %2746 = vmatpush1.bf16.msra.mxu0 %v2583
  %2747 = vmatprep.subr.bf16.mxu0 0
  %2748 = vmatpush1.bf16.msra.mxu0 %v2588
  %2749 = vmatprep.subr.bf16.mxu0 0
  %2750 = vmatpush1.bf16.msra.mxu0 0
  %2751 = vmatprep.subr.bf16.mxu0 0
  %2752 = vmatpush1.bf16.msra.mxu0 0
  %2753 = vmatprep.subr.bf16.mxu0 0
  %2754 = vmatpush1.bf16.msra.mxu0 0
  %2755 = vmatprep.subr.bf16.mxu0 0
  %2756 = vmatpush1.bf16.msra.mxu0 0
  %2757 = vmatprep.subr.bf16.mxu0 0
  %2758 = vmatpush1.bf16.msra.mxu0 0
  %2759 = vmatprep.subr.bf16.mxu0 0
  %2760 = vmatpush1.bf16.msra.mxu0 0
  %2761 = vmatprep.mubr.bf16.mxu0 %v2641
  %2762 = vmatmul.mubr.bf16.gmra.mrb[0].mxu0 %v2377
  %v2763 = vpop.f32.mrb[0].mxu0
  %v2764 = vadd.f32 0.0, %v2763
  %v2765 = vpop.f32.mrb[0].mxu0
  %v2766 = vpop.f32.mrb[0].mxu0
  %v2767 = vadd.f32 0.0, %v2766
  %v2768 = vpop.f32.mrb[0].mxu0
  %2769 = vdwg.mxu0
  %v2830 = vunpack.c.l.b16 %v2254
  %v2831 = vunpack.c.h.b16 %v2254
  %v2832 = vunpack.c.l.b16 %v2255
  %v2833 = vunpack.c.h.b16 %v2255
  %v2834 = vunpack.c.l.b16 %v2256
  %v2835 = vunpack.c.l.b16 %v2257
  %v2836 = vunpack.c.h.b16 %v2257
  %v2837 = vunpack.c.l.b16 %v2258
  %v2838 = vunpack.c.h.b16 %v2258
  %v2839 = vunpack.c.l.b16 %v2259
  %v2840 = vunpack.c.l.b16 %v2260
  %v2841 = vunpack.c.h.b16 %v2260
  %v2842 = vunpack.c.l.b16 %v2261
  %v2843 = vunpack.c.h.b16 %v2261
  %v2844 = vunpack.c.l.b16 %v2262
  %v2845 = vunpack.c.l.b16 %v2263
  %v2846 = vunpack.c.h.b16 %v2263
  %v2847 = vunpack.c.l.b16 %v2264
  %v2848 = vunpack.c.h.b16 %v2264
  %v2849 = vunpack.c.l.b16 %v2265
  %v2850 = vunpack.c.l.b16 %v2266
  %v2851 = vunpack.c.h.b16 %v2266
  %v2852 = vunpack.c.l.b16 %v2267
  %v2853 = vunpack.c.h.b16 %v2267
  %v2854 = vunpack.c.l.b16 %v2268
  %v2855 = vunpack.c.l.b16 %v2269
  %v2856 = vunpack.c.h.b16 %v2269
  %v2857 = vunpack.c.l.b16 %v2270
  %v2858 = vunpack.c.h.b16 %v2270
  %v2859 = vunpack.c.l.b16 %v2271
  %v2860 = vunpack.c.l.b16 %v2272
  %v2861 = vunpack.c.h.b16 %v2272
  %v2862 = vunpack.c.l.b16 %v2273
  %v2863 = vunpack.c.h.b16 %v2273
  %v2864 = vunpack.c.l.b16 %v2274
  %v2865 = vunpack.c.l.b16 %v2275
  %v2866 = vunpack.c.h.b16 %v2275
  %v2867 = vunpack.c.l.b16 %v2276
  %v2868 = vunpack.c.h.b16 %v2276
  %v2869 = vunpack.c.l.b16 %v2277
  %v2870 = vunpack.c.l.b16 %v2278
  %v2871 = vunpack.c.h.b16 %v2278
  %v2872 = vunpack.c.l.b16 %v2279
  %v2873 = vunpack.c.h.b16 %v2279
  %v2874 = vunpack.c.l.b16 %v2280
  %v2875 = vunpack.c.l.b16 %v2281
  %v2876 = vunpack.c.h.b16 %v2281
  %v2877 = vunpack.c.l.b16 %v2282
  %v2878 = vunpack.c.h.b16 %v2282
  %v2879 = vunpack.c.l.b16 %v2283
  %v2880 = vunpack.c.l.b16 %v2284
  %v2881 = vunpack.c.h.b16 %v2284
  %v2882 = vunpack.c.l.b16 %v2285
  %v2883 = vunpack.c.h.b16 %v2285
  %v2884 = vunpack.c.l.b16 %v2286
  %v2885 = vunpack.c.l.b16 %v2287
  %v2886 = vunpack.c.h.b16 %v2287
  %v2887 = vunpack.c.l.b16 %v2288
  %v2888 = vunpack.c.h.b16 %v2288
  %v2889 = vunpack.c.l.b16 %v2289
  %v2890 = vunpack.c.l.b16 %v2290
  %v2891 = vunpack.c.h.b16 %v2290
  %v2892 = vunpack.c.l.b16 %v2291
  %v2893 = vunpack.c.h.b16 %v2291
  %v2894 = vunpack.c.l.b16 %v2292
  %v2895 = vunpack.c.l.b16 %v2293
  %v2896 = vunpack.c.h.b16 %v2293
  %v2897 = vunpack.c.l.b16 %v2294
  %v2898 = vunpack.c.h.b16 %v2294
  %v2899 = vunpack.c.l.b16 %v2295
  %v2900 = vunpack.c.l.b16 %v2296
  %v2901 = vunpack.c.h.b16 %v2296
  %v2902 = vunpack.c.l.b16 %v2297
  %v2903 = vunpack.c.h.b16 %v2297
  %v2904 = vunpack.c.l.b16 %v2298
  %v2905 = vunpack.c.l.b16 %v2299
  %v2906 = vunpack.c.h.b16 %v2299
  %v2907 = vunpack.c.l.b16 %v2300
  %v2908 = vunpack.c.h.b16 %v2300
  %v2909 = vunpack.c.l.b16 %v2301
  %v2910 = vunpack.c.l.b16 %v2302
  %v2911 = vunpack.c.h.b16 %v2302
  %v2912 = vunpack.c.l.b16 %v2303
  %v2913 = vunpack.c.h.b16 %v2303
  %v2914 = vunpack.c.l.b16 %v2304
  %v2915 = vunpack.c.l.b16 %v2305
  %v2916 = vunpack.c.h.b16 %v2305
  %v2917 = vunpack.c.l.b16 %v2306
  %v2918 = vunpack.c.h.b16 %v2306
  %v2919 = vunpack.c.l.b16 %v2307
  %v2920 = vunpack.c.l.b16 %v2308
  %v2921 = vunpack.c.h.b16 %v2308
  %v2922 = vunpack.c.l.b16 %v2309
  %v2923 = vunpack.c.h.b16 %v2309
  %v2924 = vunpack.c.l.b16 %v2310
  %v2925 = vunpack.c.l.b16 %v2311
  %v2926 = vunpack.c.h.b16 %v2311
  %v2927 = vunpack.c.l.b16 %v2312
  %v2928 = vunpack.c.h.b16 %v2312
  %v2929 = vunpack.c.l.b16 %v2313
  %v2930 = vpack.c.b16 %v2835, %v2830
  %v2931 = vpack.c.b16 %v2836, %v2831
  %v2932 = vpack.c.b16 %v2837, %v2832
  %v2933 = vpack.c.b16 %v2838, %v2833
  %v2934 = vpack.c.b16 %v2839, %v2834
  %v2935 = vpack.c.b16 %v2845, %v2840
  %v2936 = vpack.c.b16 %v2846, %v2841
  %v2937 = vpack.c.b16 %v2847, %v2842
  %v2938 = vpack.c.b16 %v2848, %v2843
  %v2939 = vpack.c.b16 %v2849, %v2844
  %v2940 = vpack.c.b16 %v2855, %v2850
  %v2941 = vpack.c.b16 %v2856, %v2851
  %v2942 = vpack.c.b16 %v2857, %v2852
  %v2943 = vpack.c.b16 %v2858, %v2853
  %v2944 = vpack.c.b16 %v2859, %v2854
  %v2945 = vpack.c.b16 %v2865, %v2860
  %v2946 = vpack.c.b16 %v2866, %v2861
  %v2947 = vpack.c.b16 %v2867, %v2862
  %v2948 = vpack.c.b16 %v2868, %v2863
  %v2949 = vpack.c.b16 %v2869, %v2864
  %v2950 = vpack.c.b16 %v2875, %v2870
  %v2951 = vpack.c.b16 %v2876, %v2871
  %v2952 = vpack.c.b16 %v2877, %v2872
  %v2953 = vpack.c.b16 %v2878, %v2873
  %v2954 = vpack.c.b16 %v2879, %v2874
  %v2955 = vpack.c.b16 %v2885, %v2880
  %v2956 = vpack.c.b16 %v2886, %v2881
  %v2957 = vpack.c.b16 %v2887, %v2882
  %v2958 = vpack.c.b16 %v2888, %v2883
  %v2959 = vpack.c.b16 %v2889, %v2884
  %v2960 = vpack.c.b16 %v2895, %v2890
  %v2961 = vpack.c.b16 %v2896, %v2891
  %v2962 = vpack.c.b16 %v2897, %v2892
  %v2963 = vpack.c.b16 %v2898, %v2893
  %v2964 = vpack.c.b16 %v2899, %v2894
  %v2965 = vpack.c.b16 %v2905, %v2900
  %v2966 = vpack.c.b16 %v2906, %v2901
  %v2967 = vpack.c.b16 %v2907, %v2902
  %v2968 = vpack.c.b16 %v2908, %v2903
  %v2969 = vpack.c.b16 %v2909, %v2904
  %v2970 = vpack.c.b16 %v2915, %v2910
  %v2971 = vpack.c.b16 %v2916, %v2911
  %v2972 = vpack.c.b16 %v2917, %v2912
  %v2973 = vpack.c.b16 %v2918, %v2913
  %v2974 = vpack.c.b16 %v2919, %v2914
  %v2975 = vpack.c.b16 %v2925, %v2920
  %v2976 = vpack.c.b16 %v2926, %v2921
  %v2977 = vpack.c.b16 %v2927, %v2922
  %v2978 = vpack.c.b16 %v2928, %v2923
  %v2979 = vpack.c.b16 %v2929, %v2924
  %v3031 = vsel %vm2639, %v2315, 0
  %3033 = vmatprep.subr.bf16.mxu0 %v2931
  %3034 = vmatpush1.bf16.msra.mxu0 %v2930
  %3035 = vmatprep.subr.bf16.mxu0 %v2936
  %3036 = vmatpush1.bf16.msra.mxu0 %v2935
  %3037 = vmatprep.subr.bf16.mxu0 %v2941
  %3038 = vmatpush1.bf16.msra.mxu0 %v2940
  %3039 = vmatprep.subr.bf16.mxu0 %v2946
  %3040 = vmatpush1.bf16.msra.mxu0 %v2945
  %3041 = vmatprep.subr.bf16.mxu0 %v2951
  %3042 = vmatpush1.bf16.msra.mxu0 %v2950
  %3043 = vmatprep.subr.bf16.mxu0 %v2956
  %3044 = vmatpush1.bf16.msra.mxu0 %v2955
  %3045 = vmatprep.subr.bf16.mxu0 %v2961
  %3046 = vmatpush1.bf16.msra.mxu0 %v2960
  %3047 = vmatprep.subr.bf16.mxu0 %v2966
  %3048 = vmatpush1.bf16.msra.mxu0 %v2965
  %3049 = vmatprep.subr.bf16.mxu0 %v2971
  %3050 = vmatpush1.bf16.msra.mxu0 %v2970
  %3051 = vmatprep.subr.bf16.mxu0 %v2976
  %3052 = vmatpush1.bf16.msra.mxu0 %v2975
  %3053 = vmatprep.subr.bf16.mxu0 0
  %3054 = vmatpush1.bf16.msra.mxu0 0
  %3055 = vmatprep.subr.bf16.mxu0 0
  %3056 = vmatpush1.bf16.msra.mxu0 0
  %3057 = vmatprep.subr.bf16.mxu0 0
  %3058 = vmatpush1.bf16.msra.mxu0 0
  %3059 = vmatprep.subr.bf16.mxu0 0
  %3060 = vmatpush1.bf16.msra.mxu0 0
  %3061 = vmatprep.subr.bf16.mxu0 0
  %3062 = vmatpush1.bf16.msra.mxu0 0
  %3063 = vmatprep.subr.bf16.mxu0 0
  %3064 = vmatpush1.bf16.msra.mxu0 0
  %3065 = vmatprep.mubr.bf16.mxu0 %v3031
  %3066 = vmatmul.mubr.bf16.gmra.mrb[0].mxu0 %v2314
  %v3067 = vpop.f32.mrb[0].mxu0
  %v3068 = vadd.f32 %v2678, %v3067
  %v3069 = vpop.f32.mrb[0].mxu0
  %v3070 = vadd.f32 %v2680, %v3069
  %v3071 = vpop.f32.mrb[0].mxu0
  %v3072 = vadd.f32 %v2682, %v3071
  %v3073 = vpop.f32.mrb[0].mxu0
  %v3074 = vadd.f32 %v2684, %v3073
  %3075 = vdwg.mxu0
  %3076 = vmatprep.subr.bf16.mxu0 %v2933
  %3077 = vmatpush1.bf16.msra.mxu0 %v2932
  %3078 = vmatprep.subr.bf16.mxu0 %v2938
  %3079 = vmatpush1.bf16.msra.mxu0 %v2937
  %3080 = vmatprep.subr.bf16.mxu0 %v2943
  %3081 = vmatpush1.bf16.msra.mxu0 %v2942
  %3082 = vmatprep.subr.bf16.mxu0 %v2948
  %3083 = vmatpush1.bf16.msra.mxu0 %v2947
  %3084 = vmatprep.subr.bf16.mxu0 %v2953
  %3085 = vmatpush1.bf16.msra.mxu0 %v2952
  %3086 = vmatprep.subr.bf16.mxu0 %v2958
  %3087 = vmatpush1.bf16.msra.mxu0 %v2957
  %3088 = vmatprep.subr.bf16.mxu0 %v2963
  %3089 = vmatpush1.bf16.msra.mxu0 %v2962
  %3090 = vmatprep.subr.bf16.mxu0 %v2968
  %3091 = vmatpush1.bf16.msra.mxu0 %v2967
  %3092 = vmatprep.subr.bf16.mxu0 %v2973
  %3093 = vmatpush1.bf16.msra.mxu0 %v2972
  %3094 = vmatprep.subr.bf16.mxu0 %v2978
  %3095 = vmatpush1.bf16.msra.mxu0 %v2977
  %3096 = vmatprep.subr.bf16.mxu0 0
  %3097 = vmatpush1.bf16.msra.mxu0 0
  %3098 = vmatprep.subr.bf16.mxu0 0
  %3099 = vmatpush1.bf16.msra.mxu0 0
  %3100 = vmatprep.subr.bf16.mxu0 0
  %3101 = vmatpush1.bf16.msra.mxu0 0
  %3102 = vmatprep.subr.bf16.mxu0 0
  %3103 = vmatpush1.bf16.msra.mxu0 0
  %3104 = vmatprep.subr.bf16.mxu0 0
  %3105 = vmatpush1.bf16.msra.mxu0 0
  %3106 = vmatprep.subr.bf16.mxu0 0
  %3107 = vmatpush1.bf16.msra.mxu0 0
  %3108 = vmatprep.mubr.bf16.mxu0 %v3031
  %3109 = vmatmul.mubr.bf16.gmra.mrb[0].mxu0 %v2314
  %v3110 = vpop.f32.mrb[0].mxu0
  %v3111 = vadd.f32 %v2721, %v3110
  %v3112 = vpop.f32.mrb[0].mxu0
  %v3113 = vadd.f32 %v2723, %v3112
  %v3114 = vpop.f32.mrb[0].mxu0
  %v3115 = vadd.f32 %v2725, %v3114
  %v3116 = vpop.f32.mrb[0].mxu0
  %v3117 = vadd.f32 %v2727, %v3116
  %3118 = vdwg.mxu0
  %3119 = vmatprep.subr.bf16.mxu0 0
  %3120 = vmatpush1.bf16.msra.mxu0 %v2934
  %3121 = vmatprep.subr.bf16.mxu0 0
  %3122 = vmatpush1.bf16.msra.mxu0 %v2939
  %3123 = vmatprep.subr.bf16.mxu0 0
  %3124 = vmatpush1.bf16.msra.mxu0 %v2944
  %3125 = vmatprep.subr.bf16.mxu0 0
  %3126 = vmatpush1.bf16.msra.mxu0 %v2949
  %3127 = vmatprep.subr.bf16.mxu0 0
  %3128 = vmatpush1.bf16.msra.mxu0 %v2954
  %3129 = vmatprep.subr.bf16.mxu0 0
  %3130 = vmatpush1.bf16.msra.mxu0 %v2959
  %3131 = vmatprep.subr.bf16.mxu0 0
  %3132 = vmatpush1.bf16.msra.mxu0 %v2964
  %3133 = vmatprep.subr.bf16.mxu0 0
  %3134 = vmatpush1.bf16.msra.mxu0 %v2969
  %3135 = vmatprep.subr.bf16.mxu0 0
  %3136 = vmatpush1.bf16.msra.mxu0 %v2974
  %3137 = vmatprep.subr.bf16.mxu0 0
  %3138 = vmatpush1.bf16.msra.mxu0 %v2979
  %3139 = vmatprep.subr.bf16.mxu0 0
  %3140 = vmatpush1.bf16.msra.mxu0 0
  %3141 = vmatprep.subr.bf16.mxu0 0
  %3142 = vmatpush1.bf16.msra.mxu0 0
  %3143 = vmatprep.subr.bf16.mxu0 0
  %3144 = vmatpush1.bf16.msra.mxu0 0
  %3145 = vmatprep.subr.bf16.mxu0 0
  %3146 = vmatpush1.bf16.msra.mxu0 0
  %3147 = vmatprep.subr.bf16.mxu0 0
  %3148 = vmatpush1.bf16.msra.mxu0 0
  %3149 = vmatprep.subr.bf16.mxu0 0
  %3150 = vmatpush1.bf16.msra.mxu0 0
  %3151 = vmatprep.mubr.bf16.mxu0 %v3031
  %3152 = vmatmul.mubr.bf16.gmra.mrb[0].mxu0 %v2314
  %v3153 = vpop.f32.mrb[0].mxu0
  %v3154 = vadd.f32 %v2764, %v3153
  %v3155 = vpop.f32.mrb[0].mxu0
  %v3156 = vpop.f32.mrb[0].mxu0
  %v3157 = vadd.f32 %v2767, %v3156
  %v3158 = vpop.f32.mrb[0].mxu0
  %3159 = vdwg.mxu0
  %s3160 = scalar_lea.vmem %s25, 800
  %v3161 = vld [vmem:[%s3160] sm:$0xff]
  %v3162 = vld [vmem:[%s3160 + $0x8] sm:$0xff]
  %v3163 = vld [vmem:[%s3160 + $0x10] sm:$0xf]
  %v3164 = vld [vmem:[%s3160 + $0x14] sm:$0xff]
  %v3165 = vld [vmem:[%s3160 + $0x1c] sm:$0xff]
  %v3166 = vld [vmem:[%s3160 + $0x24] sm:$0xf]
  %v3167 = vld [vmem:[%s3160 + $0x28] sm:$0xff]
  %v3168 = vld [vmem:[%s3160 + $0x30] sm:$0xff]
  %v3169 = vld [vmem:[%s3160 + $0x38] sm:$0xf]
  %v3170 = vld [vmem:[%s3160 + $0x3c] sm:$0xff]
  %v3171 = vld [vmem:[%s3160 + $0x44] sm:$0xff]
  %v3172 = vld [vmem:[%s3160 + $0x4c] sm:$0xf]
  %v3173 = vld [vmem:[%s3160 + $0x50] sm:$0xff]
  %v3174 = vld [vmem:[%s3160 + $0x58] sm:$0xff]
  %v3175 = vld [vmem:[%s3160 + $0x60] sm:$0xf]
  %v3176 = vld [vmem:[%s3160 + $0x64] sm:$0xff]
  %v3177 = vld [vmem:[%s3160 + $0x6c] sm:$0xff]
  %v3178 = vld [vmem:[%s3160 + $0x74] sm:$0xf]
  %v3179 = vld [vmem:[%s3160 + $0x78] sm:$0xff]
  %v3180 = vld [vmem:[%s3160 + $0x80] sm:$0xff]
  %v3181 = vld [vmem:[%s3160 + $0x88] sm:$0xf]
  %v3182 = vld [vmem:[%s3160 + $0x8c] sm:$0xff]
  %v3183 = vld [vmem:[%s3160 + $0x94] sm:$0xff]
  %v3184 = vld [vmem:[%s3160 + $0x9c] sm:$0xf]
  %v3185 = vld [vmem:[%s3160 + $0xa0] sm:$0xff]
  %v3186 = vld [vmem:[%s3160 + $0xa8] sm:$0xff]
  %v3187 = vld [vmem:[%s3160 + $0xb0] sm:$0xf]
  %v3188 = vld [vmem:[%s3160 + $0xb4] sm:$0xff]
  %v3189 = vld [vmem:[%s3160 + $0xbc] sm:$0xff]
  %v3190 = vld [vmem:[%s3160 + $0xc4] sm:$0xf]
  %v3191 = vld [vmem:[%s3160 + $0xc8] sm:$0xff]
  %v3192 = vld [vmem:[%s3160 + $0xd0] sm:$0xff]
  %v3193 = vld [vmem:[%s3160 + $0xd8] sm:$0xf]
  %v3194 = vld [vmem:[%s3160 + $0xdc] sm:$0xff]
  %v3195 = vld [vmem:[%s3160 + $0xe4] sm:$0xff]
  %v3196 = vld [vmem:[%s3160 + $0xec] sm:$0xf]
  %v3197 = vld [vmem:[%s3160 + $0xf0] sm:$0xff]
  %v3198 = vld [vmem:[%s3160 + $0xf8] sm:$0xff]
  %v3199 = vld [vmem:[%s3160 + $0x100] sm:$0xf]
  %v3200 = vld [vmem:[%s3160 + $0x104] sm:$0xff]
  %v3201 = vld [vmem:[%s3160 + $0x10c] sm:$0xff]
  %v3202 = vld [vmem:[%s3160 + $0x114] sm:$0xf]
  %v3203 = vld [vmem:[%s3160 + $0x118] sm:$0xff]
  %v3204 = vld [vmem:[%s3160 + $0x120] sm:$0xff]
  %v3205 = vld [vmem:[%s3160 + $0x128] sm:$0xf]
  %v3206 = vld [vmem:[%s3160 + $0x12c] sm:$0xff]
  %v3207 = vld [vmem:[%s3160 + $0x134] sm:$0xff]
  %v3208 = vld [vmem:[%s3160 + $0x13c] sm:$0xf]
  %v3209 = vld [vmem:[%s3160 + $0x140] sm:$0xff]
  %v3210 = vld [vmem:[%s3160 + $0x148] sm:$0xff]
  %v3211 = vld [vmem:[%s3160 + $0x150] sm:$0xf]
  %v3212 = vld [vmem:[%s3160 + $0x154] sm:$0xff]
  %v3213 = vld [vmem:[%s3160 + $0x15c] sm:$0xff]
  %v3214 = vld [vmem:[%s3160 + $0x164] sm:$0xf]
  %v3215 = vld [vmem:[%s3160 + $0x168] sm:$0xff]
  %v3216 = vld [vmem:[%s3160 + $0x170] sm:$0xff]
  %v3217 = vld [vmem:[%s3160 + $0x178] sm:$0xf]
  %v3218 = vld [vmem:[%s3160 + $0x17c] sm:$0xff]
  %v3219 = vld [vmem:[%s3160 + $0x184] sm:$0xff]
  %v3220 = vld [vmem:[%s3160 + $0x18c] sm:$0xf]
  %v3221 = vpack.c.bf16 %v2228, %v2226
  %v3222 = vpack.c.bf16 %v2229, %v2227
  %v3283 = vunpack.c.l.b16 %v3161
  %v3284 = vunpack.c.h.b16 %v3161
  %v3285 = vunpack.c.l.b16 %v3162
  %v3286 = vunpack.c.h.b16 %v3162
  %v3287 = vunpack.c.l.b16 %v3163
  %v3288 = vunpack.c.l.b16 %v3164
  %v3289 = vunpack.c.h.b16 %v3164
  %v3290 = vunpack.c.l.b16 %v3165
  %v3291 = vunpack.c.h.b16 %v3165
  %v3292 = vunpack.c.l.b16 %v3166
  %v3293 = vunpack.c.l.b16 %v3167
  %v3294 = vunpack.c.h.b16 %v3167
  %v3295 = vunpack.c.l.b16 %v3168
  %v3296 = vunpack.c.h.b16 %v3168
  %v3297 = vunpack.c.l.b16 %v3169
  %v3298 = vunpack.c.l.b16 %v3170
  %v3299 = vunpack.c.h.b16 %v3170
  %v3300 = vunpack.c.l.b16 %v3171
  %v3301 = vunpack.c.h.b16 %v3171
  %v3302 = vunpack.c.l.b16 %v3172
  %v3303 = vunpack.c.l.b16 %v3173
  %v3304 = vunpack.c.h.b16 %v3173
  %v3305 = vunpack.c.l.b16 %v3174
  %v3306 = vunpack.c.h.b16 %v3174
  %v3307 = vunpack.c.l.b16 %v3175
  %v3308 = vunpack.c.l.b16 %v3176
  %v3309 = vunpack.c.h.b16 %v3176
  %v3310 = vunpack.c.l.b16 %v3177
  %v3311 = vunpack.c.h.b16 %v3177
  %v3312 = vunpack.c.l.b16 %v3178
  %v3313 = vunpack.c.l.b16 %v3179
  %v3314 = vunpack.c.h.b16 %v3179
  %v3315 = vunpack.c.l.b16 %v3180
  %v3316 = vunpack.c.h.b16 %v3180
  %v3317 = vunpack.c.l.b16 %v3181
  %v3318 = vunpack.c.l.b16 %v3182
  %v3319 = vunpack.c.h.b16 %v3182
  %v3320 = vunpack.c.l.b16 %v3183
  %v3321 = vunpack.c.h.b16 %v3183
  %v3322 = vunpack.c.l.b16 %v3184
  %v3323 = vunpack.c.l.b16 %v3185
  %v3324 = vunpack.c.h.b16 %v3185
  %v3325 = vunpack.c.l.b16 %v3186
  %v3326 = vunpack.c.h.b16 %v3186
  %v3327 = vunpack.c.l.b16 %v3187
  %v3328 = vunpack.c.l.b16 %v3188
  %v3329 = vunpack.c.h.b16 %v3188
  %v3330 = vunpack.c.l.b16 %v3189
  %v3331 = vunpack.c.h.b16 %v3189
  %v3332 = vunpack.c.l.b16 %v3190
  %v3333 = vunpack.c.l.b16 %v3191
  %v3334 = vunpack.c.h.b16 %v3191
  %v3335 = vunpack.c.l.b16 %v3192
  %v3336 = vunpack.c.h.b16 %v3192
  %v3337 = vunpack.c.l.b16 %v3193
  %v3338 = vunpack.c.l.b16 %v3194
  %v3339 = vunpack.c.h.b16 %v3194
  %v3340 = vunpack.c.l.b16 %v3195
  %v3341 = vunpack.c.h.b16 %v3195
  %v3342 = vunpack.c.l.b16 %v3196
  %v3343 = vunpack.c.l.b16 %v3197
  %v3344 = vunpack.c.h.b16 %v3197
  %v3345 = vunpack.c.l.b16 %v3198
  %v3346 = vunpack.c.h.b16 %v3198
  %v3347 = vunpack.c.l.b16 %v3199
  %v3348 = vunpack.c.l.b16 %v3200
  %v3349 = vunpack.c.h.b16 %v3200
  %v3350 = vunpack.c.l.b16 %v3201
  %v3351 = vunpack.c.h.b16 %v3201
  %v3352 = vunpack.c.l.b16 %v3202
  %v3353 = vunpack.c.l.b16 %v3203
  %v3354 = vunpack.c.h.b16 %v3203
  %v3355 = vunpack.c.l.b16 %v3204
  %v3356 = vunpack.c.h.b16 %v3204
  %v3357 = vunpack.c.l.b16 %v3205
  %v3358 = vunpack.c.l.b16 %v3206
  %v3359 = vunpack.c.h.b16 %v3206
  %v3360 = vunpack.c.l.b16 %v3207
  %v3361 = vunpack.c.h.b16 %v3207
  %v3362 = vunpack.c.l.b16 %v3208
  %v3363 = vunpack.c.l.b16 %v3209
  %v3364 = vunpack.c.h.b16 %v3209
  %v3365 = vunpack.c.l.b16 %v3210
  %v3366 = vunpack.c.h.b16 %v3210
  %v3367 = vunpack.c.l.b16 %v3211
  %v3368 = vunpack.c.l.b16 %v3212
  %v3369 = vunpack.c.h.b16 %v3212
  %v3370 = vunpack.c.l.b16 %v3213
  %v3371 = vunpack.c.h.b16 %v3213
  %v3372 = vunpack.c.l.b16 %v3214
  %v3373 = vunpack.c.l.b16 %v3215
  %v3374 = vunpack.c.h.b16 %v3215
  %v3375 = vunpack.c.l.b16 %v3216
  %v3376 = vunpack.c.h.b16 %v3216
  %v3377 = vunpack.c.l.b16 %v3217
  %v3378 = vunpack.c.l.b16 %v3218
  %v3379 = vunpack.c.h.b16 %v3218
  %v3380 = vunpack.c.l.b16 %v3219
  %v3381 = vunpack.c.h.b16 %v3219
  %v3382 = vunpack.c.l.b16 %v3220
  %v3383 = vpack.c.b16 %v3288, %v3283
  %v3384 = vpack.c.b16 %v3289, %v3284
  %v3385 = vpack.c.b16 %v3290, %v3285
  %v3386 = vpack.c.b16 %v3291, %v3286
  %v3387 = vpack.c.b16 %v3292, %v3287
  %v3388 = vpack.c.b16 %v3298, %v3293
  %v3389 = vpack.c.b16 %v3299, %v3294
  %v3390 = vpack.c.b16 %v3300, %v3295
  %v3391 = vpack.c.b16 %v3301, %v3296
  %v3392 = vpack.c.b16 %v3302, %v3297
  %v3393 = vpack.c.b16 %v3308, %v3303
  %v3394 = vpack.c.b16 %v3309, %v3304
  %v3395 = vpack.c.b16 %v3310, %v3305
  %v3396 = vpack.c.b16 %v3311, %v3306
  %v3397 = vpack.c.b16 %v3312, %v3307
  %v3398 = vpack.c.b16 %v3318, %v3313
  %v3399 = vpack.c.b16 %v3319, %v3314
  %v3400 = vpack.c.b16 %v3320, %v3315
  %v3401 = vpack.c.b16 %v3321, %v3316
  %v3402 = vpack.c.b16 %v3322, %v3317
  %v3403 = vpack.c.b16 %v3328, %v3323
  %v3404 = vpack.c.b16 %v3329, %v3324
  %v3405 = vpack.c.b16 %v3330, %v3325
  %v3406 = vpack.c.b16 %v3331, %v3326
  %v3407 = vpack.c.b16 %v3332, %v3327
  %v3408 = vpack.c.b16 %v3338, %v3333
  %v3409 = vpack.c.b16 %v3339, %v3334
  %v3410 = vpack.c.b16 %v3340, %v3335
  %v3411 = vpack.c.b16 %v3341, %v3336
  %v3412 = vpack.c.b16 %v3342, %v3337
  %v3413 = vpack.c.b16 %v3348, %v3343
  %v3414 = vpack.c.b16 %v3349, %v3344
  %v3415 = vpack.c.b16 %v3350, %v3345
  %v3416 = vpack.c.b16 %v3351, %v3346
  %v3417 = vpack.c.b16 %v3352, %v3347
  %v3418 = vpack.c.b16 %v3358, %v3353
  %v3419 = vpack.c.b16 %v3359, %v3354
  %v3420 = vpack.c.b16 %v3360, %v3355
  %v3421 = vpack.c.b16 %v3361, %v3356
  %v3422 = vpack.c.b16 %v3362, %v3357
  %v3423 = vpack.c.b16 %v3368, %v3363
  %v3424 = vpack.c.b16 %v3369, %v3364
  %v3425 = vpack.c.b16 %v3370, %v3365
  %v3426 = vpack.c.b16 %v3371, %v3366
  %v3427 = vpack.c.b16 %v3372, %v3367
  %v3428 = vpack.c.b16 %v3378, %v3373
  %v3429 = vpack.c.b16 %v3379, %v3374
  %v3430 = vpack.c.b16 %v3380, %v3375
  %v3431 = vpack.c.b16 %v3381, %v3376
  %v3432 = vpack.c.b16 %v3382, %v3377
  %v3484 = vsel %vm2639, %v3222, 0
  %3486 = vmatprep.subr.bf16.mxu0 %v3384
  %3487 = vmatpush1.bf16.msra.mxu0 %v3383
  %3488 = vmatprep.subr.bf16.mxu0 %v3389
  %3489 = vmatpush1.bf16.msra.mxu0 %v3388
  %3490 = vmatprep.subr.bf16.mxu0 %v3394
  %3491 = vmatpush1.bf16.msra.mxu0 %v3393
  %3492 = vmatprep.subr.bf16.mxu0 %v3399
  %3493 = vmatpush1.bf16.msra.mxu0 %v3398
  %3494 = vmatprep.subr.bf16.mxu0 %v3404
  %3495 = vmatpush1.bf16.msra.mxu0 %v3403
  %3496 = vmatprep.subr.bf16.mxu0 %v3409
  %3497 = vmatpush1.bf16.msra.mxu0 %v3408
  %3498 = vmatprep.subr.bf16.mxu0 %v3414
  %3499 = vmatpush1.bf16.msra.mxu0 %v3413
  %3500 = vmatprep.subr.bf16.mxu0 %v3419
  %3501 = vmatpush1.bf16.msra.mxu0 %v3418
  %3502 = vmatprep.subr.bf16.mxu0 %v3424
  %3503 = vmatpush1.bf16.msra.mxu0 %v3423
  %3504 = vmatprep.subr.bf16.mxu0 %v3429
  %3505 = vmatpush1.bf16.msra.mxu0 %v3428
  %3506 = vmatprep.subr.bf16.mxu0 0
  %3507 = vmatpush1.bf16.msra.mxu0 0
  %3508 = vmatprep.subr.bf16.mxu0 0
  %3509 = vmatpush1.bf16.msra.mxu0 0
  %3510 = vmatprep.subr.bf16.mxu0 0
  %3511 = vmatpush1.bf16.msra.mxu0 0
  %3512 = vmatprep.subr.bf16.mxu0 0
  %3513 = vmatpush1.bf16.msra.mxu0 0
  %3514 = vmatprep.subr.bf16.mxu0 0
  %3515 = vmatpush1.bf16.msra.mxu0 0
  %3516 = vmatprep.subr.bf16.mxu0 0
  %3517 = vmatpush1.bf16.msra.mxu0 0
  %3518 = vmatprep.mubr.bf16.mxu0 %v3484
  %3519 = vmatmul.mubr.bf16.gmra.mrb[0].mxu0 %v3221
  %v3520 = vpop.f32.mrb[0].mxu0
  %v3521 = vadd.f32 0.0, %v3520
  %v3522 = vpop.f32.mrb[0].mxu0
  %v3523 = vadd.f32 0.0, %v3522
  %v3524 = vpop.f32.mrb[0].mxu0
  %v3525 = vadd.f32 0.0, %v3524
  %v3526 = vpop.f32.mrb[0].mxu0
  %v3527 = vadd.f32 0.0, %v3526
  %3528 = vdwg.mxu0
  %3529 = vmatprep.subr.bf16.mxu0 %v3386
  %3530 = vmatpush1.bf16.msra.mxu0 %v3385
  %3531 = vmatprep.subr.bf16.mxu0 %v3391
  %3532 = vmatpush1.bf16.msra.mxu0 %v3390
  %3533 = vmatprep.subr.bf16.mxu0 %v3396
  %3534 = vmatpush1.bf16.msra.mxu0 %v3395
  %3535 = vmatprep.subr.bf16.mxu0 %v3401
  %3536 = vmatpush1.bf16.msra.mxu0 %v3400
  %3537 = vmatprep.subr.bf16.mxu0 %v3406
  %3538 = vmatpush1.bf16.msra.mxu0 %v3405
  %3539 = vmatprep.subr.bf16.mxu0 %v3411
  %3540 = vmatpush1.bf16.msra.mxu0 %v3410
  %3541 = vmatprep.subr.bf16.mxu0 %v3416
  %3542 = vmatpush1.bf16.msra.mxu0 %v3415
  %3543 = vmatprep.subr.bf16.mxu0 %v3421
  %3544 = vmatpush1.bf16.msra.mxu0 %v3420
  %3545 = vmatprep.subr.bf16.mxu0 %v3426
  %3546 = vmatpush1.bf16.msra.mxu0 %v3425
  %3547 = vmatprep.subr.bf16.mxu0 %v3431
  %3548 = vmatpush1.bf16.msra.mxu0 %v3430
  %3549 = vmatprep.subr.bf16.mxu0 0
  %3550 = vmatpush1.bf16.msra.mxu0 0
  %3551 = vmatprep.subr.bf16.mxu0 0
  %3552 = vmatpush1.bf16.msra.mxu0 0
  %3553 = vmatprep.subr.bf16.mxu0 0
  %3554 = vmatpush1.bf16.msra.mxu0 0
  %3555 = vmatprep.subr.bf16.mxu0 0
  %3556 = vmatpush1.bf16.msra.mxu0 0
  %3557 = vmatprep.subr.bf16.mxu0 0
  %3558 = vmatpush1.bf16.msra.mxu0 0
  %3559 = vmatprep.subr.bf16.mxu0 0
  %3560 = vmatpush1.bf16.msra.mxu0 0
  %3561 = vmatprep.mubr.bf16.mxu0 %v3484
  %3562 = vmatmul.mubr.bf16.gmra.mrb[0].mxu0 %v3221
  %v3563 = vpop.f32.mrb[0].mxu0
  %v3564 = vadd.f32 0.0, %v3563
  %v3565 = vpop.f32.mrb[0].mxu0
  %v3566 = vadd.f32 0.0, %v3565
  %v3567 = vpop.f32.mrb[0].mxu0
  %v3568 = vadd.f32 0.0, %v3567
  %v3569 = vpop.f32.mrb[0].mxu0
  %v3570 = vadd.f32 0.0, %v3569
  %3571 = vdwg.mxu0
  %3572 = vmatprep.subr.bf16.mxu0 0
  %3573 = vmatpush1.bf16.msra.mxu0 %v3387
  %3574 = vmatprep.subr.bf16.mxu0 0
  %3575 = vmatpush1.bf16.msra.mxu0 %v3392
  %3576 = vmatprep.subr.bf16.mxu0 0
  %3577 = vmatpush1.bf16.msra.mxu0 %v3397
  %3578 = vmatprep.subr.bf16.mxu0 0
  %3579 = vmatpush1.bf16.msra.mxu0 %v3402
  %3580 = vmatprep.subr.bf16.mxu0 0
  %3581 = vmatpush1.bf16.msra.mxu0 %v3407
  %3582 = vmatprep.subr.bf16.mxu0 0
  %3583 = vmatpush1.bf16.msra.mxu0 %v3412
  %3584 = vmatprep.subr.bf16.mxu0 0
  %3585 = vmatpush1.bf16.msra.mxu0 %v3417
  %3586 = vmatprep.subr.bf16.mxu0 0
  %3587 = vmatpush1.bf16.msra.mxu0 %v3422
  %3588 = vmatprep.subr.bf16.mxu0 0
  %3589 = vmatpush1.bf16.msra.mxu0 %v3427
  %3590 = vmatprep.subr.bf16.mxu0 0
  %3591 = vmatpush1.bf16.msra.mxu0 %v3432
  %3592 = vmatprep.subr.bf16.mxu0 0
  %3593 = vmatpush1.bf16.msra.mxu0 0
  %3594 = vmatprep.subr.bf16.mxu0 0
  %3595 = vmatpush1.bf16.msra.mxu0 0
  %3596 = vmatprep.subr.bf16.mxu0 0
  %3597 = vmatpush1.bf16.msra.mxu0 0
  %3598 = vmatprep.subr.bf16.mxu0 0
  %3599 = vmatpush1.bf16.msra.mxu0 0
  %3600 = vmatprep.subr.bf16.mxu0 0
  %3601 = vmatpush1.bf16.msra.mxu0 0
  %3602 = vmatprep.subr.bf16.mxu0 0
  %3603 = vmatpush1.bf16.msra.mxu0 0
  %3604 = vmatprep.mubr.bf16.mxu0 %v3484
  %3605 = vmatmul.mubr.bf16.gmra.mrb[0].mxu0 %v3221
  %v3606 = vpop.f32.mrb[0].mxu0
  %v3607 = vadd.f32 0.0, %v3606
  %v3608 = vpop.f32.mrb[0].mxu0
  %v3609 = vpop.f32.mrb[0].mxu0
  %v3610 = vadd.f32 0.0, %v3609
  %v3611 = vpop.f32.mrb[0].mxu0
  %3612 = vdwg.mxu0
  %v3613 = vadd.f32 %v3068, %v3521
  %v3614 = vadd.f32 %v3070, %v3523
  %v3615 = vadd.f32 %v3111, %v3564
  %v3616 = vadd.f32 %v3113, %v3566
  %v3617 = vadd.f32 %v3154, %v3607
  %v3618 = vadd.f32 %v3072, %v3525
  %v3619 = vadd.f32 %v3074, %v3527
  %v3620 = vadd.f32 %v3115, %v3568
  %v3621 = vadd.f32 %v3117, %v3570
  %v3622 = vadd.f32 %v3157, %v3610
  %s3623 = scalar_lea.vmem %s25, 1200
  %v3624 = vld [vmem:[%s3623] sm:$0xff]
  %v3625 = vld [vmem:[%s3623 + $0x8] sm:$0xff]
  %v3626 = vld [vmem:[%s3623 + $0x10] sm:$0xf]
  %v3627 = vld [vmem:[%s3623 + $0x14] sm:$0xff]
  %v3628 = vld [vmem:[%s3623 + $0x1c] sm:$0xff]
  %v3629 = vld [vmem:[%s3623 + $0x24] sm:$0xf]
  %v3630 = vld [vmem:[%s3623 + $0x28] sm:$0xff]
  %v3631 = vld [vmem:[%s3623 + $0x30] sm:$0xff]
  %v3632 = vld [vmem:[%s3623 + $0x38] sm:$0xf]
  %v3633 = vld [vmem:[%s3623 + $0x3c] sm:$0xff]
  %v3634 = vld [vmem:[%s3623 + $0x44] sm:$0xff]
  %v3635 = vld [vmem:[%s3623 + $0x4c] sm:$0xf]
  %v3636 = vld [vmem:[%s3623 + $0x50] sm:$0xff]
  %v3637 = vld [vmem:[%s3623 + $0x58] sm:$0xff]
  %v3638 = vld [vmem:[%s3623 + $0x60] sm:$0xf]
  %v3639 = vld [vmem:[%s3623 + $0x64] sm:$0xff]
  %v3640 = vld [vmem:[%s3623 + $0x6c] sm:$0xff]
  %v3641 = vld [vmem:[%s3623 + $0x74] sm:$0xf]
  %v3642 = vld [vmem:[%s3623 + $0x78] sm:$0xff]
  %v3643 = vld [vmem:[%s3623 + $0x80] sm:$0xff]
  %v3644 = vld [vmem:[%s3623 + $0x88] sm:$0xf]
  %v3645 = vld [vmem:[%s3623 + $0x8c] sm:$0xff]
  %v3646 = vld [vmem:[%s3623 + $0x94] sm:$0xff]
  %v3647 = vld [vmem:[%s3623 + $0x9c] sm:$0xf]
  %v3648 = vld [vmem:[%s3623 + $0xa0] sm:$0xff]
  %v3649 = vld [vmem:[%s3623 + $0xa8] sm:$0xff]
  %v3650 = vld [vmem:[%s3623 + $0xb0] sm:$0xf]
  %v3651 = vld [vmem:[%s3623 + $0xb4] sm:$0xff]
  %v3652 = vld [vmem:[%s3623 + $0xbc] sm:$0xff]
  %v3653 = vld [vmem:[%s3623 + $0xc4] sm:$0xf]
  %v3654 = vld [vmem:[%s3623 + $0xc8] sm:$0xff]
  %v3655 = vld [vmem:[%s3623 + $0xd0] sm:$0xff]
  %v3656 = vld [vmem:[%s3623 + $0xd8] sm:$0xf]
  %v3657 = vld [vmem:[%s3623 + $0xdc] sm:$0xff]
  %v3658 = vld [vmem:[%s3623 + $0xe4] sm:$0xff]
  %v3659 = vld [vmem:[%s3623 + $0xec] sm:$0xf]
  %v3660 = vld [vmem:[%s3623 + $0xf0] sm:$0xff]
  %v3661 = vld [vmem:[%s3623 + $0xf8] sm:$0xff]
  %v3662 = vld [vmem:[%s3623 + $0x100] sm:$0xf]
  %v3663 = vld [vmem:[%s3623 + $0x104] sm:$0xff]
  %v3664 = vld [vmem:[%s3623 + $0x10c] sm:$0xff]
  %v3665 = vld [vmem:[%s3623 + $0x114] sm:$0xf]
  %v3666 = vld [vmem:[%s3623 + $0x118] sm:$0xff]
  %v3667 = vld [vmem:[%s3623 + $0x120] sm:$0xff]
  %v3668 = vld [vmem:[%s3623 + $0x128] sm:$0xf]
  %v3669 = vld [vmem:[%s3623 + $0x12c] sm:$0xff]
  %v3670 = vld [vmem:[%s3623 + $0x134] sm:$0xff]
  %v3671 = vld [vmem:[%s3623 + $0x13c] sm:$0xf]
  %v3672 = vld [vmem:[%s3623 + $0x140] sm:$0xff]
  %v3673 = vld [vmem:[%s3623 + $0x148] sm:$0xff]
  %v3674 = vld [vmem:[%s3623 + $0x150] sm:$0xf]
  %v3675 = vld [vmem:[%s3623 + $0x154] sm:$0xff]
  %v3676 = vld [vmem:[%s3623 + $0x15c] sm:$0xff]
  %v3677 = vld [vmem:[%s3623 + $0x164] sm:$0xf]
  %v3678 = vld [vmem:[%s3623 + $0x168] sm:$0xff]
  %v3679 = vld [vmem:[%s3623 + $0x170] sm:$0xff]
  %v3680 = vld [vmem:[%s3623 + $0x178] sm:$0xf]
  %v3681 = vld [vmem:[%s3623 + $0x17c] sm:$0xff]
  %v3682 = vld [vmem:[%s3623 + $0x184] sm:$0xff]
  %v3683 = vld [vmem:[%s3623 + $0x18c] sm:$0xf]
  %v3684 = vpack.c.bf16 %v2232, %v2230
  %v3685 = vpack.c.bf16 %v2233, %v2231
  %v3746 = vunpack.c.l.b16 %v3624
  %v3747 = vunpack.c.h.b16 %v3624
  %v3748 = vunpack.c.l.b16 %v3625
  %v3749 = vunpack.c.h.b16 %v3625
  %v3750 = vunpack.c.l.b16 %v3626
  %v3751 = vunpack.c.l.b16 %v3627
  %v3752 = vunpack.c.h.b16 %v3627
  %v3753 = vunpack.c.l.b16 %v3628
  %v3754 = vunpack.c.h.b16 %v3628
  %v3755 = vunpack.c.l.b16 %v3629
  %v3756 = vunpack.c.l.b16 %v3630
  %v3757 = vunpack.c.h.b16 %v3630
  %v3758 = vunpack.c.l.b16 %v3631
  %v3759 = vunpack.c.h.b16 %v3631
  %v3760 = vunpack.c.l.b16 %v3632
  %v3761 = vunpack.c.l.b16 %v3633
  %v3762 = vunpack.c.h.b16 %v3633
  %v3763 = vunpack.c.l.b16 %v3634
  %v3764 = vunpack.c.h.b16 %v3634
  %v3765 = vunpack.c.l.b16 %v3635
  %v3766 = vunpack.c.l.b16 %v3636
  %v3767 = vunpack.c.h.b16 %v3636
  %v3768 = vunpack.c.l.b16 %v3637
  %v3769 = vunpack.c.h.b16 %v3637
  %v3770 = vunpack.c.l.b16 %v3638
  %v3771 = vunpack.c.l.b16 %v3639
  %v3772 = vunpack.c.h.b16 %v3639
  %v3773 = vunpack.c.l.b16 %v3640
  %v3774 = vunpack.c.h.b16 %v3640
  %v3775 = vunpack.c.l.b16 %v3641
  %v3776 = vunpack.c.l.b16 %v3642
  %v3777 = vunpack.c.h.b16 %v3642
  %v3778 = vunpack.c.l.b16 %v3643
  %v3779 = vunpack.c.h.b16 %v3643
  %v3780 = vunpack.c.l.b16 %v3644
  %v3781 = vunpack.c.l.b16 %v3645
  %v3782 = vunpack.c.h.b16 %v3645
  %v3783 = vunpack.c.l.b16 %v3646
  %v3784 = vunpack.c.h.b16 %v3646
  %v3785 = vunpack.c.l.b16 %v3647
  %v3786 = vunpack.c.l.b16 %v3648
  %v3787 = vunpack.c.h.b16 %v3648
  %v3788 = vunpack.c.l.b16 %v3649
  %v3789 = vunpack.c.h.b16 %v3649
  %v3790 = vunpack.c.l.b16 %v3650
  %v3791 = vunpack.c.l.b16 %v3651
  %v3792 = vunpack.c.h.b16 %v3651
  %v3793 = vunpack.c.l.b16 %v3652
  %v3794 = vunpack.c.h.b16 %v3652
  %v3795 = vunpack.c.l.b16 %v3653
  %v3796 = vunpack.c.l.b16 %v3654
  %v3797 = vunpack.c.h.b16 %v3654
  %v3798 = vunpack.c.l.b16 %v3655
  %v3799 = vunpack.c.h.b16 %v3655
  %v3800 = vunpack.c.l.b16 %v3656
  %v3801 = vunpack.c.l.b16 %v3657
  %v3802 = vunpack.c.h.b16 %v3657
  %v3803 = vunpack.c.l.b16 %v3658
  %v3804 = vunpack.c.h.b16 %v3658
  %v3805 = vunpack.c.l.b16 %v3659
  %v3806 = vunpack.c.l.b16 %v3660
  %v3807 = vunpack.c.h.b16 %v3660
  %v3808 = vunpack.c.l.b16 %v3661
  %v3809 = vunpack.c.h.b16 %v3661
  %v3810 = vunpack.c.l.b16 %v3662
  %v3811 = vunpack.c.l.b16 %v3663
  %v3812 = vunpack.c.h.b16 %v3663
  %v3813 = vunpack.c.l.b16 %v3664
  %v3814 = vunpack.c.h.b16 %v3664
  %v3815 = vunpack.c.l.b16 %v3665
  %v3816 = vunpack.c.l.b16 %v3666
  %v3817 = vunpack.c.h.b16 %v3666
  %v3818 = vunpack.c.l.b16 %v3667
  %v3819 = vunpack.c.h.b16 %v3667
  %v3820 = vunpack.c.l.b16 %v3668
  %v3821 = vunpack.c.l.b16 %v3669
  %v3822 = vunpack.c.h.b16 %v3669
  %v3823 = vunpack.c.l.b16 %v3670
  %v3824 = vunpack.c.h.b16 %v3670
  %v3825 = vunpack.c.l.b16 %v3671
  %v3826 = vunpack.c.l.b16 %v3672
  %v3827 = vunpack.c.h.b16 %v3672
  %v3828 = vunpack.c.l.b16 %v3673
  %v3829 = vunpack.c.h.b16 %v3673
  %v3830 = vunpack.c.l.b16 %v3674
  %v3831 = vunpack.c.l.b16 %v3675
  %v3832 = vunpack.c.h.b16 %v3675
  %v3833 = vunpack.c.l.b16 %v3676
  %v3834 = vunpack.c.h.b16 %v3676
  %v3835 = vunpack.c.l.b16 %v3677
  %v3836 = vunpack.c.l.b16 %v3678
  %v3837 = vunpack.c.h.b16 %v3678
  %v3838 = vunpack.c.l.b16 %v3679
  %v3839 = vunpack.c.h.b16 %v3679
  %v3840 = vunpack.c.l.b16 %v3680
  %v3841 = vunpack.c.l.b16 %v3681
  %v3842 = vunpack.c.h.b16 %v3681
  %v3843 = vunpack.c.l.b16 %v3682
  %v3844 = vunpack.c.h.b16 %v3682
  %v3845 = vunpack.c.l.b16 %v3683
  %v3846 = vpack.c.b16 %v3751, %v3746
  %v3847 = vpack.c.b16 %v3752, %v3747
  %v3848 = vpack.c.b16 %v3753, %v3748
  %v3849 = vpack.c.b16 %v3754, %v3749
  %v3850 = vpack.c.b16 %v3755, %v3750
  %v3851 = vpack.c.b16 %v3761, %v3756
  %v3852 = vpack.c.b16 %v3762, %v3757
  %v3853 = vpack.c.b16 %v3763, %v3758
  %v3854 = vpack.c.b16 %v3764, %v3759
  %v3855 = vpack.c.b16 %v3765, %v3760
  %v3856 = vpack.c.b16 %v3771, %v3766
  %v3857 = vpack.c.b16 %v3772, %v3767
  %v3858 = vpack.c.b16 %v3773, %v3768
  %v3859 = vpack.c.b16 %v3774, %v3769
  %v3860 = vpack.c.b16 %v3775, %v3770
  %v3861 = vpack.c.b16 %v3781, %v3776
  %v3862 = vpack.c.b16 %v3782, %v3777
  %v3863 = vpack.c.b16 %v3783, %v3778
  %v3864 = vpack.c.b16 %v3784, %v3779
  %v3865 = vpack.c.b16 %v3785, %v3780
  %v3866 = vpack.c.b16 %v3791, %v3786
  %v3867 = vpack.c.b16 %v3792, %v3787
  %v3868 = vpack.c.b16 %v3793, %v3788
  %v3869 = vpack.c.b16 %v3794, %v3789
  %v3870 = vpack.c.b16 %v3795, %v3790
  %v3871 = vpack.c.b16 %v3801, %v3796
  %v3872 = vpack.c.b16 %v3802, %v3797
  %v3873 = vpack.c.b16 %v3803, %v3798
  %v3874 = vpack.c.b16 %v3804, %v3799
  %v3875 = vpack.c.b16 %v3805, %v3800
  %v3876 = vpack.c.b16 %v3811, %v3806
  %v3877 = vpack.c.b16 %v3812, %v3807
  %v3878 = vpack.c.b16 %v3813, %v3808
  %v3879 = vpack.c.b16 %v3814, %v3809
  %v3880 = vpack.c.b16 %v3815, %v3810
  %v3881 = vpack.c.b16 %v3821, %v3816
  %v3882 = vpack.c.b16 %v3822, %v3817
  %v3883 = vpack.c.b16 %v3823, %v3818
  %v3884 = vpack.c.b16 %v3824, %v3819
  %v3885 = vpack.c.b16 %v3825, %v3820
  %v3886 = vpack.c.b16 %v3831, %v3826
  %v3887 = vpack.c.b16 %v3832, %v3827
  %v3888 = vpack.c.b16 %v3833, %v3828
  %v3889 = vpack.c.b16 %v3834, %v3829
  %v3890 = vpack.c.b16 %v3835, %v3830
  %v3891 = vpack.c.b16 %v3841, %v3836
  %v3892 = vpack.c.b16 %v3842, %v3837
  %v3893 = vpack.c.b16 %v3843, %v3838
  %v3894 = vpack.c.b16 %v3844, %v3839
  %v3895 = vpack.c.b16 %v3845, %v3840
  %v3947 = vsel %vm2639, %v3685, 0
  %3949 = vmatprep.subr.bf16.mxu0 %v3847
  %3950 = vmatpush1.bf16.msra.mxu0 %v3846
  %3951 = vmatprep.subr.bf16.mxu0 %v3852
  %3952 = vmatpush1.bf16.msra.mxu0 %v3851
  %3953 = vmatprep.subr.bf16.mxu0 %v3857
  %3954 = vmatpush1.bf16.msra.mxu0 %v3856
  %3955 = vmatprep.subr.bf16.mxu0 %v3862
  %3956 = vmatpush1.bf16.msra.mxu0 %v3861
  %3957 = vmatprep.subr.bf16.mxu0 %v3867
  %3958 = vmatpush1.bf16.msra.mxu0 %v3866
  %3959 = vmatprep.subr.bf16.mxu0 %v3872
  %3960 = vmatpush1.bf16.msra.mxu0 %v3871
  %3961 = vmatprep.subr.bf16.mxu0 %v3877
  %3962 = vmatpush1.bf16.msra.mxu0 %v3876
  %3963 = vmatprep.subr.bf16.mxu0 %v3882
  %3964 = vmatpush1.bf16.msra.mxu0 %v3881
  %3965 = vmatprep.subr.bf16.mxu0 %v3887
  %3966 = vmatpush1.bf16.msra.mxu0 %v3886
  %3967 = vmatprep.subr.bf16.mxu0 %v3892
  %3968 = vmatpush1.bf16.msra.mxu0 %v3891
  %3969 = vmatprep.subr.bf16.mxu0 0
  %3970 = vmatpush1.bf16.msra.mxu0 0
  %3971 = vmatprep.subr.bf16.mxu0 0
  %3972 = vmatpush1.bf16.msra.mxu0 0
  %3973 = vmatprep.subr.bf16.mxu0 0
  %3974 = vmatpush1.bf16.msra.mxu0 0
  %3975 = vmatprep.subr.bf16.mxu0 0
  %3976 = vmatpush1.bf16.msra.mxu0 0
  %3977 = vmatprep.subr.bf16.mxu0 0
  %3978 = vmatpush1.bf16.msra.mxu0 0
  %3979 = vmatprep.subr.bf16.mxu0 0
  %3980 = vmatpush1.bf16.msra.mxu0 0
  %3981 = vmatprep.mubr.bf16.mxu0 %v3947
  %3982 = vmatmul.mubr.bf16.gmra.mrb[0].mxu0 %v3684
  %v3983 = vpop.f32.mrb[0].mxu0
  %v3984 = vadd.f32 0.0, %v3983
  %v3985 = vpop.f32.mrb[0].mxu0
  %v3986 = vadd.f32 0.0, %v3985
  %v3987 = vpop.f32.mrb[0].mxu0
  %v3988 = vadd.f32 0.0, %v3987
  %v3989 = vpop.f32.mrb[0].mxu0
  %v3990 = vadd.f32 0.0, %v3989
  %3991 = vdwg.mxu0
  %3992 = vmatprep.subr.bf16.mxu0 %v3849
  %3993 = vmatpush1.bf16.msra.mxu0 %v3848
  %3994 = vmatprep.subr.bf16.mxu0 %v3854
  %3995 = vmatpush1.bf16.msra.mxu0 %v3853
  %3996 = vmatprep.subr.bf16.mxu0 %v3859
  %3997 = vmatpush1.bf16.msra.mxu0 %v3858
  %3998 = vmatprep.subr.bf16.mxu0 %v3864
  %3999 = vmatpush1.bf16.msra.mxu0 %v3863
  %4000 = vmatprep.subr.bf16.mxu0 %v3869
  %4001 = vmatpush1.bf16.msra.mxu0 %v3868
  %4002 = vmatprep.subr.bf16.mxu0 %v3874
  %4003 = vmatpush1.bf16.msra.mxu0 %v3873
  %4004 = vmatprep.subr.bf16.mxu0 %v3879
  %4005 = vmatpush1.bf16.msra.mxu0 %v3878
  %4006 = vmatprep.subr.bf16.mxu0 %v3884
  %4007 = vmatpush1.bf16.msra.mxu0 %v3883
  %4008 = vmatprep.subr.bf16.mxu0 %v3889
  %4009 = vmatpush1.bf16.msra.mxu0 %v3888
  %4010 = vmatprep.subr.bf16.mxu0 %v3894
  %4011 = vmatpush1.bf16.msra.mxu0 %v3893
  %4012 = vmatprep.subr.bf16.mxu0 0
  %4013 = vmatpush1.bf16.msra.mxu0 0
  %4014 = vmatprep.subr.bf16.mxu0 0
  %4015 = vmatpush1.bf16.msra.mxu0 0
  %4016 = vmatprep.subr.bf16.mxu0 0
  %4017 = vmatpush1.bf16.msra.mxu0 0
  %4018 = vmatprep.subr.bf16.mxu0 0
  %4019 = vmatpush1.bf16.msra.mxu0 0
  %4020 = vmatprep.subr.bf16.mxu0 0
  %4021 = vmatpush1.bf16.msra.mxu0 0
  %4022 = vmatprep.subr.bf16.mxu0 0
  %4023 = vmatpush1.bf16.msra.mxu0 0
  %4024 = vmatprep.mubr.bf16.mxu0 %v3947
  %4025 = vmatmul.mubr.bf16.gmra.mrb[0].mxu0 %v3684
  %v4026 = vpop.f32.mrb[0].mxu0
  %v4027 = vadd.f32 0.0, %v4026
  %v4028 = vpop.f32.mrb[0].mxu0
  %v4029 = vadd.f32 0.0, %v4028
  %v4030 = vpop.f32.mrb[0].mxu0
  %v4031 = vadd.f32 0.0, %v4030
  %v4032 = vpop.f32.mrb[0].mxu0
  %v4033 = vadd.f32 0.0, %v4032
  %4034 = vdwg.mxu0
  %4035 = vmatprep.subr.bf16.mxu0 0
  %4036 = vmatpush1.bf16.msra.mxu0 %v3850
  %4037 = vmatprep.subr.bf16.mxu0 0
  %4038 = vmatpush1.bf16.msra.mxu0 %v3855
  %4039 = vmatprep.subr.bf16.mxu0 0
  %4040 = vmatpush1.bf16.msra.mxu0 %v3860
  %4041 = vmatprep.subr.bf16.mxu0 0
  %4042 = vmatpush1.bf16.msra.mxu0 %v3865
  %4043 = vmatprep.subr.bf16.mxu0 0
  %4044 = vmatpush1.bf16.msra.mxu0 %v3870
  %4045 = vmatprep.subr.bf16.mxu0 0
  %4046 = vmatpush1.bf16.msra.mxu0 %v3875
  %4047 = vmatprep.subr.bf16.mxu0 0
  %4048 = vmatpush1.bf16.msra.mxu0 %v3880
  %4049 = vmatprep.subr.bf16.mxu0 0
  %4050 = vmatpush1.bf16.msra.mxu0 %v3885
  %4051 = vmatprep.subr.bf16.mxu0 0
  %4052 = vmatpush1.bf16.msra.mxu0 %v3890
  %4053 = vmatprep.subr.bf16.mxu0 0
  %4054 = vmatpush1.bf16.msra.mxu0 %v3895
  %4055 = vmatprep.subr.bf16.mxu0 0
  %4056 = vmatpush1.bf16.msra.mxu0 0
  %4057 = vmatprep.subr.bf16.mxu0 0
  %4058 = vmatpush1.bf16.msra.mxu0 0
  %4059 = vmatprep.subr.bf16.mxu0 0
  %4060 = vmatpush1.bf16.msra.mxu0 0
  %4061 = vmatprep.subr.bf16.mxu0 0
  %4062 = vmatpush1.bf16.msra.mxu0 0
  %4063 = vmatprep.subr.bf16.mxu0 0
  %4064 = vmatpush1.bf16.msra.mxu0 0
  %4065 = vmatprep.subr.bf16.mxu0 0
  %4066 = vmatpush1.bf16.msra.mxu0 0
  %4067 = vmatprep.mubr.bf16.mxu0 %v3947
  %4068 = vmatmul.mubr.bf16.gmra.mrb[0].mxu0 %v3684
  %v4069 = vpop.f32.mrb[0].mxu0
  %v4070 = vadd.f32 0.0, %v4069
  %v4071 = vpop.f32.mrb[0].mxu0
  %v4072 = vpop.f32.mrb[0].mxu0
  %v4073 = vadd.f32 0.0, %v4072
  %v4074 = vpop.f32.mrb[0].mxu0
  %4075 = vdwg.mxu0
  %v4076 = vadd.f32 %v3613, %v3984
  %v4077 = vadd.f32 %v3614, %v3986
  %v4078 = vadd.f32 %v3615, %v4027
  %v4079 = vadd.f32 %v3616, %v4029
  %v4080 = vadd.f32 %v3617, %v4070
  %v4081 = vadd.f32 %v3618, %v3988
  %v4082 = vadd.f32 %v3619, %v3990
  %v4083 = vadd.f32 %v3620, %v4031
  %v4084 = vadd.f32 %v3621, %v4033
  %v4085 = vadd.f32 %v3622, %v4073
  %s4086 = scalar_lea.vmem %s25, 1600
  %v4087 = vld [vmem:[%s4086] sm:$0xff]
  %v4088 = vld [vmem:[%s4086 + $0x8] sm:$0xff]
  %v4089 = vld [vmem:[%s4086 + $0x10] sm:$0xf]
  %v4090 = vld [vmem:[%s4086 + $0x14] sm:$0xff]
  %v4091 = vld [vmem:[%s4086 + $0x1c] sm:$0xff]
  %v4092 = vld [vmem:[%s4086 + $0x24] sm:$0xf]
  %v4093 = vld [vmem:[%s4086 + $0x28] sm:$0xff]
  %v4094 = vld [vmem:[%s4086 + $0x30] sm:$0xff]
  %v4095 = vld [vmem:[%s4086 + $0x38] sm:$0xf]
  %v4096 = vld [vmem:[%s4086 + $0x3c] sm:$0xff]
  %v4097 = vld [vmem:[%s4086 + $0x44] sm:$0xff]
  %v4098 = vld [vmem:[%s4086 + $0x4c] sm:$0xf]
  %v4099 = vld [vmem:[%s4086 + $0x50] sm:$0xff]
  %v4100 = vld [vmem:[%s4086 + $0x58] sm:$0xff]
  %v4101 = vld [vmem:[%s4086 + $0x60] sm:$0xf]
  %v4102 = vld [vmem:[%s4086 + $0x64] sm:$0xff]
  %v4103 = vld [vmem:[%s4086 + $0x6c] sm:$0xff]
  %v4104 = vld [vmem:[%s4086 + $0x74] sm:$0xf]
  %v4105 = vld [vmem:[%s4086 + $0x78] sm:$0xff]
  %v4106 = vld [vmem:[%s4086 + $0x80] sm:$0xff]
  %v4107 = vld [vmem:[%s4086 + $0x88] sm:$0xf]
  %v4108 = vld [vmem:[%s4086 + $0x8c] sm:$0xff]
  %v4109 = vld [vmem:[%s4086 + $0x94] sm:$0xff]
  %v4110 = vld [vmem:[%s4086 + $0x9c] sm:$0xf]
  %v4111 = vld [vmem:[%s4086 + $0xa0] sm:$0xff]
  %v4112 = vld [vmem:[%s4086 + $0xa8] sm:$0xff]
  %v4113 = vld [vmem:[%s4086 + $0xb0] sm:$0xf]
  %v4114 = vld [vmem:[%s4086 + $0xb4] sm:$0xff]
  %v4115 = vld [vmem:[%s4086 + $0xbc] sm:$0xff]
  %v4116 = vld [vmem:[%s4086 + $0xc4] sm:$0xf]
  %v4117 = vld [vmem:[%s4086 + $0xc8] sm:$0xff]
  %v4118 = vld [vmem:[%s4086 + $0xd0] sm:$0xff]
  %v4119 = vld [vmem:[%s4086 + $0xd8] sm:$0xf]
  %v4120 = vld [vmem:[%s4086 + $0xdc] sm:$0xff]
  %v4121 = vld [vmem:[%s4086 + $0xe4] sm:$0xff]
  %v4122 = vld [vmem:[%s4086 + $0xec] sm:$0xf]
  %v4123 = vld [vmem:[%s4086 + $0xf0] sm:$0xff]
  %v4124 = vld [vmem:[%s4086 + $0xf8] sm:$0xff]
  %v4125 = vld [vmem:[%s4086 + $0x100] sm:$0xf]
  %v4126 = vld [vmem:[%s4086 + $0x104] sm:$0xff]
  %v4127 = vld [vmem:[%s4086 + $0x10c] sm:$0xff]
  %v4128 = vld [vmem:[%s4086 + $0x114] sm:$0xf]
  %v4129 = vld [vmem:[%s4086 + $0x118] sm:$0xff]
  %v4130 = vld [vmem:[%s4086 + $0x120] sm:$0xff]
  %v4131 = vld [vmem:[%s4086 + $0x128] sm:$0xf]
  %v4132 = vld [vmem:[%s4086 + $0x12c] sm:$0xff]
  %v4133 = vld [vmem:[%s4086 + $0x134] sm:$0xff]
  %v4134 = vld [vmem:[%s4086 + $0x13c] sm:$0xf]
  %v4135 = vld [vmem:[%s4086 + $0x140] sm:$0xff]
  %v4136 = vld [vmem:[%s4086 + $0x148] sm:$0xff]
  %v4137 = vld [vmem:[%s4086 + $0x150] sm:$0xf]
  %v4138 = vld [vmem:[%s4086 + $0x154] sm:$0xff]
  %v4139 = vld [vmem:[%s4086 + $0x15c] sm:$0xff]
  %v4140 = vld [vmem:[%s4086 + $0x164] sm:$0xf]
  %v4141 = vld [vmem:[%s4086 + $0x168] sm:$0xff]
  %v4142 = vld [vmem:[%s4086 + $0x170] sm:$0xff]
  %v4143 = vld [vmem:[%s4086 + $0x178] sm:$0xf]
  %v4144 = vld [vmem:[%s4086 + $0x17c] sm:$0xff]
  %v4145 = vld [vmem:[%s4086 + $0x184] sm:$0xff]
  %v4146 = vld [vmem:[%s4086 + $0x18c] sm:$0xf]
  %v4147 = vpack.c.bf16 %v2236, %v2234
  %v4148 = vpack.c.bf16 %v2237, %v2235
  %v4209 = vunpack.c.l.b16 %v4087
  %v4210 = vunpack.c.h.b16 %v4087
  %v4211 = vunpack.c.l.b16 %v4088
  %v4212 = vunpack.c.h.b16 %v4088
  %v4213 = vunpack.c.l.b16 %v4089
  %v4214 = vunpack.c.l.b16 %v4090
  %v4215 = vunpack.c.h.b16 %v4090
  %v4216 = vunpack.c.l.b16 %v4091
  %v4217 = vunpack.c.h.b16 %v4091
  %v4218 = vunpack.c.l.b16 %v4092
  %v4219 = vunpack.c.l.b16 %v4093
  %v4220 = vunpack.c.h.b16 %v4093
  %v4221 = vunpack.c.l.b16 %v4094
  %v4222 = vunpack.c.h.b16 %v4094
  %v4223 = vunpack.c.l.b16 %v4095
  %v4224 = vunpack.c.l.b16 %v4096
  %v4225 = vunpack.c.h.b16 %v4096
  %v4226 = vunpack.c.l.b16 %v4097
  %v4227 = vunpack.c.h.b16 %v4097
  %v4228 = vunpack.c.l.b16 %v4098
  %v4229 = vunpack.c.l.b16 %v4099
  %v4230 = vunpack.c.h.b16 %v4099
  %v4231 = vunpack.c.l.b16 %v4100
  %v4232 = vunpack.c.h.b16 %v4100
  %v4233 = vunpack.c.l.b16 %v4101
  %v4234 = vunpack.c.l.b16 %v4102
  %v4235 = vunpack.c.h.b16 %v4102
  %v4236 = vunpack.c.l.b16 %v4103
  %v4237 = vunpack.c.h.b16 %v4103
  %v4238 = vunpack.c.l.b16 %v4104
  %v4239 = vunpack.c.l.b16 %v4105
  %v4240 = vunpack.c.h.b16 %v4105
  %v4241 = vunpack.c.l.b16 %v4106
  %v4242 = vunpack.c.h.b16 %v4106
  %v4243 = vunpack.c.l.b16 %v4107
  %v4244 = vunpack.c.l.b16 %v4108
  %v4245 = vunpack.c.h.b16 %v4108
  %v4246 = vunpack.c.l.b16 %v4109
  %v4247 = vunpack.c.h.b16 %v4109
  %v4248 = vunpack.c.l.b16 %v4110
  %v4249 = vunpack.c.l.b16 %v4111
  %v4250 = vunpack.c.h.b16 %v4111
  %v4251 = vunpack.c.l.b16 %v4112
  %v4252 = vunpack.c.h.b16 %v4112
  %v4253 = vunpack.c.l.b16 %v4113
  %v4254 = vunpack.c.l.b16 %v4114
  %v4255 = vunpack.c.h.b16 %v4114
  %v4256 = vunpack.c.l.b16 %v4115
  %v4257 = vunpack.c.h.b16 %v4115
  %v4258 = vunpack.c.l.b16 %v4116
  %v4259 = vunpack.c.l.b16 %v4117
  %v4260 = vunpack.c.h.b16 %v4117
  %v4261 = vunpack.c.l.b16 %v4118
  %v4262 = vunpack.c.h.b16 %v4118
  %v4263 = vunpack.c.l.b16 %v4119
  %v4264 = vunpack.c.l.b16 %v4120
  %v4265 = vunpack.c.h.b16 %v4120
  %v4266 = vunpack.c.l.b16 %v4121
  %v4267 = vunpack.c.h.b16 %v4121
  %v4268 = vunpack.c.l.b16 %v4122
  %v4269 = vunpack.c.l.b16 %v4123
  %v4270 = vunpack.c.h.b16 %v4123
  %v4271 = vunpack.c.l.b16 %v4124
  %v4272 = vunpack.c.h.b16 %v4124
  %v4273 = vunpack.c.l.b16 %v4125
  %v4274 = vunpack.c.l.b16 %v4126
  %v4275 = vunpack.c.h.b16 %v4126
  %v4276 = vunpack.c.l.b16 %v4127
  %v4277 = vunpack.c.h.b16 %v4127
  %v4278 = vunpack.c.l.b16 %v4128
  %v4279 = vunpack.c.l.b16 %v4129
  %v4280 = vunpack.c.h.b16 %v4129
  %v4281 = vunpack.c.l.b16 %v4130
  %v4282 = vunpack.c.h.b16 %v4130
  %v4283 = vunpack.c.l.b16 %v4131
  %v4284 = vunpack.c.l.b16 %v4132
  %v4285 = vunpack.c.h.b16 %v4132
  %v4286 = vunpack.c.l.b16 %v4133
  %v4287 = vunpack.c.h.b16 %v4133
  %v4288 = vunpack.c.l.b16 %v4134
  %v4289 = vunpack.c.l.b16 %v4135
  %v4290 = vunpack.c.h.b16 %v4135
  %v4291 = vunpack.c.l.b16 %v4136
  %v4292 = vunpack.c.h.b16 %v4136
  %v4293 = vunpack.c.l.b16 %v4137
  %v4294 = vunpack.c.l.b16 %v4138
  %v4295 = vunpack.c.h.b16 %v4138
  %v4296 = vunpack.c.l.b16 %v4139
  %v4297 = vunpack.c.h.b16 %v4139
  %v4298 = vunpack.c.l.b16 %v4140
  %v4299 = vunpack.c.l.b16 %v4141
  %v4300 = vunpack.c.h.b16 %v4141
  %v4301 = vunpack.c.l.b16 %v4142
  %v4302 = vunpack.c.h.b16 %v4142
  %v4303 = vunpack.c.l.b16 %v4143
  %v4304 = vunpack.c.l.b16 %v4144
  %v4305 = vunpack.c.h.b16 %v4144
  %v4306 = vunpack.c.l.b16 %v4145
  %v4307 = vunpack.c.h.b16 %v4145
  %v4308 = vunpack.c.l.b16 %v4146
  %v4309 = vpack.c.b16 %v4214, %v4209
  %v4310 = vpack.c.b16 %v4215, %v4210
  %v4311 = vpack.c.b16 %v4216, %v4211
  %v4312 = vpack.c.b16 %v4217, %v4212
  %v4313 = vpack.c.b16 %v4218, %v4213
  %v4314 = vpack.c.b16 %v4224, %v4219
  %v4315 = vpack.c.b16 %v4225, %v4220
  %v4316 = vpack.c.b16 %v4226, %v4221
  %v4317 = vpack.c.b16 %v4227, %v4222
  %v4318 = vpack.c.b16 %v4228, %v4223
  %v4319 = vpack.c.b16 %v4234, %v4229
  %v4320 = vpack.c.b16 %v4235, %v4230
  %v4321 = vpack.c.b16 %v4236, %v4231
  %v4322 = vpack.c.b16 %v4237, %v4232
  %v4323 = vpack.c.b16 %v4238, %v4233
  %v4324 = vpack.c.b16 %v4244, %v4239
  %v4325 = vpack.c.b16 %v4245, %v4240
  %v4326 = vpack.c.b16 %v4246, %v4241
  %v4327 = vpack.c.b16 %v4247, %v4242
  %v4328 = vpack.c.b16 %v4248, %v4243
  %v4329 = vpack.c.b16 %v4254, %v4249
  %v4330 = vpack.c.b16 %v4255, %v4250
  %v4331 = vpack.c.b16 %v4256, %v4251
  %v4332 = vpack.c.b16 %v4257, %v4252
  %v4333 = vpack.c.b16 %v4258, %v4253
  %v4334 = vpack.c.b16 %v4264, %v4259
  %v4335 = vpack.c.b16 %v4265, %v4260
  %v4336 = vpack.c.b16 %v4266, %v4261
  %v4337 = vpack.c.b16 %v4267, %v4262
  %v4338 = vpack.c.b16 %v4268, %v4263
  %v4339 = vpack.c.b16 %v4274, %v4269
  %v4340 = vpack.c.b16 %v4275, %v4270
  %v4341 = vpack.c.b16 %v4276, %v4271
  %v4342 = vpack.c.b16 %v4277, %v4272
  %v4343 = vpack.c.b16 %v4278, %v4273
  %v4344 = vpack.c.b16 %v4284, %v4279
  %v4345 = vpack.c.b16 %v4285, %v4280
  %v4346 = vpack.c.b16 %v4286, %v4281
  %v4347 = vpack.c.b16 %v4287, %v4282
  %v4348 = vpack.c.b16 %v4288, %v4283
  %v4349 = vpack.c.b16 %v4294, %v4289
  %v4350 = vpack.c.b16 %v4295, %v4290
  %v4351 = vpack.c.b16 %v4296, %v4291
  %v4352 = vpack.c.b16 %v4297, %v4292
  %v4353 = vpack.c.b16 %v4298, %v4293
  %v4354 = vpack.c.b16 %v4304, %v4299
  %v4355 = vpack.c.b16 %v4305, %v4300
  %v4356 = vpack.c.b16 %v4306, %v4301
  %v4357 = vpack.c.b16 %v4307, %v4302
  %v4358 = vpack.c.b16 %v4308, %v4303
  %v4410 = vsel %vm2639, %v4148, 0
  %4412 = vmatprep.subr.bf16.mxu0 %v4310
  %4413 = vmatpush1.bf16.msra.mxu0 %v4309
  %4414 = vmatprep.subr.bf16.mxu0 %v4315
  %4415 = vmatpush1.bf16.msra.mxu0 %v4314
  %4416 = vmatprep.subr.bf16.mxu0 %v4320
  %4417 = vmatpush1.bf16.msra.mxu0 %v4319
  %4418 = vmatprep.subr.bf16.mxu0 %v4325
  %4419 = vmatpush1.bf16.msra.mxu0 %v4324
  %4420 = vmatprep.subr.bf16.mxu0 %v4330
  %4421 = vmatpush1.bf16.msra.mxu0 %v4329
  %4422 = vmatprep.subr.bf16.mxu0 %v4335
  %4423 = vmatpush1.bf16.msra.mxu0 %v4334
  %4424 = vmatprep.subr.bf16.mxu0 %v4340
  %4425 = vmatpush1.bf16.msra.mxu0 %v4339
  %4426 = vmatprep.subr.bf16.mxu0 %v4345
  %4427 = vmatpush1.bf16.msra.mxu0 %v4344
  %4428 = vmatprep.subr.bf16.mxu0 %v4350
  %4429 = vmatpush1.bf16.msra.mxu0 %v4349
  %4430 = vmatprep.subr.bf16.mxu0 %v4355
  %4431 = vmatpush1.bf16.msra.mxu0 %v4354
  %4432 = vmatprep.subr.bf16.mxu0 0
  %4433 = vmatpush1.bf16.msra.mxu0 0
  %4434 = vmatprep.subr.bf16.mxu0 0
  %4435 = vmatpush1.bf16.msra.mxu0 0
  %4436 = vmatprep.subr.bf16.mxu0 0
  %4437 = vmatpush1.bf16.msra.mxu0 0
  %4438 = vmatprep.subr.bf16.mxu0 0
  %4439 = vmatpush1.bf16.msra.mxu0 0
  %4440 = vmatprep.subr.bf16.mxu0 0
  %4441 = vmatpush1.bf16.msra.mxu0 0
  %4442 = vmatprep.subr.bf16.mxu0 0
  %4443 = vmatpush1.bf16.msra.mxu0 0
  %4444 = vmatprep.mubr.bf16.mxu0 %v4410
  %4445 = vmatmul.mubr.bf16.gmra.mrb[0].mxu0 %v4147
  %v4446 = vpop.f32.mrb[0].mxu0
  %v4447 = vadd.f32 0.0, %v4446
  %v4448 = vpop.f32.mrb[0].mxu0
  %v4449 = vadd.f32 0.0, %v4448
  %v4450 = vpop.f32.mrb[0].mxu0
  %v4451 = vadd.f32 0.0, %v4450
  %v4452 = vpop.f32.mrb[0].mxu0
  %v4453 = vadd.f32 0.0, %v4452
  %4454 = vdwg.mxu0
  %4455 = vmatprep.subr.bf16.mxu0 %v4312
  %4456 = vmatpush1.bf16.msra.mxu0 %v4311
  %4457 = vmatprep.subr.bf16.mxu0 %v4317
  %4458 = vmatpush1.bf16.msra.mxu0 %v4316
  %4459 = vmatprep.subr.bf16.mxu0 %v4322
  %4460 = vmatpush1.bf16.msra.mxu0 %v4321
  %4461 = vmatprep.subr.bf16.mxu0 %v4327
  %4462 = vmatpush1.bf16.msra.mxu0 %v4326
  %4463 = vmatprep.subr.bf16.mxu0 %v4332
  %4464 = vmatpush1.bf16.msra.mxu0 %v4331
  %4465 = vmatprep.subr.bf16.mxu0 %v4337
  %4466 = vmatpush1.bf16.msra.mxu0 %v4336
  %4467 = vmatprep.subr.bf16.mxu0 %v4342
  %4468 = vmatpush1.bf16.msra.mxu0 %v4341
  %4469 = vmatprep.subr.bf16.mxu0 %v4347
  %4470 = vmatpush1.bf16.msra.mxu0 %v4346
  %4471 = vmatprep.subr.bf16.mxu0 %v4352
  %4472 = vmatpush1.bf16.msra.mxu0 %v4351
  %4473 = vmatprep.subr.bf16.mxu0 %v4357
  %4474 = vmatpush1.bf16.msra.mxu0 %v4356
  %4475 = vmatprep.subr.bf16.mxu0 0
  %4476 = vmatpush1.bf16.msra.mxu0 0
  %4477 = vmatprep.subr.bf16.mxu0 0
  %4478 = vmatpush1.bf16.msra.mxu0 0
  %4479 = vmatprep.subr.bf16.mxu0 0
  %4480 = vmatpush1.bf16.msra.mxu0 0
  %4481 = vmatprep.subr.bf16.mxu0 0
  %4482 = vmatpush1.bf16.msra.mxu0 0
  %4483 = vmatprep.subr.bf16.mxu0 0
  %4484 = vmatpush1.bf16.msra.mxu0 0
  %4485 = vmatprep.subr.bf16.mxu0 0
  %4486 = vmatpush1.bf16.msra.mxu0 0
  %4487 = vmatprep.mubr.bf16.mxu0 %v4410
  %4488 = vmatmul.mubr.bf16.gmra.mrb[0].mxu0 %v4147
  %v4489 = vpop.f32.mrb[0].mxu0
  %v4490 = vadd.f32 0.0, %v4489
  %v4491 = vpop.f32.mrb[0].mxu0
  %v4492 = vadd.f32 0.0, %v4491
  %v4493 = vpop.f32.mrb[0].mxu0
  %v4494 = vadd.f32 0.0, %v4493
  %v4495 = vpop.f32.mrb[0].mxu0
  %v4496 = vadd.f32 0.0, %v4495
  %4497 = vdwg.mxu0
  %4498 = vmatprep.subr.bf16.mxu0 0
  %4499 = vmatpush1.bf16.msra.mxu0 %v4313
  %4500 = vmatprep.subr.bf16.mxu0 0
  %4501 = vmatpush1.bf16.msra.mxu0 %v4318
  %4502 = vmatprep.subr.bf16.mxu0 0
  %4503 = vmatpush1.bf16.msra.mxu0 %v4323
  %4504 = vmatprep.subr.bf16.mxu0 0
  %4505 = vmatpush1.bf16.msra.mxu0 %v4328
  %4506 = vmatprep.subr.bf16.mxu0 0
  %4507 = vmatpush1.bf16.msra.mxu0 %v4333
  %4508 = vmatprep.subr.bf16.mxu0 0
  %4509 = vmatpush1.bf16.msra.mxu0 %v4338
  %4510 = vmatprep.subr.bf16.mxu0 0
  %4511 = vmatpush1.bf16.msra.mxu0 %v4343
  %4512 = vmatprep.subr.bf16.mxu0 0
  %4513 = vmatpush1.bf16.msra.mxu0 %v4348
  %4514 = vmatprep.subr.bf16.mxu0 0
  %4515 = vmatpush1.bf16.msra.mxu0 %v4353
  %4516 = vmatprep.subr.bf16.mxu0 0
  %4517 = vmatpush1.bf16.msra.mxu0 %v4358
  %4518 = vmatprep.subr.bf16.mxu0 0
  %4519 = vmatpush1.bf16.msra.mxu0 0
  %4520 = vmatprep.subr.bf16.mxu0 0
  %4521 = vmatpush1.bf16.msra.mxu0 0
  %4522 = vmatprep.subr.bf16.mxu0 0
  %4523 = vmatpush1.bf16.msra.mxu0 0
  %4524 = vmatprep.subr.bf16.mxu0 0
  %4525 = vmatpush1.bf16.msra.mxu0 0
  %4526 = vmatprep.subr.bf16.mxu0 0
  %4527 = vmatpush1.bf16.msra.mxu0 0
  %4528 = vmatprep.subr.bf16.mxu0 0
  %4529 = vmatpush1.bf16.msra.mxu0 0
  %4530 = vmatprep.mubr.bf16.mxu0 %v4410
  %4531 = vmatmul.mubr.bf16.gmra.mrb[0].mxu0 %v4147
  %v4532 = vpop.f32.mrb[0].mxu0
  %v4533 = vadd.f32 0.0, %v4532
  %v4534 = vpop.f32.mrb[0].mxu0
  %v4535 = vpop.f32.mrb[0].mxu0
  %v4536 = vadd.f32 0.0, %v4535
  %v4537 = vpop.f32.mrb[0].mxu0
  %4538 = vdwg.mxu0
  %v4539 = vadd.f32 %v4076, %v4447
  %v4540 = vadd.f32 %v4077, %v4449
  %v4541 = vadd.f32 %v4078, %v4490
  %v4542 = vadd.f32 %v4079, %v4492
  %v4543 = vadd.f32 %v4080, %v4533
  %v4544 = vadd.f32 %v4081, %v4451
  %v4545 = vadd.f32 %v4082, %v4453
  %v4546 = vadd.f32 %v4083, %v4494
  %v4547 = vadd.f32 %v4084, %v4496
  %v4548 = vadd.f32 %v4085, %v4536
  %s4549 = scalar_lea.vmem %s25, 2000
  %v4550 = vld [vmem:[%s4549] sm:$0xff]
  %v4551 = vld [vmem:[%s4549 + $0x8] sm:$0xff]
  %v4552 = vld [vmem:[%s4549 + $0x10] sm:$0xf]
  %v4553 = vld [vmem:[%s4549 + $0x14] sm:$0xff]
  %v4554 = vld [vmem:[%s4549 + $0x1c] sm:$0xff]
  %v4555 = vld [vmem:[%s4549 + $0x24] sm:$0xf]
  %v4556 = vld [vmem:[%s4549 + $0x28] sm:$0xff]
  %v4557 = vld [vmem:[%s4549 + $0x30] sm:$0xff]
  %v4558 = vld [vmem:[%s4549 + $0x38] sm:$0xf]
  %v4559 = vld [vmem:[%s4549 + $0x3c] sm:$0xff]
  %v4560 = vld [vmem:[%s4549 + $0x44] sm:$0xff]
  %v4561 = vld [vmem:[%s4549 + $0x4c] sm:$0xf]
  %v4562 = vld [vmem:[%s4549 + $0x50] sm:$0xff]
  %v4563 = vld [vmem:[%s4549 + $0x58] sm:$0xff]
  %v4564 = vld [vmem:[%s4549 + $0x60] sm:$0xf]
  %v4565 = vld [vmem:[%s4549 + $0x64] sm:$0xff]
  %v4566 = vld [vmem:[%s4549 + $0x6c] sm:$0xff]
  %v4567 = vld [vmem:[%s4549 + $0x74] sm:$0xf]
  %v4568 = vld [vmem:[%s4549 + $0x78] sm:$0xff]
  %v4569 = vld [vmem:[%s4549 + $0x80] sm:$0xff]
  %v4570 = vld [vmem:[%s4549 + $0x88] sm:$0xf]
  %v4571 = vld [vmem:[%s4549 + $0x8c] sm:$0xff]
  %v4572 = vld [vmem:[%s4549 + $0x94] sm:$0xff]
  %v4573 = vld [vmem:[%s4549 + $0x9c] sm:$0xf]
  %v4574 = vld [vmem:[%s4549 + $0xa0] sm:$0xff]
  %v4575 = vld [vmem:[%s4549 + $0xa8] sm:$0xff]
  %v4576 = vld [vmem:[%s4549 + $0xb0] sm:$0xf]
  %v4577 = vld [vmem:[%s4549 + $0xb4] sm:$0xff]
  %v4578 = vld [vmem:[%s4549 + $0xbc] sm:$0xff]
  %v4579 = vld [vmem:[%s4549 + $0xc4] sm:$0xf]
  %v4580 = vld [vmem:[%s4549 + $0xc8] sm:$0xff]
  %v4581 = vld [vmem:[%s4549 + $0xd0] sm:$0xff]
  %v4582 = vld [vmem:[%s4549 + $0xd8] sm:$0xf]
  %v4583 = vld [vmem:[%s4549 + $0xdc] sm:$0xff]
  %v4584 = vld [vmem:[%s4549 + $0xe4] sm:$0xff]
  %v4585 = vld [vmem:[%s4549 + $0xec] sm:$0xf]
  %v4586 = vld [vmem:[%s4549 + $0xf0] sm:$0xff]
  %v4587 = vld [vmem:[%s4549 + $0xf8] sm:$0xff]
  %v4588 = vld [vmem:[%s4549 + $0x100] sm:$0xf]
  %v4589 = vld [vmem:[%s4549 + $0x104] sm:$0xff]
  %v4590 = vld [vmem:[%s4549 + $0x10c] sm:$0xff]
  %v4591 = vld [vmem:[%s4549 + $0x114] sm:$0xf]
  %v4592 = vld [vmem:[%s4549 + $0x118] sm:$0xff]
  %v4593 = vld [vmem:[%s4549 + $0x120] sm:$0xff]
  %v4594 = vld [vmem:[%s4549 + $0x128] sm:$0xf]
  %v4595 = vld [vmem:[%s4549 + $0x12c] sm:$0xff]
  %v4596 = vld [vmem:[%s4549 + $0x134] sm:$0xff]
  %v4597 = vld [vmem:[%s4549 + $0x13c] sm:$0xf]
  %v4598 = vld [vmem:[%s4549 + $0x140] sm:$0xff]
  %v4599 = vld [vmem:[%s4549 + $0x148] sm:$0xff]
  %v4600 = vld [vmem:[%s4549 + $0x150] sm:$0xf]
  %v4601 = vld [vmem:[%s4549 + $0x154] sm:$0xff]
  %v4602 = vld [vmem:[%s4549 + $0x15c] sm:$0xff]
  %v4603 = vld [vmem:[%s4549 + $0x164] sm:$0xf]
  %v4604 = vld [vmem:[%s4549 + $0x168] sm:$0xff]
  %v4605 = vld [vmem:[%s4549 + $0x170] sm:$0xff]
  %v4606 = vld [vmem:[%s4549 + $0x178] sm:$0xf]
  %v4607 = vld [vmem:[%s4549 + $0x17c] sm:$0xff]
  %v4608 = vld [vmem:[%s4549 + $0x184] sm:$0xff]
  %v4609 = vld [vmem:[%s4549 + $0x18c] sm:$0xf]
  %v4610 = vpack.c.bf16 %v2240, %v2238
  %v4611 = vpack.c.bf16 %v2241, %v2239
  %v4672 = vunpack.c.l.b16 %v4550
  %v4673 = vunpack.c.h.b16 %v4550
  %v4674 = vunpack.c.l.b16 %v4551
  %v4675 = vunpack.c.h.b16 %v4551
  %v4676 = vunpack.c.l.b16 %v4552
  %v4677 = vunpack.c.l.b16 %v4553
  %v4678 = vunpack.c.h.b16 %v4553
  %v4679 = vunpack.c.l.b16 %v4554
  %v4680 = vunpack.c.h.b16 %v4554
  %v4681 = vunpack.c.l.b16 %v4555
  %v4682 = vunpack.c.l.b16 %v4556
  %v4683 = vunpack.c.h.b16 %v4556
  %v4684 = vunpack.c.l.b16 %v4557
  %v4685 = vunpack.c.h.b16 %v4557
  %v4686 = vunpack.c.l.b16 %v4558
  %v4687 = vunpack.c.l.b16 %v4559
  %v4688 = vunpack.c.h.b16 %v4559
  %v4689 = vunpack.c.l.b16 %v4560
  %v4690 = vunpack.c.h.b16 %v4560
  %v4691 = vunpack.c.l.b16 %v4561
  %v4692 = vunpack.c.l.b16 %v4562
  %v4693 = vunpack.c.h.b16 %v4562
  %v4694 = vunpack.c.l.b16 %v4563
  %v4695 = vunpack.c.h.b16 %v4563
  %v4696 = vunpack.c.l.b16 %v4564
  %v4697 = vunpack.c.l.b16 %v4565
  %v4698 = vunpack.c.h.b16 %v4565
  %v4699 = vunpack.c.l.b16 %v4566
  %v4700 = vunpack.c.h.b16 %v4566
  %v4701 = vunpack.c.l.b16 %v4567
  %v4702 = vunpack.c.l.b16 %v4568
  %v4703 = vunpack.c.h.b16 %v4568
  %v4704 = vunpack.c.l.b16 %v4569
  %v4705 = vunpack.c.h.b16 %v4569
  %v4706 = vunpack.c.l.b16 %v4570
  %v4707 = vunpack.c.l.b16 %v4571
  %v4708 = vunpack.c.h.b16 %v4571
  %v4709 = vunpack.c.l.b16 %v4572
  %v4710 = vunpack.c.h.b16 %v4572
  %v4711 = vunpack.c.l.b16 %v4573
  %v4712 = vunpack.c.l.b16 %v4574
  %v4713 = vunpack.c.h.b16 %v4574
  %v4714 = vunpack.c.l.b16 %v4575
  %v4715 = vunpack.c.h.b16 %v4575
  %v4716 = vunpack.c.l.b16 %v4576
  %v4717 = vunpack.c.l.b16 %v4577
  %v4718 = vunpack.c.h.b16 %v4577
  %v4719 = vunpack.c.l.b16 %v4578
  %v4720 = vunpack.c.h.b16 %v4578
  %v4721 = vunpack.c.l.b16 %v4579
  %v4722 = vunpack.c.l.b16 %v4580
  %v4723 = vunpack.c.h.b16 %v4580
  %v4724 = vunpack.c.l.b16 %v4581
  %v4725 = vunpack.c.h.b16 %v4581
  %v4726 = vunpack.c.l.b16 %v4582
  %v4727 = vunpack.c.l.b16 %v4583
  %v4728 = vunpack.c.h.b16 %v4583
  %v4729 = vunpack.c.l.b16 %v4584
  %v4730 = vunpack.c.h.b16 %v4584
  %v4731 = vunpack.c.l.b16 %v4585
  %v4732 = vunpack.c.l.b16 %v4586
  %v4733 = vunpack.c.h.b16 %v4586
  %v4734 = vunpack.c.l.b16 %v4587
  %v4735 = vunpack.c.h.b16 %v4587
  %v4736 = vunpack.c.l.b16 %v4588
  %v4737 = vunpack.c.l.b16 %v4589
  %v4738 = vunpack.c.h.b16 %v4589
  %v4739 = vunpack.c.l.b16 %v4590
  %v4740 = vunpack.c.h.b16 %v4590
  %v4741 = vunpack.c.l.b16 %v4591
  %v4742 = vunpack.c.l.b16 %v4592
  %v4743 = vunpack.c.h.b16 %v4592
  %v4744 = vunpack.c.l.b16 %v4593
  %v4745 = vunpack.c.h.b16 %v4593
  %v4746 = vunpack.c.l.b16 %v4594
  %v4747 = vunpack.c.l.b16 %v4595
  %v4748 = vunpack.c.h.b16 %v4595
  %v4749 = vunpack.c.l.b16 %v4596
  %v4750 = vunpack.c.h.b16 %v4596
  %v4751 = vunpack.c.l.b16 %v4597
  %v4752 = vunpack.c.l.b16 %v4598
  %v4753 = vunpack.c.h.b16 %v4598
  %v4754 = vunpack.c.l.b16 %v4599
  %v4755 = vunpack.c.h.b16 %v4599
  %v4756 = vunpack.c.l.b16 %v4600
  %v4757 = vunpack.c.l.b16 %v4601
  %v4758 = vunpack.c.h.b16 %v4601
  %v4759 = vunpack.c.l.b16 %v4602
  %v4760 = vunpack.c.h.b16 %v4602
  %v4761 = vunpack.c.l.b16 %v4603
  %v4762 = vunpack.c.l.b16 %v4604
  %v4763 = vunpack.c.h.b16 %v4604
  %v4764 = vunpack.c.l.b16 %v4605
  %v4765 = vunpack.c.h.b16 %v4605
  %v4766 = vunpack.c.l.b16 %v4606
  %v4767 = vunpack.c.l.b16 %v4607
  %v4768 = vunpack.c.h.b16 %v4607
  %v4769 = vunpack.c.l.b16 %v4608
  %v4770 = vunpack.c.h.b16 %v4608
  %v4771 = vunpack.c.l.b16 %v4609
  %v4772 = vpack.c.b16 %v4677, %v4672
  %v4773 = vpack.c.b16 %v4678, %v4673
  %v4774 = vpack.c.b16 %v4679, %v4674
  %v4775 = vpack.c.b16 %v4680, %v4675
  %v4776 = vpack.c.b16 %v4681, %v4676
  %v4777 = vpack.c.b16 %v4687, %v4682
  %v4778 = vpack.c.b16 %v4688, %v4683
  %v4779 = vpack.c.b16 %v4689, %v4684
  %v4780 = vpack.c.b16 %v4690, %v4685
  %v4781 = vpack.c.b16 %v4691, %v4686
  %v4782 = vpack.c.b16 %v4697, %v4692
  %v4783 = vpack.c.b16 %v4698, %v4693
  %v4784 = vpack.c.b16 %v4699, %v4694
  %v4785 = vpack.c.b16 %v4700, %v4695
  %v4786 = vpack.c.b16 %v4701, %v4696
  %v4787 = vpack.c.b16 %v4707, %v4702
  %v4788 = vpack.c.b16 %v4708, %v4703
  %v4789 = vpack.c.b16 %v4709, %v4704
  %v4790 = vpack.c.b16 %v4710, %v4705
  %v4791 = vpack.c.b16 %v4711, %v4706
  %v4792 = vpack.c.b16 %v4717, %v4712
  %v4793 = vpack.c.b16 %v4718, %v4713
  %v4794 = vpack.c.b16 %v4719, %v4714
  %v4795 = vpack.c.b16 %v4720, %v4715
  %v4796 = vpack.c.b16 %v4721, %v4716
  %v4797 = vpack.c.b16 %v4727, %v4722
  %v4798 = vpack.c.b16 %v4728, %v4723
  %v4799 = vpack.c.b16 %v4729, %v4724
  %v4800 = vpack.c.b16 %v4730, %v4725
  %v4801 = vpack.c.b16 %v4731, %v4726
  %v4802 = vpack.c.b16 %v4737, %v4732
  %v4803 = vpack.c.b16 %v4738, %v4733
  %v4804 = vpack.c.b16 %v4739, %v4734
  %v4805 = vpack.c.b16 %v4740, %v4735
  %v4806 = vpack.c.b16 %v4741, %v4736
  %v4807 = vpack.c.b16 %v4747, %v4742
  %v4808 = vpack.c.b16 %v4748, %v4743
  %v4809 = vpack.c.b16 %v4749, %v4744
  %v4810 = vpack.c.b16 %v4750, %v4745
  %v4811 = vpack.c.b16 %v4751, %v4746
  %v4812 = vpack.c.b16 %v4757, %v4752
  %v4813 = vpack.c.b16 %v4758, %v4753
  %v4814 = vpack.c.b16 %v4759, %v4754
  %v4815 = vpack.c.b16 %v4760, %v4755
  %v4816 = vpack.c.b16 %v4761, %v4756
  %v4817 = vpack.c.b16 %v4767, %v4762
  %v4818 = vpack.c.b16 %v4768, %v4763
  %v4819 = vpack.c.b16 %v4769, %v4764
  %v4820 = vpack.c.b16 %v4770, %v4765
  %v4821 = vpack.c.b16 %v4771, %v4766
  %v4873 = vsel %vm2639, %v4611, 0
  %4875 = vmatprep.subr.bf16.mxu0 %v4773
  %4876 = vmatpush1.bf16.msra.mxu0 %v4772
  %4877 = vmatprep.subr.bf16.mxu0 %v4778
  %4878 = vmatpush1.bf16.msra.mxu0 %v4777
  %4879 = vmatprep.subr.bf16.mxu0 %v4783
  %4880 = vmatpush1.bf16.msra.mxu0 %v4782
  %4881 = vmatprep.subr.bf16.mxu0 %v4788
  %4882 = vmatpush1.bf16.msra.mxu0 %v4787
  %4883 = vmatprep.subr.bf16.mxu0 %v4793
  %4884 = vmatpush1.bf16.msra.mxu0 %v4792
  %4885 = vmatprep.subr.bf16.mxu0 %v4798
  %4886 = vmatpush1.bf16.msra.mxu0 %v4797
  %4887 = vmatprep.subr.bf16.mxu0 %v4803
  %4888 = vmatpush1.bf16.msra.mxu0 %v4802
  %4889 = vmatprep.subr.bf16.mxu0 %v4808
  %4890 = vmatpush1.bf16.msra.mxu0 %v4807
  %4891 = vmatprep.subr.bf16.mxu0 %v4813
  %4892 = vmatpush1.bf16.msra.mxu0 %v4812
  %4893 = vmatprep.subr.bf16.mxu0 %v4818
  %4894 = vmatpush1.bf16.msra.mxu0 %v4817
  %4895 = vmatprep.subr.bf16.mxu0 0
  %4896 = vmatpush1.bf16.msra.mxu0 0
  %4897 = vmatprep.subr.bf16.mxu0 0
  %4898 = vmatpush1.bf16.msra.mxu0 0
  %4899 = vmatprep.subr.bf16.mxu0 0
  %4900 = vmatpush1.bf16.msra.mxu0 0
  %4901 = vmatprep.subr.bf16.mxu0 0
  %4902 = vmatpush1.bf16.msra.mxu0 0
  %4903 = vmatprep.subr.bf16.mxu0 0
  %4904 = vmatpush1.bf16.msra.mxu0 0
  %4905 = vmatprep.subr.bf16.mxu0 0
  %4906 = vmatpush1.bf16.msra.mxu0 0
  %4907 = vmatprep.mubr.bf16.mxu0 %v4873
  %4908 = vmatmul.mubr.bf16.gmra.mrb[0].mxu0 %v4610
  %v4909 = vpop.f32.mrb[0].mxu0
  %v4910 = vadd.f32 0.0, %v4909
  %v4911 = vpop.f32.mrb[0].mxu0
  %v4912 = vadd.f32 0.0, %v4911
  %v4913 = vpop.f32.mrb[0].mxu0
  %v4914 = vadd.f32 0.0, %v4913
  %v4915 = vpop.f32.mrb[0].mxu0
  %v4916 = vadd.f32 0.0, %v4915
  %4917 = vdwg.mxu0
  %4918 = vmatprep.subr.bf16.mxu0 %v4775
  %4919 = vmatpush1.bf16.msra.mxu0 %v4774
  %4920 = vmatprep.subr.bf16.mxu0 %v4780
  %4921 = vmatpush1.bf16.msra.mxu0 %v4779
  %4922 = vmatprep.subr.bf16.mxu0 %v4785
  %4923 = vmatpush1.bf16.msra.mxu0 %v4784
  %4924 = vmatprep.subr.bf16.mxu0 %v4790
  %4925 = vmatpush1.bf16.msra.mxu0 %v4789
  %4926 = vmatprep.subr.bf16.mxu0 %v4795
  %4927 = vmatpush1.bf16.msra.mxu0 %v4794
  %4928 = vmatprep.subr.bf16.mxu0 %v4800
  %4929 = vmatpush1.bf16.msra.mxu0 %v4799
  %4930 = vmatprep.subr.bf16.mxu0 %v4805
  %4931 = vmatpush1.bf16.msra.mxu0 %v4804
  %4932 = vmatprep.subr.bf16.mxu0 %v4810
  %4933 = vmatpush1.bf16.msra.mxu0 %v4809
  %4934 = vmatprep.subr.bf16.mxu0 %v4815
  %4935 = vmatpush1.bf16.msra.mxu0 %v4814
  %4936 = vmatprep.subr.bf16.mxu0 %v4820
  %4937 = vmatpush1.bf16.msra.mxu0 %v4819
  %4938 = vmatprep.subr.bf16.mxu0 0
  %4939 = vmatpush1.bf16.msra.mxu0 0
  %4940 = vmatprep.subr.bf16.mxu0 0
  %4941 = vmatpush1.bf16.msra.mxu0 0
  %4942 = vmatprep.subr.bf16.mxu0 0
  %4943 = vmatpush1.bf16.msra.mxu0 0
  %4944 = vmatprep.subr.bf16.mxu0 0
  %4945 = vmatpush1.bf16.msra.mxu0 0
  %4946 = vmatprep.subr.bf16.mxu0 0
  %4947 = vmatpush1.bf16.msra.mxu0 0
  %4948 = vmatprep.subr.bf16.mxu0 0
  %4949 = vmatpush1.bf16.msra.mxu0 0
  %4950 = vmatprep.mubr.bf16.mxu0 %v4873
  %4951 = vmatmul.mubr.bf16.gmra.mrb[0].mxu0 %v4610
  %v4952 = vpop.f32.mrb[0].mxu0
  %v4953 = vadd.f32 0.0, %v4952
  %v4954 = vpop.f32.mrb[0].mxu0
  %v4955 = vadd.f32 0.0, %v4954
  %v4956 = vpop.f32.mrb[0].mxu0
  %v4957 = vadd.f32 0.0, %v4956
  %v4958 = vpop.f32.mrb[0].mxu0
  %v4959 = vadd.f32 0.0, %v4958
  %4960 = vdwg.mxu0
  %4961 = vmatprep.subr.bf16.mxu0 0
  %4962 = vmatpush1.bf16.msra.mxu0 %v4776
  %4963 = vmatprep.subr.bf16.mxu0 0
  %4964 = vmatpush1.bf16.msra.mxu0 %v4781
  %4965 = vmatprep.subr.bf16.mxu0 0
  %4966 = vmatpush1.bf16.msra.mxu0 %v4786
  %4967 = vmatprep.subr.bf16.mxu0 0
  %4968 = vmatpush1.bf16.msra.mxu0 %v4791
  %4969 = vmatprep.subr.bf16.mxu0 0
  %4970 = vmatpush1.bf16.msra.mxu0 %v4796
  %4971 = vmatprep.subr.bf16.mxu0 0
  %4972 = vmatpush1.bf16.msra.mxu0 %v4801
  %4973 = vmatprep.subr.bf16.mxu0 0
  %4974 = vmatpush1.bf16.msra.mxu0 %v4806
  %4975 = vmatprep.subr.bf16.mxu0 0
  %4976 = vmatpush1.bf16.msra.mxu0 %v4811
  %4977 = vmatprep.subr.bf16.mxu0 0
  %4978 = vmatpush1.bf16.msra.mxu0 %v4816
  %4979 = vmatprep.subr.bf16.mxu0 0
  %4980 = vmatpush1.bf16.msra.mxu0 %v4821
  %4981 = vmatprep.subr.bf16.mxu0 0
  %4982 = vmatpush1.bf16.msra.mxu0 0
  %4983 = vmatprep.subr.bf16.mxu0 0
  %4984 = vmatpush1.bf16.msra.mxu0 0
  %4985 = vmatprep.subr.bf16.mxu0 0
  %4986 = vmatpush1.bf16.msra.mxu0 0
  %4987 = vmatprep.subr.bf16.mxu0 0
  %4988 = vmatpush1.bf16.msra.mxu0 0
  %4989 = vmatprep.subr.bf16.mxu0 0
  %4990 = vmatpush1.bf16.msra.mxu0 0
  %4991 = vmatprep.subr.bf16.mxu0 0
  %4992 = vmatpush1.bf16.msra.mxu0 0
  %4993 = vmatprep.mubr.bf16.mxu0 %v4873
  %4994 = vmatmul.mubr.bf16.gmra.mrb[0].mxu0 %v4610
  %v4995 = vpop.f32.mrb[0].mxu0
  %v4996 = vadd.f32 0.0, %v4995
  %v4997 = vpop.f32.mrb[0].mxu0
  %v4998 = vpop.f32.mrb[0].mxu0
  %v4999 = vadd.f32 0.0, %v4998
  %v5000 = vpop.f32.mrb[0].mxu0
  %5001 = vdwg.mxu0
  %v5002 = vadd.f32 %v4539, %v4910
  %v5003 = vadd.f32 %v4540, %v4912
  %v5004 = vadd.f32 %v4541, %v4953
  %v5005 = vadd.f32 %v4542, %v4955
  %v5006 = vadd.f32 %v4543, %v4996
  %v5007 = vadd.f32 %v4544, %v4914
  %v5008 = vadd.f32 %v4545, %v4916
  %v5009 = vadd.f32 %v4546, %v4957
  %v5010 = vadd.f32 %v4547, %v4959
  %v5011 = vadd.f32 %v4548, %v4999
  %s5012 = scalar_lea.vmem %s25, 2400
  %v5013 = vld [vmem:[%s5012] sm:$0xff]
  %v5014 = vld [vmem:[%s5012 + $0x8] sm:$0xff]
  %v5015 = vld [vmem:[%s5012 + $0x10] sm:$0xf]
  %v5016 = vld [vmem:[%s5012 + $0x14] sm:$0xff]
  %v5017 = vld [vmem:[%s5012 + $0x1c] sm:$0xff]
  %v5018 = vld [vmem:[%s5012 + $0x24] sm:$0xf]
  %v5019 = vld [vmem:[%s5012 + $0x28] sm:$0xff]
  %v5020 = vld [vmem:[%s5012 + $0x30] sm:$0xff]
  %v5021 = vld [vmem:[%s5012 + $0x38] sm:$0xf]
  %v5022 = vld [vmem:[%s5012 + $0x3c] sm:$0xff]
  %v5023 = vld [vmem:[%s5012 + $0x44] sm:$0xff]
  %v5024 = vld [vmem:[%s5012 + $0x4c] sm:$0xf]
  %v5025 = vld [vmem:[%s5012 + $0x50] sm:$0xff]
  %v5026 = vld [vmem:[%s5012 + $0x58] sm:$0xff]
  %v5027 = vld [vmem:[%s5012 + $0x60] sm:$0xf]
  %v5028 = vld [vmem:[%s5012 + $0x64] sm:$0xff]
  %v5029 = vld [vmem:[%s5012 + $0x6c] sm:$0xff]
  %v5030 = vld [vmem:[%s5012 + $0x74] sm:$0xf]
  %v5031 = vld [vmem:[%s5012 + $0x78] sm:$0xff]
  %v5032 = vld [vmem:[%s5012 + $0x80] sm:$0xff]
  %v5033 = vld [vmem:[%s5012 + $0x88] sm:$0xf]
  %v5034 = vld [vmem:[%s5012 + $0x8c] sm:$0xff]
  %v5035 = vld [vmem:[%s5012 + $0x94] sm:$0xff]
  %v5036 = vld [vmem:[%s5012 + $0x9c] sm:$0xf]
  %v5037 = vld [vmem:[%s5012 + $0xa0] sm:$0xff]
  %v5038 = vld [vmem:[%s5012 + $0xa8] sm:$0xff]
  %v5039 = vld [vmem:[%s5012 + $0xb0] sm:$0xf]
  %v5040 = vld [vmem:[%s5012 + $0xb4] sm:$0xff]
  %v5041 = vld [vmem:[%s5012 + $0xbc] sm:$0xff]
  %v5042 = vld [vmem:[%s5012 + $0xc4] sm:$0xf]
  %v5043 = vld [vmem:[%s5012 + $0xc8] sm:$0xff]
  %v5044 = vld [vmem:[%s5012 + $0xd0] sm:$0xff]
  %v5045 = vld [vmem:[%s5012 + $0xd8] sm:$0xf]
  %v5046 = vld [vmem:[%s5012 + $0xdc] sm:$0xff]
  %v5047 = vld [vmem:[%s5012 + $0xe4] sm:$0xff]
  %v5048 = vld [vmem:[%s5012 + $0xec] sm:$0xf]
  %v5049 = vld [vmem:[%s5012 + $0xf0] sm:$0xff]
  %v5050 = vld [vmem:[%s5012 + $0xf8] sm:$0xff]
  %v5051 = vld [vmem:[%s5012 + $0x100] sm:$0xf]
  %v5052 = vld [vmem:[%s5012 + $0x104] sm:$0xff]
  %v5053 = vld [vmem:[%s5012 + $0x10c] sm:$0xff]
  %v5054 = vld [vmem:[%s5012 + $0x114] sm:$0xf]
  %v5055 = vld [vmem:[%s5012 + $0x118] sm:$0xff]
  %v5056 = vld [vmem:[%s5012 + $0x120] sm:$0xff]
  %v5057 = vld [vmem:[%s5012 + $0x128] sm:$0xf]
  %v5058 = vld [vmem:[%s5012 + $0x12c] sm:$0xff]
  %v5059 = vld [vmem:[%s5012 + $0x134] sm:$0xff]
  %v5060 = vld [vmem:[%s5012 + $0x13c] sm:$0xf]
  %v5061 = vld [vmem:[%s5012 + $0x140] sm:$0xff]
  %v5062 = vld [vmem:[%s5012 + $0x148] sm:$0xff]
  %v5063 = vld [vmem:[%s5012 + $0x150] sm:$0xf]
  %v5064 = vld [vmem:[%s5012 + $0x154] sm:$0xff]
  %v5065 = vld [vmem:[%s5012 + $0x15c] sm:$0xff]
  %v5066 = vld [vmem:[%s5012 + $0x164] sm:$0xf]
  %v5067 = vld [vmem:[%s5012 + $0x168] sm:$0xff]
  %v5068 = vld [vmem:[%s5012 + $0x170] sm:$0xff]
  %v5069 = vld [vmem:[%s5012 + $0x178] sm:$0xf]
  %v5070 = vld [vmem:[%s5012 + $0x17c] sm:$0xff]
  %v5071 = vld [vmem:[%s5012 + $0x184] sm:$0xff]
  %v5072 = vld [vmem:[%s5012 + $0x18c] sm:$0xf]
  %v5073 = vpack.c.bf16 %v2244, %v2242
  %v5074 = vpack.c.bf16 %v2245, %v2243
  %v5135 = vunpack.c.l.b16 %v5013
  %v5136 = vunpack.c.h.b16 %v5013
  %v5137 = vunpack.c.l.b16 %v5014
  %v5138 = vunpack.c.h.b16 %v5014
  %v5139 = vunpack.c.l.b16 %v5015
  %v5140 = vunpack.c.l.b16 %v5016
  %v5141 = vunpack.c.h.b16 %v5016
  %v5142 = vunpack.c.l.b16 %v5017
  %v5143 = vunpack.c.h.b16 %v5017
  %v5144 = vunpack.c.l.b16 %v5018
  %v5145 = vunpack.c.l.b16 %v5019
  %v5146 = vunpack.c.h.b16 %v5019
  %v5147 = vunpack.c.l.b16 %v5020
  %v5148 = vunpack.c.h.b16 %v5020
  %v5149 = vunpack.c.l.b16 %v5021
  %v5150 = vunpack.c.l.b16 %v5022
  %v5151 = vunpack.c.h.b16 %v5022
  %v5152 = vunpack.c.l.b16 %v5023
  %v5153 = vunpack.c.h.b16 %v5023
  %v5154 = vunpack.c.l.b16 %v5024
  %v5155 = vunpack.c.l.b16 %v5025
  %v5156 = vunpack.c.h.b16 %v5025
  %v5157 = vunpack.c.l.b16 %v5026
  %v5158 = vunpack.c.h.b16 %v5026
  %v5159 = vunpack.c.l.b16 %v5027
  %v5160 = vunpack.c.l.b16 %v5028
  %v5161 = vunpack.c.h.b16 %v5028
  %v5162 = vunpack.c.l.b16 %v5029
  %v5163 = vunpack.c.h.b16 %v5029
  %v5164 = vunpack.c.l.b16 %v5030
  %v5165 = vunpack.c.l.b16 %v5031
  %v5166 = vunpack.c.h.b16 %v5031
  %v5167 = vunpack.c.l.b16 %v5032
  %v5168 = vunpack.c.h.b16 %v5032
  %v5169 = vunpack.c.l.b16 %v5033
  %v5170 = vunpack.c.l.b16 %v5034
  %v5171 = vunpack.c.h.b16 %v5034
  %v5172 = vunpack.c.l.b16 %v5035
  %v5173 = vunpack.c.h.b16 %v5035
  %v5174 = vunpack.c.l.b16 %v5036
  %v5175 = vunpack.c.l.b16 %v5037
  %v5176 = vunpack.c.h.b16 %v5037
  %v5177 = vunpack.c.l.b16 %v5038
  %v5178 = vunpack.c.h.b16 %v5038
  %v5179 = vunpack.c.l.b16 %v5039
  %v5180 = vunpack.c.l.b16 %v5040
  %v5181 = vunpack.c.h.b16 %v5040
  %v5182 = vunpack.c.l.b16 %v5041
  %v5183 = vunpack.c.h.b16 %v5041
  %v5184 = vunpack.c.l.b16 %v5042
  %v5185 = vunpack.c.l.b16 %v5043
  %v5186 = vunpack.c.h.b16 %v5043
  %v5187 = vunpack.c.l.b16 %v5044
  %v5188 = vunpack.c.h.b16 %v5044
  %v5189 = vunpack.c.l.b16 %v5045
  %v5190 = vunpack.c.l.b16 %v5046
  %v5191 = vunpack.c.h.b16 %v5046
  %v5192 = vunpack.c.l.b16 %v5047
  %v5193 = vunpack.c.h.b16 %v5047
  %v5194 = vunpack.c.l.b16 %v5048
  %v5195 = vunpack.c.l.b16 %v5049
  %v5196 = vunpack.c.h.b16 %v5049
  %v5197 = vunpack.c.l.b16 %v5050
  %v5198 = vunpack.c.h.b16 %v5050
  %v5199 = vunpack.c.l.b16 %v5051
  %v5200 = vunpack.c.l.b16 %v5052
  %v5201 = vunpack.c.h.b16 %v5052
  %v5202 = vunpack.c.l.b16 %v5053
  %v5203 = vunpack.c.h.b16 %v5053
  %v5204 = vunpack.c.l.b16 %v5054
  %v5205 = vunpack.c.l.b16 %v5055
  %v5206 = vunpack.c.h.b16 %v5055
  %v5207 = vunpack.c.l.b16 %v5056
  %v5208 = vunpack.c.h.b16 %v5056
  %v5209 = vunpack.c.l.b16 %v5057
  %v5210 = vunpack.c.l.b16 %v5058
  %v5211 = vunpack.c.h.b16 %v5058
  %v5212 = vunpack.c.l.b16 %v5059
  %v5213 = vunpack.c.h.b16 %v5059
  %v5214 = vunpack.c.l.b16 %v5060
  %v5215 = vunpack.c.l.b16 %v5061
  %v5216 = vunpack.c.h.b16 %v5061
  %v5217 = vunpack.c.l.b16 %v5062
  %v5218 = vunpack.c.h.b16 %v5062
  %v5219 = vunpack.c.l.b16 %v5063
  %v5220 = vunpack.c.l.b16 %v5064
  %v5221 = vunpack.c.h.b16 %v5064
  %v5222 = vunpack.c.l.b16 %v5065
  %v5223 = vunpack.c.h.b16 %v5065
  %v5224 = vunpack.c.l.b16 %v5066
  %v5225 = vunpack.c.l.b16 %v5067
  %v5226 = vunpack.c.h.b16 %v5067
  %v5227 = vunpack.c.l.b16 %v5068
  %v5228 = vunpack.c.h.b16 %v5068
  %v5229 = vunpack.c.l.b16 %v5069
  %v5230 = vunpack.c.l.b16 %v5070
  %v5231 = vunpack.c.h.b16 %v5070
  %v5232 = vunpack.c.l.b16 %v5071
  %v5233 = vunpack.c.h.b16 %v5071
  %v5234 = vunpack.c.l.b16 %v5072
  %v5235 = vpack.c.b16 %v5140, %v5135
  %v5236 = vpack.c.b16 %v5141, %v5136
  %v5237 = vpack.c.b16 %v5142, %v5137
  %v5238 = vpack.c.b16 %v5143, %v5138
  %v5239 = vpack.c.b16 %v5144, %v5139
  %v5240 = vpack.c.b16 %v5150, %v5145
  %v5241 = vpack.c.b16 %v5151, %v5146
  %v5242 = vpack.c.b16 %v5152, %v5147
  %v5243 = vpack.c.b16 %v5153, %v5148
  %v5244 = vpack.c.b16 %v5154, %v5149
  %v5245 = vpack.c.b16 %v5160, %v5155
  %v5246 = vpack.c.b16 %v5161, %v5156
  %v5247 = vpack.c.b16 %v5162, %v5157
  %v5248 = vpack.c.b16 %v5163, %v5158
  %v5249 = vpack.c.b16 %v5164, %v5159
  %v5250 = vpack.c.b16 %v5170, %v5165
  %v5251 = vpack.c.b16 %v5171, %v5166
  %v5252 = vpack.c.b16 %v5172, %v5167
  %v5253 = vpack.c.b16 %v5173, %v5168
  %v5254 = vpack.c.b16 %v5174, %v5169
  %v5255 = vpack.c.b16 %v5180, %v5175
  %v5256 = vpack.c.b16 %v5181, %v5176
  %v5257 = vpack.c.b16 %v5182, %v5177
  %v5258 = vpack.c.b16 %v5183, %v5178
  %v5259 = vpack.c.b16 %v5184, %v5179
  %v5260 = vpack.c.b16 %v5190, %v5185
  %v5261 = vpack.c.b16 %v5191, %v5186
  %v5262 = vpack.c.b16 %v5192, %v5187
  %v5263 = vpack.c.b16 %v5193, %v5188
  %v5264 = vpack.c.b16 %v5194, %v5189
  %v5265 = vpack.c.b16 %v5200, %v5195
  %v5266 = vpack.c.b16 %v5201, %v5196
  %v5267 = vpack.c.b16 %v5202, %v5197
  %v5268 = vpack.c.b16 %v5203, %v5198
  %v5269 = vpack.c.b16 %v5204, %v5199
  %v5270 = vpack.c.b16 %v5210, %v5205
  %v5271 = vpack.c.b16 %v5211, %v5206
  %v5272 = vpack.c.b16 %v5212, %v5207
  %v5273 = vpack.c.b16 %v5213, %v5208
  %v5274 = vpack.c.b16 %v5214, %v5209
  %v5275 = vpack.c.b16 %v5220, %v5215
  %v5276 = vpack.c.b16 %v5221, %v5216
  %v5277 = vpack.c.b16 %v5222, %v5217
  %v5278 = vpack.c.b16 %v5223, %v5218
  %v5279 = vpack.c.b16 %v5224, %v5219
  %v5280 = vpack.c.b16 %v5230, %v5225
  %v5281 = vpack.c.b16 %v5231, %v5226
  %v5282 = vpack.c.b16 %v5232, %v5227
  %v5283 = vpack.c.b16 %v5233, %v5228
  %v5284 = vpack.c.b16 %v5234, %v5229
  %v5336 = vsel %vm2639, %v5074, 0
  %5338 = vmatprep.subr.bf16.mxu0 %v5236
  %5339 = vmatpush1.bf16.msra.mxu0 %v5235
  %5340 = vmatprep.subr.bf16.mxu0 %v5241
  %5341 = vmatpush1.bf16.msra.mxu0 %v5240
  %5342 = vmatprep.subr.bf16.mxu0 %v5246
  %5343 = vmatpush1.bf16.msra.mxu0 %v5245
  %5344 = vmatprep.subr.bf16.mxu0 %v5251
  %5345 = vmatpush1.bf16.msra.mxu0 %v5250
  %5346 = vmatprep.subr.bf16.mxu0 %v5256
  %5347 = vmatpush1.bf16.msra.mxu0 %v5255
  %5348 = vmatprep.subr.bf16.mxu0 %v5261
  %5349 = vmatpush1.bf16.msra.mxu0 %v5260
  %5350 = vmatprep.subr.bf16.mxu0 %v5266
  %5351 = vmatpush1.bf16.msra.mxu0 %v5265
  %5352 = vmatprep.subr.bf16.mxu0 %v5271
  %5353 = vmatpush1.bf16.msra.mxu0 %v5270
  %5354 = vmatprep.subr.bf16.mxu0 %v5276
  %5355 = vmatpush1.bf16.msra.mxu0 %v5275
  %5356 = vmatprep.subr.bf16.mxu0 %v5281
  %5357 = vmatpush1.bf16.msra.mxu0 %v5280
  %5358 = vmatprep.subr.bf16.mxu0 0
  %5359 = vmatpush1.bf16.msra.mxu0 0
  %5360 = vmatprep.subr.bf16.mxu0 0
  %5361 = vmatpush1.bf16.msra.mxu0 0
  %5362 = vmatprep.subr.bf16.mxu0 0
  %5363 = vmatpush1.bf16.msra.mxu0 0
  %5364 = vmatprep.subr.bf16.mxu0 0
  %5365 = vmatpush1.bf16.msra.mxu0 0
  %5366 = vmatprep.subr.bf16.mxu0 0
  %5367 = vmatpush1.bf16.msra.mxu0 0
  %5368 = vmatprep.subr.bf16.mxu0 0
  %5369 = vmatpush1.bf16.msra.mxu0 0
  %5370 = vmatprep.mubr.bf16.mxu0 %v5336
  %5371 = vmatmul.mubr.bf16.gmra.mrb[0].mxu0 %v5073
  %v5372 = vpop.f32.mrb[0].mxu0
  %v5373 = vadd.f32 0.0, %v5372
  %v5374 = vpop.f32.mrb[0].mxu0
  %v5375 = vadd.f32 0.0, %v5374
  %v5376 = vpop.f32.mrb[0].mxu0
  %v5377 = vadd.f32 0.0, %v5376
  %v5378 = vpop.f32.mrb[0].mxu0
  %v5379 = vadd.f32 0.0, %v5378
  %5380 = vdwg.mxu0
  %5381 = vmatprep.subr.bf16.mxu0 %v5238
  %5382 = vmatpush1.bf16.msra.mxu0 %v5237
  %5383 = vmatprep.subr.bf16.mxu0 %v5243
  %5384 = vmatpush1.bf16.msra.mxu0 %v5242
  %5385 = vmatprep.subr.bf16.mxu0 %v5248
  %5386 = vmatpush1.bf16.msra.mxu0 %v5247
  %5387 = vmatprep.subr.bf16.mxu0 %v5253
  %5388 = vmatpush1.bf16.msra.mxu0 %v5252
  %5389 = vmatprep.subr.bf16.mxu0 %v5258
  %5390 = vmatpush1.bf16.msra.mxu0 %v5257
  %5391 = vmatprep.subr.bf16.mxu0 %v5263
  %5392 = vmatpush1.bf16.msra.mxu0 %v5262
  %5393 = vmatprep.subr.bf16.mxu0 %v5268
  %5394 = vmatpush1.bf16.msra.mxu0 %v5267
  %5395 = vmatprep.subr.bf16.mxu0 %v5273
  %5396 = vmatpush1.bf16.msra.mxu0 %v5272
  %5397 = vmatprep.subr.bf16.mxu0 %v5278
  %5398 = vmatpush1.bf16.msra.mxu0 %v5277
  %5399 = vmatprep.subr.bf16.mxu0 %v5283
  %5400 = vmatpush1.bf16.msra.mxu0 %v5282
  %5401 = vmatprep.subr.bf16.mxu0 0
  %5402 = vmatpush1.bf16.msra.mxu0 0
  %5403 = vmatprep.subr.bf16.mxu0 0
  %5404 = vmatpush1.bf16.msra.mxu0 0
  %5405 = vmatprep.subr.bf16.mxu0 0
  %5406 = vmatpush1.bf16.msra.mxu0 0
  %5407 = vmatprep.subr.bf16.mxu0 0
  %5408 = vmatpush1.bf16.msra.mxu0 0
  %5409 = vmatprep.subr.bf16.mxu0 0
  %5410 = vmatpush1.bf16.msra.mxu0 0
  %5411 = vmatprep.subr.bf16.mxu0 0
  %5412 = vmatpush1.bf16.msra.mxu0 0
  %5413 = vmatprep.mubr.bf16.mxu0 %v5336
  %5414 = vmatmul.mubr.bf16.gmra.mrb[0].mxu0 %v5073
  %v5415 = vpop.f32.mrb[0].mxu0
  %v5416 = vadd.f32 0.0, %v5415
  %v5417 = vpop.f32.mrb[0].mxu0
  %v5418 = vadd.f32 0.0, %v5417
  %v5419 = vpop.f32.mrb[0].mxu0
  %v5420 = vadd.f32 0.0, %v5419
  %v5421 = vpop.f32.mrb[0].mxu0
  %v5422 = vadd.f32 0.0, %v5421
  %5423 = vdwg.mxu0
  %5424 = vmatprep.subr.bf16.mxu0 0
  %5425 = vmatpush1.bf16.msra.mxu0 %v5239
  %5426 = vmatprep.subr.bf16.mxu0 0
  %5427 = vmatpush1.bf16.msra.mxu0 %v5244
  %5428 = vmatprep.subr.bf16.mxu0 0
  %5429 = vmatpush1.bf16.msra.mxu0 %v5249
  %5430 = vmatprep.subr.bf16.mxu0 0
  %5431 = vmatpush1.bf16.msra.mxu0 %v5254
  %5432 = vmatprep.subr.bf16.mxu0 0
  %5433 = vmatpush1.bf16.msra.mxu0 %v5259
  %5434 = vmatprep.subr.bf16.mxu0 0
  %5435 = vmatpush1.bf16.msra.mxu0 %v5264
  %5436 = vmatprep.subr.bf16.mxu0 0
  %5437 = vmatpush1.bf16.msra.mxu0 %v5269
  %5438 = vmatprep.subr.bf16.mxu0 0
  %5439 = vmatpush1.bf16.msra.mxu0 %v5274
  %5440 = vmatprep.subr.bf16.mxu0 0
  %5441 = vmatpush1.bf16.msra.mxu0 %v5279
  %5442 = vmatprep.subr.bf16.mxu0 0
  %5443 = vmatpush1.bf16.msra.mxu0 %v5284
  %5444 = vmatprep.subr.bf16.mxu0 0
  %5445 = vmatpush1.bf16.msra.mxu0 0
  %5446 = vmatprep.subr.bf16.mxu0 0
  %5447 = vmatpush1.bf16.msra.mxu0 0
  %5448 = vmatprep.subr.bf16.mxu0 0
  %5449 = vmatpush1.bf16.msra.mxu0 0
  %5450 = vmatprep.subr.bf16.mxu0 0
  %5451 = vmatpush1.bf16.msra.mxu0 0
  %5452 = vmatprep.subr.bf16.mxu0 0
  %5453 = vmatpush1.bf16.msra.mxu0 0
  %5454 = vmatprep.subr.bf16.mxu0 0
  %5455 = vmatpush1.bf16.msra.mxu0 0
  %5456 = vmatprep.mubr.bf16.mxu0 %v5336
  %5457 = vmatmul.mubr.bf16.gmra.mrb[0].mxu0 %v5073
  %v5458 = vpop.f32.mrb[0].mxu0
  %v5459 = vadd.f32 0.0, %v5458
  %v5460 = vpop.f32.mrb[0].mxu0
  %v5461 = vpop.f32.mrb[0].mxu0
  %v5462 = vadd.f32 0.0, %v5461
  %v5463 = vpop.f32.mrb[0].mxu0
  %5464 = vdwg.mxu0
  %v5465 = vadd.f32 %v5002, %v5373
  %v5466 = vadd.f32 %v5003, %v5375
  %v5467 = vadd.f32 %v5004, %v5416
  %v5468 = vadd.f32 %v5005, %v5418
  %v5469 = vadd.f32 %v5006, %v5459
  %v5470 = vadd.f32 %v5007, %v5377
  %v5471 = vadd.f32 %v5008, %v5379
  %v5472 = vadd.f32 %v5009, %v5420
  %v5473 = vadd.f32 %v5010, %v5422
  %v5474 = vadd.f32 %v5011, %v5462
  %s5475 = scalar_lea.vmem %s25, 2800
  %v5476 = vld [vmem:[%s5475] sm:$0xff]
  %v5477 = vld [vmem:[%s5475 + $0x8] sm:$0xff]
  %v5478 = vld [vmem:[%s5475 + $0x10] sm:$0xf]
  %v5479 = vld [vmem:[%s5475 + $0x14] sm:$0xff]
  %v5480 = vld [vmem:[%s5475 + $0x1c] sm:$0xff]
  %v5481 = vld [vmem:[%s5475 + $0x24] sm:$0xf]
  %v5482 = vld [vmem:[%s5475 + $0x28] sm:$0xff]
  %v5483 = vld [vmem:[%s5475 + $0x30] sm:$0xff]
  %v5484 = vld [vmem:[%s5475 + $0x38] sm:$0xf]
  %v5485 = vld [vmem:[%s5475 + $0x3c] sm:$0xff]
  %v5486 = vld [vmem:[%s5475 + $0x44] sm:$0xff]
  %v5487 = vld [vmem:[%s5475 + $0x4c] sm:$0xf]
  %v5488 = vld [vmem:[%s5475 + $0x50] sm:$0xff]
  %v5489 = vld [vmem:[%s5475 + $0x58] sm:$0xff]
  %v5490 = vld [vmem:[%s5475 + $0x60] sm:$0xf]
  %v5491 = vld [vmem:[%s5475 + $0x64] sm:$0xff]
  %v5492 = vld [vmem:[%s5475 + $0x6c] sm:$0xff]
  %v5493 = vld [vmem:[%s5475 + $0x74] sm:$0xf]
  %v5494 = vld [vmem:[%s5475 + $0x78] sm:$0xff]
  %v5495 = vld [vmem:[%s5475 + $0x80] sm:$0xff]
  %v5496 = vld [vmem:[%s5475 + $0x88] sm:$0xf]
  %v5497 = vld [vmem:[%s5475 + $0x8c] sm:$0xff]
  %v5498 = vld [vmem:[%s5475 + $0x94] sm:$0xff]
  %v5499 = vld [vmem:[%s5475 + $0x9c] sm:$0xf]
  %v5500 = vld [vmem:[%s5475 + $0xa0] sm:$0xff]
  %v5501 = vld [vmem:[%s5475 + $0xa8] sm:$0xff]
  %v5502 = vld [vmem:[%s5475 + $0xb0] sm:$0xf]
  %v5503 = vld [vmem:[%s5475 + $0xb4] sm:$0xff]
  %v5504 = vld [vmem:[%s5475 + $0xbc] sm:$0xff]
  %v5505 = vld [vmem:[%s5475 + $0xc4] sm:$0xf]
  %v5506 = vld [vmem:[%s5475 + $0xc8] sm:$0xff]
  %v5507 = vld [vmem:[%s5475 + $0xd0] sm:$0xff]
  %v5508 = vld [vmem:[%s5475 + $0xd8] sm:$0xf]
  %v5509 = vld [vmem:[%s5475 + $0xdc] sm:$0xff]
  %v5510 = vld [vmem:[%s5475 + $0xe4] sm:$0xff]
  %v5511 = vld [vmem:[%s5475 + $0xec] sm:$0xf]
  %v5512 = vld [vmem:[%s5475 + $0xf0] sm:$0xff]
  %v5513 = vld [vmem:[%s5475 + $0xf8] sm:$0xff]
  %v5514 = vld [vmem:[%s5475 + $0x100] sm:$0xf]
  %v5515 = vld [vmem:[%s5475 + $0x104] sm:$0xff]
  %v5516 = vld [vmem:[%s5475 + $0x10c] sm:$0xff]
  %v5517 = vld [vmem:[%s5475 + $0x114] sm:$0xf]
  %v5518 = vld [vmem:[%s5475 + $0x118] sm:$0xff]
  %v5519 = vld [vmem:[%s5475 + $0x120] sm:$0xff]
  %v5520 = vld [vmem:[%s5475 + $0x128] sm:$0xf]
  %v5521 = vld [vmem:[%s5475 + $0x12c] sm:$0xff]
  %v5522 = vld [vmem:[%s5475 + $0x134] sm:$0xff]
  %v5523 = vld [vmem:[%s5475 + $0x13c] sm:$0xf]
  %v5524 = vld [vmem:[%s5475 + $0x140] sm:$0xff]
  %v5525 = vld [vmem:[%s5475 + $0x148] sm:$0xff]
  %v5526 = vld [vmem:[%s5475 + $0x150] sm:$0xf]
  %v5527 = vld [vmem:[%s5475 + $0x154] sm:$0xff]
  %v5528 = vld [vmem:[%s5475 + $0x15c] sm:$0xff]
  %v5529 = vld [vmem:[%s5475 + $0x164] sm:$0xf]
  %v5530 = vld [vmem:[%s5475 + $0x168] sm:$0xff]
  %v5531 = vld [vmem:[%s5475 + $0x170] sm:$0xff]
  %v5532 = vld [vmem:[%s5475 + $0x178] sm:$0xf]
  %v5533 = vld [vmem:[%s5475 + $0x17c] sm:$0xff]
  %v5534 = vld [vmem:[%s5475 + $0x184] sm:$0xff]
  %v5535 = vld [vmem:[%s5475 + $0x18c] sm:$0xf]
  %v5536 = vpack.c.bf16 %v2248, %v2246
  %v5537 = vpack.c.bf16 %v2249, %v2247
  %v5598 = vunpack.c.l.b16 %v5476
  %v5599 = vunpack.c.h.b16 %v5476
  %v5600 = vunpack.c.l.b16 %v5477
  %v5601 = vunpack.c.h.b16 %v5477
  %v5602 = vunpack.c.l.b16 %v5478
  %v5603 = vunpack.c.l.b16 %v5479
  %v5604 = vunpack.c.h.b16 %v5479
  %v5605 = vunpack.c.l.b16 %v5480
  %v5606 = vunpack.c.h.b16 %v5480
  %v5607 = vunpack.c.l.b16 %v5481
  %v5608 = vunpack.c.l.b16 %v5482
  %v5609 = vunpack.c.h.b16 %v5482
  %v5610 = vunpack.c.l.b16 %v5483
  %v5611 = vunpack.c.h.b16 %v5483
  %v5612 = vunpack.c.l.b16 %v5484
  %v5613 = vunpack.c.l.b16 %v5485
  %v5614 = vunpack.c.h.b16 %v5485
  %v5615 = vunpack.c.l.b16 %v5486
  %v5616 = vunpack.c.h.b16 %v5486
  %v5617 = vunpack.c.l.b16 %v5487
  %v5618 = vunpack.c.l.b16 %v5488
  %v5619 = vunpack.c.h.b16 %v5488
  %v5620 = vunpack.c.l.b16 %v5489
  %v5621 = vunpack.c.h.b16 %v5489
  %v5622 = vunpack.c.l.b16 %v5490
  %v5623 = vunpack.c.l.b16 %v5491
  %v5624 = vunpack.c.h.b16 %v5491
  %v5625 = vunpack.c.l.b16 %v5492
  %v5626 = vunpack.c.h.b16 %v5492
  %v5627 = vunpack.c.l.b16 %v5493
  %v5628 = vunpack.c.l.b16 %v5494
  %v5629 = vunpack.c.h.b16 %v5494
  %v5630 = vunpack.c.l.b16 %v5495
  %v5631 = vunpack.c.h.b16 %v5495
  %v5632 = vunpack.c.l.b16 %v5496
  %v5633 = vunpack.c.l.b16 %v5497
  %v5634 = vunpack.c.h.b16 %v5497
  %v5635 = vunpack.c.l.b16 %v5498
  %v5636 = vunpack.c.h.b16 %v5498
  %v5637 = vunpack.c.l.b16 %v5499
  %v5638 = vunpack.c.l.b16 %v5500
  %v5639 = vunpack.c.h.b16 %v5500
  %v5640 = vunpack.c.l.b16 %v5501
  %v5641 = vunpack.c.h.b16 %v5501
  %v5642 = vunpack.c.l.b16 %v5502
  %v5643 = vunpack.c.l.b16 %v5503
  %v5644 = vunpack.c.h.b16 %v5503
  %v5645 = vunpack.c.l.b16 %v5504
  %v5646 = vunpack.c.h.b16 %v5504
  %v5647 = vunpack.c.l.b16 %v5505
  %v5648 = vunpack.c.l.b16 %v5506
  %v5649 = vunpack.c.h.b16 %v5506
  %v5650 = vunpack.c.l.b16 %v5507
  %v5651 = vunpack.c.h.b16 %v5507
  %v5652 = vunpack.c.l.b16 %v5508
  %v5653 = vunpack.c.l.b16 %v5509
  %v5654 = vunpack.c.h.b16 %v5509
  %v5655 = vunpack.c.l.b16 %v5510
  %v5656 = vunpack.c.h.b16 %v5510
  %v5657 = vunpack.c.l.b16 %v5511
  %v5658 = vunpack.c.l.b16 %v5512
  %v5659 = vunpack.c.h.b16 %v5512
  %v5660 = vunpack.c.l.b16 %v5513
  %v5661 = vunpack.c.h.b16 %v5513
  %v5662 = vunpack.c.l.b16 %v5514
  %v5663 = vunpack.c.l.b16 %v5515
  %v5664 = vunpack.c.h.b16 %v5515
  %v5665 = vunpack.c.l.b16 %v5516
  %v5666 = vunpack.c.h.b16 %v5516
  %v5667 = vunpack.c.l.b16 %v5517
  %v5668 = vunpack.c.l.b16 %v5518
  %v5669 = vunpack.c.h.b16 %v5518
  %v5670 = vunpack.c.l.b16 %v5519
  %v5671 = vunpack.c.h.b16 %v5519
  %v5672 = vunpack.c.l.b16 %v5520
  %v5673 = vunpack.c.l.b16 %v5521
  %v5674 = vunpack.c.h.b16 %v5521
  %v5675 = vunpack.c.l.b16 %v5522
  %v5676 = vunpack.c.h.b16 %v5522
  %v5677 = vunpack.c.l.b16 %v5523
  %v5678 = vunpack.c.l.b16 %v5524
  %v5679 = vunpack.c.h.b16 %v5524
  %v5680 = vunpack.c.l.b16 %v5525
  %v5681 = vunpack.c.h.b16 %v5525
  %v5682 = vunpack.c.l.b16 %v5526
  %v5683 = vunpack.c.l.b16 %v5527
  %v5684 = vunpack.c.h.b16 %v5527
  %v5685 = vunpack.c.l.b16 %v5528
  %v5686 = vunpack.c.h.b16 %v5528
  %v5687 = vunpack.c.l.b16 %v5529
  %v5688 = vunpack.c.l.b16 %v5530
  %v5689 = vunpack.c.h.b16 %v5530
  %v5690 = vunpack.c.l.b16 %v5531
  %v5691 = vunpack.c.h.b16 %v5531
  %v5692 = vunpack.c.l.b16 %v5532
  %v5693 = vunpack.c.l.b16 %v5533
  %v5694 = vunpack.c.h.b16 %v5533
  %v5695 = vunpack.c.l.b16 %v5534
  %v5696 = vunpack.c.h.b16 %v5534
  %v5697 = vunpack.c.l.b16 %v5535
  %v5698 = vpack.c.b16 %v5603, %v5598
  %v5699 = vpack.c.b16 %v5604, %v5599
  %v5700 = vpack.c.b16 %v5605, %v5600
  %v5701 = vpack.c.b16 %v5606, %v5601
  %v5702 = vpack.c.b16 %v5607, %v5602
  %v5703 = vpack.c.b16 %v5613, %v5608
  %v5704 = vpack.c.b16 %v5614, %v5609
  %v5705 = vpack.c.b16 %v5615, %v5610
  %v5706 = vpack.c.b16 %v5616, %v5611
  %v5707 = vpack.c.b16 %v5617, %v5612
  %v5708 = vpack.c.b16 %v5623, %v5618
  %v5709 = vpack.c.b16 %v5624, %v5619
  %v5710 = vpack.c.b16 %v5625, %v5620
  %v5711 = vpack.c.b16 %v5626, %v5621
  %v5712 = vpack.c.b16 %v5627, %v5622
  %v5713 = vpack.c.b16 %v5633, %v5628
  %v5714 = vpack.c.b16 %v5634, %v5629
  %v5715 = vpack.c.b16 %v5635, %v5630
  %v5716 = vpack.c.b16 %v5636, %v5631
  %v5717 = vpack.c.b16 %v5637, %v5632
  %v5718 = vpack.c.b16 %v5643, %v5638
  %v5719 = vpack.c.b16 %v5644, %v5639
  %v5720 = vpack.c.b16 %v5645, %v5640
  %v5721 = vpack.c.b16 %v5646, %v5641
  %v5722 = vpack.c.b16 %v5647, %v5642
  %v5723 = vpack.c.b16 %v5653, %v5648
  %v5724 = vpack.c.b16 %v5654, %v5649
  %v5725 = vpack.c.b16 %v5655, %v5650
  %v5726 = vpack.c.b16 %v5656, %v5651
  %v5727 = vpack.c.b16 %v5657, %v5652
  %v5728 = vpack.c.b16 %v5663, %v5658
  %v5729 = vpack.c.b16 %v5664, %v5659
  %v5730 = vpack.c.b16 %v5665, %v5660
  %v5731 = vpack.c.b16 %v5666, %v5661
  %v5732 = vpack.c.b16 %v5667, %v5662
  %v5733 = vpack.c.b16 %v5673, %v5668
  %v5734 = vpack.c.b16 %v5674, %v5669
  %v5735 = vpack.c.b16 %v5675, %v5670
  %v5736 = vpack.c.b16 %v5676, %v5671
  %v5737 = vpack.c.b16 %v5677, %v5672
  %v5738 = vpack.c.b16 %v5683, %v5678
  %v5739 = vpack.c.b16 %v5684, %v5679
  %v5740 = vpack.c.b16 %v5685, %v5680
  %v5741 = vpack.c.b16 %v5686, %v5681
  %v5742 = vpack.c.b16 %v5687, %v5682
  %v5743 = vpack.c.b16 %v5693, %v5688
  %v5744 = vpack.c.b16 %v5694, %v5689
  %v5745 = vpack.c.b16 %v5695, %v5690
  %v5746 = vpack.c.b16 %v5696, %v5691
  %v5747 = vpack.c.b16 %v5697, %v5692
  %v5799 = vsel %vm2639, %v5537, 0
  %5801 = vmatprep.subr.bf16.mxu0 %v5699
  %5802 = vmatpush1.bf16.msra.mxu0 %v5698
  %5803 = vmatprep.subr.bf16.mxu0 %v5704
  %5804 = vmatpush1.bf16.msra.mxu0 %v5703
  %5805 = vmatprep.subr.bf16.mxu0 %v5709
  %5806 = vmatpush1.bf16.msra.mxu0 %v5708
  %5807 = vmatprep.subr.bf16.mxu0 %v5714
  %5808 = vmatpush1.bf16.msra.mxu0 %v5713
  %5809 = vmatprep.subr.bf16.mxu0 %v5719
  %5810 = vmatpush1.bf16.msra.mxu0 %v5718
  %5811 = vmatprep.subr.bf16.mxu0 %v5724
  %5812 = vmatpush1.bf16.msra.mxu0 %v5723
  %5813 = vmatprep.subr.bf16.mxu0 %v5729
  %5814 = vmatpush1.bf16.msra.mxu0 %v5728
  %5815 = vmatprep.subr.bf16.mxu0 %v5734
  %5816 = vmatpush1.bf16.msra.mxu0 %v5733
  %5817 = vmatprep.subr.bf16.mxu0 %v5739
  %5818 = vmatpush1.bf16.msra.mxu0 %v5738
  %5819 = vmatprep.subr.bf16.mxu0 %v5744
  %5820 = vmatpush1.bf16.msra.mxu0 %v5743
  %5821 = vmatprep.subr.bf16.mxu0 0
  %5822 = vmatpush1.bf16.msra.mxu0 0
  %5823 = vmatprep.subr.bf16.mxu0 0
  %5824 = vmatpush1.bf16.msra.mxu0 0
  %5825 = vmatprep.subr.bf16.mxu0 0
  %5826 = vmatpush1.bf16.msra.mxu0 0
  %5827 = vmatprep.subr.bf16.mxu0 0
  %5828 = vmatpush1.bf16.msra.mxu0 0
  %5829 = vmatprep.subr.bf16.mxu0 0
  %5830 = vmatpush1.bf16.msra.mxu0 0
  %5831 = vmatprep.subr.bf16.mxu0 0
  %5832 = vmatpush1.bf16.msra.mxu0 0
  %5833 = vmatprep.mubr.bf16.mxu0 %v5799
  %5834 = vmatmul.mubr.bf16.gmra.mrb[0].mxu0 %v5536
  %v5835 = vpop.f32.mrb[0].mxu0
  %v5836 = vadd.f32 0.0, %v5835
  %v5837 = vpop.f32.mrb[0].mxu0
  %v5838 = vadd.f32 0.0, %v5837
  %v5839 = vpop.f32.mrb[0].mxu0
  %v5840 = vadd.f32 0.0, %v5839
  %v5841 = vpop.f32.mrb[0].mxu0
  %v5842 = vadd.f32 0.0, %v5841
  %5843 = vdwg.mxu0
  %5844 = vmatprep.subr.bf16.mxu0 %v5701
  %5845 = vmatpush1.bf16.msra.mxu0 %v5700
  %5846 = vmatprep.subr.bf16.mxu0 %v5706
  %5847 = vmatpush1.bf16.msra.mxu0 %v5705
  %5848 = vmatprep.subr.bf16.mxu0 %v5711
  %5849 = vmatpush1.bf16.msra.mxu0 %v5710
  %5850 = vmatprep.subr.bf16.mxu0 %v5716
  %5851 = vmatpush1.bf16.msra.mxu0 %v5715
  %5852 = vmatprep.subr.bf16.mxu0 %v5721
  %5853 = vmatpush1.bf16.msra.mxu0 %v5720
  %5854 = vmatprep.subr.bf16.mxu0 %v5726
  %5855 = vmatpush1.bf16.msra.mxu0 %v5725
  %5856 = vmatprep.subr.bf16.mxu0 %v5731
  %5857 = vmatpush1.bf16.msra.mxu0 %v5730
  %5858 = vmatprep.subr.bf16.mxu0 %v5736
  %5859 = vmatpush1.bf16.msra.mxu0 %v5735
  %5860 = vmatprep.subr.bf16.mxu0 %v5741
  %5861 = vmatpush1.bf16.msra.mxu0 %v5740
  %5862 = vmatprep.subr.bf16.mxu0 %v5746
  %5863 = vmatpush1.bf16.msra.mxu0 %v5745
  %5864 = vmatprep.subr.bf16.mxu0 0
  %5865 = vmatpush1.bf16.msra.mxu0 0
  %5866 = vmatprep.subr.bf16.mxu0 0
  %5867 = vmatpush1.bf16.msra.mxu0 0
  %5868 = vmatprep.subr.bf16.mxu0 0
  %5869 = vmatpush1.bf16.msra.mxu0 0
  %5870 = vmatprep.subr.bf16.mxu0 0
  %5871 = vmatpush1.bf16.msra.mxu0 0
  %5872 = vmatprep.subr.bf16.mxu0 0
  %5873 = vmatpush1.bf16.msra.mxu0 0
  %5874 = vmatprep.subr.bf16.mxu0 0
  %5875 = vmatpush1.bf16.msra.mxu0 0
  %5876 = vmatprep.mubr.bf16.mxu0 %v5799
  %5877 = vmatmul.mubr.bf16.gmra.mrb[0].mxu0 %v5536
  %v5878 = vpop.f32.mrb[0].mxu0
  %v5879 = vadd.f32 0.0, %v5878
  %v5880 = vpop.f32.mrb[0].mxu0
  %v5881 = vadd.f32 0.0, %v5880
  %v5882 = vpop.f32.mrb[0].mxu0
  %v5883 = vadd.f32 0.0, %v5882
  %v5884 = vpop.f32.mrb[0].mxu0
  %v5885 = vadd.f32 0.0, %v5884
  %5886 = vdwg.mxu0
  %5887 = vmatprep.subr.bf16.mxu0 0
  %5888 = vmatpush1.bf16.msra.mxu0 %v5702
  %5889 = vmatprep.subr.bf16.mxu0 0
  %5890 = vmatpush1.bf16.msra.mxu0 %v5707
  %5891 = vmatprep.subr.bf16.mxu0 0
  %5892 = vmatpush1.bf16.msra.mxu0 %v5712
  %5893 = vmatprep.subr.bf16.mxu0 0
  %5894 = vmatpush1.bf16.msra.mxu0 %v5717
  %5895 = vmatprep.subr.bf16.mxu0 0
  %5896 = vmatpush1.bf16.msra.mxu0 %v5722
  %5897 = vmatprep.subr.bf16.mxu0 0
  %5898 = vmatpush1.bf16.msra.mxu0 %v5727
  %5899 = vmatprep.subr.bf16.mxu0 0
  %5900 = vmatpush1.bf16.msra.mxu0 %v5732
  %5901 = vmatprep.subr.bf16.mxu0 0
  %5902 = vmatpush1.bf16.msra.mxu0 %v5737
  %5903 = vmatprep.subr.bf16.mxu0 0
  %5904 = vmatpush1.bf16.msra.mxu0 %v5742
  %5905 = vmatprep.subr.bf16.mxu0 0
  %5906 = vmatpush1.bf16.msra.mxu0 %v5747
  %5907 = vmatprep.subr.bf16.mxu0 0
  %5908 = vmatpush1.bf16.msra.mxu0 0
  %5909 = vmatprep.subr.bf16.mxu0 0
  %5910 = vmatpush1.bf16.msra.mxu0 0
  %5911 = vmatprep.subr.bf16.mxu0 0
  %5912 = vmatpush1.bf16.msra.mxu0 0
  %5913 = vmatprep.subr.bf16.mxu0 0
  %5914 = vmatpush1.bf16.msra.mxu0 0
  %5915 = vmatprep.subr.bf16.mxu0 0
  %5916 = vmatpush1.bf16.msra.mxu0 0
  %5917 = vmatprep.subr.bf16.mxu0 0
  %5918 = vmatpush1.bf16.msra.mxu0 0
  %5919 = vmatprep.mubr.bf16.mxu0 %v5799
  %5920 = vmatmul.mubr.bf16.gmra.mrb[0].mxu0 %v5536
  %v5921 = vpop.f32.mrb[0].mxu0
  %v5922 = vadd.f32 0.0, %v5921
  %v5923 = vpop.f32.mrb[0].mxu0
  %v5924 = vpop.f32.mrb[0].mxu0
  %v5925 = vadd.f32 0.0, %v5924
  %v5926 = vpop.f32.mrb[0].mxu0
  %5927 = vdwg.mxu0
  %v5928 = vadd.f32 %v5465, %v5836
  %v5929 = vadd.f32 %v5466, %v5838
  %v5930 = vadd.f32 %v5467, %v5879
  %v5931 = vadd.f32 %v5468, %v5881
  %v5932 = vadd.f32 %v5469, %v5922
  %v5933 = vadd.f32 %v5470, %v5840
  %v5934 = vadd.f32 %v5471, %v5842
  %v5935 = vadd.f32 %v5472, %v5883
  %v5936 = vadd.f32 %v5473, %v5885
  %v5937 = vadd.f32 %v5474, %v5925
  %s5938 = scalar_lea.vmem %s25, 3200
  %v5939 = vld [vmem:[%s5938] sm:$0xff]
  %v5940 = vld [vmem:[%s5938 + $0x8] sm:$0xff]
  %v5941 = vld [vmem:[%s5938 + $0x10] sm:$0xf]
  %v5942 = vld [vmem:[%s5938 + $0x14] sm:$0xff]
  %v5943 = vld [vmem:[%s5938 + $0x1c] sm:$0xff]
  %v5944 = vld [vmem:[%s5938 + $0x24] sm:$0xf]
  %v5945 = vld [vmem:[%s5938 + $0x28] sm:$0xff]
  %v5946 = vld [vmem:[%s5938 + $0x30] sm:$0xff]
  %v5947 = vld [vmem:[%s5938 + $0x38] sm:$0xf]
  %v5948 = vld [vmem:[%s5938 + $0x3c] sm:$0xff]
  %v5949 = vld [vmem:[%s5938 + $0x44] sm:$0xff]
  %v5950 = vld [vmem:[%s5938 + $0x4c] sm:$0xf]
  %v5951 = vld [vmem:[%s5938 + $0x50] sm:$0xff]
  %v5952 = vld [vmem:[%s5938 + $0x58] sm:$0xff]
  %v5953 = vld [vmem:[%s5938 + $0x60] sm:$0xf]
  %v5954 = vld [vmem:[%s5938 + $0x64] sm:$0xff]
  %v5955 = vld [vmem:[%s5938 + $0x6c] sm:$0xff]
  %v5956 = vld [vmem:[%s5938 + $0x74] sm:$0xf]
  %v5957 = vld [vmem:[%s5938 + $0x78] sm:$0xff]
  %v5958 = vld [vmem:[%s5938 + $0x80] sm:$0xff]
  %v5959 = vld [vmem:[%s5938 + $0x88] sm:$0xf]
  %v5960 = vld [vmem:[%s5938 + $0x8c] sm:$0xff]
  %v5961 = vld [vmem:[%s5938 + $0x94] sm:$0xff]
  %v5962 = vld [vmem:[%s5938 + $0x9c] sm:$0xf]
  %v5963 = vld [vmem:[%s5938 + $0xa0] sm:$0xff]
  %v5964 = vld [vmem:[%s5938 + $0xa8] sm:$0xff]
  %v5965 = vld [vmem:[%s5938 + $0xb0] sm:$0xf]
  %v5966 = vld [vmem:[%s5938 + $0xb4] sm:$0xff]
  %v5967 = vld [vmem:[%s5938 + $0xbc] sm:$0xff]
  %v5968 = vld [vmem:[%s5938 + $0xc4] sm:$0xf]
  %v5969 = vld [vmem:[%s5938 + $0xc8] sm:$0xff]
  %v5970 = vld [vmem:[%s5938 + $0xd0] sm:$0xff]
  %v5971 = vld [vmem:[%s5938 + $0xd8] sm:$0xf]
  %v5972 = vld [vmem:[%s5938 + $0xdc] sm:$0xff]
  %v5973 = vld [vmem:[%s5938 + $0xe4] sm:$0xff]
  %v5974 = vld [vmem:[%s5938 + $0xec] sm:$0xf]
  %v5975 = vld [vmem:[%s5938 + $0xf0] sm:$0xff]
  %v5976 = vld [vmem:[%s5938 + $0xf8] sm:$0xff]
  %v5977 = vld [vmem:[%s5938 + $0x100] sm:$0xf]
  %v5978 = vld [vmem:[%s5938 + $0x104] sm:$0xff]
  %v5979 = vld [vmem:[%s5938 + $0x10c] sm:$0xff]
  %v5980 = vld [vmem:[%s5938 + $0x114] sm:$0xf]
  %v5981 = vld [vmem:[%s5938 + $0x118] sm:$0xff]
  %v5982 = vld [vmem:[%s5938 + $0x120] sm:$0xff]
  %v5983 = vld [vmem:[%s5938 + $0x128] sm:$0xf]
  %v5984 = vld [vmem:[%s5938 + $0x12c] sm:$0xff]
  %v5985 = vld [vmem:[%s5938 + $0x134] sm:$0xff]
  %v5986 = vld [vmem:[%s5938 + $0x13c] sm:$0xf]
  %v5987 = vld [vmem:[%s5938 + $0x140] sm:$0xff]
  %v5988 = vld [vmem:[%s5938 + $0x148] sm:$0xff]
  %v5989 = vld [vmem:[%s5938 + $0x150] sm:$0xf]
  %v5990 = vld [vmem:[%s5938 + $0x154] sm:$0xff]
  %v5991 = vld [vmem:[%s5938 + $0x15c] sm:$0xff]
  %v5992 = vld [vmem:[%s5938 + $0x164] sm:$0xf]
  %v5993 = vld [vmem:[%s5938 + $0x168] sm:$0xff]
  %v5994 = vld [vmem:[%s5938 + $0x170] sm:$0xff]
  %v5995 = vld [vmem:[%s5938 + $0x178] sm:$0xf]
  %v5996 = vld [vmem:[%s5938 + $0x17c] sm:$0xff]
  %v5997 = vld [vmem:[%s5938 + $0x184] sm:$0xff]
  %v5998 = vld [vmem:[%s5938 + $0x18c] sm:$0xf]
  %v5999 = vpack.c.bf16 %v2252, %v2250
  %v6000 = vpack.c.bf16 %v2253, %v2251
  %v6061 = vunpack.c.l.b16 %v5939
  %v6062 = vunpack.c.h.b16 %v5939
  %v6063 = vunpack.c.l.b16 %v5940
  %v6064 = vunpack.c.h.b16 %v5940
  %v6065 = vunpack.c.l.b16 %v5941
  %v6066 = vunpack.c.l.b16 %v5942
  %v6067 = vunpack.c.h.b16 %v5942
  %v6068 = vunpack.c.l.b16 %v5943
  %v6069 = vunpack.c.h.b16 %v5943
  %v6070 = vunpack.c.l.b16 %v5944
  %v6071 = vunpack.c.l.b16 %v5945
  %v6072 = vunpack.c.h.b16 %v5945
  %v6073 = vunpack.c.l.b16 %v5946
  %v6074 = vunpack.c.h.b16 %v5946
  %v6075 = vunpack.c.l.b16 %v5947
  %v6076 = vunpack.c.l.b16 %v5948
  %v6077 = vunpack.c.h.b16 %v5948
  %v6078 = vunpack.c.l.b16 %v5949
  %v6079 = vunpack.c.h.b16 %v5949
  %v6080 = vunpack.c.l.b16 %v5950
  %v6081 = vunpack.c.l.b16 %v5951
  %v6082 = vunpack.c.h.b16 %v5951
  %v6083 = vunpack.c.l.b16 %v5952
  %v6084 = vunpack.c.h.b16 %v5952
  %v6085 = vunpack.c.l.b16 %v5953
  %v6086 = vunpack.c.l.b16 %v5954
  %v6087 = vunpack.c.h.b16 %v5954
  %v6088 = vunpack.c.l.b16 %v5955
  %v6089 = vunpack.c.h.b16 %v5955
  %v6090 = vunpack.c.l.b16 %v5956
  %v6091 = vunpack.c.l.b16 %v5957
  %v6092 = vunpack.c.h.b16 %v5957
  %v6093 = vunpack.c.l.b16 %v5958
  %v6094 = vunpack.c.h.b16 %v5958
  %v6095 = vunpack.c.l.b16 %v5959
  %v6096 = vunpack.c.l.b16 %v5960
  %v6097 = vunpack.c.h.b16 %v5960
  %v6098 = vunpack.c.l.b16 %v5961
  %v6099 = vunpack.c.h.b16 %v5961
  %v6100 = vunpack.c.l.b16 %v5962
  %v6101 = vunpack.c.l.b16 %v5963
  %v6102 = vunpack.c.h.b16 %v5963
  %v6103 = vunpack.c.l.b16 %v5964
  %v6104 = vunpack.c.h.b16 %v5964
  %v6105 = vunpack.c.l.b16 %v5965
  %v6106 = vunpack.c.l.b16 %v5966
  %v6107 = vunpack.c.h.b16 %v5966
  %v6108 = vunpack.c.l.b16 %v5967
  %v6109 = vunpack.c.h.b16 %v5967
  %v6110 = vunpack.c.l.b16 %v5968
  %v6111 = vunpack.c.l.b16 %v5969
  %v6112 = vunpack.c.h.b16 %v5969
  %v6113 = vunpack.c.l.b16 %v5970
  %v6114 = vunpack.c.h.b16 %v5970
  %v6115 = vunpack.c.l.b16 %v5971
  %v6116 = vunpack.c.l.b16 %v5972
  %v6117 = vunpack.c.h.b16 %v5972
  %v6118 = vunpack.c.l.b16 %v5973
  %v6119 = vunpack.c.h.b16 %v5973
  %v6120 = vunpack.c.l.b16 %v5974
  %v6121 = vunpack.c.l.b16 %v5975
  %v6122 = vunpack.c.h.b16 %v5975
  %v6123 = vunpack.c.l.b16 %v5976
  %v6124 = vunpack.c.h.b16 %v5976
  %v6125 = vunpack.c.l.b16 %v5977
  %v6126 = vunpack.c.l.b16 %v5978
  %v6127 = vunpack.c.h.b16 %v5978
  %v6128 = vunpack.c.l.b16 %v5979
  %v6129 = vunpack.c.h.b16 %v5979
  %v6130 = vunpack.c.l.b16 %v5980
  %v6131 = vunpack.c.l.b16 %v5981
  %v6132 = vunpack.c.h.b16 %v5981
  %v6133 = vunpack.c.l.b16 %v5982
  %v6134 = vunpack.c.h.b16 %v5982
  %v6135 = vunpack.c.l.b16 %v5983
  %v6136 = vunpack.c.l.b16 %v5984
  %v6137 = vunpack.c.h.b16 %v5984
  %v6138 = vunpack.c.l.b16 %v5985
  %v6139 = vunpack.c.h.b16 %v5985
  %v6140 = vunpack.c.l.b16 %v5986
  %v6141 = vunpack.c.l.b16 %v5987
  %v6142 = vunpack.c.h.b16 %v5987
  %v6143 = vunpack.c.l.b16 %v5988
  %v6144 = vunpack.c.h.b16 %v5988
  %v6145 = vunpack.c.l.b16 %v5989
  %v6146 = vunpack.c.l.b16 %v5990
  %v6147 = vunpack.c.h.b16 %v5990
  %v6148 = vunpack.c.l.b16 %v5991
  %v6149 = vunpack.c.h.b16 %v5991
  %v6150 = vunpack.c.l.b16 %v5992
  %v6151 = vunpack.c.l.b16 %v5993
  %v6152 = vunpack.c.h.b16 %v5993
  %v6153 = vunpack.c.l.b16 %v5994
  %v6154 = vunpack.c.h.b16 %v5994
  %v6155 = vunpack.c.l.b16 %v5995
  %v6156 = vunpack.c.l.b16 %v5996
  %v6157 = vunpack.c.h.b16 %v5996
  %v6158 = vunpack.c.l.b16 %v5997
  %v6159 = vunpack.c.h.b16 %v5997
  %v6160 = vunpack.c.l.b16 %v5998
  %v6161 = vpack.c.b16 %v6066, %v6061
  %v6162 = vpack.c.b16 %v6067, %v6062
  %v6163 = vpack.c.b16 %v6068, %v6063
  %v6164 = vpack.c.b16 %v6069, %v6064
  %v6165 = vpack.c.b16 %v6070, %v6065
  %v6166 = vpack.c.b16 %v6076, %v6071
  %v6167 = vpack.c.b16 %v6077, %v6072
  %v6168 = vpack.c.b16 %v6078, %v6073
  %v6169 = vpack.c.b16 %v6079, %v6074
  %v6170 = vpack.c.b16 %v6080, %v6075
  %v6171 = vpack.c.b16 %v6086, %v6081
  %v6172 = vpack.c.b16 %v6087, %v6082
  %v6173 = vpack.c.b16 %v6088, %v6083
  %v6174 = vpack.c.b16 %v6089, %v6084
  %v6175 = vpack.c.b16 %v6090, %v6085
  %v6176 = vpack.c.b16 %v6096, %v6091
  %v6177 = vpack.c.b16 %v6097, %v6092
  %v6178 = vpack.c.b16 %v6098, %v6093
  %v6179 = vpack.c.b16 %v6099, %v6094
  %v6180 = vpack.c.b16 %v6100, %v6095
  %v6181 = vpack.c.b16 %v6106, %v6101
  %v6182 = vpack.c.b16 %v6107, %v6102
  %v6183 = vpack.c.b16 %v6108, %v6103
  %v6184 = vpack.c.b16 %v6109, %v6104
  %v6185 = vpack.c.b16 %v6110, %v6105
  %v6186 = vpack.c.b16 %v6116, %v6111
  %v6187 = vpack.c.b16 %v6117, %v6112
  %v6188 = vpack.c.b16 %v6118, %v6113
  %v6189 = vpack.c.b16 %v6119, %v6114
  %v6190 = vpack.c.b16 %v6120, %v6115
  %v6191 = vpack.c.b16 %v6126, %v6121
  %v6192 = vpack.c.b16 %v6127, %v6122
  %v6193 = vpack.c.b16 %v6128, %v6123
  %v6194 = vpack.c.b16 %v6129, %v6124
  %v6195 = vpack.c.b16 %v6130, %v6125
  %v6196 = vpack.c.b16 %v6136, %v6131
  %v6197 = vpack.c.b16 %v6137, %v6132
  %v6198 = vpack.c.b16 %v6138, %v6133
  %v6199 = vpack.c.b16 %v6139, %v6134
  %v6200 = vpack.c.b16 %v6140, %v6135
  %v6201 = vpack.c.b16 %v6146, %v6141
  %v6202 = vpack.c.b16 %v6147, %v6142
  %v6203 = vpack.c.b16 %v6148, %v6143
  %v6204 = vpack.c.b16 %v6149, %v6144
  %v6205 = vpack.c.b16 %v6150, %v6145
  %v6206 = vpack.c.b16 %v6156, %v6151
  %v6207 = vpack.c.b16 %v6157, %v6152
  %v6208 = vpack.c.b16 %v6158, %v6153
  %v6209 = vpack.c.b16 %v6159, %v6154
  %v6210 = vpack.c.b16 %v6160, %v6155
  %v6262 = vsel %vm2639, %v6000, 0
  %6264 = vmatprep.subr.bf16.mxu0 %v6162
  %6265 = vmatpush1.bf16.msra.mxu0 %v6161
  %6266 = vmatprep.subr.bf16.mxu0 %v6167
  %6267 = vmatpush1.bf16.msra.mxu0 %v6166
  %6268 = vmatprep.subr.bf16.mxu0 %v6172
  %6269 = vmatpush1.bf16.msra.mxu0 %v6171
  %6270 = vmatprep.subr.bf16.mxu0 %v6177
  %6271 = vmatpush1.bf16.msra.mxu0 %v6176
  %6272 = vmatprep.subr.bf16.mxu0 %v6182
  %6273 = vmatpush1.bf16.msra.mxu0 %v6181
  %6274 = vmatprep.subr.bf16.mxu0 %v6187
  %6275 = vmatpush1.bf16.msra.mxu0 %v6186
  %6276 = vmatprep.subr.bf16.mxu0 %v6192
  %6277 = vmatpush1.bf16.msra.mxu0 %v6191
  %6278 = vmatprep.subr.bf16.mxu0 %v6197
  %6279 = vmatpush1.bf16.msra.mxu0 %v6196
  %6280 = vmatprep.subr.bf16.mxu0 %v6202
  %6281 = vmatpush1.bf16.msra.mxu0 %v6201
  %6282 = vmatprep.subr.bf16.mxu0 %v6207
  %6283 = vmatpush1.bf16.msra.mxu0 %v6206
  %6284 = vmatprep.subr.bf16.mxu0 0
  %6285 = vmatpush1.bf16.msra.mxu0 0
  %6286 = vmatprep.subr.bf16.mxu0 0
  %6287 = vmatpush1.bf16.msra.mxu0 0
  %6288 = vmatprep.subr.bf16.mxu0 0
  %6289 = vmatpush1.bf16.msra.mxu0 0
  %6290 = vmatprep.subr.bf16.mxu0 0
  %6291 = vmatpush1.bf16.msra.mxu0 0
  %6292 = vmatprep.subr.bf16.mxu0 0
  %6293 = vmatpush1.bf16.msra.mxu0 0
  %6294 = vmatprep.subr.bf16.mxu0 0
  %6295 = vmatpush1.bf16.msra.mxu0 0
  %6296 = vmatprep.mubr.bf16.mxu0 %v6262
  %6297 = vmatmul.mubr.bf16.gmra.mrb[0].mxu0 %v5999
  %v6298 = vpop.f32.mrb[0].mxu0
  %v6299 = vadd.f32 0.0, %v6298
  %v6300 = vpop.f32.mrb[0].mxu0
  %v6301 = vadd.f32 0.0, %v6300
  %v6302 = vpop.f32.mrb[0].mxu0
  %v6303 = vadd.f32 0.0, %v6302
  %v6304 = vpop.f32.mrb[0].mxu0
  %v6305 = vadd.f32 0.0, %v6304
  %6306 = vdwg.mxu0
  %6307 = vmatprep.subr.bf16.mxu0 %v6164
  %6308 = vmatpush1.bf16.msra.mxu0 %v6163
  %6309 = vmatprep.subr.bf16.mxu0 %v6169
  %6310 = vmatpush1.bf16.msra.mxu0 %v6168
  %6311 = vmatprep.subr.bf16.mxu0 %v6174
  %6312 = vmatpush1.bf16.msra.mxu0 %v6173
  %6313 = vmatprep.subr.bf16.mxu0 %v6179
  %6314 = vmatpush1.bf16.msra.mxu0 %v6178
  %6315 = vmatprep.subr.bf16.mxu0 %v6184
  %6316 = vmatpush1.bf16.msra.mxu0 %v6183
  %6317 = vmatprep.subr.bf16.mxu0 %v6189
  %6318 = vmatpush1.bf16.msra.mxu0 %v6188
  %6319 = vmatprep.subr.bf16.mxu0 %v6194
  %6320 = vmatpush1.bf16.msra.mxu0 %v6193
  %6321 = vmatprep.subr.bf16.mxu0 %v6199
  %6322 = vmatpush1.bf16.msra.mxu0 %v6198
  %6323 = vmatprep.subr.bf16.mxu0 %v6204
  %6324 = vmatpush1.bf16.msra.mxu0 %v6203
  %6325 = vmatprep.subr.bf16.mxu0 %v6209
  %6326 = vmatpush1.bf16.msra.mxu0 %v6208
  %6327 = vmatprep.subr.bf16.mxu0 0
  %6328 = vmatpush1.bf16.msra.mxu0 0
  %6329 = vmatprep.subr.bf16.mxu0 0
  %6330 = vmatpush1.bf16.msra.mxu0 0
  %6331 = vmatprep.subr.bf16.mxu0 0
  %6332 = vmatpush1.bf16.msra.mxu0 0
  %6333 = vmatprep.subr.bf16.mxu0 0
  %6334 = vmatpush1.bf16.msra.mxu0 0
  %6335 = vmatprep.subr.bf16.mxu0 0
  %6336 = vmatpush1.bf16.msra.mxu0 0
  %6337 = vmatprep.subr.bf16.mxu0 0
  %6338 = vmatpush1.bf16.msra.mxu0 0
  %6339 = vmatprep.mubr.bf16.mxu0 %v6262
  %6340 = vmatmul.mubr.bf16.gmra.mrb[0].mxu0 %v5999
  %v6341 = vpop.f32.mrb[0].mxu0
  %v6342 = vadd.f32 0.0, %v6341
  %v6343 = vpop.f32.mrb[0].mxu0
  %v6344 = vadd.f32 0.0, %v6343
  %v6345 = vpop.f32.mrb[0].mxu0
  %v6346 = vadd.f32 0.0, %v6345
  %v6347 = vpop.f32.mrb[0].mxu0
  %v6348 = vadd.f32 0.0, %v6347
  %6349 = vdwg.mxu0
  %6350 = vmatprep.subr.bf16.mxu0 0
  %6351 = vmatpush1.bf16.msra.mxu0 %v6165
  %6352 = vmatprep.subr.bf16.mxu0 0
  %6353 = vmatpush1.bf16.msra.mxu0 %v6170
  %6354 = vmatprep.subr.bf16.mxu0 0
  %6355 = vmatpush1.bf16.msra.mxu0 %v6175
  %6356 = vmatprep.subr.bf16.mxu0 0
  %6357 = vmatpush1.bf16.msra.mxu0 %v6180
  %6358 = vmatprep.subr.bf16.mxu0 0
  %6359 = vmatpush1.bf16.msra.mxu0 %v6185
  %6360 = vmatprep.subr.bf16.mxu0 0
  %6361 = vmatpush1.bf16.msra.mxu0 %v6190
  %6362 = vmatprep.subr.bf16.mxu0 0
  %6363 = vmatpush1.bf16.msra.mxu0 %v6195
  %6364 = vmatprep.subr.bf16.mxu0 0
  %6365 = vmatpush1.bf16.msra.mxu0 %v6200
  %6366 = vmatprep.subr.bf16.mxu0 0
  %6367 = vmatpush1.bf16.msra.mxu0 %v6205
  %6368 = vmatprep.subr.bf16.mxu0 0
  %6369 = vmatpush1.bf16.msra.mxu0 %v6210
  %6370 = vmatprep.subr.bf16.mxu0 0
  %6371 = vmatpush1.bf16.msra.mxu0 0
  %6372 = vmatprep.subr.bf16.mxu0 0
  %6373 = vmatpush1.bf16.msra.mxu0 0
  %6374 = vmatprep.subr.bf16.mxu0 0
  %6375 = vmatpush1.bf16.msra.mxu0 0
  %6376 = vmatprep.subr.bf16.mxu0 0
  %6377 = vmatpush1.bf16.msra.mxu0 0
  %6378 = vmatprep.subr.bf16.mxu0 0
  %6379 = vmatpush1.bf16.msra.mxu0 0
  %6380 = vmatprep.subr.bf16.mxu0 0
  %6381 = vmatpush1.bf16.msra.mxu0 0
  %6382 = vmatprep.mubr.bf16.mxu0 %v6262
  %6383 = vmatmul.mubr.bf16.gmra.mrb[0].mxu0 %v5999
  %v6384 = vpop.f32.mrb[0].mxu0
  %v6385 = vadd.f32 0.0, %v6384
  %v6386 = vpop.f32.mrb[0].mxu0
  %v6387 = vpop.f32.mrb[0].mxu0
  %v6388 = vadd.f32 0.0, %v6387
  %v6389 = vpop.f32.mrb[0].mxu0
  %6390 = vdwg.mxu0
  %v6391 = vadd.f32 %v5928, %v6299
  %v6392 = vadd.f32 %v5929, %v6301
  %v6393 = vadd.f32 %v5930, %v6342
  %v6394 = vadd.f32 %v5931, %v6344
  %v6395 = vadd.f32 %v5932, %v6385
  %v6396 = vadd.f32 %v5933, %v6303
  %v6397 = vadd.f32 %v5934, %v6305
  %v6398 = vadd.f32 %v5935, %v6346
  %v6399 = vadd.f32 %v5936, %v6348
  %v6400 = vadd.f32 %v5937, %v6388
  %v6401 = vld [vmem:[%s27] sm:$0x1f]
  %v6403 = vlaneseq
  %v6404 = vshrl.u32 %v6403, 7
  %v6405 = vsub.s32 0, %v6404
  %v6406 = vrot.slane %v6401, %v6405
  %v6407 = vlaneseq
  %v6408 = vshrl.u32 %v6407, 7
  %v6409 = vsub.s32 1, %v6408
  %v6410 = vrot.slane %v6401, %v6409
  %v6411 = vlaneseq
  %v6412 = vshrl.u32 %v6411, 7
  %v6413 = vsub.s32 2, %v6412
  %v6414 = vrot.slane %v6401, %v6413
  %v6415 = vlaneseq
  %v6416 = vshrl.u32 %v6415, 7
  %v6417 = vsub.s32 3, %v6416
  %v6418 = vrot.slane %v6401, %v6417
  %v6419 = vlaneseq
  %v6420 = vshrl.u32 %v6419, 7
  %v6421 = vsub.s32 4, %v6420
  %v6422 = vrot.slane %v6401, %v6421
  %v6428 = vadd.f32 %v6391, %v6406
  %v6429 = vadd.f32 %v6392, %v6410
  %v6430 = vadd.f32 %v6393, %v6414
  %v6431 = vadd.f32 %v6394, %v6418
  %v6432 = vadd.f32 %v6395, %v6422
  %v6433 = vadd.f32 %v6396, %v6406
  %v6434 = vadd.f32 %v6397, %v6410
  %v6435 = vadd.f32 %v6398, %v6414
  %v6436 = vadd.f32 %v6399, %v6418
  %v6437 = vadd.f32 %v6400, %v6422
  %v6438 = vmax.f32 %v6428, 0.0
  %v6439 = vmax.f32 %v6429, 0.0
  %v6440 = vmax.f32 %v6430, 0.0
  %v6441 = vmax.f32 %v6431, 0.0
  %v6442 = vmax.f32 %v6432, 0.0
  %v6443 = vmax.f32 %v6433, 0.0
  %v6444 = vmax.f32 %v6434, 0.0
  %v6445 = vmax.f32 %v6435, 0.0
  %v6446 = vmax.f32 %v6436, 0.0
  %v6447 = vmax.f32 %v6437, 0.0
  %v6448 = vld [vmem:[%s29] sm:$0xf]
  %v6449 = vld [vmem:[%s29 + $0x4] sm:$0xf]
  %v6450 = vld [vmem:[%s29 + $0x8] sm:$0xf]
  %v6451 = vld [vmem:[%s29 + $0xc] sm:$0xf]
  %v6452 = vld [vmem:[%s29 + $0x10] sm:$0xf]
  %v6453 = vld [vmem:[%s29 + $0x14] sm:$0xf]
  %v6454 = vld [vmem:[%s29 + $0x18] sm:$0xf]
  %v6455 = vld [vmem:[%s29 + $0x1c] sm:$0xf]
  %v6456 = vld [vmem:[%s29 + $0x20] sm:$0xf]
  %v6457 = vld [vmem:[%s29 + $0x24] sm:$0xf]
  %v6458 = vld [vmem:[%s29 + $0x28] sm:$0xf]
  %v6459 = vld [vmem:[%s29 + $0x2c] sm:$0xf]
  %v6460 = vld [vmem:[%s29 + $0x30] sm:$0xf]
  %v6461 = vld [vmem:[%s29 + $0x34] sm:$0xf]
  %v6462 = vld [vmem:[%s29 + $0x38] sm:$0xf]
  %v6463 = vld [vmem:[%s29 + $0x3c] sm:$0xf]
  %v6464 = vld [vmem:[%s29 + $0x40] sm:$0xf]
  %v6465 = vld [vmem:[%s29 + $0x44] sm:$0xf]
  %v6466 = vld [vmem:[%s29 + $0x48] sm:$0xf]
  %v6467 = vld [vmem:[%s29 + $0x4c] sm:$0xf]
  %v6468 = vld [vmem:[%s29 + $0x50] sm:$0xf]
  %v6469 = vld [vmem:[%s29 + $0x54] sm:$0xf]
  %v6470 = vld [vmem:[%s29 + $0x58] sm:$0xf]
  %v6471 = vld [vmem:[%s29 + $0x5c] sm:$0xf]
  %v6472 = vld [vmem:[%s29 + $0x60] sm:$0xf]
  %v6473 = vld [vmem:[%s29 + $0x64] sm:$0xf]
  %v6474 = vld [vmem:[%s29 + $0x68] sm:$0xf]
  %v6475 = vld [vmem:[%s29 + $0x6c] sm:$0xf]
  %v6476 = vld [vmem:[%s29 + $0x70] sm:$0xf]
  %v6477 = vld [vmem:[%s29 + $0x74] sm:$0xf]
  %v6478 = vld [vmem:[%s29 + $0x78] sm:$0xf]
  %v6479 = vld [vmem:[%s29 + $0x7c] sm:$0xf]
  %v6480 = vld [vmem:[%s29 + $0x80] sm:$0xf]
  %v6481 = vld [vmem:[%s29 + $0x84] sm:$0xf]
  %v6482 = vld [vmem:[%s29 + $0x88] sm:$0xf]
  %v6483 = vld [vmem:[%s29 + $0x8c] sm:$0xf]
  %v6484 = vld [vmem:[%s29 + $0x90] sm:$0xf]
  %v6485 = vld [vmem:[%s29 + $0x94] sm:$0xf]
  %v6486 = vld [vmem:[%s29 + $0x98] sm:$0xf]
  %v6487 = vld [vmem:[%s29 + $0x9c] sm:$0xf]
  %v6488 = vld [vmem:[%s29 + $0xa0] sm:$0xf]
  %v6489 = vld [vmem:[%s29 + $0xa4] sm:$0xf]
  %v6490 = vld [vmem:[%s29 + $0xa8] sm:$0xf]
  %v6491 = vld [vmem:[%s29 + $0xac] sm:$0xf]
  %v6492 = vld [vmem:[%s29 + $0xb0] sm:$0xf]
  %v6493 = vld [vmem:[%s29 + $0xb4] sm:$0xf]
  %v6494 = vld [vmem:[%s29 + $0xb8] sm:$0xf]
  %v6495 = vld [vmem:[%s29 + $0xbc] sm:$0xf]
  %v6496 = vld [vmem:[%s29 + $0xc0] sm:$0xf]
  %v6497 = vld [vmem:[%s29 + $0xc4] sm:$0xf]
  %v6498 = vld [vmem:[%s29 + $0xc8] sm:$0xf]
  %v6499 = vld [vmem:[%s29 + $0xcc] sm:$0xf]
  %v6500 = vld [vmem:[%s29 + $0xd0] sm:$0xf]
  %v6501 = vld [vmem:[%s29 + $0xd4] sm:$0xf]
  %v6502 = vld [vmem:[%s29 + $0xd8] sm:$0xf]
  %v6503 = vld [vmem:[%s29 + $0xdc] sm:$0xf]
  %v6504 = vld [vmem:[%s29 + $0xe0] sm:$0xf]
  %v6505 = vld [vmem:[%s29 + $0xe4] sm:$0xf]
  %v6506 = vld [vmem:[%s29 + $0xe8] sm:$0xf]
  %v6507 = vld [vmem:[%s29 + $0xec] sm:$0xf]
  %v6508 = vld [vmem:[%s29 + $0xf0] sm:$0xf]
  %v6509 = vld [vmem:[%s29 + $0xf4] sm:$0xf]
  %v6510 = vld [vmem:[%s29 + $0xf8] sm:$0xf]
  %v6511 = vld [vmem:[%s29 + $0xfc] sm:$0xf]
  %v6512 = vld [vmem:[%s29 + $0x100] sm:$0xf]
  %v6513 = vld [vmem:[%s29 + $0x104] sm:$0xf]
  %v6514 = vld [vmem:[%s29 + $0x108] sm:$0xf]
  %v6515 = vld [vmem:[%s29 + $0x10c] sm:$0xf]
  %v6516 = vld [vmem:[%s29 + $0x110] sm:$0xf]
  %v6517 = vld [vmem:[%s29 + $0x114] sm:$0xf]
  %v6518 = vld [vmem:[%s29 + $0x118] sm:$0xf]
  %v6519 = vld [vmem:[%s29 + $0x11c] sm:$0xf]
  %v6520 = vld [vmem:[%s29 + $0x120] sm:$0xf]
  %v6521 = vld [vmem:[%s29 + $0x124] sm:$0xf]
  %v6522 = vld [vmem:[%s29 + $0x128] sm:$0xf]
  %v6523 = vpack.c.bf16 %v6443, %v6438
  %v6524 = vpack.c.bf16 %v6444, %v6439
  %v6525 = vpack.c.bf16 %v6445, %v6440
  %v6526 = vpack.c.bf16 %v6446, %v6441
  %v6527 = vpack.c.bf16 %v6447, %v6442
  %v6528 = vld [vmem:[%s31] sm:$0x1]
  %v6530 = vlaneseq
  %v6531 = vshrl.u32 %v6530, 7
  %v6532 = vsub.s32 0, %v6531
  %v6533 = vrot.slane %v6528, %v6532
  %v6610 = vunpack.c.l.b16 %v6448
  %v6611 = vunpack.c.l.b16 %v6449
  %v6612 = vunpack.c.l.b16 %v6450
  %v6613 = vunpack.c.l.b16 %v6451
  %v6614 = vunpack.c.l.b16 %v6452
  %v6615 = vunpack.c.l.b16 %v6453
  %v6616 = vunpack.c.l.b16 %v6454
  %v6617 = vunpack.c.l.b16 %v6455
  %v6618 = vunpack.c.l.b16 %v6456
  %v6619 = vunpack.c.l.b16 %v6457
  %v6620 = vunpack.c.l.b16 %v6458
  %v6621 = vunpack.c.l.b16 %v6459
  %v6622 = vunpack.c.l.b16 %v6460
  %v6623 = vunpack.c.l.b16 %v6461
  %v6624 = vunpack.c.l.b16 %v6462
  %v6625 = vunpack.c.l.b16 %v6463
  %v6626 = vunpack.c.l.b16 %v6464
  %v6627 = vunpack.c.l.b16 %v6465
  %v6628 = vunpack.c.l.b16 %v6466
  %v6629 = vunpack.c.l.b16 %v6467
  %v6630 = vunpack.c.l.b16 %v6468
  %v6631 = vunpack.c.l.b16 %v6469
  %v6632 = vunpack.c.l.b16 %v6470
  %v6633 = vunpack.c.l.b16 %v6471
  %v6634 = vunpack.c.l.b16 %v6472
  %v6635 = vunpack.c.l.b16 %v6473
  %v6636 = vunpack.c.l.b16 %v6474
  %v6637 = vunpack.c.l.b16 %v6475
  %v6638 = vunpack.c.l.b16 %v6476
  %v6639 = vunpack.c.l.b16 %v6477
  %v6640 = vunpack.c.l.b16 %v6478
  %v6641 = vunpack.c.l.b16 %v6479
  %v6642 = vunpack.c.l.b16 %v6480
  %v6643 = vunpack.c.l.b16 %v6481
  %v6644 = vunpack.c.l.b16 %v6482
  %v6645 = vunpack.c.l.b16 %v6483
  %v6646 = vunpack.c.l.b16 %v6484
  %v6647 = vunpack.c.l.b16 %v6485
  %v6648 = vunpack.c.l.b16 %v6486
  %v6649 = vunpack.c.l.b16 %v6487
  %v6650 = vunpack.c.l.b16 %v6488
  %v6651 = vunpack.c.l.b16 %v6489
  %v6652 = vunpack.c.l.b16 %v6490
  %v6653 = vunpack.c.l.b16 %v6491
  %v6654 = vunpack.c.l.b16 %v6492
  %v6655 = vunpack.c.l.b16 %v6493
  %v6656 = vunpack.c.l.b16 %v6494
  %v6657 = vunpack.c.l.b16 %v6495
  %v6658 = vunpack.c.l.b16 %v6496
  %v6659 = vunpack.c.l.b16 %v6497
  %v6660 = vunpack.c.l.b16 %v6498
  %v6661 = vunpack.c.l.b16 %v6499
  %v6662 = vunpack.c.l.b16 %v6500
  %v6663 = vunpack.c.l.b16 %v6501
  %v6664 = vunpack.c.l.b16 %v6502
  %v6665 = vunpack.c.l.b16 %v6503
  %v6666 = vunpack.c.l.b16 %v6504
  %v6667 = vunpack.c.l.b16 %v6505
  %v6668 = vunpack.c.l.b16 %v6506
  %v6669 = vunpack.c.l.b16 %v6507
  %v6670 = vunpack.c.l.b16 %v6508
  %v6671 = vunpack.c.l.b16 %v6509
  %v6672 = vunpack.c.l.b16 %v6510
  %v6673 = vunpack.c.l.b16 %v6511
  %v6674 = vunpack.c.l.b16 %v6512
  %v6675 = vunpack.c.l.b16 %v6513
  %v6676 = vunpack.c.l.b16 %v6514
  %v6677 = vunpack.c.l.b16 %v6515
  %v6678 = vunpack.c.l.b16 %v6516
  %v6679 = vunpack.c.l.b16 %v6517
  %v6680 = vunpack.c.l.b16 %v6518
  %v6681 = vunpack.c.l.b16 %v6519
  %v6682 = vunpack.c.l.b16 %v6520
  %v6683 = vunpack.c.l.b16 %v6521
  %v6684 = vunpack.c.l.b16 %v6522
  %v6685 = vpack.c.b16 %v6611, %v6610
  %v6686 = vpack.c.b16 %v6613, %v6612
  %v6687 = vpack.c.b16 %v6615, %v6614
  %v6688 = vpack.c.b16 %v6617, %v6616
  %v6689 = vpack.c.b16 %v6619, %v6618
  %v6690 = vpack.c.b16 %v6621, %v6620
  %v6691 = vpack.c.b16 %v6623, %v6622
  %v6692 = vpack.c.b16 %v6625, %v6624
  %v6693 = vpack.c.b16 %v6627, %v6626
  %v6694 = vpack.c.b16 %v6629, %v6628
  %v6695 = vpack.c.b16 %v6631, %v6630
  %v6696 = vpack.c.b16 %v6633, %v6632
  %v6697 = vpack.c.b16 %v6635, %v6634
  %v6698 = vpack.c.b16 %v6637, %v6636
  %v6699 = vpack.c.b16 %v6639, %v6638
  %v6700 = vpack.c.b16 %v6641, %v6640
  %v6701 = vpack.c.b16 %v6643, %v6642
  %v6702 = vpack.c.b16 %v6645, %v6644
  %v6703 = vpack.c.b16 %v6647, %v6646
  %v6704 = vpack.c.b16 %v6649, %v6648
  %v6705 = vpack.c.b16 %v6651, %v6650
  %v6706 = vpack.c.b16 %v6653, %v6652
  %v6707 = vpack.c.b16 %v6655, %v6654
  %v6708 = vpack.c.b16 %v6657, %v6656
  %v6709 = vpack.c.b16 %v6659, %v6658
  %v6710 = vpack.c.b16 %v6661, %v6660
  %v6711 = vpack.c.b16 %v6663, %v6662
  %v6712 = vpack.c.b16 %v6665, %v6664
  %v6713 = vpack.c.b16 %v6667, %v6666
  %v6714 = vpack.c.b16 %v6669, %v6668
  %v6715 = vpack.c.b16 %v6671, %v6670
  %v6716 = vpack.c.b16 %v6673, %v6672
  %v6717 = vpack.c.b16 %v6675, %v6674
  %v6718 = vpack.c.b16 %v6677, %v6676
  %v6719 = vpack.c.b16 %v6679, %v6678
  %v6720 = vpack.c.b16 %v6681, %v6680
  %v6721 = vpack.c.b16 %v6683, %v6682
  %v6722 = vpack.c.b16 %v6684, %v6684
  %vm6760 = vcmask 719872
  %v6762 = vsel %vm6760, %v6527, 0
  %v6765 = vsel %vm1621, %v6722, 0
  %6767 = vmatprep.subr.bf16.mxu0 0
  %6768 = vmatpush1.bf16.msra.mxu0 %v6685
  %6769 = vmatprep.subr.bf16.mxu0 0
  %6770 = vmatpush1.bf16.msra.mxu0 %v6686
  %6771 = vmatprep.subr.bf16.mxu0 0
  %6772 = vmatpush1.bf16.msra.mxu0 %v6687
  %6773 = vmatprep.subr.bf16.mxu0 0
  %6774 = vmatpush1.bf16.msra.mxu0 %v6688
  %6775 = vmatprep.subr.bf16.mxu0 0
  %6776 = vmatpush1.bf16.msra.mxu0 %v6689
  %6777 = vmatprep.subr.bf16.mxu0 0
  %6778 = vmatpush1.bf16.msra.mxu0 %v6690
  %6779 = vmatprep.subr.bf16.mxu0 0
  %6780 = vmatpush1.bf16.msra.mxu0 %v6691
  %6781 = vmatprep.subr.bf16.mxu0 0
  %6782 = vmatpush1.bf16.msra.mxu0 %v6692
  %6783 = vmatprep.subr.bf16.mxu0 0
  %6784 = vmatpush1.bf16.msra.mxu0 %v6693
  %6785 = vmatprep.subr.bf16.mxu0 0
  %6786 = vmatpush1.bf16.msra.mxu0 %v6694
  %6787 = vmatprep.subr.bf16.mxu0 0
  %6788 = vmatpush1.bf16.msra.mxu0 %v6695
  %6789 = vmatprep.subr.bf16.mxu0 0
  %6790 = vmatpush1.bf16.msra.mxu0 %v6696
  %6791 = vmatprep.subr.bf16.mxu0 0
  %6792 = vmatpush1.bf16.msra.mxu0 %v6697
  %6793 = vmatprep.subr.bf16.mxu0 0
  %6794 = vmatpush1.bf16.msra.mxu0 %v6698
  %6795 = vmatprep.subr.bf16.mxu0 0
  %6796 = vmatpush1.bf16.msra.mxu0 %v6699
  %6797 = vmatprep.subr.bf16.mxu0 0
  %6798 = vmatpush1.bf16.msra.mxu0 %v6700
  %6799 = vmatprep.mubr.bf16.mxu0 %v6524
  %6800 = vmatmul.mubr.bf16.gmra.mrb[0].mxu0 %v6523
  %v6801 = vpop.f32.mrb[0].mxu0
  %v6802 = vadd.f32 %v6533, %v6801
  %v6803 = vpop.f32.mrb[0].mxu0
  %v6804 = vpop.f32.mrb[0].mxu0
  %v6805 = vadd.f32 %v6533, %v6804
  %v6806 = vpop.f32.mrb[0].mxu0
  %6807 = vdwg.mxu0
  %6808 = vmatprep.subr.bf16.mxu0 0
  %6809 = vmatpush1.bf16.msra.mxu0 %v6701
  %6810 = vmatprep.subr.bf16.mxu0 0
  %6811 = vmatpush1.bf16.msra.mxu0 %v6702
  %6812 = vmatprep.subr.bf16.mxu0 0
  %6813 = vmatpush1.bf16.msra.mxu0 %v6703
  %6814 = vmatprep.subr.bf16.mxu0 0
  %6815 = vmatpush1.bf16.msra.mxu0 %v6704
  %6816 = vmatprep.subr.bf16.mxu0 0
  %6817 = vmatpush1.bf16.msra.mxu0 %v6705
  %6818 = vmatprep.subr.bf16.mxu0 0
  %6819 = vmatpush1.bf16.msra.mxu0 %v6706
  %6820 = vmatprep.subr.bf16.mxu0 0
  %6821 = vmatpush1.bf16.msra.mxu0 %v6707
  %6822 = vmatprep.subr.bf16.mxu0 0
  %6823 = vmatpush1.bf16.msra.mxu0 %v6708
  %6824 = vmatprep.subr.bf16.mxu0 0
  %6825 = vmatpush1.bf16.msra.mxu0 %v6709
  %6826 = vmatprep.subr.bf16.mxu0 0
  %6827 = vmatpush1.bf16.msra.mxu0 %v6710
  %6828 = vmatprep.subr.bf16.mxu0 0
  %6829 = vmatpush1.bf16.msra.mxu0 %v6711
  %6830 = vmatprep.subr.bf16.mxu0 0
  %6831 = vmatpush1.bf16.msra.mxu0 %v6712
  %6832 = vmatprep.subr.bf16.mxu0 0
  %6833 = vmatpush1.bf16.msra.mxu0 %v6713
  %6834 = vmatprep.subr.bf16.mxu0 0
  %6835 = vmatpush1.bf16.msra.mxu0 %v6714
  %6836 = vmatprep.subr.bf16.mxu0 0
  %6837 = vmatpush1.bf16.msra.mxu0 %v6715
  %6838 = vmatprep.subr.bf16.mxu0 0
  %6839 = vmatpush1.bf16.msra.mxu0 %v6716
  %6840 = vmatprep.mubr.bf16.mxu0 %v6526
  %6841 = vmatmul.mubr.bf16.gmra.mrb[0].mxu0 %v6525
  %v6842 = vpop.f32.mrb[0].mxu0
  %v6843 = vadd.f32 %v6802, %v6842
  %v6844 = vpop.f32.mrb[0].mxu0
  %v6845 = vpop.f32.mrb[0].mxu0
  %v6846 = vadd.f32 %v6805, %v6845
  %v6847 = vpop.f32.mrb[0].mxu0
  %6848 = vdwg.mxu0
  %6849 = vmatprep.subr.bf16.mxu0 0
  %6850 = vmatpush1.bf16.msra.mxu0 %v6717
  %6851 = vmatprep.subr.bf16.mxu0 0
  %6852 = vmatpush1.bf16.msra.mxu0 %v6718
  %6853 = vmatprep.subr.bf16.mxu0 0
  %6854 = vmatpush1.bf16.msra.mxu0 %v6719
  %6855 = vmatprep.subr.bf16.mxu0 0
  %6856 = vmatpush1.bf16.msra.mxu0 %v6720
  %6857 = vmatprep.subr.bf16.mxu0 0
  %6858 = vmatpush1.bf16.msra.mxu0 %v6721
  %6859 = vmatprep.subr.bf16.mxu0 0
  %6860 = vmatpush1.bf16.msra.mxu0 %v6765
  %6861 = vmatprep.subr.bf16.mxu0 0
  %6862 = vmatpush1.bf16.msra.mxu0 0
  %6863 = vmatprep.subr.bf16.mxu0 0
  %6864 = vmatpush1.bf16.msra.mxu0 0
  %6865 = vmatprep.subr.bf16.mxu0 0
  %6866 = vmatpush1.bf16.msra.mxu0 0
  %6867 = vmatprep.subr.bf16.mxu0 0
  %6868 = vmatpush1.bf16.msra.mxu0 0
  %6869 = vmatprep.subr.bf16.mxu0 0
  %6870 = vmatpush1.bf16.msra.mxu0 0
  %6871 = vmatprep.subr.bf16.mxu0 0
  %6872 = vmatpush1.bf16.msra.mxu0 0
  %6873 = vmatprep.subr.bf16.mxu0 0
  %6874 = vmatpush1.bf16.msra.mxu0 0
  %6875 = vmatprep.subr.bf16.mxu0 0
  %6876 = vmatpush1.bf16.msra.mxu0 0
  %6877 = vmatprep.subr.bf16.mxu0 0
  %6878 = vmatpush1.bf16.msra.mxu0 0
  %6879 = vmatprep.subr.bf16.mxu0 0
  %6880 = vmatpush1.bf16.msra.mxu0 0
  %6881 = vmatprep.mubr.bf16.mxu0 0
  %6882 = vmatmul.mubr.bf16.gmra.mrb[0].mxu0 %v6762
  %v6883 = vpop.f32.mrb[0].mxu0
  %v6884 = vadd.f32 %v6843, %v6883
  %v6885 = vpop.f32.mrb[0].mxu0
  %v6886 = vpop.f32.mrb[0].mxu0
  %v6887 = vadd.f32 %v6846, %v6886
  %v6888 = vpop.f32.mrb[0].mxu0
  %6889 = vdwg.mxu0
  %v6890 = vmax.f32 %v6884, 0.0
  %v6891 = vmax.f32 %v6887, 0.0
  %v6892 = vld [vmem:[%s3] sm:$0xff]
  %v6893 = vld [vmem:[%s3 + $0x8] sm:$0xff]
  %v6894 = vld [vmem:[%s33] sm:$0xf]
  %v6895 = vld [vmem:[%s33 + $0x4] sm:$0xf]
  %v6896 = vld [vmem:[%s33 + $0x8] sm:$0xf]
  %v6897 = vld [vmem:[%s33 + $0xc] sm:$0x3]
  %v6898 = vpack.c.bf16 %v6893, %v6892
  %v6899 = vld [vmem:[%s35] sm:$0x1]
  %v6901 = vlaneseq
  %v6902 = vshrl.u32 %v6901, 7
  %v6903 = vsub.s32 0, %v6902
  %v6904 = vrot.slane %v6899, %v6903
  %v6910 = vunpack.c.l.b16 %v6894
  %v6911 = vunpack.c.l.b16 %v6895
  %v6912 = vunpack.c.l.b16 %v6896
  %v6913 = vunpack.c.l.b16 %v6897
  %v6914 = vpack.c.b16 %v6911, %v6910
  %v6915 = vpack.c.b16 %v6913, %v6912
  %vm6917 = vcmask 220160
  %v6919 = vsel %vm6917, %v6898, 0
  %vm6921 = vcmask 1044480
  %v6922 = vsel %vm6921, 4294967295, 65535
  %v6923 = vsel %vm450, %v6922, 0
  %v6925 = vand.u32 %v6915, %v6923
  %6927 = vmatprep.subr.bf16.mxu0 0
  %6928 = vmatpush1.bf16.msra.mxu0 %v6914
  %6929 = vmatprep.subr.bf16.mxu0 0
  %6930 = vmatpush1.bf16.msra.mxu0 %v6925
  %6931 = vmatprep.subr.bf16.mxu0 0
  %6932 = vmatpush1.bf16.msra.mxu0 0
  %6933 = vmatprep.subr.bf16.mxu0 0
  %6934 = vmatpush1.bf16.msra.mxu0 0
  %6935 = vmatprep.subr.bf16.mxu0 0
  %6936 = vmatpush1.bf16.msra.mxu0 0
  %6937 = vmatprep.subr.bf16.mxu0 0
  %6938 = vmatpush1.bf16.msra.mxu0 0
  %6939 = vmatprep.subr.bf16.mxu0 0
  %6940 = vmatpush1.bf16.msra.mxu0 0
  %6941 = vmatprep.subr.bf16.mxu0 0
  %6942 = vmatpush1.bf16.msra.mxu0 0
  %6943 = vmatprep.subr.bf16.mxu0 0
  %6944 = vmatpush1.bf16.msra.mxu0 0
  %6945 = vmatprep.subr.bf16.mxu0 0
  %6946 = vmatpush1.bf16.msra.mxu0 0
  %6947 = vmatprep.subr.bf16.mxu0 0
  %6948 = vmatpush1.bf16.msra.mxu0 0
  %6949 = vmatprep.subr.bf16.mxu0 0
  %6950 = vmatpush1.bf16.msra.mxu0 0
  %6951 = vmatprep.subr.bf16.mxu0 0
  %6952 = vmatpush1.bf16.msra.mxu0 0
  %6953 = vmatprep.subr.bf16.mxu0 0
  %6954 = vmatpush1.bf16.msra.mxu0 0
  %6955 = vmatprep.subr.bf16.mxu0 0
  %6956 = vmatpush1.bf16.msra.mxu0 0
  %6957 = vmatprep.subr.bf16.mxu0 0
  %6958 = vmatpush1.bf16.msra.mxu0 0
  %6959 = vmatprep.mubr.bf16.mxu0 0
  %6960 = vmatmul.mubr.bf16.gmra.mrb[0].mxu0 %v6919
  %v6961 = vpop.f32.mrb[0].mxu0
  %v6962 = vadd.f32 %v6904, %v6961
  %v6963 = vpop.f32.mrb[0].mxu0
  %v6964 = vpop.f32.mrb[0].mxu0
  %v6965 = vadd.f32 %v6904, %v6964
  %v6966 = vpop.f32.mrb[0].mxu0
  %6967 = vdwg.mxu0
  %v6968 = vmax.f32 %v6962, 0.0
  %v6969 = vmax.f32 %v6965, 0.0
  %v6970 = vld [vmem:[%s37] sm:$0xf]
  %v6971 = vld [vmem:[%s37 + $0x4] sm:$0xf]
  %v6972 = vld [vmem:[%s37 + $0x8] sm:$0xf]
  %v6973 = vld [vmem:[%s37 + $0xc] sm:$0x3]
  %v6974 = vpack.c.bf16 %v6969, %v6968
  %v6975 = vld [vmem:[%s39] sm:$0x1]
  %v6977 = vlaneseq
  %v6978 = vshrl.u32 %v6977, 7
  %v6979 = vsub.s32 0, %v6978
  %v6980 = vrot.slane %v6975, %v6979
  %v6986 = vunpack.c.l.b16 %v6970
  %v6987 = vunpack.c.l.b16 %v6971
  %v6988 = vunpack.c.l.b16 %v6972
  %v6989 = vunpack.c.l.b16 %v6973
  %v6990 = vpack.c.b16 %v6987, %v6986
  %v6991 = vpack.c.b16 %v6989, %v6988
  %v6994 = vsel %vm6917, %v6974, 0
  %v6997 = vand.u32 %v6991, %v6923
  %6999 = vmatprep.subr.bf16.mxu0 0
  %7000 = vmatpush1.bf16.msra.mxu0 %v6990
  %7001 = vmatprep.subr.bf16.mxu0 0
  %7002 = vmatpush1.bf16.msra.mxu0 %v6997
  %7003 = vmatprep.subr.bf16.mxu0 0
  %7004 = vmatpush1.bf16.msra.mxu0 0
  %7005 = vmatprep.subr.bf16.mxu0 0
  %7006 = vmatpush1.bf16.msra.mxu0 0
  %7007 = vmatprep.subr.bf16.mxu0 0
  %7008 = vmatpush1.bf16.msra.mxu0 0
  %7009 = vmatprep.subr.bf16.mxu0 0
  %7010 = vmatpush1.bf16.msra.mxu0 0
  %7011 = vmatprep.subr.bf16.mxu0 0
  %7012 = vmatpush1.bf16.msra.mxu0 0
  %7013 = vmatprep.subr.bf16.mxu0 0
  %7014 = vmatpush1.bf16.msra.mxu0 0
  %7015 = vmatprep.subr.bf16.mxu0 0
  %7016 = vmatpush1.bf16.msra.mxu0 0
  %7017 = vmatprep.subr.bf16.mxu0 0
  %7018 = vmatpush1.bf16.msra.mxu0 0
  %7019 = vmatprep.subr.bf16.mxu0 0
  %7020 = vmatpush1.bf16.msra.mxu0 0
  %7021 = vmatprep.subr.bf16.mxu0 0
  %7022 = vmatpush1.bf16.msra.mxu0 0
  %7023 = vmatprep.subr.bf16.mxu0 0
  %7024 = vmatpush1.bf16.msra.mxu0 0
  %7025 = vmatprep.subr.bf16.mxu0 0
  %7026 = vmatpush1.bf16.msra.mxu0 0
  %7027 = vmatprep.subr.bf16.mxu0 0
  %7028 = vmatpush1.bf16.msra.mxu0 0
  %7029 = vmatprep.subr.bf16.mxu0 0
  %7030 = vmatpush1.bf16.msra.mxu0 0
  %7031 = vmatprep.mubr.bf16.mxu0 0
  %7032 = vmatmul.mubr.bf16.gmra.mrb[0].mxu0 %v6994
  %v7033 = vpop.f32.mrb[0].mxu0
  %v7034 = vadd.f32 %v6980, %v7033
  %v7035 = vpop.f32.mrb[0].mxu0
  %v7036 = vpop.f32.mrb[0].mxu0
  %v7037 = vadd.f32 %v6980, %v7036
  %v7038 = vpop.f32.mrb[0].mxu0
  %7039 = vdwg.mxu0
  %v7040 = vmax.f32 %v7034, 0.0
  %v7041 = vmax.f32 %v7037, 0.0
  %v7042 = vld [vmem:[%s41] sm:$0xf]
  %v7043 = vld [vmem:[%s41 + $0x4] sm:$0xf]
  %v7044 = vld [vmem:[%s41 + $0x8] sm:$0x3]
  %v7045 = vpack.c.bf16 %v7041, %v7040
  %v7046 = vld [vmem:[%s43] sm:$0x1]
  %v7048 = vlaneseq
  %v7049 = vshrl.u32 %v7048, 7
  %v7050 = vsub.s32 0, %v7049
  %v7051 = vrot.slane %v7046, %v7050
  %v7056 = vunpack.c.l.b16 %v7042
  %v7057 = vunpack.c.l.b16 %v7043
  %v7058 = vunpack.c.l.b16 %v7044
  %v7059 = vpack.c.b16 %v7057, %v7056
  %v7060 = vpack.c.b16 %v7058, %v7058
  %vm7062 = vcmask 162816
  %v7064 = vsel %vm7062, %v7045, 0
  %v7067 = vsel %vm1020, %v7060, 0
  %7069 = vmatprep.subr.bf16.mxu0 0
  %7070 = vmatpush1.bf16.msra.mxu0 %v7059
  %7071 = vmatprep.subr.bf16.mxu0 0
  %7072 = vmatpush1.bf16.msra.mxu0 %v7067
  %7073 = vmatprep.subr.bf16.mxu0 0
  %7074 = vmatpush1.bf16.msra.mxu0 0
  %7075 = vmatprep.subr.bf16.mxu0 0
  %7076 = vmatpush1.bf16.msra.mxu0 0
  %7077 = vmatprep.subr.bf16.mxu0 0
  %7078 = vmatpush1.bf16.msra.mxu0 0
  %7079 = vmatprep.subr.bf16.mxu0 0
  %7080 = vmatpush1.bf16.msra.mxu0 0
  %7081 = vmatprep.subr.bf16.mxu0 0
  %7082 = vmatpush1.bf16.msra.mxu0 0
  %7083 = vmatprep.subr.bf16.mxu0 0
  %7084 = vmatpush1.bf16.msra.mxu0 0
  %7085 = vmatprep.subr.bf16.mxu0 0
  %7086 = vmatpush1.bf16.msra.mxu0 0
  %7087 = vmatprep.subr.bf16.mxu0 0
  %7088 = vmatpush1.bf16.msra.mxu0 0
  %7089 = vmatprep.subr.bf16.mxu0 0
  %7090 = vmatpush1.bf16.msra.mxu0 0
  %7091 = vmatprep.subr.bf16.mxu0 0
  %7092 = vmatpush1.bf16.msra.mxu0 0
  %7093 = vmatprep.subr.bf16.mxu0 0
  %7094 = vmatpush1.bf16.msra.mxu0 0
  %7095 = vmatprep.subr.bf16.mxu0 0
  %7096 = vmatpush1.bf16.msra.mxu0 0
  %7097 = vmatprep.subr.bf16.mxu0 0
  %7098 = vmatpush1.bf16.msra.mxu0 0
  %7099 = vmatprep.subr.bf16.mxu0 0
  %7100 = vmatpush1.bf16.msra.mxu0 0
  %7101 = vmatprep.mubr.bf16.mxu0 0
  %7102 = vmatmul.mubr.bf16.gmra.mrb[0].mxu0 %v7064
  %v7103 = vpop.f32.mrb[0].mxu0
  %v7104 = vadd.f32 %v7051, %v7103
  %v7105 = vpop.f32.mrb[0].mxu0
  %v7106 = vpop.f32.mrb[0].mxu0
  %v7107 = vadd.f32 %v7051, %v7106
  %v7108 = vpop.f32.mrb[0].mxu0
  %7109 = vdwg.mxu0
  %v7110 = vmax.f32 %v7104, 0.0
  %v7111 = vmax.f32 %v7107, 0.0
  %v7112 = vld [vmem:[%s45] sm:$0xf]
  %v7113 = vld [vmem:[%s45 + $0x4] sm:$0x3]
  %v7114 = vpack.c.bf16 %v7111, %v7110
  %v7115 = vld [vmem:[%s47] sm:$0xf]
  %v7116 = vld [vmem:[%s47 + $0x4] sm:$0xf]
  %v7117 = vld [vmem:[%s47 + $0x8] sm:$0xf]
  %v7118 = vld [vmem:[%s47 + $0xc] sm:$0xf]
  %v7119 = vld [vmem:[%s47 + $0x10] sm:$0xf]
  %v7120 = vld [vmem:[%s47 + $0x14] sm:$0xf]
  %v7121 = vld [vmem:[%s47 + $0x18] sm:$0xf]
  %v7122 = vld [vmem:[%s47 + $0x1c] sm:$0xf]
  %v7123 = vld [vmem:[%s47 + $0x20] sm:$0xf]
  %v7124 = vld [vmem:[%s47 + $0x24] sm:$0xf]
  %v7125 = vpack.c.bf16 %v6891, %v6890
  %v7136 = vunpack.c.l.b16 %v7115
  %v7137 = vunpack.c.l.b16 %v7116
  %v7138 = vunpack.c.l.b16 %v7117
  %v7139 = vunpack.c.l.b16 %v7118
  %v7140 = vunpack.c.l.b16 %v7119
  %v7141 = vunpack.c.l.b16 %v7120
  %v7142 = vunpack.c.l.b16 %v7121
  %v7143 = vunpack.c.l.b16 %v7122
  %v7144 = vunpack.c.l.b16 %v7123
  %v7145 = vunpack.c.l.b16 %v7124
  %v7146 = vpack.c.b16 %v7137, %v7136
  %v7147 = vpack.c.b16 %v7139, %v7138
  %v7148 = vpack.c.b16 %v7141, %v7140
  %v7149 = vpack.c.b16 %v7143, %v7142
  %v7150 = vpack.c.b16 %v7145, %v7144
  %vm7156 = vcmask 654336
  %v7158 = vsel %vm7156, %v7125, 0
  %7160 = vmatprep.subr.bf16.mxu0 0
  %7161 = vmatpush1.bf16.msra.mxu0 %v7146
  %7162 = vmatprep.subr.bf16.mxu0 0
  %7163 = vmatpush1.bf16.msra.mxu0 %v7147
  %7164 = vmatprep.subr.bf16.mxu0 0
  %7165 = vmatpush1.bf16.msra.mxu0 %v7148
  %7166 = vmatprep.subr.bf16.mxu0 0
  %7167 = vmatpush1.bf16.msra.mxu0 %v7149
  %7168 = vmatprep.subr.bf16.mxu0 0
  %7169 = vmatpush1.bf16.msra.mxu0 %v7150
  %7170 = vmatprep.subr.bf16.mxu0 0
  %7171 = vmatpush1.bf16.msra.mxu0 0
  %7172 = vmatprep.subr.bf16.mxu0 0
  %7173 = vmatpush1.bf16.msra.mxu0 0
  %7174 = vmatprep.subr.bf16.mxu0 0
  %7175 = vmatpush1.bf16.msra.mxu0 0
  %7176 = vmatprep.subr.bf16.mxu0 0
  %7177 = vmatpush1.bf16.msra.mxu0 0
  %7178 = vmatprep.subr.bf16.mxu0 0
  %7179 = vmatpush1.bf16.msra.mxu0 0
  %7180 = vmatprep.subr.bf16.mxu0 0
  %7181 = vmatpush1.bf16.msra.mxu0 0
  %7182 = vmatprep.subr.bf16.mxu0 0
  %7183 = vmatpush1.bf16.msra.mxu0 0
  %7184 = vmatprep.subr.bf16.mxu0 0
  %7185 = vmatpush1.bf16.msra.mxu0 0
  %7186 = vmatprep.subr.bf16.mxu0 0
  %7187 = vmatpush1.bf16.msra.mxu0 0
  %7188 = vmatprep.subr.bf16.mxu0 0
  %7189 = vmatpush1.bf16.msra.mxu0 0
  %7190 = vmatprep.subr.bf16.mxu0 0
  %7191 = vmatpush1.bf16.msra.mxu0 0
  %7192 = vmatprep.mubr.bf16.mxu0 0
  %7193 = vmatmul.mubr.bf16.gmra.mrb[0].mxu0 %v7158
  %v7194 = vpop.f32.mrb[0].mxu0
  %v7195 = vadd.f32 0.0, %v7194
  %v7196 = vpop.f32.mrb[0].mxu0
  %v7197 = vpop.f32.mrb[0].mxu0
  %v7198 = vadd.f32 0.0, %v7197
  %v7199 = vpop.f32.mrb[0].mxu0
  %7200 = vdwg.mxu0
  %v7203 = vunpack.c.l.b16 %v7112
  %v7204 = vunpack.c.l.b16 %v7113
  %v7205 = vpack.c.b16 %v7204, %v7203
  %vm7206 = vcmask 97280
  %v7208 = vsel %vm7206, %v7114, 0
  %v7211 = vsel %vm450, %v7205, 0
  %7213 = vmatprep.subr.bf16.mxu0 0
  %7214 = vmatpush1.bf16.msra.mxu0 %v7211
  %7215 = vmatprep.subr.bf16.mxu0 0
  %7216 = vmatpush1.bf16.msra.mxu0 0
  %7217 = vmatprep.subr.bf16.mxu0 0
  %7218 = vmatpush1.bf16.msra.mxu0 0
  %7219 = vmatprep.subr.bf16.mxu0 0
  %7220 = vmatpush1.bf16.msra.mxu0 0
  %7221 = vmatprep.subr.bf16.mxu0 0
  %7222 = vmatpush1.bf16.msra.mxu0 0
  %7223 = vmatprep.subr.bf16.mxu0 0
  %7224 = vmatpush1.bf16.msra.mxu0 0
  %7225 = vmatprep.subr.bf16.mxu0 0
  %7226 = vmatpush1.bf16.msra.mxu0 0
  %7227 = vmatprep.subr.bf16.mxu0 0
  %7228 = vmatpush1.bf16.msra.mxu0 0
  %7229 = vmatprep.subr.bf16.mxu0 0
  %7230 = vmatpush1.bf16.msra.mxu0 0
  %7231 = vmatprep.subr.bf16.mxu0 0
  %7232 = vmatpush1.bf16.msra.mxu0 0
  %7233 = vmatprep.subr.bf16.mxu0 0
  %7234 = vmatpush1.bf16.msra.mxu0 0
  %7235 = vmatprep.subr.bf16.mxu0 0
  %7236 = vmatpush1.bf16.msra.mxu0 0
  %7237 = vmatprep.subr.bf16.mxu0 0
  %7238 = vmatpush1.bf16.msra.mxu0 0
  %7239 = vmatprep.subr.bf16.mxu0 0
  %7240 = vmatpush1.bf16.msra.mxu0 0
  %7241 = vmatprep.subr.bf16.mxu0 0
  %7242 = vmatpush1.bf16.msra.mxu0 0
  %7243 = vmatprep.subr.bf16.mxu0 0
  %7244 = vmatpush1.bf16.msra.mxu0 0
  %7245 = vmatprep.mubr.bf16.mxu0 0
  %7246 = vmatmul.mubr.bf16.gmra.mrb[0].mxu0 %v7208
  %v7247 = vpop.f32.mrb[0].mxu0
  %v7248 = vadd.f32 %v7195, %v7247
  %v7249 = vpop.f32.mrb[0].mxu0
  %v7250 = vpop.f32.mrb[0].mxu0
  %v7251 = vadd.f32 %v7198, %v7250
  %v7252 = vpop.f32.mrb[0].mxu0
  %7253 = vdwg.mxu0
  %v7254 = vld [vmem:[%s49] sm:$0x1]
  %v7256 = vlaneseq
  %v7257 = vshrl.u32 %v7256, 7
  %v7258 = vsub.s32 0, %v7257
  %v7259 = vrot.slane %v7254, %v7258
  %v7261 = vadd.f32 %v7248, %v7259
  %v7262 = vadd.f32 %v7251, %v7259
  %v7263 = vmax.f32 %v7261, 0.0
  %v7264 = vmax.f32 %v7262, 0.0
  %v7265 = vld [vmem:[%s51] sm:$0xf]
  %v7266 = vld [vmem:[%s51 + $0x4] sm:$0xf]
  %v7267 = vld [vmem:[%s51 + $0x8] sm:$0xf]
  %v7268 = vld [vmem:[%s51 + $0xc] sm:$0xf]
  %v7269 = vld [vmem:[%s51 + $0x10] sm:$0xf]
  %v7270 = vld [vmem:[%s51 + $0x14] sm:$0xf]
  %v7271 = vld [vmem:[%s51 + $0x18] sm:$0xf]
  %v7272 = vld [vmem:[%s51 + $0x1c] sm:$0x3]
  %v7273 = vpack.c.bf16 %v7264, %v7263
  %v7274 = vld [vmem:[%s53] sm:$0x1]
  %v7276 = vlaneseq
  %v7277 = vshrl.u32 %v7276, 7
  %v7278 = vsub.s32 0, %v7277
  %v7279 = vrot.slane %v7274, %v7278
  %v7289 = vunpack.c.l.b16 %v7265
  %v7290 = vunpack.c.l.b16 %v7266
  %v7291 = vunpack.c.l.b16 %v7267
  %v7292 = vunpack.c.l.b16 %v7268
  %v7293 = vunpack.c.l.b16 %v7269
  %v7294 = vunpack.c.l.b16 %v7270
  %v7295 = vunpack.c.l.b16 %v7271
  %v7296 = vunpack.c.l.b16 %v7272
  %v7297 = vpack.c.b16 %v7290, %v7289
  %v7298 = vpack.c.b16 %v7292, %v7291
  %v7299 = vpack.c.b16 %v7294, %v7293
  %v7300 = vpack.c.b16 %v7296, %v7295
  %v7305 = vsel %vm401, %v7273, 0
  %v7308 = vsel %vm450, %v7300, 0
  %7310 = vmatprep.subr.bf16.mxu0 0
  %7311 = vmatpush1.bf16.msra.mxu0 %v7297
  %7312 = vmatprep.subr.bf16.mxu0 0
  %7313 = vmatpush1.bf16.msra.mxu0 %v7298
  %7314 = vmatprep.subr.bf16.mxu0 0
  %7315 = vmatpush1.bf16.msra.mxu0 %v7299
  %7316 = vmatprep.subr.bf16.mxu0 0
  %7317 = vmatpush1.bf16.msra.mxu0 %v7308
  %7318 = vmatprep.subr.bf16.mxu0 0
  %7319 = vmatpush1.bf16.msra.mxu0 0
  %7320 = vmatprep.subr.bf16.mxu0 0
  %7321 = vmatpush1.bf16.msra.mxu0 0
  %7322 = vmatprep.subr.bf16.mxu0 0
  %7323 = vmatpush1.bf16.msra.mxu0 0
  %7324 = vmatprep.subr.bf16.mxu0 0
  %7325 = vmatpush1.bf16.msra.mxu0 0
  %7326 = vmatprep.subr.bf16.mxu0 0
  %7327 = vmatpush1.bf16.msra.mxu0 0
  %7328 = vmatprep.subr.bf16.mxu0 0
  %7329 = vmatpush1.bf16.msra.mxu0 0
  %7330 = vmatprep.subr.bf16.mxu0 0
  %7331 = vmatpush1.bf16.msra.mxu0 0
  %7332 = vmatprep.subr.bf16.mxu0 0
  %7333 = vmatpush1.bf16.msra.mxu0 0
  %7334 = vmatprep.subr.bf16.mxu0 0
  %7335 = vmatpush1.bf16.msra.mxu0 0
  %7336 = vmatprep.subr.bf16.mxu0 0
  %7337 = vmatpush1.bf16.msra.mxu0 0
  %7338 = vmatprep.subr.bf16.mxu0 0
  %7339 = vmatpush1.bf16.msra.mxu0 0
  %7340 = vmatprep.subr.bf16.mxu0 0
  %7341 = vmatpush1.bf16.msra.mxu0 0
  %7342 = vmatprep.mubr.bf16.mxu0 0
  %7343 = vmatmul.mubr.bf16.gmra.mrb[0].mxu0 %v7305
  %v7344 = vpop.f32.mrb[0].mxu0
  %v7345 = vadd.f32 %v7279, %v7344
  %v7346 = vpop.f32.mrb[0].mxu0
  %v7347 = vpop.f32.mrb[0].mxu0
  %v7348 = vadd.f32 %v7279, %v7347
  %v7349 = vpop.f32.mrb[0].mxu0
  %7350 = vdwg.mxu0
  %v7351 = vmax.f32 %v7345, 0.0
  %v7352 = vmax.f32 %v7348, 0.0
  %v7353 = vld [vmem:[%s55] sm:$0xf]
  %v7354 = vld [vmem:[%s55 + $0x4] sm:$0xf]
  %v7355 = vld [vmem:[%s55 + $0x8] sm:$0xf]
  %v7356 = vld [vmem:[%s55 + $0xc] sm:$0x7]
  %v7357 = vpack.c.bf16 %v7352, %v7351
  %v7358 = vld [vmem:[%s57] sm:$0x1]
  %v7360 = vlaneseq
  %v7361 = vshrl.u32 %v7360, 7
  %v7362 = vsub.s32 0, %v7361
  %v7363 = vrot.slane %v7358, %v7362
  %v7369 = vunpack.c.l.b16 %v7353
  %v7370 = vunpack.c.l.b16 %v7354
  %v7371 = vunpack.c.l.b16 %v7355
  %v7372 = vunpack.c.l.b16 %v7356
  %v7373 = vpack.c.b16 %v7370, %v7369
  %v7374 = vpack.c.b16 %v7372, %v7371
  %vm7376 = vcmask 244736
  %v7378 = vsel %vm7376, %v7357, 0
  %vm7380 = vcmask 1046528
  %v7382 = vsel %vm7380, %v7374, 0
  %7384 = vmatprep.subr.bf16.mxu0 0
  %7385 = vmatpush1.bf16.msra.mxu0 %v7373
  %7386 = vmatprep.subr.bf16.mxu0 0
  %7387 = vmatpush1.bf16.msra.mxu0 %v7382
  %7388 = vmatprep.subr.bf16.mxu0 0
  %7389 = vmatpush1.bf16.msra.mxu0 0
  %7390 = vmatprep.subr.bf16.mxu0 0
  %7391 = vmatpush1.bf16.msra.mxu0 0
  %7392 = vmatprep.subr.bf16.mxu0 0
  %7393 = vmatpush1.bf16.msra.mxu0 0
  %7394 = vmatprep.subr.bf16.mxu0 0
  %7395 = vmatpush1.bf16.msra.mxu0 0
  %7396 = vmatprep.subr.bf16.mxu0 0
  %7397 = vmatpush1.bf16.msra.mxu0 0
  %7398 = vmatprep.subr.bf16.mxu0 0
  %7399 = vmatpush1.bf16.msra.mxu0 0
  %7400 = vmatprep.subr.bf16.mxu0 0
  %7401 = vmatpush1.bf16.msra.mxu0 0
  %7402 = vmatprep.subr.bf16.mxu0 0
  %7403 = vmatpush1.bf16.msra.mxu0 0
  %7404 = vmatprep.subr.bf16.mxu0 0
  %7405 = vmatpush1.bf16.msra.mxu0 0
  %7406 = vmatprep.subr.bf16.mxu0 0
  %7407 = vmatpush1.bf16.msra.mxu0 0
  %7408 = vmatprep.subr.bf16.mxu0 0
  %7409 = vmatpush1.bf16.msra.mxu0 0
  %7410 = vmatprep.subr.bf16.mxu0 0
  %7411 = vmatpush1.bf16.msra.mxu0 0
  %7412 = vmatprep.subr.bf16.mxu0 0
  %7413 = vmatpush1.bf16.msra.mxu0 0
  %7414 = vmatprep.subr.bf16.mxu0 0
  %7415 = vmatpush1.bf16.msra.mxu0 0
  %7416 = vmatprep.mubr.bf16.mxu0 0
  %7417 = vmatmul.mubr.bf16.gmra.mrb[0].mxu0 %v7378
  %v7418 = vpop.f32.mrb[0].mxu0
  %v7419 = vadd.f32 %v7363, %v7418
  %v7420 = vpop.f32.mrb[0].mxu0
  %v7421 = vpop.f32.mrb[0].mxu0
  %v7422 = vadd.f32 %v7363, %v7421
  %v7423 = vpop.f32.mrb[0].mxu0
  %7424 = vdwg.mxu0
  %v7425 = vmax.f32 %v7419, 0.0
  %v7426 = vmax.f32 %v7422, 0.0
  %v7427 = vld [vmem:[%s59] sm:$0xf]
  %v7428 = vld [vmem:[%s59 + $0x4] sm:$0xf]
  %v7429 = vld [vmem:[%s59 + $0x8] sm:$0x3]
  %v7430 = vpack.c.bf16 %v7426, %v7425
  %v7431 = vld [vmem:[%s61] sm:$0x1]
  %v7433 = vlaneseq
  %v7434 = vshrl.u32 %v7433, 7
  %v7435 = vsub.s32 0, %v7434
  %v7436 = vrot.slane %v7431, %v7435
  %v7441 = vunpack.c.l.b16 %v7427
  %v7442 = vunpack.c.l.b16 %v7428
  %v7443 = vunpack.c.l.b16 %v7429
  %v7444 = vpack.c.b16 %v7442, %v7441
  %v7445 = vpack.c.b16 %v7443, %v7443
  %v7448 = vsel %vm7062, %v7430, 0
  %v7451 = vsel %vm1020, %v7445, 0
  %7453 = vmatprep.subr.bf16.mxu0 0
  %7454 = vmatpush1.bf16.msra.mxu0 %v7444
  %7455 = vmatprep.subr.bf16.mxu0 0
  %7456 = vmatpush1.bf16.msra.mxu0 %v7451
  %7457 = vmatprep.subr.bf16.mxu0 0
  %7458 = vmatpush1.bf16.msra.mxu0 0
  %7459 = vmatprep.subr.bf16.mxu0 0
  %7460 = vmatpush1.bf16.msra.mxu0 0
  %7461 = vmatprep.subr.bf16.mxu0 0
  %7462 = vmatpush1.bf16.msra.mxu0 0
  %7463 = vmatprep.subr.bf16.mxu0 0
  %7464 = vmatpush1.bf16.msra.mxu0 0
  %7465 = vmatprep.subr.bf16.mxu0 0
  %7466 = vmatpush1.bf16.msra.mxu0 0
  %7467 = vmatprep.subr.bf16.mxu0 0
  %7468 = vmatpush1.bf16.msra.mxu0 0
  %7469 = vmatprep.subr.bf16.mxu0 0
  %7470 = vmatpush1.bf16.msra.mxu0 0
  %7471 = vmatprep.subr.bf16.mxu0 0
  %7472 = vmatpush1.bf16.msra.mxu0 0
  %7473 = vmatprep.subr.bf16.mxu0 0
  %7474 = vmatpush1.bf16.msra.mxu0 0
  %7475 = vmatprep.subr.bf16.mxu0 0
  %7476 = vmatpush1.bf16.msra.mxu0 0
  %7477 = vmatprep.subr.bf16.mxu0 0
  %7478 = vmatpush1.bf16.msra.mxu0 0
  %7479 = vmatprep.subr.bf16.mxu0 0
  %7480 = vmatpush1.bf16.msra.mxu0 0
  %7481 = vmatprep.subr.bf16.mxu0 0
  %7482 = vmatpush1.bf16.msra.mxu0 0
  %7483 = vmatprep.subr.bf16.mxu0 0
  %7484 = vmatpush1.bf16.msra.mxu0 0
  %7485 = vmatprep.mubr.bf16.mxu0 0
  %7486 = vmatmul.mubr.bf16.gmra.mrb[0].mxu0 %v7448
  %v7487 = vpop.f32.mrb[0].mxu0
  %v7488 = vadd.f32 %v7436, %v7487
  %v7489 = vpop.f32.mrb[0].mxu0
  %v7490 = vpop.f32.mrb[0].mxu0
  %v7491 = vadd.f32 %v7436, %v7490
  %v7492 = vpop.f32.mrb[0].mxu0
  %7493 = vdwg.mxu0
  %v7494 = vmax.f32 %v7488, 0.0
  %v7495 = vmax.f32 %v7491, 0.0
  %v7496 = vld [vmem:[%s63] sm:$0xf]
  %v7497 = vpack.c.bf16 %v7495, %v7494
  %v7498 = vld [vmem:[%s5] sm:$0xff]
  %v7499 = vld [vmem:[%s5 + $0x8] sm:$0xff]
  %v7500 = vld [vmem:[%s65] sm:$0x1]
  %v7501 = vpack.c.bf16 %v7499, %v7498
  %vm7502 = vcmask 15360
  %v7504 = vsel %vm7502, %v7501, 0
  %vm7506 = vcmask 1040384
  %v7508 = vsel %vm7506, %v7500, 0
  %7510 = vmatprep.subr.bf16.mxu0 0
  %7511 = vmatpush1.bf16.msra.mxu0 %v7508
  %7512 = vmatprep.subr.bf16.mxu0 0
  %7513 = vmatpush1.bf16.msra.mxu0 0
  %7514 = vmatprep.subr.bf16.mxu0 0
  %7515 = vmatpush1.bf16.msra.mxu0 0
  %7516 = vmatprep.subr.bf16.mxu0 0
  %7517 = vmatpush1.bf16.msra.mxu0 0
  %7518 = vmatprep.subr.bf16.mxu0 0
  %7519 = vmatpush1.bf16.msra.mxu0 0
  %7520 = vmatprep.subr.bf16.mxu0 0
  %7521 = vmatpush1.bf16.msra.mxu0 0
  %7522 = vmatprep.subr.bf16.mxu0 0
  %7523 = vmatpush1.bf16.msra.mxu0 0
  %7524 = vmatprep.subr.bf16.mxu0 0
  %7525 = vmatpush1.bf16.msra.mxu0 0
  %7526 = vmatprep.subr.bf16.mxu0 0
  %7527 = vmatpush1.bf16.msra.mxu0 0
  %7528 = vmatprep.subr.bf16.mxu0 0
  %7529 = vmatpush1.bf16.msra.mxu0 0
  %7530 = vmatprep.subr.bf16.mxu0 0
  %7531 = vmatpush1.bf16.msra.mxu0 0
  %7532 = vmatprep.subr.bf16.mxu0 0
  %7533 = vmatpush1.bf16.msra.mxu0 0
  %7534 = vmatprep.subr.bf16.mxu0 0
  %7535 = vmatpush1.bf16.msra.mxu0 0
  %7536 = vmatprep.subr.bf16.mxu0 0
  %7537 = vmatpush1.bf16.msra.mxu0 0
  %7538 = vmatprep.subr.bf16.mxu0 0
  %7539 = vmatpush1.bf16.msra.mxu0 0
  %7540 = vmatprep.subr.bf16.mxu0 0
  %7541 = vmatpush1.bf16.msra.mxu0 0
  %7542 = vmatprep.mubr.bf16.mxu0 0
  %7543 = vmatmul.mubr.bf16.gmra.mrb[0].mxu0 %v7504
  %v7544 = vpop.f32.mrb[0].mxu0
  %v7545 = vadd.f32 0.0, %v7544
  %v7546 = vpop.f32.mrb[0].mxu0
  %v7547 = vpop.f32.mrb[0].mxu0
  %v7548 = vadd.f32 0.0, %v7547
  %v7549 = vpop.f32.mrb[0].mxu0
  %7550 = vdwg.mxu0
  %vm7551 = vcmask 56320
  %v7553 = vsel %vm7551, %v7497, 0
  %vm7555 = vcmask 1042432
  %v7556 = vsel %vm7555, 4294967295, 65535
  %v7557 = vsel %vm1621, %v7556, 0
  %v7559 = vand.u32 %v7496, %v7557
  %7561 = vmatprep.subr.bf16.mxu0 0
  %7562 = vmatpush1.bf16.msra.mxu0 %v7559
  %7563 = vmatprep.subr.bf16.mxu0 0
  %7564 = vmatpush1.bf16.msra.mxu0 0
  %7565 = vmatprep.subr.bf16.mxu0 0
  %7566 = vmatpush1.bf16.msra.mxu0 0
  %7567 = vmatprep.subr.bf16.mxu0 0
  %7568 = vmatpush1.bf16.msra.mxu0 0
  %7569 = vmatprep.subr.bf16.mxu0 0
  %7570 = vmatpush1.bf16.msra.mxu0 0
  %7571 = vmatprep.subr.bf16.mxu0 0
  %7572 = vmatpush1.bf16.msra.mxu0 0
  %7573 = vmatprep.subr.bf16.mxu0 0
  %7574 = vmatpush1.bf16.msra.mxu0 0
  %7575 = vmatprep.subr.bf16.mxu0 0
  %7576 = vmatpush1.bf16.msra.mxu0 0
  %7577 = vmatprep.subr.bf16.mxu0 0
  %7578 = vmatpush1.bf16.msra.mxu0 0
  %7579 = vmatprep.subr.bf16.mxu0 0
  %7580 = vmatpush1.bf16.msra.mxu0 0
  %7581 = vmatprep.subr.bf16.mxu0 0
  %7582 = vmatpush1.bf16.msra.mxu0 0
  %7583 = vmatprep.subr.bf16.mxu0 0
  %7584 = vmatpush1.bf16.msra.mxu0 0
  %7585 = vmatprep.subr.bf16.mxu0 0
  %7586 = vmatpush1.bf16.msra.mxu0 0
  %7587 = vmatprep.subr.bf16.mxu0 0
  %7588 = vmatpush1.bf16.msra.mxu0 0
  %7589 = vmatprep.subr.bf16.mxu0 0
  %7590 = vmatpush1.bf16.msra.mxu0 0
  %7591 = vmatprep.subr.bf16.mxu0 0
  %7592 = vmatpush1.bf16.msra.mxu0 0
  %7593 = vmatprep.mubr.bf16.mxu0 0
  %7594 = vmatmul.mubr.bf16.gmra.mrb[0].mxu0 %v7553
  %v7595 = vpop.f32.mrb[0].mxu0
  %v7596 = vadd.f32 %v7545, %v7595
  %v7597 = vpop.f32.mrb[0].mxu0
  %v7598 = vpop.f32.mrb[0].mxu0
  %v7599 = vadd.f32 %v7548, %v7598
  %v7600 = vpop.f32.mrb[0].mxu0
  %7601 = vdwg.mxu0
  %v7602 = vld [vmem:[%s67] sm:$0x1]
  %v7604 = vlaneseq
  %v7605 = vshrl.u32 %v7604, 7
  %v7606 = vsub.s32 0, %v7605
  %v7607 = vrot.slane %v7602, %v7606
  %v7609 = vadd.f32 %v7596, %v7607
  %v7610 = vadd.f32 %v7599, %v7607
  %v7611 = vmax.f32 %v7609, 0.0
  %v7612 = vmax.f32 %v7610, 0.0
  %v7613 = vld [vmem:[%s69] sm:$0x7]
  %v7614 = vpack.c.bf16 %v7612, %v7611
  %v7615 = vld [vmem:[%s71] sm:$0x1]
  %v7617 = vlaneseq
  %v7618 = vshrl.u32 %v7617, 7
  %v7619 = vsub.s32 0, %v7618
  %v7620 = vrot.slane %v7615, %v7619
  %vm7622 = vcmask 48128
  %v7624 = vsel %vm7622, %v7614, 0
  %v7627 = vsel %vm7555, %v7613, 0
  %7629 = vmatprep.subr.bf16.mxu0 0
  %7630 = vmatpush1.bf16.msra.mxu0 %v7627
  %7631 = vmatprep.subr.bf16.mxu0 0
  %7632 = vmatpush1.bf16.msra.mxu0 0
  %7633 = vmatprep.subr.bf16.mxu0 0
  %7634 = vmatpush1.bf16.msra.mxu0 0
  %7635 = vmatprep.subr.bf16.mxu0 0
  %7636 = vmatpush1.bf16.msra.mxu0 0
  %7637 = vmatprep.subr.bf16.mxu0 0
  %7638 = vmatpush1.bf16.msra.mxu0 0
  %7639 = vmatprep.subr.bf16.mxu0 0
  %7640 = vmatpush1.bf16.msra.mxu0 0
  %7641 = vmatprep.subr.bf16.mxu0 0
  %7642 = vmatpush1.bf16.msra.mxu0 0
  %7643 = vmatprep.subr.bf16.mxu0 0
  %7644 = vmatpush1.bf16.msra.mxu0 0
  %7645 = vmatprep.subr.bf16.mxu0 0
  %7646 = vmatpush1.bf16.msra.mxu0 0
  %7647 = vmatprep.subr.bf16.mxu0 0
  %7648 = vmatpush1.bf16.msra.mxu0 0
  %7649 = vmatprep.subr.bf16.mxu0 0
  %7650 = vmatpush1.bf16.msra.mxu0 0
  %7651 = vmatprep.subr.bf16.mxu0 0
  %7652 = vmatpush1.bf16.msra.mxu0 0
  %7653 = vmatprep.subr.bf16.mxu0 0
  %7654 = vmatpush1.bf16.msra.mxu0 0
  %7655 = vmatprep.subr.bf16.mxu0 0
  %7656 = vmatpush1.bf16.msra.mxu0 0
  %7657 = vmatprep.subr.bf16.mxu0 0
  %7658 = vmatpush1.bf16.msra.mxu0 0
  %7659 = vmatprep.subr.bf16.mxu0 0
  %7660 = vmatpush1.bf16.msra.mxu0 0
  %7661 = vmatprep.mubr.bf16.mxu0 0
  %7662 = vmatmul.mubr.bf16.gmra.mrb[0].mxu0 %v7624
  %v7663 = vpop.f32.mrb[0].mxu0
  %v7664 = vadd.f32 %v7620, %v7663
  %v7665 = vpop.f32.mrb[0].mxu0
  %v7666 = vpop.f32.mrb[0].mxu0
  %v7667 = vadd.f32 %v7620, %v7666
  %v7668 = vpop.f32.mrb[0].mxu0
  %7669 = vdwg.mxu0
  %v7670 = vmax.f32 %v7664, 0.0
  %v7671 = vmax.f32 %v7667, 0.0
  %vm7672 = vcmask 23552
  %7673 = vst.msk [vmem:[%s73] sm:$0xff] %vm7672, %v7670
  %7674 = vst.msk [vmem:[%s73 + $0x8] sm:$0xff] %vm7672, %v7671
  // Predicated region
  $region146: #{dqn_t1_forward.1} parent=0 // pred_check
    _
  $region147: #{dqn_t1_forward.1} parent=0 // pred_check_branch
    %7676 = sbr.rel (0) target = $region149
  $region148: #{dqn_t1_forward.1} parent=0 // pred_region
    _
  $region149: #{dqn_t1_forward.1} parent=0 // pred_fallthru
    _
  // Predicated region
  $region150: #{dqn_t1_forward.1} parent=0 // pred_check
    _
  $region151: #{dqn_t1_forward.1} parent=0 // pred_check_branch
    %7678 = sbr.rel (0) target = $region153
  $region152: #{dqn_t1_forward.1} parent=0 // pred_region
    _
  $region153: #{dqn_t1_forward.1} parent=0 // pred_fallthru
    _

</llo_original>
